<compile_context>
chip_gen: v6e
topology: v6e:2x2x1
jax: 0.10.0
libtpu: 0.0.40
codegen_flags: <defaults>
</compile_context>

<pallas_src>
import functools

import jax
import jax.numpy as jnp
import numpy as np
from jax import lax
from jax.experimental import pallas as pl
from jax.experimental.pallas import tpu as pltpu

_PAD_NEG = -1e30  # finite "-inf": excluded by the maxpool, safe through the MXU


# ----------------------------------------------------------------------------
# Fused inception-block kernel
# ----------------------------------------------------------------------------
def _inception_kernel(xp_ref, gap_ref,
                      w123_ref, b123_ref,
                      w2b_ref, b2b_ref,
                      w3b_ref, b3b_ref,
                      w4_ref, b4_ref,
                      o_ref, pad_ref,
                      *, H, Wp, p, M0, c1, c2a, c3a):
    f32 = jnp.float32
    Lv = H * Wp                    # pitched spatial width of every output row
    base = Wp + p                  # xp column holding image pixel (0, 0)
    c2b = w2b_ref.shape[1]
    c3b = w3b_ref.shape[1]
    c4 = w4_ref.shape[0]

    # Zero ONLY the margins of the conv scratch (they provide the vertical /
    # horizontal zero padding of the 3x3 and 5x5 convs).  The body
    # [M0, M0 + Lv) is fully overwritten below each step.
    nrows = pad_ref.shape[0]
    M1 = pad_ref.shape[1] - M0 - Lv
    pad_ref[:, 0:M0] = jnp.zeros((nrows, M0), pad_ref.dtype)
    pad_ref[:, M0 + Lv:M0 + Lv + M1] = jnp.zeros((nrows, M1), pad_ref.dtype)

    x0 = xp_ref[0]                 # (Cin, (H+3)*Wp) pitched input, pads = -1e30
    gap = gap_ref[...]             # (1, Lv): 1.0 at payload cols, 0.0 at pads

    # ---- branches 1/2/3 first stage: ONE fused 1x1 conv (+folded BN) + ReLU --
    rhs = x0[:, base:base + Lv]                         # (Cin, Lv) pitched view
    acc = jnp.dot(w123_ref[...], rhs, preferred_element_type=f32)
    acc = jnp.maximum(acc + b123_ref[...], 0.0)
    y1 = acc[0:c1]
    # Zero the pad columns so they act as exact zero padding for the KxK convs.
    t2 = (acc[c1:c1 + c2a] * gap).astype(pad_ref.dtype)
    t3 = (acc[c1 + c2a:c1 + c2a + c3a] * gap).astype(pad_ref.dtype)
    o_ref[0, 0:c1, :] = y1.astype(o_ref.dtype)

    # ---- branch 4: 3x3 maxpool (stride 1, pad 1) -> 1x1 conv + ReLU ----------
    # The -1e30 pads in xp act as -inf, so no masks are needed; junk values in
    # the pad columns of the result are discarded by the wrapper's final slice.
    pooled = None
    for dy in (-1, 0, 1):
        for dx in (-1, 0, 1):
            s = dy * Wp + dx
            v = x0[:, base + s:base + s + Lv]
            pooled = v if pooled is None else jnp.maximum(pooled, v)
    y4 = jnp.dot(w4_ref[...], pooled, preferred_element_type=f32)
    y4 = jnp.maximum(y4 + b4_ref[...], 0.0)
    o_ref[0, c1 + c2b + c3b:c1 + c2b + c3b + c4, :] = y4.astype(o_ref.dtype)

    # ---- branches 2/3 second stage: KxK conv = K*K accumulated matmuls over
    # shifted views of the pitched scratch (no im2col materialization).
    def kxk(t, w_ref, b_ref, K, cmid):
        ph = K // 2
        pad_ref[0:cmid, M0:M0 + Lv] = t          # body write only (never margins)
        acc_k = None
        tap = 0
        for dy in range(-ph, ph + 1):
            for dx in range(-ph, ph + 1):
                s = dy * Wp + dx
                v = pad_ref[0:cmid, M0 + s:M0 + s + Lv]
                c = jnp.dot(w_ref[tap], v, preferred_element_type=f32)
                acc_k = c if acc_k is None else acc_k + c
                tap += 1
        return jnp.maximum(acc_k + b_ref[...], 0.0)

    y2 = kxk(t2, w2b_ref, b2b_ref, 3, c2a)
    o_ref[0, c1:c1 + c2b, :] = y2.astype(o_ref.dtype)
    y3 = kxk(t3, w3b_ref, b3b_ref, 5, c3a)
    o_ref[0, c1 + c2b:c1 + c2b + c3b, :] = y3.astype(o_ref.dtype)


# ----------------------------------------------------------------------------
# Wrapper (NCHW in -> NCHW out)
# ----------------------------------------------------------------------------
def inception_forward(x_nchw, kp, out_dtype=jnp.float32):
    N, Cin, H, W = x_nchw.shape
    p = 2                                        # half-width of the 5x5 kernel
    cdt = kp["w1"].dtype                         # compute dtype (f32 or bf16)

    # Row pitch: W + 2p, rounded up (when cheap) so H*Wp is a multiple of 128
    # -> lane-dense, unmasked output stores.
    Wp0 = W + 2 * p
    step = 128 // int(np.gcd(H, 128))
    Wp = -(-Wp0 // step) * step
    if Wp > max(Wp0 + 4, int(Wp0 * 1.3)):
        Wp = Wp0
    Lv = H * Wp                                  # pitched spatial width
    Lxp = (H + 3) * Wp                           # pitched input width (w/ margins)
    M0 = -(-(p * Wp + p) // 128) * 128           # top scratch margin (aligned body)
    M1 = p * Wp + p                              # bottom scratch margin
    P = M0 + Lv + M1

    # Pitched input: each row padded to Wp columns with -1e30, plus one -1e30
    # margin row above and two below (handles the largest positive pool shift).
    xp = jnp.pad(x_nchw.astype(cdt),
                 ((0, 0), (0, 0), (1, 2), (p, Wp - W - p)),
                 constant_values=_PAD_NEG).reshape(N, Cin, Lxp)

    # 1.0 at payload columns, 0.0 at pad columns of a pitched row.
    lane = np.arange(Lv, dtype=np.int64) % Wp
    gapmask = jnp.asarray((lane < W).astype(np.float32).reshape(1, Lv))

    # ---- stack / pad weights (all tiny ops) ----------------------------------
    c1 = kp["w1"].shape[0]
    c2a, c3a = kp["w2a"].shape[0], kp["w3a"].shape[0]
    c2b, c3b = kp["w2b"].shape[1], kp["w3b"].shape[1]
    c4 = kp["w4"].shape[0]
    ctot = c1 + c2b + c3b + c4

    sub = 16 if cdt == jnp.bfloat16 else 8       # sublane multiple
    c2a_p = -(-c2a // sub) * sub
    c3a_p = -(-c3a // sub) * sub
    cmid_max = max(c2a_p, c3a_p)

    def padrows(w, b, cp):
        c = w.shape[0]
        return (jnp.pad(w, ((0, cp - c), (0, 0))),
                jnp.pad(b, ((0, cp - c), (0, 0))))

    w2a_p, b2a_p = padrows(kp["w2a"], kp["b2a"], c2a_p)
    w3a_p, b3a_p = padrows(kp["w3a"], kp["b3a"], c3a_p)
    w123 = jnp.concatenate([kp["w1"], w2a_p, w3a_p], axis=0)   # (c1+c2a_p+c3a_p, Cin)
    b123 = jnp.concatenate([kp["b1"], b2a_p, b3a_p], axis=0)
    w2b = jnp.pad(kp["w2b"], ((0, 0), (0, 0), (0, c2a_p - c2a)))   # (9,  c2b, c2a_p)
    w3b = jnp.pad(kp["w3b"], ((0, 0), (0, 0), (0, c3a_p - c3a)))   # (25, c3b, c3a_p)

    # Explicit VMEM budget (generous; v5e's scoped default is only 16 MiB).
    bsz = jnp.dtype(cdt).itemsize
    est = (Cin * Lxp * bsz * 2
           + ctot * Lv * jnp.dtype(out_dtype).itemsize * 2
           + cmid_max * P * bsz
           + (c1 + c2a_p + c3a_p + c2b + c3b + Cin) * Lv * 4
           + 2 * (w123.size + w2b.size + w3b.size + kp["w4"].size) * bsz
           + (1 << 20))
    vmem_limit = int(min(64 << 20, max(32 << 20, 2 * est)))

    def rep(shape):
        return pl.BlockSpec(shape, lambda n: (0,) * len(shape))

    kernel = functools.partial(_inception_kernel, H=H, Wp=Wp, p=p, M0=M0,
                               c1=c1, c2a=c2a_p, c3a=c3a_p)
    out = pl.pallas_call(
        kernel,
        out_shape=jax.ShapeDtypeStruct((N, ctot, Lv), out_dtype),
        grid=(N,),
        in_specs=[
            pl.BlockSpec((1, Cin, Lxp), lambda n: (n, 0, 0)),
            rep((1, Lv)),
            rep(w123.shape), rep(b123.shape),
            rep(w2b.shape), rep(kp["b2b"].shape),
            rep(w3b.shape), rep(kp["b3b"].shape),
            rep(kp["w4"].shape), rep(kp["b4"].shape),
        ],
        out_specs=pl.BlockSpec((1, ctot, Lv), lambda n: (n, 0, 0)),
        scratch_shapes=[pltpu.VMEM((cmid_max, P), cdt)],
        compiler_params=pltpu.CompilerParams(
            dimension_semantics=("parallel",),
            vmem_limit_bytes=vmem_limit),
    )(xp, gapmask, w123, b123, w2b, kp["b2b"], w3b, kp["b3b"],
      kp["w4"], kp["b4"])

    # Drop the pitch-pad columns (free reshape + cheap slice).
    return out.reshape(N, ctot, H, Wp)[:, :, :, :W]


# ----------------------------------------------------------------------------
# Parameter construction (deterministic), BN folding, kernel-layout prep
# ----------------------------------------------------------------------------
def _fold_bn(w, b, gamma, beta, mean, var, eps=1e-5):
    scale = gamma / jnp.sqrt(var + eps)          # per-out-channel
    return w * scale, b * scale + (beta - mean * scale)


def _make_conv(key, k, cin, cout):
    kw, kb = jax.random.split(key)
    if k == 1:
        w = 0.1 * jax.random.normal(kw, (cin, cout), jnp.float32)
    else:
        w = 0.1 * jax.random.normal(kw, (k, k, cin, cout), jnp.float32)  # HWIO
    b = 0.05 * jax.random.normal(kb, (cout,), jnp.float32)
    return w, b


def _make_bn(key, c):
    k1, k2, k3, k4 = jax.random.split(key, 4)
    gamma = 1.0 + 0.1 * jax.random.normal(k1, (c,), jnp.float32)
    beta = 0.05 * jax.random.normal(k2, (c,), jnp.float32)
    mean = 0.05 * jax.random.normal(k3, (c,), jnp.float32)
    var = 1.0 + 0.1 * jnp.abs(jax.random.normal(k4, (c,), jnp.float32))
    return gamma, beta, mean, var


def make_params(key, in_features, branch_1, branch_2, branch_3, branch_4):
    ks = jax.random.split(key, 12)
    p = {}
    w, b = _make_conv(ks[0], 1, in_features, branch_1[0])
    p["b1"] = _fold_bn(w, b, *_make_bn(ks[1], branch_1[0]))
    w, b = _make_conv(ks[2], 1, in_features, branch_2[0])
    p["b2a"] = _fold_bn(w, b, *_make_bn(ks[3], branch_2[0]))
    p["b2b"] = _make_conv(ks[4], 3, branch_2[0], branch_2[1])      # no BN
    w, b = _make_conv(ks[5], 1, in_features, branch_3[0])
    p["b3a"] = _fold_bn(w, b, *_make_bn(ks[6], branch_3[0]))
    w, b = _make_conv(ks[7], 5, branch_3[0], branch_3[1])
    p["b3b"] = _fold_bn(w, b, *_make_bn(ks[8], branch_3[1]))
    w, b = _make_conv(ks[9], 1, in_features, branch_4[0])
    p["b4"] = _fold_bn(w, b, *_make_bn(ks[10], branch_4[0]))
    return p


def prepare_kernel_params(params, compute_dtype=jnp.float32):
    """Reshape BN-folded weights into the kernel's (Cout, contraction) layouts."""
    def c1x1(w, b):                       # (Cin, Cout) -> (Cout, Cin)
        return w.T.astype(compute_dtype), b.reshape(-1, 1).astype(jnp.float32)

    def ckxk(w, b):                       # HWIO (K,K,Cin,Cout) -> (K*K, Cout, Cin)
        K, _, cin, cout = w.shape
        wt = jnp.transpose(w, (0, 1, 3, 2)).reshape(K * K, cout, cin)
        return wt.astype(compute_dtype), b.reshape(-1, 1).astype(jnp.float32)

    kp = {}
    kp["w1"], kp["b1"] = c1x1(*params["b1"])
    kp["w2a"], kp["b2a"] = c1x1(*params["b2a"])
    kp["w2b"], kp["b2b"] = ckxk(*params["b2b"])
    kp["w3a"], kp["b3a"] = c1x1(*params["b3a"])
    kp["w3b"], kp["b3b"] = ckxk(*params["b3b"])
    kp["w4"], kp["b4"] = c1x1(*params["b4"])
    return kp


# ----------------------------------------------------------------------------
# Pure-JAX reference (high precision) for correctness checking
# ----------------------------------------------------------------------------
def _ref_conv1x1(x, w, b):
    y = jnp.einsum("nhwc,cf->nhwf", x, w, precision=lax.Precision.HIGHEST)
    return jnp.maximum(y + b, 0.0)


def _ref_convk(x, w_hwio, b):
    pad = w_hwio.shape[0] // 2
    y = lax.conv_general_dilated(
        x, w_hwio, window_strides=(1, 1),
        padding=[(pad, pad), (pad, pad)],
        dimension_numbers=("NHWC", "HWIO", "NHWC"),
        precision=lax.Precision.HIGHEST)
    return jnp.maximum(y + b, 0.0)


def _ref_maxpool(x):
    return lax.reduce_window(x, -jnp.inf, lax.max,
                             (1, 3, 3, 1), (1, 1, 1, 1),
                             padding=[(0, 0), (1, 1), (1, 1), (0, 0)])


def inception_reference(x_nchw, params):
    x = jnp.transpose(x_nchw, (0, 2, 3, 1))
    y1 = _ref_conv1x1(x, *params["b1"])
    y2 = _ref_convk(_ref_conv1x1(x, *params["b2a"]), *params["b2b"])
    y3 = _ref_convk(_ref_conv1x1(x, *params["b3a"]), *params["b3b"])
    y4 = _ref_conv1x1(_ref_maxpool(x), *params["b4"])
    out = jnp.concatenate([y1, y2, y3, y4], axis=-1)
    return jnp.transpose(out, (0, 3, 1, 2))


if __name__ == "__main__":
    key = jax.random.PRNGKey(0)
    k_x, k_p = jax.random.split(key)

    in_features = 4
    branch_1, branch_2, branch_3, branch_4 = [8], [4, 8], [4, 8], [8]
    N, H, W = 2, 16, 16

    x = jax.random.normal(k_x, (N, in_features, H, W), jnp.float32)  # NCHW
    params = make_params(k_p, in_features, branch_1, branch_2, branch_3, branch_4)

    expected_c = branch_1[0] + branch_2[1] + branch_3[1] + branch_4[0]
    ref = jax.block_until_ready(inception_reference(x, params))
    assert ref.shape == (N, expected_c, H, W), ref.shape

    fwd = jax.jit(inception_forward)

    # float32 operands
    kp32 = prepare_kernel_params(params, jnp.float32)
    out32 = jax.block_until_ready(fwd(x, kp32))
    assert out32.shape == (N, expected_c, H, W), out32.shape
    np.testing.assert_allclose(np.asarray(out32), np.asarray(ref),
                               rtol=2e-3, atol=2e-3)

    # bf16 operands (MXU-friendly on v6e/v7x), f32 accumulation + epilogue
    kpbf = prepare_kernel_params(params, jnp.bfloat16)
    outbf = jax.block_until_ready(fwd(x, kpbf))
    np.testing.assert_allclose(np.asarray(outbf), np.asarray(ref),
                               rtol=5e-2, atol=5e-2)

    print("KERNEL_OK")
</pallas_src>

<mosaic_0001>
module attributes {stable_mosaic.version = 11 : i64} {
  func.func @_inception_kernel(%arg0: i32, %arg1: memref<1x4x456xf32, #tpu.memory_space<vmem>>, %arg2: memref<1x384xf32, #tpu.memory_space<vmem>>, %arg3: memref<24x4xf32, #tpu.memory_space<vmem>>, %arg4: memref<24x1xf32, #tpu.memory_space<vmem>>, %arg5: memref<9x8x8xf32, #tpu.memory_space<vmem>>, %arg6: memref<8x1xf32, #tpu.memory_space<vmem>>, %arg7: memref<25x8x8xf32, #tpu.memory_space<vmem>>, %arg8: memref<8x1xf32, #tpu.memory_space<vmem>>, %arg9: memref<8x4xf32, #tpu.memory_space<vmem>>, %arg10: memref<8x1xf32, #tpu.memory_space<vmem>>, %arg11: memref<1x32x384xf32, #tpu.memory_space<vmem>>, %arg12: memref<8x562xf32, #tpu.memory_space<vmem>>) attributes {dimension_semantics = [#tpu.dimension_semantics<parallel>], iteration_bounds = array<i64: 2>, scalar_prefetch = 0 : i64, scratch_operands = 1 : i64, tpu.core_type = #tpu.core_type<tc>, window_params = [{transform_indices = @transform_0, window_bounds = array<i64: 1, 4, 456>}, {pipeline_mode = #tpu.pipeline_mode<synchronous>, transform_indices = @transform_1, window_bounds = array<i64: 1, 384>}, {pipeline_mode = #tpu.pipeline_mode<synchronous>, transform_indices = @transform_2, window_bounds = array<i64: 24, 4>}, {pipeline_mode = #tpu.pipeline_mode<synchronous>, transform_indices = @transform_3, window_bounds = array<i64: 24, 1>}, {pipeline_mode = #tpu.pipeline_mode<synchronous>, transform_indices = @transform_4, window_bounds = array<i64: 9, 8, 8>}, {pipeline_mode = #tpu.pipeline_mode<synchronous>, transform_indices = @transform_5, window_bounds = array<i64: 8, 1>}, {pipeline_mode = #tpu.pipeline_mode<synchronous>, transform_indices = @transform_6, window_bounds = array<i64: 25, 8, 8>}, {pipeline_mode = #tpu.pipeline_mode<synchronous>, transform_indices = @transform_7, window_bounds = array<i64: 8, 1>}, {pipeline_mode = #tpu.pipeline_mode<synchronous>, transform_indices = @transform_8, window_bounds = array<i64: 8, 4>}, {pipeline_mode = #tpu.pipeline_mode<synchronous>, transform_indices = @transform_9, window_bounds = array<i64: 8, 1>}, {transform_indices = @transform_10, window_bounds = array<i64: 1, 32, 384>}]} {
    %cst = arith.constant 0.000000e+00 : f32
    %0 = vector.broadcast %cst : f32 to vector<8x128xf32>
    %c0 = arith.constant 0 : index
    %c0_0 = arith.constant 0 : index
    %1 = vector.load %arg12[%c0, %c0_0] : memref<8x562xf32, #tpu.memory_space<vmem>>, vector<8x128xf32>
    tpu.vector_store %arg12[%c0, %c0_0], %0 {strides = array<i32>} : memref<8x562xf32, #tpu.memory_space<vmem>>, vector<8x128xf32>,
    %cst_1 = arith.constant 0.000000e+00 : f32
    %2 = vector.broadcast %cst_1 : f32 to vector<8x50xf32>
    %c0_2 = arith.constant 0 : index
    %c512 = arith.constant 512 : index
    %3 = vector.load %arg12[%c0_2, %c512] : memref<8x562xf32, #tpu.memory_space<vmem>>, vector<8x50xf32>
    tpu.vector_store %arg12[%c0_2, %c512], %2 {strides = array<i32>} : memref<8x562xf32, #tpu.memory_space<vmem>>, vector<8x50xf32>,
    %c0_3 = arith.constant 0 : index
    %c0_4 = arith.constant 0 : index
    %c0_5 = arith.constant 0 : index
    %4 = vector.load %arg1[%c0_3, %c0_4, %c0_5] : memref<1x4x456xf32, #tpu.memory_space<vmem>>, vector<1x4x456xf32>
    %5 = vector.shape_cast %4 : vector<1x4x456xf32> to vector<4x456xf32>
    %c0_6 = arith.constant 0 : index
    %c0_7 = arith.constant 0 : index
    %6 = vector.load %arg2[%c0_6, %c0_7] : memref<1x384xf32, #tpu.memory_space<vmem>>, vector<1x384xf32>
    %7 = vector.extract_strided_slice %5 {offsets = [0, 26], sizes = [4, 384], strides = [1, 1]} : vector<4x456xf32> to vector<4x384xf32>
    %c0_8 = arith.constant 0 : index
    %c0_9 = arith.constant 0 : index
    %8 = vector.load %arg3[%c0_8, %c0_9] : memref<24x4xf32, #tpu.memory_space<vmem>>, vector<24x4xf32>
    %cst_10 = arith.constant dense<0.000000e+00> : vector<24x384xf32>
    %9 = tpu.matmul %8, %7, %cst_10 {dimension_numbers = #tpu.dot_dimension_numbers<[1], [0], [0], [1], [0, 0, 1, 1], [], []>} : vector<24x4xf32>, vector<4x384xf32>, vector<24x384xf32> -> vector<24x384xf32>
    %c0_11 = arith.constant 0 : index
    %c0_12 = arith.constant 0 : index
    %10 = vector.load %arg4[%c0_11, %c0_12] : memref<24x1xf32, #tpu.memory_space<vmem>>, vector<24x1xf32>
    %11 = vector.broadcast %10 : vector<24x1xf32> to vector<24x384xf32>
    %12 = arith.addf %9, %11 : vector<24x384xf32>
    %cst_13 = arith.constant 0.000000e+00 : f32
    %13 = vector.broadcast %cst_13 : f32 to vector<24x384xf32>
    %14 = arith.maximumf %12, %13 : vector<24x384xf32>
    %15 = vector.extract_strided_slice %14 {offsets = [0, 0], sizes = [8, 384], strides = [1, 1]} : vector<24x384xf32> to vector<8x384xf32>
    %16 = vector.extract_strided_slice %14 {offsets = [8, 0], sizes = [8, 384], strides = [1, 1]} : vector<24x384xf32> to vector<8x384xf32>
    %17 = vector.broadcast %6 : vector<1x384xf32> to vector<8x384xf32>
    %18 = arith.mulf %16, %17 : vector<8x384xf32>
    %19 = vector.extract_strided_slice %14 {offsets = [16, 0], sizes = [8, 384], strides = [1, 1]} : vector<24x384xf32> to vector<8x384xf32>
    %20 = vector.broadcast %6 : vector<1x384xf32> to vector<8x384xf32>
    %21 = arith.mulf %19, %20 : vector<8x384xf32>
    %c0_14 = arith.constant 0 : index
    %c0_15 = arith.constant 0 : index
    %c0_16 = arith.constant 0 : index
    %22 = vector.load %arg11[%c0_14, %c0_15, %c0_16] : memref<1x32x384xf32, #tpu.memory_space<vmem>>, vector<1x8x384xf32>
    %23 = vector.shape_cast %22 : vector<1x8x384xf32> to vector<8x384xf32>
    %24 = vector.shape_cast %15 : vector<8x384xf32> to vector<1x8x384xf32>
    tpu.vector_store %arg11[%c0_14, %c0_15, %c0_16], %24 {strides = array<i32>} : memref<1x32x384xf32, #tpu.memory_space<vmem>>, vector<1x8x384xf32>,
    %25 = vector.extract_strided_slice %5 {offsets = [0, 1], sizes = [4, 384], strides = [1, 1]} : vector<4x456xf32> to vector<4x384xf32>
    %26 = vector.extract_strided_slice %5 {offsets = [0, 2], sizes = [4, 384], strides = [1, 1]} : vector<4x456xf32> to vector<4x384xf32>
    %27 = arith.maximumf %25, %26 : vector<4x384xf32>
    %28 = vector.extract_strided_slice %5 {offsets = [0, 3], sizes = [4, 384], strides = [1, 1]} : vector<4x456xf32> to vector<4x384xf32>
    %29 = arith.maximumf %27, %28 : vector<4x384xf32>
    %30 = vector.extract_strided_slice %5 {offsets = [0, 25], sizes = [4, 384], strides = [1, 1]} : vector<4x456xf32> to vector<4x384xf32>
    %31 = arith.maximumf %29, %30 : vector<4x384xf32>
    %32 = vector.extract_strided_slice %5 {offsets = [0, 26], sizes = [4, 384], strides = [1, 1]} : vector<4x456xf32> to vector<4x384xf32>
    %33 = arith.maximumf %31, %32 : vector<4x384xf32>
    %34 = vector.extract_strided_slice %5 {offsets = [0, 27], sizes = [4, 384], strides = [1, 1]} : vector<4x456xf32> to vector<4x384xf32>
    %35 = arith.maximumf %33, %34 : vector<4x384xf32>
    %36 = vector.extract_strided_slice %5 {offsets = [0, 49], sizes = [4, 384], strides = [1, 1]} : vector<4x456xf32> to vector<4x384xf32>
    %37 = arith.maximumf %35, %36 : vector<4x384xf32>
    %38 = vector.extract_strided_slice %5 {offsets = [0, 50], sizes = [4, 384], strides = [1, 1]} : vector<4x456xf32> to vector<4x384xf32>
    %39 = arith.maximumf %37, %38 : vector<4x384xf32>
    %40 = vector.extract_strided_slice %5 {offsets = [0, 51], sizes = [4, 384], strides = [1, 1]} : vector<4x456xf32> to vector<4x384xf32>
    %41 = arith.maximumf %39, %40 : vector<4x384xf32>
    %c0_17 = arith.constant 0 : index
    %c0_18 = arith.constant 0 : index
    %42 = vector.load %arg9[%c0_17, %c0_18] : memref<8x4xf32, #tpu.memory_space<vmem>>, vector<8x4xf32>
    %cst_19 = arith.constant dense<0.000000e+00> : vector<8x384xf32>
    %43 = tpu.matmul %42, %41, %cst_19 {dimension_numbers = #tpu.dot_dimension_numbers<[1], [0], [0], [1], [0, 0, 1, 1], [], []>} : vector<8x4xf32>, vector<4x384xf32>, vector<8x384xf32> -> vector<8x384xf32>
    %c0_20 = arith.constant 0 : index
    %c0_21 = arith.constant 0 : index
    %44 = vector.load %arg10[%c0_20, %c0_21] : memref<8x1xf32, #tpu.memory_space<vmem>>, vector<8x1xf32>
    %45 = vector.broadcast %44 : vector<8x1xf32> to vector<8x384xf32>
    %46 = arith.addf %43, %45 : vector<8x384xf32>
    %cst_22 = arith.constant 0.000000e+00 : f32
    %47 = vector.broadcast %cst_22 : f32 to vector<8x384xf32>
    %48 = arith.maximumf %46, %47 : vector<8x384xf32>
    %c0_23 = arith.constant 0 : index
    %c24 = arith.constant 24 : index
    %c0_24 = arith.constant 0 : index
    %49 = vector.load %arg11[%c0_23, %c24, %c0_24] : memref<1x32x384xf32, #tpu.memory_space<vmem>>, vector<1x8x384xf32>
    %50 = vector.shape_cast %49 : vector<1x8x384xf32> to vector<8x384xf32>
    %51 = vector.shape_cast %48 : vector<8x384xf32> to vector<1x8x384xf32>
    tpu.vector_store %arg11[%c0_23, %c24, %c0_24], %51 {strides = array<i32>} : memref<1x32x384xf32, #tpu.memory_space<vmem>>, vector<1x8x384xf32>,
    %c0_25 = arith.constant 0 : index
    %c128 = arith.constant 128 : index
    %52 = vector.load %arg12[%c0_25, %c128] : memref<8x562xf32, #tpu.memory_space<vmem>>, vector<8x384xf32>
    tpu.vector_store %arg12[%c0_25, %c128], %18 {strides = array<i32>} : memref<8x562xf32, #tpu.memory_space<vmem>>, vector<8x384xf32>,
    %c0_26 = arith.constant 0 : index
    %c103 = arith.constant 103 : index
    %53 = vector.load %arg12[%c0_26, %c103] : memref<8x562xf32, #tpu.memory_space<vmem>>, vector<8x384xf32>
    %c0_27 = arith.constant 0 : index
    %c0_28 = arith.constant 0 : index
    %c0_29 = arith.constant 0 : index
    %54 = vector.load %arg5[%c0_27, %c0_28, %c0_29] : memref<9x8x8xf32, #tpu.memory_space<vmem>>, vector<1x8x8xf32>
    %55 = vector.shape_cast %54 : vector<1x8x8xf32> to vector<8x8xf32>
    %cst_30 = arith.constant dense<0.000000e+00> : vector<8x384xf32>
    %56 = tpu.matmul %55, %53, %cst_30 {dimension_numbers = #tpu.dot_dimension_numbers<[1], [0], [0], [1], [0, 0, 1, 1], [], []>} : vector<8x8xf32>, vector<8x384xf32>, vector<8x384xf32> -> vector<8x384xf32>
    %c0_31 = arith.constant 0 : index
    %c104 = arith.constant 104 : index
    %57 = vector.load %arg12[%c0_31, %c104] : memref<8x562xf32, #tpu.memory_space<vmem>>, vector<8x384xf32>
    %c1 = arith.constant 1 : index
    %c0_32 = arith.constant 0 : index
    %c0_33 = arith.constant 0 : index
    %58 = vector.load %arg5[%c1, %c0_32, %c0_33] : memref<9x8x8xf32, #tpu.memory_space<vmem>>, vector<1x8x8xf32>
    %59 = vector.shape_cast %58 : vector<1x8x8xf32> to vector<8x8xf32>
    %cst_34 = arith.constant dense<0.000000e+00> : vector<8x384xf32>
    %60 = tpu.matmul %59, %57, %cst_34 {dimension_numbers = #tpu.dot_dimension_numbers<[1], [0], [0], [1], [0, 0, 1, 1], [], []>} : vector<8x8xf32>, vector<8x384xf32>, vector<8x384xf32> -> vector<8x384xf32>
    %61 = arith.addf %56, %60 : vector<8x384xf32>
    %c0_35 = arith.constant 0 : index
    %c105 = arith.constant 105 : index
    %62 = vector.load %arg12[%c0_35, %c105] : memref<8x562xf32, #tpu.memory_space<vmem>>, vector<8x384xf32>
    %c2 = arith.constant 2 : index
    %c0_36 = arith.constant 0 : index
    %c0_37 = arith.constant 0 : index
    %63 = vector.load %arg5[%c2, %c0_36, %c0_37] : memref<9x8x8xf32, #tpu.memory_space<vmem>>, vector<1x8x8xf32>
    %64 = vector.shape_cast %63 : vector<1x8x8xf32> to vector<8x8xf32>
    %cst_38 = arith.constant dense<0.000000e+00> : vector<8x384xf32>
    %65 = tpu.matmul %64, %62, %cst_38 {dimension_numbers = #tpu.dot_dimension_numbers<[1], [0], [0], [1], [0, 0, 1, 1], [], []>} : vector<8x8xf32>, vector<8x384xf32>, vector<8x384xf32> -> vector<8x384xf32>
    %66 = arith.addf %61, %65 : vector<8x384xf32>
    %c0_39 = arith.constant 0 : index
    %c127 = arith.constant 127 : index
    %67 = vector.load %arg12[%c0_39, %c127] : memref<8x562xf32, #tpu.memory_space<vmem>>, vector<8x384xf32>
    %c3 = arith.constant 3 : index
    %c0_40 = arith.constant 0 : index
    %c0_41 = arith.constant 0 : index
    %68 = vector.load %arg5[%c3, %c0_40, %c0_41] : memref<9x8x8xf32, #tpu.memory_space<vmem>>, vector<1x8x8xf32>
    %69 = vector.shape_cast %68 : vector<1x8x8xf32> to vector<8x8xf32>
    %cst_42 = arith.constant dense<0.000000e+00> : vector<8x384xf32>
    %70 = tpu.matmul %69, %67, %cst_42 {dimension_numbers = #tpu.dot_dimension_numbers<[1], [0], [0], [1], [0, 0, 1, 1], [], []>} : vector<8x8xf32>, vector<8x384xf32>, vector<8x384xf32> -> vector<8x384xf32>
    %71 = arith.addf %66, %70 : vector<8x384xf32>
    %c0_43 = arith.constant 0 : index
    %c128_44 = arith.constant 128 : index
    %72 = vector.load %arg12[%c0_43, %c128_44] : memref<8x562xf32, #tpu.memory_space<vmem>>, vector<8x384xf32>
    %c4 = arith.constant 4 : index
    %c0_45 = arith.constant 0 : index
    %c0_46 = arith.constant 0 : index
    %73 = vector.load %arg5[%c4, %c0_45, %c0_46] : memref<9x8x8xf32, #tpu.memory_space<vmem>>, vector<1x8x8xf32>
    %74 = vector.shape_cast %73 : vector<1x8x8xf32> to vector<8x8xf32>
    %cst_47 = arith.constant dense<0.000000e+00> : vector<8x384xf32>
    %75 = tpu.matmul %74, %72, %cst_47 {dimension_numbers = #tpu.dot_dimension_numbers<[1], [0], [0], [1], [0, 0, 1, 1], [], []>} : vector<8x8xf32>, vector<8x384xf32>, vector<8x384xf32> -> vector<8x384xf32>
    %76 = arith.addf %71, %75 : vector<8x384xf32>
    %c0_48 = arith.constant 0 : index
    %c129 = arith.constant 129 : index
    %77 = vector.load %arg12[%c0_48, %c129] : memref<8x562xf32, #tpu.memory_space<vmem>>, vector<8x384xf32>
    %c5 = arith.constant 5 : index
    %c0_49 = arith.constant 0 : index
    %c0_50 = arith.constant 0 : index
    %78 = vector.load %arg5[%c5, %c0_49, %c0_50] : memref<9x8x8xf32, #tpu.memory_space<vmem>>, vector<1x8x8xf32>
    %79 = vector.shape_cast %78 : vector<1x8x8xf32> to vector<8x8xf32>
    %cst_51 = arith.constant dense<0.000000e+00> : vector<8x384xf32>
    %80 = tpu.matmul %79, %77, %cst_51 {dimension_numbers = #tpu.dot_dimension_numbers<[1], [0], [0], [1], [0, 0, 1, 1], [], []>} : vector<8x8xf32>, vector<8x384xf32>, vector<8x384xf32> -> vector<8x384xf32>
    %81 = arith.addf %76, %80 : vector<8x384xf32>
    %c0_52 = arith.constant 0 : index
    %c151 = arith.constant 151 : index
    %82 = vector.load %arg12[%c0_52, %c151] : memref<8x562xf32, #tpu.memory_space<vmem>>, vector<8x384xf32>
    %c6 = arith.constant 6 : index
    %c0_53 = arith.constant 0 : index
    %c0_54 = arith.constant 0 : index
    %83 = vector.load %arg5[%c6, %c0_53, %c0_54] : memref<9x8x8xf32, #tpu.memory_space<vmem>>, vector<1x8x8xf32>
    %84 = vector.shape_cast %83 : vector<1x8x8xf32> to vector<8x8xf32>
    %cst_55 = arith.constant dense<0.000000e+00> : vector<8x384xf32>
    %85 = tpu.matmul %84, %82, %cst_55 {dimension_numbers = #tpu.dot_dimension_numbers<[1], [0], [0], [1], [0, 0, 1, 1], [], []>} : vector<8x8xf32>, vector<8x384xf32>, vector<8x384xf32> -> vector<8x384xf32>
    %86 = arith.addf %81, %85 : vector<8x384xf32>
    %c0_56 = arith.constant 0 : index
    %c152 = arith.constant 152 : index
    %87 = vector.load %arg12[%c0_56, %c152] : memref<8x562xf32, #tpu.memory_space<vmem>>, vector<8x384xf32>
    %c7 = arith.constant 7 : index
    %c0_57 = arith.constant 0 : index
    %c0_58 = arith.constant 0 : index
    %88 = vector.load %arg5[%c7, %c0_57, %c0_58] : memref<9x8x8xf32, #tpu.memory_space<vmem>>, vector<1x8x8xf32>
    %89 = vector.shape_cast %88 : vector<1x8x8xf32> to vector<8x8xf32>
    %cst_59 = arith.constant dense<0.000000e+00> : vector<8x384xf32>
    %90 = tpu.matmul %89, %87, %cst_59 {dimension_numbers = #tpu.dot_dimension_numbers<[1], [0], [0], [1], [0, 0, 1, 1], [], []>} : vector<8x8xf32>, vector<8x384xf32>, vector<8x384xf32> -> vector<8x384xf32>
    %91 = arith.addf %86, %90 : vector<8x384xf32>
    %c0_60 = arith.constant 0 : index
    %c153 = arith.constant 153 : index
    %92 = vector.load %arg12[%c0_60, %c153] : memref<8x562xf32, #tpu.memory_space<vmem>>, vector<8x384xf32>
    %c8 = arith.constant 8 : index
    %c0_61 = arith.constant 0 : index
    %c0_62 = arith.constant 0 : index
    %93 = vector.load %arg5[%c8, %c0_61, %c0_62] : memref<9x8x8xf32, #tpu.memory_space<vmem>>, vector<1x8x8xf32>
    %94 = vector.shape_cast %93 : vector<1x8x8xf32> to vector<8x8xf32>
    %cst_63 = arith.constant dense<0.000000e+00> : vector<8x384xf32>
    %95 = tpu.matmul %94, %92, %cst_63 {dimension_numbers = #tpu.dot_dimension_numbers<[1], [0], [0], [1], [0, 0, 1, 1], [], []>} : vector<8x8xf32>, vector<8x384xf32>, vector<8x384xf32> -> vector<8x384xf32>
    %96 = arith.addf %91, %95 : vector<8x384xf32>
    %c0_64 = arith.constant 0 : index
    %c0_65 = arith.constant 0 : index
    %97 = vector.load %arg6[%c0_64, %c0_65] : memref<8x1xf32, #tpu.memory_space<vmem>>, vector<8x1xf32>
    %98 = vector.broadcast %97 : vector<8x1xf32> to vector<8x384xf32>
    %99 = arith.addf %96, %98 : vector<8x384xf32>
    %cst_66 = arith.constant 0.000000e+00 : f32
    %100 = vector.broadcast %cst_66 : f32 to vector<8x384xf32>
    %101 = arith.maximumf %99, %100 : vector<8x384xf32>
    %c0_67 = arith.constant 0 : index
    %c8_68 = arith.constant 8 : index
    %c0_69 = arith.constant 0 : index
    %102 = vector.load %arg11[%c0_67, %c8_68, %c0_69] : memref<1x32x384xf32, #tpu.memory_space<vmem>>, vector<1x8x384xf32>
    %103 = vector.shape_cast %102 : vector<1x8x384xf32> to vector<8x384xf32>
    %104 = vector.shape_cast %101 : vector<8x384xf32> to vector<1x8x384xf32>
    tpu.vector_store %arg11[%c0_67, %c8_68, %c0_69], %104 {strides = array<i32>} : memref<1x32x384xf32, #tpu.memory_space<vmem>>, vector<1x8x384xf32>,
    %c0_70 = arith.constant 0 : index
    %c128_71 = arith.constant 128 : index
    %105 = vector.load %arg12[%c0_70, %c128_71] : memref<8x562xf32, #tpu.memory_space<vmem>>, vector<8x384xf32>
    tpu.vector_store %arg12[%c0_70, %c128_71], %21 {strides = array<i32>} : memref<8x562xf32, #tpu.memory_space<vmem>>, vector<8x384xf32>,
    %c0_72 = arith.constant 0 : index
    %c78 = arith.constant 78 : index
    %106 = vector.load %arg12[%c0_72, %c78] : memref<8x562xf32, #tpu.memory_space<vmem>>, vector<8x384xf32>
    %c0_73 = arith.constant 0 : index
    %c0_74 = arith.constant 0 : index
    %c0_75 = arith.constant 0 : index
    %107 = vector.load %arg7[%c0_73, %c0_74, %c0_75] : memref<25x8x8xf32, #tpu.memory_space<vmem>>, vector<1x8x8xf32>
    %108 = vector.shape_cast %107 : vector<1x8x8xf32> to vector<8x8xf32>
    %cst_76 = arith.constant dense<0.000000e+00> : vector<8x384xf32>
    %109 = tpu.matmul %108, %106, %cst_76 {dimension_numbers = #tpu.dot_dimension_numbers<[1], [0], [0], [1], [0, 0, 1, 1], [], []>} : vector<8x8xf32>, vector<8x384xf32>, vector<8x384xf32> -> vector<8x384xf32>
    %c0_77 = arith.constant 0 : index
    %c79 = arith.constant 79 : index
    %110 = vector.load %arg12[%c0_77, %c79] : memref<8x562xf32, #tpu.memory_space<vmem>>, vector<8x384xf32>
    %c1_78 = arith.constant 1 : index
    %c0_79 = arith.constant 0 : index
    %c0_80 = arith.constant 0 : index
    %111 = vector.load %arg7[%c1_78, %c0_79, %c0_80] : memref<25x8x8xf32, #tpu.memory_space<vmem>>, vector<1x8x8xf32>
    %112 = vector.shape_cast %111 : vector<1x8x8xf32> to vector<8x8xf32>
    %cst_81 = arith.constant dense<0.000000e+00> : vector<8x384xf32>
    %113 = tpu.matmul %112, %110, %cst_81 {dimension_numbers = #tpu.dot_dimension_numbers<[1], [0], [0], [1], [0, 0, 1, 1], [], []>} : vector<8x8xf32>, vector<8x384xf32>, vector<8x384xf32> -> vector<8x384xf32>
    %114 = arith.addf %109, %113 : vector<8x384xf32>
    %c0_82 = arith.constant 0 : index
    %c80 = arith.constant 80 : index
    %115 = vector.load %arg12[%c0_82, %c80] : memref<8x562xf32, #tpu.memory_space<vmem>>, vector<8x384xf32>
    %c2_83 = arith.constant 2 : index
    %c0_84 = arith.constant 0 : index
    %c0_85 = arith.constant 0 : index
    %116 = vector.load %arg7[%c2_83, %c0_84, %c0_85] : memref<25x8x8xf32, #tpu.memory_space<vmem>>, vector<1x8x8xf32>
    %117 = vector.shape_cast %116 : vector<1x8x8xf32> to vector<8x8xf32>
    %cst_86 = arith.constant dense<0.000000e+00> : vector<8x384xf32>
    %118 = tpu.matmul %117, %115, %cst_86 {dimension_numbers = #tpu.dot_dimension_numbers<[1], [0], [0], [1], [0, 0, 1, 1], [], []>} : vector<8x8xf32>, vector<8x384xf32>, vector<8x384xf32> -> vector<8x384xf32>
    %119 = arith.addf %114, %118 : vector<8x384xf32>
    %c0_87 = arith.constant 0 : index
    %c81 = arith.constant 81 : index
    %120 = vector.load %arg12[%c0_87, %c81] : memref<8x562xf32, #tpu.memory_space<vmem>>, vector<8x384xf32>
    %c3_88 = arith.constant 3 : index
    %c0_89 = arith.constant 0 : index
    %c0_90 = arith.constant 0 : index
    %121 = vector.load %arg7[%c3_88, %c0_89, %c0_90] : memref<25x8x8xf32, #tpu.memory_space<vmem>>, vector<1x8x8xf32>
    %122 = vector.shape_cast %121 : vector<1x8x8xf32> to vector<8x8xf32>
    %cst_91 = arith.constant dense<0.000000e+00> : vector<8x384xf32>
    %123 = tpu.matmul %122, %120, %cst_91 {dimension_numbers = #tpu.dot_dimension_numbers<[1], [0], [0], [1], [0, 0, 1, 1], [], []>} : vector<8x8xf32>, vector<8x384xf32>, vector<8x384xf32> -> vector<8x384xf32>
    %124 = arith.addf %119, %123 : vector<8x384xf32>
    %c0_92 = arith.constant 0 : index
    %c82 = arith.constant 82 : index
    %125 = vector.load %arg12[%c0_92, %c82] : memref<8x562xf32, #tpu.memory_space<vmem>>, vector<8x384xf32>
    %c4_93 = arith.constant 4 : index
    %c0_94 = arith.constant 0 : index
    %c0_95 = arith.constant 0 : index
    %126 = vector.load %arg7[%c4_93, %c0_94, %c0_95] : memref<25x8x8xf32, #tpu.memory_space<vmem>>, vector<1x8x8xf32>
    %127 = vector.shape_cast %126 : vector<1x8x8xf32> to vector<8x8xf32>
    %cst_96 = arith.constant dense<0.000000e+00> : vector<8x384xf32>
    %128 = tpu.matmul %127, %125, %cst_96 {dimension_numbers = #tpu.dot_dimension_numbers<[1], [0], [0], [1], [0, 0, 1, 1], [], []>} : vector<8x8xf32>, vector<8x384xf32>, vector<8x384xf32> -> vector<8x384xf32>
    %129 = arith.addf %124, %128 : vector<8x384xf32>
    %c0_97 = arith.constant 0 : index
    %c102 = arith.constant 102 : index
    %130 = vector.load %arg12[%c0_97, %c102] : memref<8x562xf32, #tpu.memory_space<vmem>>, vector<8x384xf32>
    %c5_98 = arith.constant 5 : index
    %c0_99 = arith.constant 0 : index
    %c0_100 = arith.constant 0 : index
    %131 = vector.load %arg7[%c5_98, %c0_99, %c0_100] : memref<25x8x8xf32, #tpu.memory_space<vmem>>, vector<1x8x8xf32>
    %132 = vector.shape_cast %131 : vector<1x8x8xf32> to vector<8x8xf32>
    %cst_101 = arith.constant dense<0.000000e+00> : vector<8x384xf32>
    %133 = tpu.matmul %132, %130, %cst_101 {dimension_numbers = #tpu.dot_dimension_numbers<[1], [0], [0], [1], [0, 0, 1, 1], [], []>} : vector<8x8xf32>, vector<8x384xf32>, vector<8x384xf32> -> vector<8x384xf32>
    %134 = arith.addf %129, %133 : vector<8x384xf32>
    %c0_102 = arith.constant 0 : index
    %c103_103 = arith.constant 103 : index
    %135 = vector.load %arg12[%c0_102, %c103_103] : memref<8x562xf32, #tpu.memory_space<vmem>>, vector<8x384xf32>
    %c6_104 = arith.constant 6 : index
    %c0_105 = arith.constant 0 : index
    %c0_106 = arith.constant 0 : index
    %136 = vector.load %arg7[%c6_104, %c0_105, %c0_106] : memref<25x8x8xf32, #tpu.memory_space<vmem>>, vector<1x8x8xf32>
    %137 = vector.shape_cast %136 : vector<1x8x8xf32> to vector<8x8xf32>
    %cst_107 = arith.constant dense<0.000000e+00> : vector<8x384xf32>
    %138 = tpu.matmul %137, %135, %cst_107 {dimension_numbers = #tpu.dot_dimension_numbers<[1], [0], [0], [1], [0, 0, 1, 1], [], []>} : vector<8x8xf32>, vector<8x384xf32>, vector<8x384xf32> -> vector<8x384xf32>
    %139 = arith.addf %134, %138 : vector<8x384xf32>
    %c0_108 = arith.constant 0 : index
    %c104_109 = arith.constant 104 : index
    %140 = vector.load %arg12[%c0_108, %c104_109] : memref<8x562xf32, #tpu.memory_space<vmem>>, vector<8x384xf32>
    %c7_110 = arith.constant 7 : index
    %c0_111 = arith.constant 0 : index
    %c0_112 = arith.constant 0 : index
    %141 = vector.load %arg7[%c7_110, %c0_111, %c0_112] : memref<25x8x8xf32, #tpu.memory_space<vmem>>, vector<1x8x8xf32>
    %142 = vector.shape_cast %141 : vector<1x8x8xf32> to vector<8x8xf32>
    %cst_113 = arith.constant dense<0.000000e+00> : vector<8x384xf32>
    %143 = tpu.matmul %142, %140, %cst_113 {dimension_numbers = #tpu.dot_dimension_numbers<[1], [0], [0], [1], [0, 0, 1, 1], [], []>} : vector<8x8xf32>, vector<8x384xf32>, vector<8x384xf32> -> vector<8x384xf32>
    %144 = arith.addf %139, %143 : vector<8x384xf32>
    %c0_114 = arith.constant 0 : index
    %c105_115 = arith.constant 105 : index
    %145 = vector.load %arg12[%c0_114, %c105_115] : memref<8x562xf32, #tpu.memory_space<vmem>>, vector<8x384xf32>
    %c8_116 = arith.constant 8 : index
    %c0_117 = arith.constant 0 : index
    %c0_118 = arith.constant 0 : index
    %146 = vector.load %arg7[%c8_116, %c0_117, %c0_118] : memref<25x8x8xf32, #tpu.memory_space<vmem>>, vector<1x8x8xf32>
    %147 = vector.shape_cast %146 : vector<1x8x8xf32> to vector<8x8xf32>
    %cst_119 = arith.constant dense<0.000000e+00> : vector<8x384xf32>
    %148 = tpu.matmul %147, %145, %cst_119 {dimension_numbers = #tpu.dot_dimension_numbers<[1], [0], [0], [1], [0, 0, 1, 1], [], []>} : vector<8x8xf32>, vector<8x384xf32>, vector<8x384xf32> -> vector<8x384xf32>
    %149 = arith.addf %144, %148 : vector<8x384xf32>
    %c0_120 = arith.constant 0 : index
    %c106 = arith.constant 106 : index
    %150 = vector.load %arg12[%c0_120, %c106] : memref<8x562xf32, #tpu.memory_space<vmem>>, vector<8x384xf32>
    %c9 = arith.constant 9 : index
    %c0_121 = arith.constant 0 : index
    %c0_122 = arith.constant 0 : index
    %151 = vector.load %arg7[%c9, %c0_121, %c0_122] : memref<25x8x8xf32, #tpu.memory_space<vmem>>, vector<1x8x8xf32>
    %152 = vector.shape_cast %151 : vector<1x8x8xf32> to vector<8x8xf32>
    %cst_123 = arith.constant dense<0.000000e+00> : vector<8x384xf32>
    %153 = tpu.matmul %152, %150, %cst_123 {dimension_numbers = #tpu.dot_dimension_numbers<[1], [0], [0], [1], [0, 0, 1, 1], [], []>} : vector<8x8xf32>, vector<8x384xf32>, vector<8x384xf32> -> vector<8x384xf32>
    %154 = arith.addf %149, %153 : vector<8x384xf32>
    %c0_124 = arith.constant 0 : index
    %c126 = arith.constant 126 : index
    %155 = vector.load %arg12[%c0_124, %c126] : memref<8x562xf32, #tpu.memory_space<vmem>>, vector<8x384xf32>
    %c10 = arith.constant 10 : index
    %c0_125 = arith.constant 0 : index
    %c0_126 = arith.constant 0 : index
    %156 = vector.load %arg7[%c10, %c0_125, %c0_126] : memref<25x8x8xf32, #tpu.memory_space<vmem>>, vector<1x8x8xf32>
    %157 = vector.shape_cast %156 : vector<1x8x8xf32> to vector<8x8xf32>
    %cst_127 = arith.constant dense<0.000000e+00> : vector<8x384xf32>
    %158 = tpu.matmul %157, %155, %cst_127 {dimension_numbers = #tpu.dot_dimension_numbers<[1], [0], [0], [1], [0, 0, 1, 1], [], []>} : vector<8x8xf32>, vector<8x384xf32>, vector<8x384xf32> -> vector<8x384xf32>
    %159 = arith.addf %154, %158 : vector<8x384xf32>
    %c0_128 = arith.constant 0 : index
    %c127_129 = arith.constant 127 : index
    %160 = vector.load %arg12[%c0_128, %c127_129] : memref<8x562xf32, #tpu.memory_space<vmem>>, vector<8x384xf32>
    %c11 = arith.constant 11 : index
    %c0_130 = arith.constant 0 : index
    %c0_131 = arith.constant 0 : index
    %161 = vector.load %arg7[%c11, %c0_130, %c0_131] : memref<25x8x8xf32, #tpu.memory_space<vmem>>, vector<1x8x8xf32>
    %162 = vector.shape_cast %161 : vector<1x8x8xf32> to vector<8x8xf32>
    %cst_132 = arith.constant dense<0.000000e+00> : vector<8x384xf32>
    %163 = tpu.matmul %162, %160, %cst_132 {dimension_numbers = #tpu.dot_dimension_numbers<[1], [0], [0], [1], [0, 0, 1, 1], [], []>} : vector<8x8xf32>, vector<8x384xf32>, vector<8x384xf32> -> vector<8x384xf32>
    %164 = arith.addf %159, %163 : vector<8x384xf32>
    %c0_133 = arith.constant 0 : index
    %c128_134 = arith.constant 128 : index
    %165 = vector.load %arg12[%c0_133, %c128_134] : memref<8x562xf32, #tpu.memory_space<vmem>>, vector<8x384xf32>
    %c12 = arith.constant 12 : index
    %c0_135 = arith.constant 0 : index
    %c0_136 = arith.constant 0 : index
    %166 = vector.load %arg7[%c12, %c0_135, %c0_136] : memref<25x8x8xf32, #tpu.memory_space<vmem>>, vector<1x8x8xf32>
    %167 = vector.shape_cast %166 : vector<1x8x8xf32> to vector<8x8xf32>
    %cst_137 = arith.constant dense<0.000000e+00> : vector<8x384xf32>
    %168 = tpu.matmul %167, %165, %cst_137 {dimension_numbers = #tpu.dot_dimension_numbers<[1], [0], [0], [1], [0, 0, 1, 1], [], []>} : vector<8x8xf32>, vector<8x384xf32>, vector<8x384xf32> -> vector<8x384xf32>
    %169 = arith.addf %164, %168 : vector<8x384xf32>
    %c0_138 = arith.constant 0 : index
    %c129_139 = arith.constant 129 : index
    %170 = vector.load %arg12[%c0_138, %c129_139] : memref<8x562xf32, #tpu.memory_space<vmem>>, vector<8x384xf32>
    %c13 = arith.constant 13 : index
    %c0_140 = arith.constant 0 : index
    %c0_141 = arith.constant 0 : index
    %171 = vector.load %arg7[%c13, %c0_140, %c0_141] : memref<25x8x8xf32, #tpu.memory_space<vmem>>, vector<1x8x8xf32>
    %172 = vector.shape_cast %171 : vector<1x8x8xf32> to vector<8x8xf32>
    %cst_142 = arith.constant dense<0.000000e+00> : vector<8x384xf32>
    %173 = tpu.matmul %172, %170, %cst_142 {dimension_numbers = #tpu.dot_dimension_numbers<[1], [0], [0], [1], [0, 0, 1, 1], [], []>} : vector<8x8xf32>, vector<8x384xf32>, vector<8x384xf32> -> vector<8x384xf32>
    %174 = arith.addf %169, %173 : vector<8x384xf32>
    %c0_143 = arith.constant 0 : index
    %c130 = arith.constant 130 : index
    %175 = vector.load %arg12[%c0_143, %c130] : memref<8x562xf32, #tpu.memory_space<vmem>>, vector<8x384xf32>
    %c14 = arith.constant 14 : index
    %c0_144 = arith.constant 0 : index
    %c0_145 = arith.constant 0 : index
    %176 = vector.load %arg7[%c14, %c0_144, %c0_145] : memref<25x8x8xf32, #tpu.memory_space<vmem>>, vector<1x8x8xf32>
    %177 = vector.shape_cast %176 : vector<1x8x8xf32> to vector<8x8xf32>
    %cst_146 = arith.constant dense<0.000000e+00> : vector<8x384xf32>
    %178 = tpu.matmul %177, %175, %cst_146 {dimension_numbers = #tpu.dot_dimension_numbers<[1], [0], [0], [1], [0, 0, 1, 1], [], []>} : vector<8x8xf32>, vector<8x384xf32>, vector<8x384xf32> -> vector<8x384xf32>
    %179 = arith.addf %174, %178 : vector<8x384xf32>
    %c0_147 = arith.constant 0 : index
    %c150 = arith.constant 150 : index
    %180 = vector.load %arg12[%c0_147, %c150] : memref<8x562xf32, #tpu.memory_space<vmem>>, vector<8x384xf32>
    %c15 = arith.constant 15 : index
    %c0_148 = arith.constant 0 : index
    %c0_149 = arith.constant 0 : index
    %181 = vector.load %arg7[%c15, %c0_148, %c0_149] : memref<25x8x8xf32, #tpu.memory_space<vmem>>, vector<1x8x8xf32>
    %182 = vector.shape_cast %181 : vector<1x8x8xf32> to vector<8x8xf32>
    %cst_150 = arith.constant dense<0.000000e+00> : vector<8x384xf32>
    %183 = tpu.matmul %182, %180, %cst_150 {dimension_numbers = #tpu.dot_dimension_numbers<[1], [0], [0], [1], [0, 0, 1, 1], [], []>} : vector<8x8xf32>, vector<8x384xf32>, vector<8x384xf32> -> vector<8x384xf32>
    %184 = arith.addf %179, %183 : vector<8x384xf32>
    %c0_151 = arith.constant 0 : index
    %c151_152 = arith.constant 151 : index
    %185 = vector.load %arg12[%c0_151, %c151_152] : memref<8x562xf32, #tpu.memory_space<vmem>>, vector<8x384xf32>
    %c16 = arith.constant 16 : index
    %c0_153 = arith.constant 0 : index
    %c0_154 = arith.constant 0 : index
    %186 = vector.load %arg7[%c16, %c0_153, %c0_154] : memref<25x8x8xf32, #tpu.memory_space<vmem>>, vector<1x8x8xf32>
    %187 = vector.shape_cast %186 : vector<1x8x8xf32> to vector<8x8xf32>
    %cst_155 = arith.constant dense<0.000000e+00> : vector<8x384xf32>
    %188 = tpu.matmul %187, %185, %cst_155 {dimension_numbers = #tpu.dot_dimension_numbers<[1], [0], [0], [1], [0, 0, 1, 1], [], []>} : vector<8x8xf32>, vector<8x384xf32>, vector<8x384xf32> -> vector<8x384xf32>
    %189 = arith.addf %184, %188 : vector<8x384xf32>
    %c0_156 = arith.constant 0 : index
    %c152_157 = arith.constant 152 : index
    %190 = vector.load %arg12[%c0_156, %c152_157] : memref<8x562xf32, #tpu.memory_space<vmem>>, vector<8x384xf32>
    %c17 = arith.constant 17 : index
    %c0_158 = arith.constant 0 : index
    %c0_159 = arith.constant 0 : index
    %191 = vector.load %arg7[%c17, %c0_158, %c0_159] : memref<25x8x8xf32, #tpu.memory_space<vmem>>, vector<1x8x8xf32>
    %192 = vector.shape_cast %191 : vector<1x8x8xf32> to vector<8x8xf32>
    %cst_160 = arith.constant dense<0.000000e+00> : vector<8x384xf32>
    %193 = tpu.matmul %192, %190, %cst_160 {dimension_numbers = #tpu.dot_dimension_numbers<[1], [0], [0], [1], [0, 0, 1, 1], [], []>} : vector<8x8xf32>, vector<8x384xf32>, vector<8x384xf32> -> vector<8x384xf32>
    %194 = arith.addf %189, %193 : vector<8x384xf32>
    %c0_161 = arith.constant 0 : index
    %c153_162 = arith.constant 153 : index
    %195 = vector.load %arg12[%c0_161, %c153_162] : memref<8x562xf32, #tpu.memory_space<vmem>>, vector<8x384xf32>
    %c18 = arith.constant 18 : index
    %c0_163 = arith.constant 0 : index
    %c0_164 = arith.constant 0 : index
    %196 = vector.load %arg7[%c18, %c0_163, %c0_164] : memref<25x8x8xf32, #tpu.memory_space<vmem>>, vector<1x8x8xf32>
    %197 = vector.shape_cast %196 : vector<1x8x8xf32> to vector<8x8xf32>
    %cst_165 = arith.constant dense<0.000000e+00> : vector<8x384xf32>
    %198 = tpu.matmul %197, %195, %cst_165 {dimension_numbers = #tpu.dot_dimension_numbers<[1], [0], [0], [1], [0, 0, 1, 1], [], []>} : vector<8x8xf32>, vector<8x384xf32>, vector<8x384xf32> -> vector<8x384xf32>
    %199 = arith.addf %194, %198 : vector<8x384xf32>
    %c0_166 = arith.constant 0 : index
    %c154 = arith.constant 154 : index
    %200 = vector.load %arg12[%c0_166, %c154] : memref<8x562xf32, #tpu.memory_space<vmem>>, vector<8x384xf32>
    %c19 = arith.constant 19 : index
    %c0_167 = arith.constant 0 : index
    %c0_168 = arith.constant 0 : index
    %201 = vector.load %arg7[%c19, %c0_167, %c0_168] : memref<25x8x8xf32, #tpu.memory_space<vmem>>, vector<1x8x8xf32>
    %202 = vector.shape_cast %201 : vector<1x8x8xf32> to vector<8x8xf32>
    %cst_169 = arith.constant dense<0.000000e+00> : vector<8x384xf32>
    %203 = tpu.matmul %202, %200, %cst_169 {dimension_numbers = #tpu.dot_dimension_numbers<[1], [0], [0], [1], [0, 0, 1, 1], [], []>} : vector<8x8xf32>, vector<8x384xf32>, vector<8x384xf32> -> vector<8x384xf32>
    %204 = arith.addf %199, %203 : vector<8x384xf32>
    %c0_170 = arith.constant 0 : index
    %c174 = arith.constant 174 : index
    %205 = vector.load %arg12[%c0_170, %c174] : memref<8x562xf32, #tpu.memory_space<vmem>>, vector<8x384xf32>
    %c20 = arith.constant 20 : index
    %c0_171 = arith.constant 0 : index
    %c0_172 = arith.constant 0 : index
    %206 = vector.load %arg7[%c20, %c0_171, %c0_172] : memref<25x8x8xf32, #tpu.memory_space<vmem>>, vector<1x8x8xf32>
    %207 = vector.shape_cast %206 : vector<1x8x8xf32> to vector<8x8xf32>
    %cst_173 = arith.constant dense<0.000000e+00> : vector<8x384xf32>
    %208 = tpu.matmul %207, %205, %cst_173 {dimension_numbers = #tpu.dot_dimension_numbers<[1], [0], [0], [1], [0, 0, 1, 1], [], []>} : vector<8x8xf32>, vector<8x384xf32>, vector<8x384xf32> -> vector<8x384xf32>
    %209 = arith.addf %204, %208 : vector<8x384xf32>
    %c0_174 = arith.constant 0 : index
    %c175 = arith.constant 175 : index
    %210 = vector.load %arg12[%c0_174, %c175] : memref<8x562xf32, #tpu.memory_space<vmem>>, vector<8x384xf32>
    %c21 = arith.constant 21 : index
    %c0_175 = arith.constant 0 : index
    %c0_176 = arith.constant 0 : index
    %211 = vector.load %arg7[%c21, %c0_175, %c0_176] : memref<25x8x8xf32, #tpu.memory_space<vmem>>, vector<1x8x8xf32>
    %212 = vector.shape_cast %211 : vector<1x8x8xf32> to vector<8x8xf32>
    %cst_177 = arith.constant dense<0.000000e+00> : vector<8x384xf32>
    %213 = tpu.matmul %212, %210, %cst_177 {dimension_numbers = #tpu.dot_dimension_numbers<[1], [0], [0], [1], [0, 0, 1, 1], [], []>} : vector<8x8xf32>, vector<8x384xf32>, vector<8x384xf32> -> vector<8x384xf32>
    %214 = arith.addf %209, %213 : vector<8x384xf32>
    %c0_178 = arith.constant 0 : index
    %c176 = arith.constant 176 : index
    %215 = vector.load %arg12[%c0_178, %c176] : memref<8x562xf32, #tpu.memory_space<vmem>>, vector<8x384xf32>
    %c22 = arith.constant 22 : index
    %c0_179 = arith.constant 0 : index
    %c0_180 = arith.constant 0 : index
    %216 = vector.load %arg7[%c22, %c0_179, %c0_180] : memref<25x8x8xf32, #tpu.memory_space<vmem>>, vector<1x8x8xf32>
    %217 = vector.shape_cast %216 : vector<1x8x8xf32> to vector<8x8xf32>
    %cst_181 = arith.constant dense<0.000000e+00> : vector<8x384xf32>
    %218 = tpu.matmul %217, %215, %cst_181 {dimension_numbers = #tpu.dot_dimension_numbers<[1], [0], [0], [1], [0, 0, 1, 1], [], []>} : vector<8x8xf32>, vector<8x384xf32>, vector<8x384xf32> -> vector<8x384xf32>
    %219 = arith.addf %214, %218 : vector<8x384xf32>
    %c0_182 = arith.constant 0 : index
    %c177 = arith.constant 177 : index
    %220 = vector.load %arg12[%c0_182, %c177] : memref<8x562xf32, #tpu.memory_space<vmem>>, vector<8x384xf32>
    %c23 = arith.constant 23 : index
    %c0_183 = arith.constant 0 : index
    %c0_184 = arith.constant 0 : index
    %221 = vector.load %arg7[%c23, %c0_183, %c0_184] : memref<25x8x8xf32, #tpu.memory_space<vmem>>, vector<1x8x8xf32>
    %222 = vector.shape_cast %221 : vector<1x8x8xf32> to vector<8x8xf32>
    %cst_185 = arith.constant dense<0.000000e+00> : vector<8x384xf32>
    %223 = tpu.matmul %222, %220, %cst_185 {dimension_numbers = #tpu.dot_dimension_numbers<[1], [0], [0], [1], [0, 0, 1, 1], [], []>} : vector<8x8xf32>, vector<8x384xf32>, vector<8x384xf32> -> vector<8x384xf32>
    %224 = arith.addf %219, %223 : vector<8x384xf32>
    %c0_186 = arith.constant 0 : index
    %c178 = arith.constant 178 : index
    %225 = vector.load %arg12[%c0_186, %c178] : memref<8x562xf32, #tpu.memory_space<vmem>>, vector<8x384xf32>
    %c24_187 = arith.constant 24 : index
    %c0_188 = arith.constant 0 : index
    %c0_189 = arith.constant 0 : index
    %226 = vector.load %arg7[%c24_187, %c0_188, %c0_189] : memref<25x8x8xf32, #tpu.memory_space<vmem>>, vector<1x8x8xf32>
    %227 = vector.shape_cast %226 : vector<1x8x8xf32> to vector<8x8xf32>
    %cst_190 = arith.constant dense<0.000000e+00> : vector<8x384xf32>
    %228 = tpu.matmul %227, %225, %cst_190 {dimension_numbers = #tpu.dot_dimension_numbers<[1], [0], [0], [1], [0, 0, 1, 1], [], []>} : vector<8x8xf32>, vector<8x384xf32>, vector<8x384xf32> -> vector<8x384xf32>
    %229 = arith.addf %224, %228 : vector<8x384xf32>
    %c0_191 = arith.constant 0 : index
    %c0_192 = arith.constant 0 : index
    %230 = vector.load %arg8[%c0_191, %c0_192] : memref<8x1xf32, #tpu.memory_space<vmem>>, vector<8x1xf32>
    %231 = vector.broadcast %230 : vector<8x1xf32> to vector<8x384xf32>
    %232 = arith.addf %229, %231 : vector<8x384xf32>
    %cst_193 = arith.constant 0.000000e+00 : f32
    %233 = vector.broadcast %cst_193 : f32 to vector<8x384xf32>
    %234 = arith.maximumf %232, %233 : vector<8x384xf32>
    %c0_194 = arith.constant 0 : index
    %c16_195 = arith.constant 16 : index
    %c0_196 = arith.constant 0 : index
    %235 = vector.load %arg11[%c0_194, %c16_195, %c0_196] : memref<1x32x384xf32, #tpu.memory_space<vmem>>, vector<1x8x384xf32>
    %236 = vector.shape_cast %235 : vector<1x8x384xf32> to vector<8x384xf32>
    %237 = vector.shape_cast %234 : vector<8x384xf32> to vector<1x8x384xf32>
    tpu.vector_store %arg11[%c0_194, %c16_195, %c0_196], %237 {strides = array<i32>} : memref<1x32x384xf32, #tpu.memory_space<vmem>>, vector<1x8x384xf32>,
    return
  }
  func.func @transform_0(%arg0: i32) -> (i32, i32, i32) {
    %c0_i32 = arith.constant 0 : i32
    %c0_i32_0 = arith.constant 0 : i32
    %c0_i32_1 = arith.constant 0 : i32
    return %arg0, %c0_i32, %c0_i32_0 : i32, i32, i32
  }
  func.func @transform_1(%arg0: i32) -> (i32, i32) {
    %c0_i32 = arith.constant 0 : i32
    %c0_i32_0 = arith.constant 0 : i32
    %c0_i32_1 = arith.constant 0 : i32
    return %c0_i32, %c0_i32_0 : i32, i32
  }
  func.func @transform_2(%arg0: i32) -> (i32, i32) {
    %c0_i32 = arith.constant 0 : i32
    %c0_i32_0 = arith.constant 0 : i32
    %c0_i32_1 = arith.constant 0 : i32
    return %c0_i32, %c0_i32_0 : i32, i32
  }
  func.func @transform_3(%arg0: i32) -> (i32, i32) {
    %c0_i32 = arith.constant 0 : i32
    %c0_i32_0 = arith.constant 0 : i32
    %c0_i32_1 = arith.constant 0 : i32
    return %c0_i32, %c0_i32_0 : i32, i32
  }
  func.func @transform_4(%arg0: i32) -> (i32, i32, i32) {
    %c0_i32 = arith.constant 0 : i32
    %c0_i32_0 = arith.constant 0 : i32
    %c0_i32_1 = arith.constant 0 : i32
    %c0_i32_2 = arith.constant 0 : i32
    return %c0_i32, %c0_i32_0, %c0_i32_1 : i32, i32, i32
  }
  func.func @transform_5(%arg0: i32) -> (i32, i32) {
    %c0_i32 = arith.constant 0 : i32
    %c0_i32_0 = arith.constant 0 : i32
    %c0_i32_1 = arith.constant 0 : i32
    return %c0_i32, %c0_i32_0 : i32, i32
  }
  func.func @transform_6(%arg0: i32) -> (i32, i32, i32) {
    %c0_i32 = arith.constant 0 : i32
    %c0_i32_0 = arith.constant 0 : i32
    %c0_i32_1 = arith.constant 0 : i32
    %c0_i32_2 = arith.constant 0 : i32
    return %c0_i32, %c0_i32_0, %c0_i32_1 : i32, i32, i32
  }
  func.func @transform_7(%arg0: i32) -> (i32, i32) {
    %c0_i32 = arith.constant 0 : i32
    %c0_i32_0 = arith.constant 0 : i32
    %c0_i32_1 = arith.constant 0 : i32
    return %c0_i32, %c0_i32_0 : i32, i32
  }
  func.func @transform_8(%arg0: i32) -> (i32, i32) {
    %c0_i32 = arith.constant 0 : i32
    %c0_i32_0 = arith.constant 0 : i32
    %c0_i32_1 = arith.constant 0 : i32
    return %c0_i32, %c0_i32_0 : i32, i32
  }
  func.func @transform_9(%arg0: i32) -> (i32, i32) {
    %c0_i32 = arith.constant 0 : i32
    %c0_i32_0 = arith.constant 0 : i32
    %c0_i32_1 = arith.constant 0 : i32
    return %c0_i32, %c0_i32_0 : i32, i32
  }
  func.func @transform_10(%arg0: i32) -> (i32, i32, i32) {
    %c0_i32 = arith.constant 0 : i32
    %c0_i32_0 = arith.constant 0 : i32
    %c0_i32_1 = arith.constant 0 : i32
    return %arg0, %c0_i32, %c0_i32_0 : i32, i32, i32
  }
}

</mosaic_0001>

<llo_original>
// kernel: inception_forward.1
$region0: #{inception_forward.1}
  #allocation0 [shape = 'u32[]', space=smem, size = 0x4, offset = 0x4, fixed_abs, tag = 'smem constant byte address 0x4 - core index']
  #allocation1 [shape = 'u32[144,128]{1,0:T(1,128)}', space=vmem, size = 0x12000, scoped, tag = 'internal scratch']
  #allocation2 [shape = 'f32[8,562]{1,0:T(8,128)}', space=vmem, size = 0x5000, scoped, tag = 'scratch operand']
  %s0 = inlined_call_operand.vmem [shape: f32[2,4,456], index: 0, kind: input, shape index: {}]
  %s1 = inlined_call_operand.vmem [shape: f32[1,384], index: 1, kind: input, shape index: {}]
  %s2 = inlined_call_operand.vmem [shape: f32[24,4], index: 2, kind: input, shape index: {}]
  %s3 = inlined_call_operand.vmem [shape: f32[24,1], index: 3, kind: input, shape index: {}]
  %s4 = inlined_call_operand.vmem [shape: f32[9,8,8], index: 4, kind: input, shape index: {}]
  %s5 = inlined_call_operand.vmem [shape: f32[8,1], index: 5, kind: input, shape index: {}]
  %s6 = inlined_call_operand.vmem [shape: f32[25,8,8], index: 6, kind: input, shape index: {}]
  %s7 = inlined_call_operand.vmem [shape: f32[8,1], index: 7, kind: input, shape index: {}]
  %s8 = inlined_call_operand.vmem [shape: f32[8,4], index: 8, kind: input, shape index: {}]
  %s9 = inlined_call_operand.vmem [shape: f32[8,1], index: 9, kind: input, shape index: {}]
  %s10 = inlined_call_operand.vmem [shape: f32[2,32,384], index: 10, kind: output, shape index: {}]
  %s11 = sld [smem:[#allocation0]]
  $region73: #{inception_forward.1} parent=0
    _
  %s13 = ssub.s32 1, %s11
  %s14 = scalar_select 0, %s13, %s11
  loop: start=0, step=1, limit=4
  $region2: #{inception_forward.1} parent=0 // loop_pre_header
    _
  $region3: #{inception_forward.1} parent=0 // loop_header
    %s16 = sphi 0, %s20
    %p17 = scmp.ge.s32.totalorder %s16, 4
    %s26 = sphi 0, %s28
    %s29 = sphi 0, %s26
    %s30 = sphi 0, %s29
    %s46 = sphi 0, %s30
    %s50 = sphi 0, %s50
    %s52 = sphi 0, %s50
    %s53 = sphi 0, %s52
    %s67 = sphi 0, %s53
    %s71 = sphi 0, %s71
    %s73 = sphi 0, %s71
    %s74 = sphi 0, %s73
    %s88 = sphi 0, %s74
    %s92 = sphi 0, %s92
    %s94 = sphi 0, %s92
    %s95 = sphi 0, %s94
    %s109 = sphi 0, %s95
    %s113 = sphi 0, %s113
    %s115 = sphi 0, %s113
    %s116 = sphi 0, %s115
    %s130 = sphi 0, %s116
    %s134 = sphi 0, %s134
    %s136 = sphi 0, %s134
    %s137 = sphi 0, %s136
    %s151 = sphi 0, %s137
    %s155 = sphi 0, %s155
    %s157 = sphi 0, %s155
    %s158 = sphi 0, %s157
    %s172 = sphi 0, %s158
    %s176 = sphi 0, %s176
    %s178 = sphi 0, %s176
    %s179 = sphi 0, %s178
    %s193 = sphi 0, %s179
    %s197 = sphi 0, %s197
    %s199 = sphi 0, %s197
    %s200 = sphi 0, %s199
    %s214 = sphi 0, %s200
    %s218 = sphi 0, %s218
    %s220 = sphi 0, %s218
    %s221 = sphi 0, %s220
    %s235 = sphi 0, %s221
    %s241 = sphi 0, %s243
    %s244 = sphi 0, %s241
    %s245 = sphi 0, %s244
    %s261 = sphi 0, %s245
  $region4: #{inception_forward.1} parent=0 // loop_header_branch
    %19 = sbr.rel (%p17) target = $region8
  $region5: #{inception_forward.1} parent=0 // loop_body
    %s21 = ssub.s32 %s16, 1
    %s22 = ssub.s32 %s16, 2
    %s23 = sadd.s32 %s16, 1
    %s24 = ssub.s32 %s16, %s23
    %p25 = scmp.eq.s32.totalorder %s24, 0
    %s27 = sadd.s32 %s26, 1
    %s28 = scalar_select %p25, %s26, %s27
    %p31 = pneg %p25
    %p32 = scmp.eq.s32.totalorder %s16, 1
    %p33 = por %p31, %p32
    %p34 = scmp.ne.s32.totalorder %s26, %s29
    %p35 = scmp.eq.s32.totalorder %s16, 0
    %p36 = por %p34, %p35
    %p37 = scmp.ne.s32.totalorder %s26, %s29
    %p38 = scmp.eq.s32.totalorder %s21, 1
    %p39 = por %p37, %p38
    %p40 = scmp.ne.s32.totalorder %s29, %s30
    %p41 = scmp.eq.s32.totalorder %s21, 0
    %p42 = por %p40, %p41
    %p43 = scmp.ne.s32.totalorder %s29, %s30
    %p44 = scmp.eq.s32.totalorder %s22, 1
    %p45 = por %p43, %p44
    %p47 = scmp.ne.s32.totalorder %s30, %s46
    %p48 = scmp.eq.s32.totalorder %s22, 0
    %p49 = por %p47, %p48
    %s51 = sadd.s32 %s50, 1
    %p54 = scmp.eq.s32.totalorder %s16, 1
    %p55 = scmp.ne.s32.totalorder %s50, %s52
    %p56 = scmp.eq.s32.totalorder %s16, 0
    %p57 = por %p55, %p56
    %p58 = scmp.ne.s32.totalorder %s50, %s52
    %p59 = scmp.eq.s32.totalorder %s21, 1
    %p60 = por %p58, %p59
    %p61 = scmp.ne.s32.totalorder %s52, %s53
    %p62 = scmp.eq.s32.totalorder %s21, 0
    %p63 = por %p61, %p62
    %p64 = scmp.ne.s32.totalorder %s52, %s53
    %p65 = scmp.eq.s32.totalorder %s22, 1
    %p66 = por %p64, %p65
    %p68 = scmp.ne.s32.totalorder %s53, %s67
    %p69 = scmp.eq.s32.totalorder %s22, 0
    %p70 = por %p68, %p69
    %s72 = sadd.s32 %s71, 1
    %p75 = scmp.eq.s32.totalorder %s16, 1
    %p76 = scmp.ne.s32.totalorder %s71, %s73
    %p77 = scmp.eq.s32.totalorder %s16, 0
    %p78 = por %p76, %p77
    %p79 = scmp.ne.s32.totalorder %s71, %s73
    %p80 = scmp.eq.s32.totalorder %s21, 1
    %p81 = por %p79, %p80
    %p82 = scmp.ne.s32.totalorder %s73, %s74
    %p83 = scmp.eq.s32.totalorder %s21, 0
    %p84 = por %p82, %p83
    %p85 = scmp.ne.s32.totalorder %s73, %s74
    %p86 = scmp.eq.s32.totalorder %s22, 1
    %p87 = por %p85, %p86
    %p89 = scmp.ne.s32.totalorder %s74, %s88
    %p90 = scmp.eq.s32.totalorder %s22, 0
    %p91 = por %p89, %p90
    %s93 = sadd.s32 %s92, 1
    %p96 = scmp.eq.s32.totalorder %s16, 1
    %p97 = scmp.ne.s32.totalorder %s92, %s94
    %p98 = scmp.eq.s32.totalorder %s16, 0
    %p99 = por %p97, %p98
    %p100 = scmp.ne.s32.totalorder %s92, %s94
    %p101 = scmp.eq.s32.totalorder %s21, 1
    %p102 = por %p100, %p101
    %p103 = scmp.ne.s32.totalorder %s94, %s95
    %p104 = scmp.eq.s32.totalorder %s21, 0
    %p105 = por %p103, %p104
    %p106 = scmp.ne.s32.totalorder %s94, %s95
    %p107 = scmp.eq.s32.totalorder %s22, 1
    %p108 = por %p106, %p107
    %p110 = scmp.ne.s32.totalorder %s95, %s109
    %p111 = scmp.eq.s32.totalorder %s22, 0
    %p112 = por %p110, %p111
    %s114 = sadd.s32 %s113, 1
    %p117 = scmp.eq.s32.totalorder %s16, 1
    %p118 = scmp.ne.s32.totalorder %s113, %s115
    %p119 = scmp.eq.s32.totalorder %s16, 0
    %p120 = por %p118, %p119
    %p121 = scmp.ne.s32.totalorder %s113, %s115
    %p122 = scmp.eq.s32.totalorder %s21, 1
    %p123 = por %p121, %p122
    %p124 = scmp.ne.s32.totalorder %s115, %s116
    %p125 = scmp.eq.s32.totalorder %s21, 0
    %p126 = por %p124, %p125
    %p127 = scmp.ne.s32.totalorder %s115, %s116
    %p128 = scmp.eq.s32.totalorder %s22, 1
    %p129 = por %p127, %p128
    %p131 = scmp.ne.s32.totalorder %s116, %s130
    %p132 = scmp.eq.s32.totalorder %s22, 0
    %p133 = por %p131, %p132
    %s135 = sadd.s32 %s134, 1
    %p138 = scmp.eq.s32.totalorder %s16, 1
    %p139 = scmp.ne.s32.totalorder %s134, %s136
    %p140 = scmp.eq.s32.totalorder %s16, 0
    %p141 = por %p139, %p140
    %p142 = scmp.ne.s32.totalorder %s134, %s136
    %p143 = scmp.eq.s32.totalorder %s21, 1
    %p144 = por %p142, %p143
    %p145 = scmp.ne.s32.totalorder %s136, %s137
    %p146 = scmp.eq.s32.totalorder %s21, 0
    %p147 = por %p145, %p146
    %p148 = scmp.ne.s32.totalorder %s136, %s137
    %p149 = scmp.eq.s32.totalorder %s22, 1
    %p150 = por %p148, %p149
    %p152 = scmp.ne.s32.totalorder %s137, %s151
    %p153 = scmp.eq.s32.totalorder %s22, 0
    %p154 = por %p152, %p153
    %s156 = sadd.s32 %s155, 1
    %p159 = scmp.eq.s32.totalorder %s16, 1
    %p160 = scmp.ne.s32.totalorder %s155, %s157
    %p161 = scmp.eq.s32.totalorder %s16, 0
    %p162 = por %p160, %p161
    %p163 = scmp.ne.s32.totalorder %s155, %s157
    %p164 = scmp.eq.s32.totalorder %s21, 1
    %p165 = por %p163, %p164
    %p166 = scmp.ne.s32.totalorder %s157, %s158
    %p167 = scmp.eq.s32.totalorder %s21, 0
    %p168 = por %p166, %p167
    %p169 = scmp.ne.s32.totalorder %s157, %s158
    %p170 = scmp.eq.s32.totalorder %s22, 1
    %p171 = por %p169, %p170
    %p173 = scmp.ne.s32.totalorder %s158, %s172
    %p174 = scmp.eq.s32.totalorder %s22, 0
    %p175 = por %p173, %p174
    %s177 = sadd.s32 %s176, 1
    %p180 = scmp.eq.s32.totalorder %s16, 1
    %p181 = scmp.ne.s32.totalorder %s176, %s178
    %p182 = scmp.eq.s32.totalorder %s16, 0
    %p183 = por %p181, %p182
    %p184 = scmp.ne.s32.totalorder %s176, %s178
    %p185 = scmp.eq.s32.totalorder %s21, 1
    %p186 = por %p184, %p185
    %p187 = scmp.ne.s32.totalorder %s178, %s179
    %p188 = scmp.eq.s32.totalorder %s21, 0
    %p189 = por %p187, %p188
    %p190 = scmp.ne.s32.totalorder %s178, %s179
    %p191 = scmp.eq.s32.totalorder %s22, 1
    %p192 = por %p190, %p191
    %p194 = scmp.ne.s32.totalorder %s179, %s193
    %p195 = scmp.eq.s32.totalorder %s22, 0
    %p196 = por %p194, %p195
    %s198 = sadd.s32 %s197, 1
    %p201 = scmp.eq.s32.totalorder %s16, 1
    %p202 = scmp.ne.s32.totalorder %s197, %s199
    %p203 = scmp.eq.s32.totalorder %s16, 0
    %p204 = por %p202, %p203
    %p205 = scmp.ne.s32.totalorder %s197, %s199
    %p206 = scmp.eq.s32.totalorder %s21, 1
    %p207 = por %p205, %p206
    %p208 = scmp.ne.s32.totalorder %s199, %s200
    %p209 = scmp.eq.s32.totalorder %s21, 0
    %p210 = por %p208, %p209
    %p211 = scmp.ne.s32.totalorder %s199, %s200
    %p212 = scmp.eq.s32.totalorder %s22, 1
    %p213 = por %p211, %p212
    %p215 = scmp.ne.s32.totalorder %s200, %s214
    %p216 = scmp.eq.s32.totalorder %s22, 0
    %p217 = por %p215, %p216
    %s219 = sadd.s32 %s218, 1
    %p222 = scmp.eq.s32.totalorder %s16, 1
    %p223 = scmp.ne.s32.totalorder %s218, %s220
    %p224 = scmp.eq.s32.totalorder %s16, 0
    %p225 = por %p223, %p224
    %p226 = scmp.ne.s32.totalorder %s218, %s220
    %p227 = scmp.eq.s32.totalorder %s21, 1
    %p228 = por %p226, %p227
    %p229 = scmp.ne.s32.totalorder %s220, %s221
    %p230 = scmp.eq.s32.totalorder %s21, 0
    %p231 = por %p229, %p230
    %p232 = scmp.ne.s32.totalorder %s220, %s221
    %p233 = scmp.eq.s32.totalorder %s22, 1
    %p234 = por %p232, %p233
    %p236 = scmp.ne.s32.totalorder %s221, %s235
    %p237 = scmp.eq.s32.totalorder %s22, 0
    %p238 = por %p236, %p237
    %s239 = ssub.s32 %s16, %s23
    %p240 = scmp.eq.s32.totalorder %s239, 0
    %s242 = sadd.s32 %s241, 1
    %s243 = scalar_select %p240, %s241, %s242
    %p246 = pneg %p240
    %p247 = scmp.eq.s32.totalorder %s16, 1
    %p248 = por %p246, %p247
    %p249 = scmp.ne.s32.totalorder %s241, %s244
    %p250 = scmp.eq.s32.totalorder %s16, 0
    %p251 = por %p249, %p250
    %p252 = scmp.ne.s32.totalorder %s241, %s244
    %p253 = scmp.eq.s32.totalorder %s21, 1
    %p254 = por %p252, %p253
    %p255 = scmp.ne.s32.totalorder %s244, %s245
    %p256 = scmp.eq.s32.totalorder %s21, 0
    %p257 = por %p255, %p256
    %p258 = scmp.ne.s32.totalorder %s244, %s245
    %p259 = scmp.eq.s32.totalorder %s22, 1
    %p260 = por %p258, %p259
    %p262 = scmp.ne.s32.totalorder %s245, %s261
    %p263 = scmp.eq.s32.totalorder %s22, 0
    %p264 = por %p262, %p263
    %p265 = scmp.le.s32.totalorder 1, %s16
    %p266 = scmp.lt.s32.totalorder %s16, 3
    %p267 = pnand %p265, %p266
    %p268 = pneg %p267
    // Predicated region
    $region9: #{inception_forward.1} parent=5 // pred_check
      _
    $region10: #{inception_forward.1} parent=5 // pred_check_branch
      %270 = sbr.rel (%p267) target = $region12
    $region11: #{inception_forward.1} parent=5 // pred_region
      %s271 = ssub.s32 %s16, 1
      // Predicated region
      $region13: #{inception_forward.1} parent=11 // pred_check
        %p272 = pneg %p63
      $region14: #{inception_forward.1} parent=11 // pred_check_branch
        %274 = sbr.rel (%p272) target = $region16
      $region15: #{inception_forward.1} parent=11 // pred_region
        _
      $region16: #{inception_forward.1} parent=11 // pred_fallthru
        _
      // Predicated region
      $region17: #{inception_forward.1} parent=11 // pred_check
        %p275 = pneg %p84
      $region18: #{inception_forward.1} parent=11 // pred_check_branch
        %277 = sbr.rel (%p275) target = $region20
      $region19: #{inception_forward.1} parent=11 // pred_region
        _
      $region20: #{inception_forward.1} parent=11 // pred_fallthru
        _
      // Predicated region
      $region21: #{inception_forward.1} parent=11 // pred_check
        %p278 = pneg %p105
      $region22: #{inception_forward.1} parent=11 // pred_check_branch
        %280 = sbr.rel (%p278) target = $region24
      $region23: #{inception_forward.1} parent=11 // pred_region
        _
      $region24: #{inception_forward.1} parent=11 // pred_fallthru
        _
      // Predicated region
      $region25: #{inception_forward.1} parent=11 // pred_check
        %p281 = pneg %p126
      $region26: #{inception_forward.1} parent=11 // pred_check_branch
        %283 = sbr.rel (%p281) target = $region28
      $region27: #{inception_forward.1} parent=11 // pred_region
        _
      $region28: #{inception_forward.1} parent=11 // pred_fallthru
        _
      // Predicated region
      $region29: #{inception_forward.1} parent=11 // pred_check
        %p284 = pneg %p147
      $region30: #{inception_forward.1} parent=11 // pred_check_branch
        %286 = sbr.rel (%p284) target = $region32
      $region31: #{inception_forward.1} parent=11 // pred_region
        _
      $region32: #{inception_forward.1} parent=11 // pred_fallthru
        _
      // Predicated region
      $region33: #{inception_forward.1} parent=11 // pred_check
        %p287 = pneg %p168
      $region34: #{inception_forward.1} parent=11 // pred_check_branch
        %289 = sbr.rel (%p287) target = $region36
      $region35: #{inception_forward.1} parent=11 // pred_region
        _
      $region36: #{inception_forward.1} parent=11 // pred_fallthru
        _
      // Predicated region
      $region37: #{inception_forward.1} parent=11 // pred_check
        %p290 = pneg %p189
      $region38: #{inception_forward.1} parent=11 // pred_check_branch
        %292 = sbr.rel (%p290) target = $region40
      $region39: #{inception_forward.1} parent=11 // pred_region
        _
      $region40: #{inception_forward.1} parent=11 // pred_fallthru
        _
      // Predicated region
      $region41: #{inception_forward.1} parent=11 // pred_check
        %p293 = pneg %p210
      $region42: #{inception_forward.1} parent=11 // pred_check_branch
        %295 = sbr.rel (%p293) target = $region44
      $region43: #{inception_forward.1} parent=11 // pred_region
        _
      $region44: #{inception_forward.1} parent=11 // pred_fallthru
        _
      // Predicated region
      $region45: #{inception_forward.1} parent=11 // pred_check
        %p296 = pneg %p231
      $region46: #{inception_forward.1} parent=11 // pred_check_branch
        %298 = sbr.rel (%p296) target = $region48
      $region47: #{inception_forward.1} parent=11 // pred_region
        _
      $region48: #{inception_forward.1} parent=11 // pred_fallthru
        _
    $region12: #{inception_forward.1} parent=5 // pred_fallthru
      _
    %p299 = scmp.lt.s32.totalorder %s16, 2
    // Predicated region
    $region49: #{inception_forward.1} parent=5 // pred_check
      %p300 = pneg %p299
    $region50: #{inception_forward.1} parent=5 // pred_check_branch
      %302 = sbr.rel (%p300) target = $region52
    $region51: #{inception_forward.1} parent=5 // pred_region
      // Predicated region
      $region53: #{inception_forward.1} parent=51 // pred_check
        %p303 = pneg %p36
      $region54: #{inception_forward.1} parent=51 // pred_check_branch
        %305 = sbr.rel (%p303) target = $region56
      $region55: #{inception_forward.1} parent=51 // pred_region
        %p306 = scmp.lt.s32.totalorder %s16, 1
        %s307 = scalar_select %p306, %s16, 1
        %s308 = smul.addr %s307, 4
        %s309 = smul.addr %s308, 4
        %s310 = scalar_lea.vmem %s0, %s309
      $region56: #{inception_forward.1} parent=51 // pred_fallthru
        _
    $region52: #{inception_forward.1} parent=5 // pred_fallthru
      _
    %p311 = scmp.le.s32.totalorder 1, %s16
    %p312 = scmp.lt.s32.totalorder %s16, 3
    %p313 = pnand %p311, %p312
    %p314 = pneg %p313
    // Predicated region
    $region57: #{inception_forward.1} parent=5 // pred_check
      _
    $region58: #{inception_forward.1} parent=5 // pred_check_branch
      %316 = sbr.rel (%p313) target = $region60
    $region59: #{inception_forward.1} parent=5 // pred_region
      %s317 = ssub.s32 %s16, 1
      %p318 = scmp.lt.s32.totalorder %s21, 1
      %s319 = scalar_select %p318, %s21, 1
      %s320 = smul.addr %s319, 4
      %s321 = smul.addr %s320, 4
      %s322 = scalar_lea.vmem %s0, %s321
      %p323 = pneg %p42
      %p324 = pneg %p39
      %p325 = pneg %p63
      %p326 = pneg %p60
      %p327 = pneg %p84
      %p328 = pneg %p81
      %p329 = pneg %p105
      %p330 = pneg %p102
      %p331 = pneg %p126
      %p332 = pneg %p123
      %p333 = pneg %p147
      %p334 = pneg %p144
      %p335 = pneg %p168
      %p336 = pneg %p165
      %p337 = pneg %p189
      %p338 = pneg %p186
      %p339 = pneg %p210
      %p340 = pneg %p207
      %p341 = pneg %p231
      %p342 = pneg %p228
      %p343 = pneg %p257
      %p344 = pneg %p254
      %p345 = scmp.lt.s32.totalorder %s21, 1
      %s346 = scalar_select %p345, %s21, 1
      %s347 = smul.addr %s346, 12
      %s348 = smul.addr %s347, 8
      %s349 = scalar_lea.vmem %s10, %s348
      %p350 = scmp.lt.s32.totalorder %s21, 1
      %s351 = scalar_select %p350, %s21, 1
      %s352 = smul.addr %s351, 4
      %s353 = smul.addr %s352, 4
      %s354 = scalar_lea.vmem %s0, %s353
      %p355 = scmp.lt.s32.totalorder %s21, 1
      %s356 = scalar_select %p355, %s21, 1
      %s357 = smul.addr %s356, 12
      %s358 = smul.addr %s357, 8
      %s359 = scalar_lea.vmem %s10, %s358
      %360 = vst [vmem:[#allocation2] sm:$0xff] 0.0
      %vm361 = vcmask 408576
      %362 = vst.msk [vmem:[#allocation2 + $0x20] sm:$0xff] %vm361, 0.0
      %v363 = vld [vmem:[%s354] sm:$0xff]
      %v364 = vld [vmem:[%s354 + $0x8] sm:$0xff]
      %v365 = vld [vmem:[%s1] sm:$0x7]
      %v366 = vld [vmem:[%s2] sm:$0xff]
      %v367 = vld [vmem:[%s2 + $0x8] sm:$0xff]
      %v368 = vld [vmem:[%s2 + $0x10] sm:$0xff]
      %v369 = vld [vmem:[%s3] sm:$0xff]
      %v370 = vld [vmem:[%s3 + $0x8] sm:$0xff]
      %v371 = vld [vmem:[%s3 + $0x10] sm:$0xff]
      %373 = vset.pattern.permute.xlu0 0
      %374 = vperm.xlu0 %373, %v369
      %v375 = vpop.permute.xlu0 %374
      %378 = vset.pattern.permute.xlu0 0
      %379 = vperm.xlu0 %378, %v370
      %v380 = vpop.permute.xlu0 %379
      %383 = vset.pattern.permute.xlu0 0
      %384 = vperm.xlu0 %383, %v371
      %v385 = vpop.permute.xlu0 %384
      %v389 = vcombine.high %v363, %v363
      %v390 = vcombine.high %v364, %v364
      %391 = vrot.lane.b32.xlu0 %v363, 102
      %v392 = vpop.permute.xlu0 %391
      %393 = vrot.lane.b32.xlu0 %v389, 102
      %v394 = vpop.permute.xlu0 %393
      %395 = vrot.lane.b32.xlu0 %v364, 102
      %v396 = vpop.permute.xlu0 %395
      %397 = vrot.lane.b32.xlu0 %v390, 102
      %v398 = vpop.permute.xlu0 %397
      %vm399 = vcmask 834560
      %v400 = vsel %vm399, %v392, %v394
      %v401 = vsel %vm399, %v394, %v396
      %v402 = vsel %vm399, %v396, %v398
      %vm403 = vcmask 31744
      %v405 = vsel %vm403, %v366, 0
      %v408 = vsel %vm403, %v367, 0
      %v411 = vsel %vm403, %v368, 0
      %vm413 = vcmask 1043456
      %v414 = vsel %vm413, %v400, 0
      %v416 = vsel %vm413, %v401, 0
      %v418 = vsel %vm413, %v402, 0
      %420 = vmatprep.subr.mxu0 0.0
      %421 = vmatpush1.msra.mxu0 0.0
      %422 = vmatprep.subr.mxu0 0.0
      %423 = vmatpush1.msra.mxu0 0.0
      %424 = vmatprep.subr.mxu0 0.0
      %425 = vmatpush1.msra.mxu0 0.0
      %426 = vmatprep.subr.mxu0 0.0
      %427 = vmatpush1.msra.mxu0 0.0
      %428 = vmatprep.subr.mxu0 0.0
      %429 = vmatpush1.msra.mxu0 0.0
      %430 = vmatprep.subr.mxu0 0.0
      %431 = vmatpush1.msra.mxu0 0.0
      %432 = vmatprep.subr.mxu0 0.0
      %433 = vmatpush1.msra.mxu0 0.0
      %434 = vmatprep.subr.mxu0 0.0
      %435 = vmatpush1.msra.mxu0 0.0
      %436 = vmatprep.subr.mxu0 0.0
      %437 = vmatpush1.msra.mxu0 0.0
      %438 = vmatprep.subr.mxu0 0.0
      %439 = vmatpush1.msra.mxu0 0.0
      %440 = vmatprep.subr.mxu0 0.0
      %441 = vmatpush1.msra.mxu0 0.0
      %442 = vmatprep.subr.mxu0 0.0
      %443 = vmatpush1.msra.mxu0 0.0
      %444 = vmatprep.subr.mxu0 0.0
      %445 = vmatpush1.msra.mxu0 0.0
      %446 = vmatprep.subr.mxu0 0.0
      %447 = vmatpush1.msra.mxu0 0.0
      %448 = vmatprep.subr.mxu0 0.0
      %449 = vmatpush1.msra.mxu0 0.0
      %450 = vmatprep.subr.mxu0 %v416
      %451 = vmatpush1.msra.mxu0 %v414
      %452 = vmatprep.subr.mxu0 0.0
      %453 = vmatpush2.msra.mxu0 0.0
      %454 = vmatprep.subr.mxu0 0.0
      %455 = vmatpush2.msra.mxu0 0.0
      %456 = vmatprep.subr.mxu0 0.0
      %457 = vmatpush2.msra.mxu0 0.0
      %458 = vmatprep.subr.mxu0 0.0
      %459 = vmatpush2.msra.mxu0 0.0
      %460 = vmatprep.subr.mxu0 0.0
      %461 = vmatpush2.msra.mxu0 0.0
      %462 = vmatprep.subr.mxu0 0.0
      %463 = vmatpush2.msra.mxu0 0.0
      %464 = vmatprep.subr.mxu0 0.0
      %465 = vmatpush2.msra.mxu0 0.0
      %466 = vmatprep.subr.mxu0 0.0
      %467 = vmatpush2.msra.mxu0 0.0
      %468 = vmatprep.subr.mxu0 0.0
      %469 = vmatpush2.msra.mxu0 0.0
      %470 = vmatprep.subr.mxu0 0.0
      %471 = vmatpush2.msra.mxu0 0.0
      %472 = vmatprep.subr.mxu0 0.0
      %473 = vmatpush2.msra.mxu0 0.0
      %474 = vmatprep.subr.mxu0 0.0
      %475 = vmatpush2.msra.mxu0 0.0
      %476 = vmatprep.subr.mxu0 0.0
      %477 = vmatpush2.msra.mxu0 0.0
      %478 = vmatprep.subr.mxu0 0.0
      %479 = vmatpush2.msra.mxu0 0.0
      %480 = vmatprep.subr.mxu0 0.0
      %481 = vmatpush2.msra.mxu0 0.0
      %482 = vmatprep.subr.mxu0 0.0
      %483 = vmatpush2.msra.mxu0 0.0
      %484 = vmatprep.mubr.f32.mxu0 0.0
      %485 = vmatmul.mubr.f32.gmra.mxu0 %v405
      %v486 = vpop.f32.mrf.mxu0
      %v487 = vadd.f32 %v375, %v486
      %v488 = vpop.f32.mrf.mxu0
      %v489 = vadd.f32 %v375, %v488
      %490 = vmatprep.mubr.f32.mxu0 0.0
      %491 = vmatmul.mubr.f32.gmra.mxu0 %v408
      %v492 = vpop.f32.mrf.mxu0
      %v493 = vadd.f32 %v380, %v492
      %v494 = vpop.f32.mrf.mxu0
      %v495 = vadd.f32 %v380, %v494
      %496 = vmatprep.mubr.f32.mxu0 0.0
      %497 = vmatmul.mubr.f32.gmra.mxu0 %v411
      %v498 = vpop.f32.mrf.mxu0
      %v499 = vadd.f32 %v385, %v498
      %v500 = vpop.f32.mrf.mxu0
      %v501 = vadd.f32 %v385, %v500
      %502 = vdwg.mxu0
      %503 = vmatprep.subr.mxu0 0.0
      %504 = vmatpush1.msra.mxu0 0.0
      %505 = vmatprep.subr.mxu0 0.0
      %506 = vmatpush1.msra.mxu0 0.0
      %507 = vmatprep.subr.mxu0 0.0
      %508 = vmatpush1.msra.mxu0 0.0
      %509 = vmatprep.subr.mxu0 0.0
      %510 = vmatpush1.msra.mxu0 0.0
      %511 = vmatprep.subr.mxu0 0.0
      %512 = vmatpush1.msra.mxu0 0.0
      %513 = vmatprep.subr.mxu0 0.0
      %514 = vmatpush1.msra.mxu0 0.0
      %515 = vmatprep.subr.mxu0 0.0
      %516 = vmatpush1.msra.mxu0 0.0
      %517 = vmatprep.subr.mxu0 0.0
      %518 = vmatpush1.msra.mxu0 0.0
      %519 = vmatprep.subr.mxu0 0.0
      %520 = vmatpush1.msra.mxu0 0.0
      %521 = vmatprep.subr.mxu0 0.0
      %522 = vmatpush1.msra.mxu0 0.0
      %523 = vmatprep.subr.mxu0 0.0
      %524 = vmatpush1.msra.mxu0 0.0
      %525 = vmatprep.subr.mxu0 0.0
      %526 = vmatpush1.msra.mxu0 0.0
      %527 = vmatprep.subr.mxu0 0.0
      %528 = vmatpush1.msra.mxu0 0.0
      %529 = vmatprep.subr.mxu0 0.0
      %530 = vmatpush1.msra.mxu0 0.0
      %531 = vmatprep.subr.mxu0 0.0
      %532 = vmatpush1.msra.mxu0 0.0
      %533 = vmatprep.subr.mxu0 0.0
      %534 = vmatpush1.msra.mxu0 %v418
      %535 = vmatprep.subr.mxu0 0.0
      %536 = vmatpush2.msra.mxu0 0.0
      %537 = vmatprep.subr.mxu0 0.0
      %538 = vmatpush2.msra.mxu0 0.0
      %539 = vmatprep.subr.mxu0 0.0
      %540 = vmatpush2.msra.mxu0 0.0
      %541 = vmatprep.subr.mxu0 0.0
      %542 = vmatpush2.msra.mxu0 0.0
      %543 = vmatprep.subr.mxu0 0.0
      %544 = vmatpush2.msra.mxu0 0.0
      %545 = vmatprep.subr.mxu0 0.0
      %546 = vmatpush2.msra.mxu0 0.0
      %547 = vmatprep.subr.mxu0 0.0
      %548 = vmatpush2.msra.mxu0 0.0
      %549 = vmatprep.subr.mxu0 0.0
      %550 = vmatpush2.msra.mxu0 0.0
      %551 = vmatprep.subr.mxu0 0.0
      %552 = vmatpush2.msra.mxu0 0.0
      %553 = vmatprep.subr.mxu0 0.0
      %554 = vmatpush2.msra.mxu0 0.0
      %555 = vmatprep.subr.mxu0 0.0
      %556 = vmatpush2.msra.mxu0 0.0
      %557 = vmatprep.subr.mxu0 0.0
      %558 = vmatpush2.msra.mxu0 0.0
      %559 = vmatprep.subr.mxu0 0.0
      %560 = vmatpush2.msra.mxu0 0.0
      %561 = vmatprep.subr.mxu0 0.0
      %562 = vmatpush2.msra.mxu0 0.0
      %563 = vmatprep.subr.mxu0 0.0
      %564 = vmatpush2.msra.mxu0 0.0
      %565 = vmatprep.subr.mxu0 0.0
      %566 = vmatpush2.msra.mxu0 0.0
      %567 = vmatprep.mubr.f32.mxu0 0.0
      %568 = vmatmul.mubr.f32.gmra.mxu0 %v405
      %v569 = vpop.f32.mrf.mxu0
      %v570 = vadd.f32 %v375, %v569
      %v571 = vpop.f32.mrf.mxu0
      %572 = vmatprep.mubr.f32.mxu0 0.0
      %573 = vmatmul.mubr.f32.gmra.mxu0 %v408
      %v574 = vpop.f32.mrf.mxu0
      %v575 = vadd.f32 %v380, %v574
      %v576 = vpop.f32.mrf.mxu0
      %577 = vmatprep.mubr.f32.mxu0 0.0
      %578 = vmatmul.mubr.f32.gmra.mxu0 %v411
      %v579 = vpop.f32.mrf.mxu0
      %v580 = vadd.f32 %v385, %v579
      %v581 = vpop.f32.mrf.mxu0
      %582 = vdwg.mxu0
      %v583 = vmax.f32 %v487, 0.0
      %v584 = vmax.f32 %v489, 0.0
      %v585 = vmax.f32 %v570, 0.0
      %v586 = vmax.f32 %v493, 0.0
      %v587 = vmax.f32 %v495, 0.0
      %v588 = vmax.f32 %v575, 0.0
      %v589 = vmax.f32 %v499, 0.0
      %v590 = vmax.f32 %v501, 0.0
      %v591 = vmax.f32 %v580, 0.0
      %v593 = vlaneseq
      %v594 = vshrl.u32 %v593, 7
      %v595 = vsub.s32 0, %v594
      %v596 = vrot.slane %v365, %v595
      %v597 = vlaneseq
      %v598 = vshrl.u32 %v597, 7
      %v599 = vsub.s32 1, %v598
      %v600 = vrot.slane %v365, %v599
      %v601 = vlaneseq
      %v602 = vshrl.u32 %v601, 7
      %v603 = vsub.s32 2, %v602
      %v604 = vrot.slane %v365, %v603
      %v608 = vmul.f32 %v586, %v596
      %v609 = vmul.f32 %v587, %v600
      %v610 = vmul.f32 %v588, %v604
      %v611 = vmul.f32 %v589, %v596
      %v612 = vmul.f32 %v590, %v600
      %v613 = vmul.f32 %v591, %v604
      %614 = vst [vmem:[%s359] sm:$0xff] %v583
      %615 = vst [vmem:[%s359 + $0x8] sm:$0xff] %v584
      %616 = vst [vmem:[%s359 + $0x10] sm:$0xff] %v585
      %617 = vrot.lane.b32.xlu0 %v363, 127
      %v618 = vpop.permute.xlu0 %617
      %619 = vrot.lane.b32.xlu0 %v364, 127
      %v620 = vpop.permute.xlu0 %619
      %v621 = vrot.slane %v618, 4
      %v622 = vrot.slane %v620, 4
      %v623 = vsel %vm413, %v621, %v622
      %vm624 = vcmask 1039360
      %v625 = vsel %vm624, %v618, %v623
      %v626 = vsel %vm624, %v620, %v622
      %v629 = vmax.f32 %v363, %v625
      %v630 = vmax.f32 %v364, %v626
      %631 = vrot.lane.b32.xlu0 %v363, 126
      %v632 = vpop.permute.xlu0 %631
      %633 = vrot.lane.b32.xlu0 %v364, 126
      %v634 = vpop.permute.xlu0 %633
      %v635 = vrot.slane %v632, 4
      %v636 = vrot.slane %v634, 4
      %v637 = vsel %vm413, %v635, %v636
      %vm638 = vcmask 1031168
      %v639 = vsel %vm638, %v632, %v637
      %v640 = vsel %vm638, %v634, %v636
      %v643 = vmax.f32 %v629, %v639
      %v644 = vmax.f32 %v630, %v640
      %645 = vrot.lane.b32.xlu0 %v363, 104
      %v646 = vpop.permute.xlu0 %645
      %647 = vrot.lane.b32.xlu0 %v364, 104
      %v648 = vpop.permute.xlu0 %647
      %v649 = vrot.slane %v646, 4
      %v650 = vrot.slane %v648, 4
      %v651 = vsel %vm413, %v649, %v650
      %vm652 = vcmask 850944
      %v653 = vsel %vm652, %v646, %v651
      %v654 = vsel %vm652, %v648, %v650
      %v657 = vmax.f32 %v643, %v653
      %v658 = vmax.f32 %v644, %v654
      %659 = vrot.lane.b32.xlu0 %v363, 103
      %v660 = vpop.permute.xlu0 %659
      %661 = vrot.lane.b32.xlu0 %v364, 103
      %v662 = vpop.permute.xlu0 %661
      %v663 = vrot.slane %v660, 4
      %v664 = vrot.slane %v662, 4
      %v665 = vsel %vm413, %v663, %v664
      %vm666 = vcmask 842752
      %v667 = vsel %vm666, %v660, %v665
      %v668 = vsel %vm666, %v662, %v664
      %v671 = vmax.f32 %v657, %v667
      %v672 = vmax.f32 %v658, %v668
      %v673 = vrot.slane %v392, 4
      %v674 = vrot.slane %v396, 4
      %v675 = vsel %vm413, %v673, %v674
      %v676 = vsel %vm399, %v392, %v675
      %v677 = vsel %vm399, %v396, %v674
      %v680 = vmax.f32 %v671, %v676
      %v681 = vmax.f32 %v672, %v677
      %682 = vrot.lane.b32.xlu0 %v363, 80
      %v683 = vpop.permute.xlu0 %682
      %684 = vrot.lane.b32.xlu0 %v364, 80
      %v685 = vpop.permute.xlu0 %684
      %v686 = vrot.slane %v683, 4
      %v687 = vrot.slane %v685, 4
      %v688 = vsel %vm413, %v686, %v687
      %vm689 = vcmask 654336
      %v690 = vsel %vm689, %v683, %v688
      %v691 = vsel %vm689, %v685, %v687
      %v694 = vmax.f32 %v680, %v690
      %v695 = vmax.f32 %v681, %v691
      %696 = vrot.lane.b32.xlu0 %v363, 79
      %v697 = vpop.permute.xlu0 %696
      %698 = vrot.lane.b32.xlu0 %v364, 79
      %v699 = vpop.permute.xlu0 %698
      %v700 = vrot.slane %v697, 4
      %v701 = vrot.slane %v699, 4
      %v702 = vsel %vm413, %v700, %v701
      %vm703 = vcmask 646144
      %v704 = vsel %vm703, %v697, %v702
      %v705 = vsel %vm703, %v699, %v701
      %v708 = vmax.f32 %v694, %v704
      %v709 = vmax.f32 %v695, %v705
      %710 = vrot.lane.b32.xlu0 %v363, 78
      %v711 = vpop.permute.xlu0 %710
      %712 = vrot.lane.b32.xlu0 %v364, 78
      %v713 = vpop.permute.xlu0 %712
      %v714 = vrot.slane %v711, 4
      %v715 = vrot.slane %v713, 4
      %v716 = vsel %vm413, %v714, %v715
      %vm717 = vcmask 637952
      %v718 = vsel %vm717, %v711, %v716
      %v719 = vsel %vm717, %v713, %v715
      %v722 = vmax.f32 %v708, %v718
      %v723 = vmax.f32 %v709, %v719
      %v724 = vld [vmem:[%s8] sm:$0xff]
      %v725 = vld [vmem:[%s9] sm:$0xff]
      %727 = vset.pattern.permute.xlu0 0
      %728 = vperm.xlu0 %727, %v725
      %v729 = vpop.permute.xlu0 %728
      %v733 = vcombine.high %v722, %v722
      %v734 = vcombine.high %v723, %v723
      %735 = vrot.lane.b32.xlu0 %v722, 127
      %v736 = vpop.permute.xlu0 %735
      %737 = vrot.lane.b32.xlu0 %v733, 127
      %v738 = vpop.permute.xlu0 %737
      %739 = vrot.lane.b32.xlu0 %v723, 127
      %v740 = vpop.permute.xlu0 %739
      %741 = vrot.lane.b32.xlu0 %v734, 127
      %v742 = vpop.permute.xlu0 %741
      %v743 = vsel %vm624, %v736, %v738
      %v744 = vsel %vm624, %v738, %v740
      %v745 = vsel %vm624, %v740, %v742
      %v747 = vsel %vm403, %v724, 0
      %v749 = vsel %vm413, %v743, 0
      %v751 = vsel %vm413, %v744, 0
      %v753 = vsel %vm413, %v745, 0
      %755 = vmatprep.subr.mxu0 0.0
      %756 = vmatpush1.msra.mxu0 0.0
      %757 = vmatprep.subr.mxu0 0.0
      %758 = vmatpush1.msra.mxu0 0.0
      %759 = vmatprep.subr.mxu0 0.0
      %760 = vmatpush1.msra.mxu0 0.0
      %761 = vmatprep.subr.mxu0 0.0
      %762 = vmatpush1.msra.mxu0 0.0
      %763 = vmatprep.subr.mxu0 0.0
      %764 = vmatpush1.msra.mxu0 0.0
      %765 = vmatprep.subr.mxu0 0.0
      %766 = vmatpush1.msra.mxu0 0.0
      %767 = vmatprep.subr.mxu0 0.0
      %768 = vmatpush1.msra.mxu0 0.0
      %769 = vmatprep.subr.mxu0 0.0
      %770 = vmatpush1.msra.mxu0 0.0
      %771 = vmatprep.subr.mxu0 0.0
      %772 = vmatpush1.msra.mxu0 0.0
      %773 = vmatprep.subr.mxu0 0.0
      %774 = vmatpush1.msra.mxu0 0.0
      %775 = vmatprep.subr.mxu0 0.0
      %776 = vmatpush1.msra.mxu0 0.0
      %777 = vmatprep.subr.mxu0 0.0
      %778 = vmatpush1.msra.mxu0 0.0
      %779 = vmatprep.subr.mxu0 0.0
      %780 = vmatpush1.msra.mxu0 0.0
      %781 = vmatprep.subr.mxu0 0.0
      %782 = vmatpush1.msra.mxu0 0.0
      %783 = vmatprep.subr.mxu0 0.0
      %784 = vmatpush1.msra.mxu0 0.0
      %785 = vmatprep.subr.mxu0 %v751
      %786 = vmatpush1.msra.mxu0 %v749
      %787 = vmatprep.subr.mxu0 0.0
      %788 = vmatpush2.msra.mxu0 0.0
      %789 = vmatprep.subr.mxu0 0.0
      %790 = vmatpush2.msra.mxu0 0.0
      %791 = vmatprep.subr.mxu0 0.0
      %792 = vmatpush2.msra.mxu0 0.0
      %793 = vmatprep.subr.mxu0 0.0
      %794 = vmatpush2.msra.mxu0 0.0
      %795 = vmatprep.subr.mxu0 0.0
      %796 = vmatpush2.msra.mxu0 0.0
      %797 = vmatprep.subr.mxu0 0.0
      %798 = vmatpush2.msra.mxu0 0.0
      %799 = vmatprep.subr.mxu0 0.0
      %800 = vmatpush2.msra.mxu0 0.0
      %801 = vmatprep.subr.mxu0 0.0
      %802 = vmatpush2.msra.mxu0 0.0
      %803 = vmatprep.subr.mxu0 0.0
      %804 = vmatpush2.msra.mxu0 0.0
      %805 = vmatprep.subr.mxu0 0.0
      %806 = vmatpush2.msra.mxu0 0.0
      %807 = vmatprep.subr.mxu0 0.0
      %808 = vmatpush2.msra.mxu0 0.0
      %809 = vmatprep.subr.mxu0 0.0
      %810 = vmatpush2.msra.mxu0 0.0
      %811 = vmatprep.subr.mxu0 0.0
      %812 = vmatpush2.msra.mxu0 0.0
      %813 = vmatprep.subr.mxu0 0.0
      %814 = vmatpush2.msra.mxu0 0.0
      %815 = vmatprep.subr.mxu0 0.0
      %816 = vmatpush2.msra.mxu0 0.0
      %817 = vmatprep.subr.mxu0 0.0
      %818 = vmatpush2.msra.mxu0 0.0
      %819 = vmatprep.mubr.f32.mxu0 0.0
      %820 = vmatmul.mubr.f32.gmra.mxu0 %v747
      %v821 = vpop.f32.mrf.mxu0
      %v822 = vadd.f32 %v729, %v821
      %v823 = vpop.f32.mrf.mxu0
      %v824 = vadd.f32 %v729, %v823
      %825 = vdwg.mxu0
      %826 = vmatprep.subr.mxu0 0.0
      %827 = vmatpush1.msra.mxu0 0.0
      %828 = vmatprep.subr.mxu0 0.0
      %829 = vmatpush1.msra.mxu0 0.0
      %830 = vmatprep.subr.mxu0 0.0
      %831 = vmatpush1.msra.mxu0 0.0
      %832 = vmatprep.subr.mxu0 0.0
      %833 = vmatpush1.msra.mxu0 0.0
      %834 = vmatprep.subr.mxu0 0.0
      %835 = vmatpush1.msra.mxu0 0.0
      %836 = vmatprep.subr.mxu0 0.0
      %837 = vmatpush1.msra.mxu0 0.0
      %838 = vmatprep.subr.mxu0 0.0
      %839 = vmatpush1.msra.mxu0 0.0
      %840 = vmatprep.subr.mxu0 0.0
      %841 = vmatpush1.msra.mxu0 0.0
      %842 = vmatprep.subr.mxu0 0.0
      %843 = vmatpush1.msra.mxu0 0.0
      %844 = vmatprep.subr.mxu0 0.0
      %845 = vmatpush1.msra.mxu0 0.0
      %846 = vmatprep.subr.mxu0 0.0
      %847 = vmatpush1.msra.mxu0 0.0
      %848 = vmatprep.subr.mxu0 0.0
      %849 = vmatpush1.msra.mxu0 0.0
      %850 = vmatprep.subr.mxu0 0.0
      %851 = vmatpush1.msra.mxu0 0.0
      %852 = vmatprep.subr.mxu0 0.0
      %853 = vmatpush1.msra.mxu0 0.0
      %854 = vmatprep.subr.mxu0 0.0
      %855 = vmatpush1.msra.mxu0 0.0
      %856 = vmatprep.subr.mxu0 0.0
      %857 = vmatpush1.msra.mxu0 %v753
      %858 = vmatprep.subr.mxu0 0.0
      %859 = vmatpush2.msra.mxu0 0.0
      %860 = vmatprep.subr.mxu0 0.0
      %861 = vmatpush2.msra.mxu0 0.0
      %862 = vmatprep.subr.mxu0 0.0
      %863 = vmatpush2.msra.mxu0 0.0
      %864 = vmatprep.subr.mxu0 0.0
      %865 = vmatpush2.msra.mxu0 0.0
      %866 = vmatprep.subr.mxu0 0.0
      %867 = vmatpush2.msra.mxu0 0.0
      %868 = vmatprep.subr.mxu0 0.0
      %869 = vmatpush2.msra.mxu0 0.0
      %870 = vmatprep.subr.mxu0 0.0
      %871 = vmatpush2.msra.mxu0 0.0
      %872 = vmatprep.subr.mxu0 0.0
      %873 = vmatpush2.msra.mxu0 0.0
      %874 = vmatprep.subr.mxu0 0.0
      %875 = vmatpush2.msra.mxu0 0.0
      %876 = vmatprep.subr.mxu0 0.0
      %877 = vmatpush2.msra.mxu0 0.0
      %878 = vmatprep.subr.mxu0 0.0
      %879 = vmatpush2.msra.mxu0 0.0
      %880 = vmatprep.subr.mxu0 0.0
      %881 = vmatpush2.msra.mxu0 0.0
      %882 = vmatprep.subr.mxu0 0.0
      %883 = vmatpush2.msra.mxu0 0.0
      %884 = vmatprep.subr.mxu0 0.0
      %885 = vmatpush2.msra.mxu0 0.0
      %886 = vmatprep.subr.mxu0 0.0
      %887 = vmatpush2.msra.mxu0 0.0
      %888 = vmatprep.subr.mxu0 0.0
      %889 = vmatpush2.msra.mxu0 0.0
      %890 = vmatprep.mubr.f32.mxu0 0.0
      %891 = vmatmul.mubr.f32.gmra.mxu0 %v747
      %v892 = vpop.f32.mrf.mxu0
      %v893 = vadd.f32 %v729, %v892
      %v894 = vpop.f32.mrf.mxu0
      %895 = vdwg.mxu0
      %v896 = vmax.f32 %v822, 0.0
      %v897 = vmax.f32 %v824, 0.0
      %v898 = vmax.f32 %v893, 0.0
      %899 = vst [vmem:[%s359 + $0x48] sm:$0xff] %v896
      %900 = vst [vmem:[%s359 + $0x50] sm:$0xff] %v897
      %901 = vst [vmem:[%s359 + $0x58] sm:$0xff] %v898
      %902 = vst [vmem:[#allocation2 + $0x8] sm:$0xff] %v608
      %903 = vst [vmem:[#allocation2 + $0x10] sm:$0xff] %v609
      %904 = vst [vmem:[#allocation2 + $0x18] sm:$0xff] %v610
      %v905 = vld [vmem:[#allocation2] sm:$0xff]
      %v906 = vld [vmem:[#allocation2 + $0x8] sm:$0xff]
      %v907 = vld [vmem:[#allocation2 + $0x10] sm:$0xff]
      %v908 = vld [vmem:[#allocation2 + $0x18] sm:$0xff]
      %v909 = vld [vmem:[%s4] sm:$0xff]
      %s910 = scalar_lea.vmem %s4, 8
      %v911 = vld [vmem:[%s910] sm:$0xff]
      %916 = vrot.lane.b32.xlu0 %v905, 24
      %v917 = vpop.permute.xlu0 %916
      %918 = vrot.lane.b32.xlu0 %v906, 24
      %v919 = vpop.permute.xlu0 %918
      %920 = vrot.lane.b32.xlu0 %v907, 24
      %v921 = vpop.permute.xlu0 %920
      %922 = vrot.lane.b32.xlu0 %v908, 24
      %v923 = vpop.permute.xlu0 %922
      %vm924 = vcmask 195584
      %v925 = vsel %vm924, %v917, %v919
      %v926 = vsel %vm924, %v919, %v921
      %v927 = vsel %vm924, %v921, %v923
      %vm931 = vcmask 64512
      %v933 = vsel %vm931, %v911, 0
      %935 = vmatprep.subr.mxu0 0.0
      %936 = vmatpush1.msra.mxu0 0.0
      %937 = vmatprep.subr.mxu0 0.0
      %938 = vmatpush1.msra.mxu0 0.0
      %939 = vmatprep.subr.mxu0 0.0
      %940 = vmatpush1.msra.mxu0 0.0
      %941 = vmatprep.subr.mxu0 0.0
      %942 = vmatpush1.msra.mxu0 0.0
      %943 = vmatprep.subr.mxu0 0.0
      %944 = vmatpush1.msra.mxu0 0.0
      %945 = vmatprep.subr.mxu0 0.0
      %946 = vmatpush1.msra.mxu0 0.0
      %947 = vmatprep.subr.mxu0 0.0
      %948 = vmatpush1.msra.mxu0 0.0
      %949 = vmatprep.subr.mxu0 0.0
      %950 = vmatpush1.msra.mxu0 0.0
      %951 = vmatprep.subr.mxu0 0.0
      %952 = vmatpush1.msra.mxu0 0.0
      %953 = vmatprep.subr.mxu0 0.0
      %954 = vmatpush1.msra.mxu0 0.0
      %955 = vmatprep.subr.mxu0 0.0
      %956 = vmatpush1.msra.mxu0 0.0
      %957 = vmatprep.subr.mxu0 0.0
      %958 = vmatpush1.msra.mxu0 0.0
      %959 = vmatprep.subr.mxu0 0.0
      %960 = vmatpush1.msra.mxu0 0.0
      %961 = vmatprep.subr.mxu0 0.0
      %962 = vmatpush1.msra.mxu0 0.0
      %963 = vmatprep.subr.mxu0 0.0
      %964 = vmatpush1.msra.mxu0 0.0
      %965 = vmatprep.subr.mxu0 %v926
      %966 = vmatpush1.msra.mxu0 %v925
      %967 = vmatprep.subr.mxu0 0.0
      %968 = vmatpush2.msra.mxu0 0.0
      %969 = vmatprep.subr.mxu0 0.0
      %970 = vmatpush2.msra.mxu0 0.0
      %971 = vmatprep.subr.mxu0 0.0
      %972 = vmatpush2.msra.mxu0 0.0
      %973 = vmatprep.subr.mxu0 0.0
      %974 = vmatpush2.msra.mxu0 0.0
      %975 = vmatprep.subr.mxu0 0.0
      %976 = vmatpush2.msra.mxu0 0.0
      %977 = vmatprep.subr.mxu0 0.0
      %978 = vmatpush2.msra.mxu0 0.0
      %979 = vmatprep.subr.mxu0 0.0
      %980 = vmatpush2.msra.mxu0 0.0
      %981 = vmatprep.subr.mxu0 0.0
      %982 = vmatpush2.msra.mxu0 0.0
      %983 = vmatprep.subr.mxu0 0.0
      %984 = vmatpush2.msra.mxu0 0.0
      %985 = vmatprep.subr.mxu0 0.0
      %986 = vmatpush2.msra.mxu0 0.0
      %987 = vmatprep.subr.mxu0 0.0
      %988 = vmatpush2.msra.mxu0 0.0
      %989 = vmatprep.subr.mxu0 0.0
      %990 = vmatpush2.msra.mxu0 0.0
      %991 = vmatprep.subr.mxu0 0.0
      %992 = vmatpush2.msra.mxu0 0.0
      %993 = vmatprep.subr.mxu0 0.0
      %994 = vmatpush2.msra.mxu0 0.0
      %995 = vmatprep.subr.mxu0 0.0
      %996 = vmatpush2.msra.mxu0 0.0
      %997 = vmatprep.subr.mxu0 0.0
      %998 = vmatpush2.msra.mxu0 0.0
      %999 = vmatprep.mubr.f32.mxu0 0.0
      %1000 = vmatmul.mubr.f32.gmra.mxu0 %v933
      %v1001 = vpop.f32.mrf.mxu0
      %v1002 = vadd.f32 0.0, %v1001
      %v1003 = vpop.f32.mrf.mxu0
      %v1004 = vadd.f32 0.0, %v1003
      %1005 = vdwg.mxu0
      %1006 = vmatprep.subr.mxu0 0.0
      %1007 = vmatpush1.msra.mxu0 0.0
      %1008 = vmatprep.subr.mxu0 0.0
      %1009 = vmatpush1.msra.mxu0 0.0
      %1010 = vmatprep.subr.mxu0 0.0
      %1011 = vmatpush1.msra.mxu0 0.0
      %1012 = vmatprep.subr.mxu0 0.0
      %1013 = vmatpush1.msra.mxu0 0.0
      %1014 = vmatprep.subr.mxu0 0.0
      %1015 = vmatpush1.msra.mxu0 0.0
      %1016 = vmatprep.subr.mxu0 0.0
      %1017 = vmatpush1.msra.mxu0 0.0
      %1018 = vmatprep.subr.mxu0 0.0
      %1019 = vmatpush1.msra.mxu0 0.0
      %1020 = vmatprep.subr.mxu0 0.0
      %1021 = vmatpush1.msra.mxu0 0.0
      %1022 = vmatprep.subr.mxu0 0.0
      %1023 = vmatpush1.msra.mxu0 0.0
      %1024 = vmatprep.subr.mxu0 0.0
      %1025 = vmatpush1.msra.mxu0 0.0
      %1026 = vmatprep.subr.mxu0 0.0
      %1027 = vmatpush1.msra.mxu0 0.0
      %1028 = vmatprep.subr.mxu0 0.0
      %1029 = vmatpush1.msra.mxu0 0.0
      %1030 = vmatprep.subr.mxu0 0.0
      %1031 = vmatpush1.msra.mxu0 0.0
      %1032 = vmatprep.subr.mxu0 0.0
      %1033 = vmatpush1.msra.mxu0 0.0
      %1034 = vmatprep.subr.mxu0 0.0
      %1035 = vmatpush1.msra.mxu0 0.0
      %1036 = vmatprep.subr.mxu0 0.0
      %1037 = vmatpush1.msra.mxu0 %v927
      %1038 = vmatprep.subr.mxu0 0.0
      %1039 = vmatpush2.msra.mxu0 0.0
      %1040 = vmatprep.subr.mxu0 0.0
      %1041 = vmatpush2.msra.mxu0 0.0
      %1042 = vmatprep.subr.mxu0 0.0
      %1043 = vmatpush2.msra.mxu0 0.0
      %1044 = vmatprep.subr.mxu0 0.0
      %1045 = vmatpush2.msra.mxu0 0.0
      %1046 = vmatprep.subr.mxu0 0.0
      %1047 = vmatpush2.msra.mxu0 0.0
      %1048 = vmatprep.subr.mxu0 0.0
      %1049 = vmatpush2.msra.mxu0 0.0
      %1050 = vmatprep.subr.mxu0 0.0
      %1051 = vmatpush2.msra.mxu0 0.0
      %1052 = vmatprep.subr.mxu0 0.0
      %1053 = vmatpush2.msra.mxu0 0.0
      %1054 = vmatprep.subr.mxu0 0.0
      %1055 = vmatpush2.msra.mxu0 0.0
      %1056 = vmatprep.subr.mxu0 0.0
      %1057 = vmatpush2.msra.mxu0 0.0
      %1058 = vmatprep.subr.mxu0 0.0
      %1059 = vmatpush2.msra.mxu0 0.0
      %1060 = vmatprep.subr.mxu0 0.0
      %1061 = vmatpush2.msra.mxu0 0.0
      %1062 = vmatprep.subr.mxu0 0.0
      %1063 = vmatpush2.msra.mxu0 0.0
      %1064 = vmatprep.subr.mxu0 0.0
      %1065 = vmatpush2.msra.mxu0 0.0
      %1066 = vmatprep.subr.mxu0 0.0
      %1067 = vmatpush2.msra.mxu0 0.0
      %1068 = vmatprep.subr.mxu0 0.0
      %1069 = vmatpush2.msra.mxu0 0.0
      %1070 = vmatprep.mubr.f32.mxu0 0.0
      %1071 = vmatmul.mubr.f32.gmra.mxu0 %v933
      %v1072 = vpop.f32.mrf.mxu0
      %v1073 = vadd.f32 0.0, %v1072
      %v1074 = vpop.f32.mrf.mxu0
      %1075 = vdwg.mxu0
      %1076 = vrot.lane.b32.xlu0 %v905, 25
      %v1077 = vpop.permute.xlu0 %1076
      %1078 = vrot.lane.b32.xlu0 %v906, 25
      %v1079 = vpop.permute.xlu0 %1078
      %1080 = vrot.lane.b32.xlu0 %v907, 25
      %v1081 = vpop.permute.xlu0 %1080
      %1082 = vrot.lane.b32.xlu0 %v908, 25
      %v1083 = vpop.permute.xlu0 %1082
      %vm1084 = vcmask 203776
      %v1085 = vsel %vm1084, %v1077, %v1079
      %v1086 = vsel %vm1084, %v1079, %v1081
      %v1087 = vsel %vm1084, %v1081, %v1083
      %v1092 = vsel %vm931, %v909, 0
      %1094 = vmatprep.subr.mxu0 0.0
      %1095 = vmatpush1.msra.mxu0 0.0
      %1096 = vmatprep.subr.mxu0 0.0
      %1097 = vmatpush1.msra.mxu0 0.0
      %1098 = vmatprep.subr.mxu0 0.0
      %1099 = vmatpush1.msra.mxu0 0.0
      %1100 = vmatprep.subr.mxu0 0.0
      %1101 = vmatpush1.msra.mxu0 0.0
      %1102 = vmatprep.subr.mxu0 0.0
      %1103 = vmatpush1.msra.mxu0 0.0
      %1104 = vmatprep.subr.mxu0 0.0
      %1105 = vmatpush1.msra.mxu0 0.0
      %1106 = vmatprep.subr.mxu0 0.0
      %1107 = vmatpush1.msra.mxu0 0.0
      %1108 = vmatprep.subr.mxu0 0.0
      %1109 = vmatpush1.msra.mxu0 0.0
      %1110 = vmatprep.subr.mxu0 0.0
      %1111 = vmatpush1.msra.mxu0 0.0
      %1112 = vmatprep.subr.mxu0 0.0
      %1113 = vmatpush1.msra.mxu0 0.0
      %1114 = vmatprep.subr.mxu0 0.0
      %1115 = vmatpush1.msra.mxu0 0.0
      %1116 = vmatprep.subr.mxu0 0.0
      %1117 = vmatpush1.msra.mxu0 0.0
      %1118 = vmatprep.subr.mxu0 0.0
      %1119 = vmatpush1.msra.mxu0 0.0
      %1120 = vmatprep.subr.mxu0 0.0
      %1121 = vmatpush1.msra.mxu0 0.0
      %1122 = vmatprep.subr.mxu0 0.0
      %1123 = vmatpush1.msra.mxu0 0.0
      %1124 = vmatprep.subr.mxu0 %v1086
      %1125 = vmatpush1.msra.mxu0 %v1085
      %1126 = vmatprep.subr.mxu0 0.0
      %1127 = vmatpush2.msra.mxu0 0.0
      %1128 = vmatprep.subr.mxu0 0.0
      %1129 = vmatpush2.msra.mxu0 0.0
      %1130 = vmatprep.subr.mxu0 0.0
      %1131 = vmatpush2.msra.mxu0 0.0
      %1132 = vmatprep.subr.mxu0 0.0
      %1133 = vmatpush2.msra.mxu0 0.0
      %1134 = vmatprep.subr.mxu0 0.0
      %1135 = vmatpush2.msra.mxu0 0.0
      %1136 = vmatprep.subr.mxu0 0.0
      %1137 = vmatpush2.msra.mxu0 0.0
      %1138 = vmatprep.subr.mxu0 0.0
      %1139 = vmatpush2.msra.mxu0 0.0
      %1140 = vmatprep.subr.mxu0 0.0
      %1141 = vmatpush2.msra.mxu0 0.0
      %1142 = vmatprep.subr.mxu0 0.0
      %1143 = vmatpush2.msra.mxu0 0.0
      %1144 = vmatprep.subr.mxu0 0.0
      %1145 = vmatpush2.msra.mxu0 0.0
      %1146 = vmatprep.subr.mxu0 0.0
      %1147 = vmatpush2.msra.mxu0 0.0
      %1148 = vmatprep.subr.mxu0 0.0
      %1149 = vmatpush2.msra.mxu0 0.0
      %1150 = vmatprep.subr.mxu0 0.0
      %1151 = vmatpush2.msra.mxu0 0.0
      %1152 = vmatprep.subr.mxu0 0.0
      %1153 = vmatpush2.msra.mxu0 0.0
      %1154 = vmatprep.subr.mxu0 0.0
      %1155 = vmatpush2.msra.mxu0 0.0
      %1156 = vmatprep.subr.mxu0 0.0
      %1157 = vmatpush2.msra.mxu0 0.0
      %1158 = vmatprep.mubr.f32.mxu0 0.0
      %1159 = vmatmul.mubr.f32.gmra.mxu0 %v1092
      %v1160 = vpop.f32.mrf.mxu0
      %v1161 = vadd.f32 %v1002, %v1160
      %v1162 = vpop.f32.mrf.mxu0
      %v1163 = vadd.f32 %v1004, %v1162
      %1164 = vdwg.mxu0
      %1165 = vmatprep.subr.mxu0 0.0
      %1166 = vmatpush1.msra.mxu0 0.0
      %1167 = vmatprep.subr.mxu0 0.0
      %1168 = vmatpush1.msra.mxu0 0.0
      %1169 = vmatprep.subr.mxu0 0.0
      %1170 = vmatpush1.msra.mxu0 0.0
      %1171 = vmatprep.subr.mxu0 0.0
      %1172 = vmatpush1.msra.mxu0 0.0
      %1173 = vmatprep.subr.mxu0 0.0
      %1174 = vmatpush1.msra.mxu0 0.0
      %1175 = vmatprep.subr.mxu0 0.0
      %1176 = vmatpush1.msra.mxu0 0.0
      %1177 = vmatprep.subr.mxu0 0.0
      %1178 = vmatpush1.msra.mxu0 0.0
      %1179 = vmatprep.subr.mxu0 0.0
      %1180 = vmatpush1.msra.mxu0 0.0
      %1181 = vmatprep.subr.mxu0 0.0
      %1182 = vmatpush1.msra.mxu0 0.0
      %1183 = vmatprep.subr.mxu0 0.0
      %1184 = vmatpush1.msra.mxu0 0.0
      %1185 = vmatprep.subr.mxu0 0.0
      %1186 = vmatpush1.msra.mxu0 0.0
      %1187 = vmatprep.subr.mxu0 0.0
      %1188 = vmatpush1.msra.mxu0 0.0
      %1189 = vmatprep.subr.mxu0 0.0
      %1190 = vmatpush1.msra.mxu0 0.0
      %1191 = vmatprep.subr.mxu0 0.0
      %1192 = vmatpush1.msra.mxu0 0.0
      %1193 = vmatprep.subr.mxu0 0.0
      %1194 = vmatpush1.msra.mxu0 0.0
      %1195 = vmatprep.subr.mxu0 0.0
      %1196 = vmatpush1.msra.mxu0 %v1087
      %1197 = vmatprep.subr.mxu0 0.0
      %1198 = vmatpush2.msra.mxu0 0.0
      %1199 = vmatprep.subr.mxu0 0.0
      %1200 = vmatpush2.msra.mxu0 0.0
      %1201 = vmatprep.subr.mxu0 0.0
      %1202 = vmatpush2.msra.mxu0 0.0
      %1203 = vmatprep.subr.mxu0 0.0
      %1204 = vmatpush2.msra.mxu0 0.0
      %1205 = vmatprep.subr.mxu0 0.0
      %1206 = vmatpush2.msra.mxu0 0.0
      %1207 = vmatprep.subr.mxu0 0.0
      %1208 = vmatpush2.msra.mxu0 0.0
      %1209 = vmatprep.subr.mxu0 0.0
      %1210 = vmatpush2.msra.mxu0 0.0
      %1211 = vmatprep.subr.mxu0 0.0
      %1212 = vmatpush2.msra.mxu0 0.0
      %1213 = vmatprep.subr.mxu0 0.0
      %1214 = vmatpush2.msra.mxu0 0.0
      %1215 = vmatprep.subr.mxu0 0.0
      %1216 = vmatpush2.msra.mxu0 0.0
      %1217 = vmatprep.subr.mxu0 0.0
      %1218 = vmatpush2.msra.mxu0 0.0
      %1219 = vmatprep.subr.mxu0 0.0
      %1220 = vmatpush2.msra.mxu0 0.0
      %1221 = vmatprep.subr.mxu0 0.0
      %1222 = vmatpush2.msra.mxu0 0.0
      %1223 = vmatprep.subr.mxu0 0.0
      %1224 = vmatpush2.msra.mxu0 0.0
      %1225 = vmatprep.subr.mxu0 0.0
      %1226 = vmatpush2.msra.mxu0 0.0
      %1227 = vmatprep.subr.mxu0 0.0
      %1228 = vmatpush2.msra.mxu0 0.0
      %1229 = vmatprep.mubr.f32.mxu0 0.0
      %1230 = vmatmul.mubr.f32.gmra.mxu0 %v1092
      %v1231 = vpop.f32.mrf.mxu0
      %v1232 = vadd.f32 %v1073, %v1231
      %v1233 = vpop.f32.mrf.mxu0
      %1234 = vdwg.mxu0
      %s1235 = scalar_lea.vmem %s4, 16
      %v1236 = vld [vmem:[%s1235] sm:$0xff]
      %1237 = vrot.lane.b32.xlu0 %v905, 23
      %v1238 = vpop.permute.xlu0 %1237
      %1239 = vrot.lane.b32.xlu0 %v906, 23
      %v1240 = vpop.permute.xlu0 %1239
      %1241 = vrot.lane.b32.xlu0 %v907, 23
      %v1242 = vpop.permute.xlu0 %1241
      %1243 = vrot.lane.b32.xlu0 %v908, 23
      %v1244 = vpop.permute.xlu0 %1243
      %vm1245 = vcmask 187392
      %v1246 = vsel %vm1245, %v1238, %v1240
      %v1247 = vsel %vm1245, %v1240, %v1242
      %v1248 = vsel %vm1245, %v1242, %v1244
      %v1253 = vsel %vm931, %v1236, 0
      %1255 = vmatprep.subr.mxu0 0.0
      %1256 = vmatpush1.msra.mxu0 0.0
      %1257 = vmatprep.subr.mxu0 0.0
      %1258 = vmatpush1.msra.mxu0 0.0
      %1259 = vmatprep.subr.mxu0 0.0
      %1260 = vmatpush1.msra.mxu0 0.0
      %1261 = vmatprep.subr.mxu0 0.0
      %1262 = vmatpush1.msra.mxu0 0.0
      %1263 = vmatprep.subr.mxu0 0.0
      %1264 = vmatpush1.msra.mxu0 0.0
      %1265 = vmatprep.subr.mxu0 0.0
      %1266 = vmatpush1.msra.mxu0 0.0
      %1267 = vmatprep.subr.mxu0 0.0
      %1268 = vmatpush1.msra.mxu0 0.0
      %1269 = vmatprep.subr.mxu0 0.0
      %1270 = vmatpush1.msra.mxu0 0.0
      %1271 = vmatprep.subr.mxu0 0.0
      %1272 = vmatpush1.msra.mxu0 0.0
      %1273 = vmatprep.subr.mxu0 0.0
      %1274 = vmatpush1.msra.mxu0 0.0
      %1275 = vmatprep.subr.mxu0 0.0
      %1276 = vmatpush1.msra.mxu0 0.0
      %1277 = vmatprep.subr.mxu0 0.0
      %1278 = vmatpush1.msra.mxu0 0.0
      %1279 = vmatprep.subr.mxu0 0.0
      %1280 = vmatpush1.msra.mxu0 0.0
      %1281 = vmatprep.subr.mxu0 0.0
      %1282 = vmatpush1.msra.mxu0 0.0
      %1283 = vmatprep.subr.mxu0 0.0
      %1284 = vmatpush1.msra.mxu0 0.0
      %1285 = vmatprep.subr.mxu0 %v1247
      %1286 = vmatpush1.msra.mxu0 %v1246
      %1287 = vmatprep.subr.mxu0 0.0
      %1288 = vmatpush2.msra.mxu0 0.0
      %1289 = vmatprep.subr.mxu0 0.0
      %1290 = vmatpush2.msra.mxu0 0.0
      %1291 = vmatprep.subr.mxu0 0.0
      %1292 = vmatpush2.msra.mxu0 0.0
      %1293 = vmatprep.subr.mxu0 0.0
      %1294 = vmatpush2.msra.mxu0 0.0
      %1295 = vmatprep.subr.mxu0 0.0
      %1296 = vmatpush2.msra.mxu0 0.0
      %1297 = vmatprep.subr.mxu0 0.0
      %1298 = vmatpush2.msra.mxu0 0.0
      %1299 = vmatprep.subr.mxu0 0.0
      %1300 = vmatpush2.msra.mxu0 0.0
      %1301 = vmatprep.subr.mxu0 0.0
      %1302 = vmatpush2.msra.mxu0 0.0
      %1303 = vmatprep.subr.mxu0 0.0
      %1304 = vmatpush2.msra.mxu0 0.0
      %1305 = vmatprep.subr.mxu0 0.0
      %1306 = vmatpush2.msra.mxu0 0.0
      %1307 = vmatprep.subr.mxu0 0.0
      %1308 = vmatpush2.msra.mxu0 0.0
      %1309 = vmatprep.subr.mxu0 0.0
      %1310 = vmatpush2.msra.mxu0 0.0
      %1311 = vmatprep.subr.mxu0 0.0
      %1312 = vmatpush2.msra.mxu0 0.0
      %1313 = vmatprep.subr.mxu0 0.0
      %1314 = vmatpush2.msra.mxu0 0.0
      %1315 = vmatprep.subr.mxu0 0.0
      %1316 = vmatpush2.msra.mxu0 0.0
      %1317 = vmatprep.subr.mxu0 0.0
      %1318 = vmatpush2.msra.mxu0 0.0
      %1319 = vmatprep.mubr.f32.mxu0 0.0
      %1320 = vmatmul.mubr.f32.gmra.mxu0 %v1253
      %v1321 = vpop.f32.mrf.mxu0
      %v1322 = vadd.f32 0.0, %v1321
      %v1323 = vpop.f32.mrf.mxu0
      %v1324 = vadd.f32 0.0, %v1323
      %1325 = vdwg.mxu0
      %1326 = vmatprep.subr.mxu0 0.0
      %1327 = vmatpush1.msra.mxu0 0.0
      %1328 = vmatprep.subr.mxu0 0.0
      %1329 = vmatpush1.msra.mxu0 0.0
      %1330 = vmatprep.subr.mxu0 0.0
      %1331 = vmatpush1.msra.mxu0 0.0
      %1332 = vmatprep.subr.mxu0 0.0
      %1333 = vmatpush1.msra.mxu0 0.0
      %1334 = vmatprep.subr.mxu0 0.0
      %1335 = vmatpush1.msra.mxu0 0.0
      %1336 = vmatprep.subr.mxu0 0.0
      %1337 = vmatpush1.msra.mxu0 0.0
      %1338 = vmatprep.subr.mxu0 0.0
      %1339 = vmatpush1.msra.mxu0 0.0
      %1340 = vmatprep.subr.mxu0 0.0
      %1341 = vmatpush1.msra.mxu0 0.0
      %1342 = vmatprep.subr.mxu0 0.0
      %1343 = vmatpush1.msra.mxu0 0.0
      %1344 = vmatprep.subr.mxu0 0.0
      %1345 = vmatpush1.msra.mxu0 0.0
      %1346 = vmatprep.subr.mxu0 0.0
      %1347 = vmatpush1.msra.mxu0 0.0
      %1348 = vmatprep.subr.mxu0 0.0
      %1349 = vmatpush1.msra.mxu0 0.0
      %1350 = vmatprep.subr.mxu0 0.0
      %1351 = vmatpush1.msra.mxu0 0.0
      %1352 = vmatprep.subr.mxu0 0.0
      %1353 = vmatpush1.msra.mxu0 0.0
      %1354 = vmatprep.subr.mxu0 0.0
      %1355 = vmatpush1.msra.mxu0 0.0
      %1356 = vmatprep.subr.mxu0 0.0
      %1357 = vmatpush1.msra.mxu0 %v1248
      %1358 = vmatprep.subr.mxu0 0.0
      %1359 = vmatpush2.msra.mxu0 0.0
      %1360 = vmatprep.subr.mxu0 0.0
      %1361 = vmatpush2.msra.mxu0 0.0
      %1362 = vmatprep.subr.mxu0 0.0
      %1363 = vmatpush2.msra.mxu0 0.0
      %1364 = vmatprep.subr.mxu0 0.0
      %1365 = vmatpush2.msra.mxu0 0.0
      %1366 = vmatprep.subr.mxu0 0.0
      %1367 = vmatpush2.msra.mxu0 0.0
      %1368 = vmatprep.subr.mxu0 0.0
      %1369 = vmatpush2.msra.mxu0 0.0
      %1370 = vmatprep.subr.mxu0 0.0
      %1371 = vmatpush2.msra.mxu0 0.0
      %1372 = vmatprep.subr.mxu0 0.0
      %1373 = vmatpush2.msra.mxu0 0.0
      %1374 = vmatprep.subr.mxu0 0.0
      %1375 = vmatpush2.msra.mxu0 0.0
      %1376 = vmatprep.subr.mxu0 0.0
      %1377 = vmatpush2.msra.mxu0 0.0
      %1378 = vmatprep.subr.mxu0 0.0
      %1379 = vmatpush2.msra.mxu0 0.0
      %1380 = vmatprep.subr.mxu0 0.0
      %1381 = vmatpush2.msra.mxu0 0.0
      %1382 = vmatprep.subr.mxu0 0.0
      %1383 = vmatpush2.msra.mxu0 0.0
      %1384 = vmatprep.subr.mxu0 0.0
      %1385 = vmatpush2.msra.mxu0 0.0
      %1386 = vmatprep.subr.mxu0 0.0
      %1387 = vmatpush2.msra.mxu0 0.0
      %1388 = vmatprep.subr.mxu0 0.0
      %1389 = vmatpush2.msra.mxu0 0.0
      %1390 = vmatprep.mubr.f32.mxu0 0.0
      %1391 = vmatmul.mubr.f32.gmra.mxu0 %v1253
      %v1392 = vpop.f32.mrf.mxu0
      %v1393 = vadd.f32 0.0, %v1392
      %v1394 = vpop.f32.mrf.mxu0
      %1395 = vdwg.mxu0
      %v1396 = vadd.f32 %v1161, %v1322
      %v1397 = vadd.f32 %v1163, %v1324
      %v1398 = vadd.f32 %v1232, %v1393
      %s1399 = scalar_lea.vmem %s4, 24
      %v1400 = vld [vmem:[%s1399] sm:$0xff]
      %1401 = vrot.lane.b32.xlu0 %v905, 1
      %v1402 = vpop.permute.xlu0 %1401
      %1403 = vrot.lane.b32.xlu0 %v906, 1
      %v1404 = vpop.permute.xlu0 %1403
      %1405 = vrot.lane.b32.xlu0 %v907, 1
      %v1406 = vpop.permute.xlu0 %1405
      %1407 = vrot.lane.b32.xlu0 %v908, 1
      %v1408 = vpop.permute.xlu0 %1407
      %vm1409 = vcmask 7168
      %v1410 = vsel %vm1409, %v1402, %v1404
      %v1411 = vsel %vm1409, %v1404, %v1406
      %v1412 = vsel %vm1409, %v1406, %v1408
      %v1417 = vsel %vm931, %v1400, 0
      %1419 = vmatprep.subr.mxu0 0.0
      %1420 = vmatpush1.msra.mxu0 0.0
      %1421 = vmatprep.subr.mxu0 0.0
      %1422 = vmatpush1.msra.mxu0 0.0
      %1423 = vmatprep.subr.mxu0 0.0
      %1424 = vmatpush1.msra.mxu0 0.0
      %1425 = vmatprep.subr.mxu0 0.0
      %1426 = vmatpush1.msra.mxu0 0.0
      %1427 = vmatprep.subr.mxu0 0.0
      %1428 = vmatpush1.msra.mxu0 0.0
      %1429 = vmatprep.subr.mxu0 0.0
      %1430 = vmatpush1.msra.mxu0 0.0
      %1431 = vmatprep.subr.mxu0 0.0
      %1432 = vmatpush1.msra.mxu0 0.0
      %1433 = vmatprep.subr.mxu0 0.0
      %1434 = vmatpush1.msra.mxu0 0.0
      %1435 = vmatprep.subr.mxu0 0.0
      %1436 = vmatpush1.msra.mxu0 0.0
      %1437 = vmatprep.subr.mxu0 0.0
      %1438 = vmatpush1.msra.mxu0 0.0
      %1439 = vmatprep.subr.mxu0 0.0
      %1440 = vmatpush1.msra.mxu0 0.0
      %1441 = vmatprep.subr.mxu0 0.0
      %1442 = vmatpush1.msra.mxu0 0.0
      %1443 = vmatprep.subr.mxu0 0.0
      %1444 = vmatpush1.msra.mxu0 0.0
      %1445 = vmatprep.subr.mxu0 0.0
      %1446 = vmatpush1.msra.mxu0 0.0
      %1447 = vmatprep.subr.mxu0 0.0
      %1448 = vmatpush1.msra.mxu0 0.0
      %1449 = vmatprep.subr.mxu0 %v1411
      %1450 = vmatpush1.msra.mxu0 %v1410
      %1451 = vmatprep.subr.mxu0 0.0
      %1452 = vmatpush2.msra.mxu0 0.0
      %1453 = vmatprep.subr.mxu0 0.0
      %1454 = vmatpush2.msra.mxu0 0.0
      %1455 = vmatprep.subr.mxu0 0.0
      %1456 = vmatpush2.msra.mxu0 0.0
      %1457 = vmatprep.subr.mxu0 0.0
      %1458 = vmatpush2.msra.mxu0 0.0
      %1459 = vmatprep.subr.mxu0 0.0
      %1460 = vmatpush2.msra.mxu0 0.0
      %1461 = vmatprep.subr.mxu0 0.0
      %1462 = vmatpush2.msra.mxu0 0.0
      %1463 = vmatprep.subr.mxu0 0.0
      %1464 = vmatpush2.msra.mxu0 0.0
      %1465 = vmatprep.subr.mxu0 0.0
      %1466 = vmatpush2.msra.mxu0 0.0
      %1467 = vmatprep.subr.mxu0 0.0
      %1468 = vmatpush2.msra.mxu0 0.0
      %1469 = vmatprep.subr.mxu0 0.0
      %1470 = vmatpush2.msra.mxu0 0.0
      %1471 = vmatprep.subr.mxu0 0.0
      %1472 = vmatpush2.msra.mxu0 0.0
      %1473 = vmatprep.subr.mxu0 0.0
      %1474 = vmatpush2.msra.mxu0 0.0
      %1475 = vmatprep.subr.mxu0 0.0
      %1476 = vmatpush2.msra.mxu0 0.0
      %1477 = vmatprep.subr.mxu0 0.0
      %1478 = vmatpush2.msra.mxu0 0.0
      %1479 = vmatprep.subr.mxu0 0.0
      %1480 = vmatpush2.msra.mxu0 0.0
      %1481 = vmatprep.subr.mxu0 0.0
      %1482 = vmatpush2.msra.mxu0 0.0
      %1483 = vmatprep.mubr.f32.mxu0 0.0
      %1484 = vmatmul.mubr.f32.gmra.mxu0 %v1417
      %v1485 = vpop.f32.mrf.mxu0
      %v1486 = vadd.f32 0.0, %v1485
      %v1487 = vpop.f32.mrf.mxu0
      %v1488 = vadd.f32 0.0, %v1487
      %1489 = vdwg.mxu0
      %1490 = vmatprep.subr.mxu0 0.0
      %1491 = vmatpush1.msra.mxu0 0.0
      %1492 = vmatprep.subr.mxu0 0.0
      %1493 = vmatpush1.msra.mxu0 0.0
      %1494 = vmatprep.subr.mxu0 0.0
      %1495 = vmatpush1.msra.mxu0 0.0
      %1496 = vmatprep.subr.mxu0 0.0
      %1497 = vmatpush1.msra.mxu0 0.0
      %1498 = vmatprep.subr.mxu0 0.0
      %1499 = vmatpush1.msra.mxu0 0.0
      %1500 = vmatprep.subr.mxu0 0.0
      %1501 = vmatpush1.msra.mxu0 0.0
      %1502 = vmatprep.subr.mxu0 0.0
      %1503 = vmatpush1.msra.mxu0 0.0
      %1504 = vmatprep.subr.mxu0 0.0
      %1505 = vmatpush1.msra.mxu0 0.0
      %1506 = vmatprep.subr.mxu0 0.0
      %1507 = vmatpush1.msra.mxu0 0.0
      %1508 = vmatprep.subr.mxu0 0.0
      %1509 = vmatpush1.msra.mxu0 0.0
      %1510 = vmatprep.subr.mxu0 0.0
      %1511 = vmatpush1.msra.mxu0 0.0
      %1512 = vmatprep.subr.mxu0 0.0
      %1513 = vmatpush1.msra.mxu0 0.0
      %1514 = vmatprep.subr.mxu0 0.0
      %1515 = vmatpush1.msra.mxu0 0.0
      %1516 = vmatprep.subr.mxu0 0.0
      %1517 = vmatpush1.msra.mxu0 0.0
      %1518 = vmatprep.subr.mxu0 0.0
      %1519 = vmatpush1.msra.mxu0 0.0
      %1520 = vmatprep.subr.mxu0 0.0
      %1521 = vmatpush1.msra.mxu0 %v1412
      %1522 = vmatprep.subr.mxu0 0.0
      %1523 = vmatpush2.msra.mxu0 0.0
      %1524 = vmatprep.subr.mxu0 0.0
      %1525 = vmatpush2.msra.mxu0 0.0
      %1526 = vmatprep.subr.mxu0 0.0
      %1527 = vmatpush2.msra.mxu0 0.0
      %1528 = vmatprep.subr.mxu0 0.0
      %1529 = vmatpush2.msra.mxu0 0.0
      %1530 = vmatprep.subr.mxu0 0.0
      %1531 = vmatpush2.msra.mxu0 0.0
      %1532 = vmatprep.subr.mxu0 0.0
      %1533 = vmatpush2.msra.mxu0 0.0
      %1534 = vmatprep.subr.mxu0 0.0
      %1535 = vmatpush2.msra.mxu0 0.0
      %1536 = vmatprep.subr.mxu0 0.0
      %1537 = vmatpush2.msra.mxu0 0.0
      %1538 = vmatprep.subr.mxu0 0.0
      %1539 = vmatpush2.msra.mxu0 0.0
      %1540 = vmatprep.subr.mxu0 0.0
      %1541 = vmatpush2.msra.mxu0 0.0
      %1542 = vmatprep.subr.mxu0 0.0
      %1543 = vmatpush2.msra.mxu0 0.0
      %1544 = vmatprep.subr.mxu0 0.0
      %1545 = vmatpush2.msra.mxu0 0.0
      %1546 = vmatprep.subr.mxu0 0.0
      %1547 = vmatpush2.msra.mxu0 0.0
      %1548 = vmatprep.subr.mxu0 0.0
      %1549 = vmatpush2.msra.mxu0 0.0
      %1550 = vmatprep.subr.mxu0 0.0
      %1551 = vmatpush2.msra.mxu0 0.0
      %1552 = vmatprep.subr.mxu0 0.0
      %1553 = vmatpush2.msra.mxu0 0.0
      %1554 = vmatprep.mubr.f32.mxu0 0.0
      %1555 = vmatmul.mubr.f32.gmra.mxu0 %v1417
      %v1556 = vpop.f32.mrf.mxu0
      %v1557 = vadd.f32 0.0, %v1556
      %v1558 = vpop.f32.mrf.mxu0
      %1559 = vdwg.mxu0
      %v1560 = vadd.f32 %v1396, %v1486
      %v1561 = vadd.f32 %v1397, %v1488
      %v1562 = vadd.f32 %v1398, %v1557
      %s1563 = scalar_lea.vmem %s4, 32
      %v1564 = vld [vmem:[%s1563] sm:$0xff]
      %v1566 = vsel %vm931, %v1564, 0
      %1568 = vmatprep.subr.mxu0 0.0
      %1569 = vmatpush1.msra.mxu0 0.0
      %1570 = vmatprep.subr.mxu0 0.0
      %1571 = vmatpush1.msra.mxu0 0.0
      %1572 = vmatprep.subr.mxu0 0.0
      %1573 = vmatpush1.msra.mxu0 0.0
      %1574 = vmatprep.subr.mxu0 0.0
      %1575 = vmatpush1.msra.mxu0 0.0
      %1576 = vmatprep.subr.mxu0 0.0
      %1577 = vmatpush1.msra.mxu0 0.0
      %1578 = vmatprep.subr.mxu0 0.0
      %1579 = vmatpush1.msra.mxu0 0.0
      %1580 = vmatprep.subr.mxu0 0.0
      %1581 = vmatpush1.msra.mxu0 0.0
      %1582 = vmatprep.subr.mxu0 0.0
      %1583 = vmatpush1.msra.mxu0 0.0
      %1584 = vmatprep.subr.mxu0 0.0
      %1585 = vmatpush1.msra.mxu0 0.0
      %1586 = vmatprep.subr.mxu0 0.0
      %1587 = vmatpush1.msra.mxu0 0.0
      %1588 = vmatprep.subr.mxu0 0.0
      %1589 = vmatpush1.msra.mxu0 0.0
      %1590 = vmatprep.subr.mxu0 0.0
      %1591 = vmatpush1.msra.mxu0 0.0
      %1592 = vmatprep.subr.mxu0 0.0
      %1593 = vmatpush1.msra.mxu0 0.0
      %1594 = vmatprep.subr.mxu0 0.0
      %1595 = vmatpush1.msra.mxu0 0.0
      %1596 = vmatprep.subr.mxu0 0.0
      %1597 = vmatpush1.msra.mxu0 0.0
      %1598 = vmatprep.subr.mxu0 %v907
      %1599 = vmatpush1.msra.mxu0 %v906
      %1600 = vmatprep.subr.mxu0 0.0
      %1601 = vmatpush2.msra.mxu0 0.0
      %1602 = vmatprep.subr.mxu0 0.0
      %1603 = vmatpush2.msra.mxu0 0.0
      %1604 = vmatprep.subr.mxu0 0.0
      %1605 = vmatpush2.msra.mxu0 0.0
      %1606 = vmatprep.subr.mxu0 0.0
      %1607 = vmatpush2.msra.mxu0 0.0
      %1608 = vmatprep.subr.mxu0 0.0
      %1609 = vmatpush2.msra.mxu0 0.0
      %1610 = vmatprep.subr.mxu0 0.0
      %1611 = vmatpush2.msra.mxu0 0.0
      %1612 = vmatprep.subr.mxu0 0.0
      %1613 = vmatpush2.msra.mxu0 0.0
      %1614 = vmatprep.subr.mxu0 0.0
      %1615 = vmatpush2.msra.mxu0 0.0
      %1616 = vmatprep.subr.mxu0 0.0
      %1617 = vmatpush2.msra.mxu0 0.0
      %1618 = vmatprep.subr.mxu0 0.0
      %1619 = vmatpush2.msra.mxu0 0.0
      %1620 = vmatprep.subr.mxu0 0.0
      %1621 = vmatpush2.msra.mxu0 0.0
      %1622 = vmatprep.subr.mxu0 0.0
      %1623 = vmatpush2.msra.mxu0 0.0
      %1624 = vmatprep.subr.mxu0 0.0
      %1625 = vmatpush2.msra.mxu0 0.0
      %1626 = vmatprep.subr.mxu0 0.0
      %1627 = vmatpush2.msra.mxu0 0.0
      %1628 = vmatprep.subr.mxu0 0.0
      %1629 = vmatpush2.msra.mxu0 0.0
      %1630 = vmatprep.subr.mxu0 0.0
      %1631 = vmatpush2.msra.mxu0 0.0
      %1632 = vmatprep.mubr.f32.mxu0 0.0
      %1633 = vmatmul.mubr.f32.gmra.mxu0 %v1566
      %v1634 = vpop.f32.mrf.mxu0
      %v1635 = vadd.f32 0.0, %v1634
      %v1636 = vpop.f32.mrf.mxu0
      %v1637 = vadd.f32 0.0, %v1636
      %1638 = vdwg.mxu0
      %1639 = vmatprep.subr.mxu0 0.0
      %1640 = vmatpush1.msra.mxu0 0.0
      %1641 = vmatprep.subr.mxu0 0.0
      %1642 = vmatpush1.msra.mxu0 0.0
      %1643 = vmatprep.subr.mxu0 0.0
      %1644 = vmatpush1.msra.mxu0 0.0
      %1645 = vmatprep.subr.mxu0 0.0
      %1646 = vmatpush1.msra.mxu0 0.0
      %1647 = vmatprep.subr.mxu0 0.0
      %1648 = vmatpush1.msra.mxu0 0.0
      %1649 = vmatprep.subr.mxu0 0.0
      %1650 = vmatpush1.msra.mxu0 0.0
      %1651 = vmatprep.subr.mxu0 0.0
      %1652 = vmatpush1.msra.mxu0 0.0
      %1653 = vmatprep.subr.mxu0 0.0
      %1654 = vmatpush1.msra.mxu0 0.0
      %1655 = vmatprep.subr.mxu0 0.0
      %1656 = vmatpush1.msra.mxu0 0.0
      %1657 = vmatprep.subr.mxu0 0.0
      %1658 = vmatpush1.msra.mxu0 0.0
      %1659 = vmatprep.subr.mxu0 0.0
      %1660 = vmatpush1.msra.mxu0 0.0
      %1661 = vmatprep.subr.mxu0 0.0
      %1662 = vmatpush1.msra.mxu0 0.0
      %1663 = vmatprep.subr.mxu0 0.0
      %1664 = vmatpush1.msra.mxu0 0.0
      %1665 = vmatprep.subr.mxu0 0.0
      %1666 = vmatpush1.msra.mxu0 0.0
      %1667 = vmatprep.subr.mxu0 0.0
      %1668 = vmatpush1.msra.mxu0 0.0
      %1669 = vmatprep.subr.mxu0 0.0
      %1670 = vmatpush1.msra.mxu0 %v908
      %1671 = vmatprep.subr.mxu0 0.0
      %1672 = vmatpush2.msra.mxu0 0.0
      %1673 = vmatprep.subr.mxu0 0.0
      %1674 = vmatpush2.msra.mxu0 0.0
      %1675 = vmatprep.subr.mxu0 0.0
      %1676 = vmatpush2.msra.mxu0 0.0
      %1677 = vmatprep.subr.mxu0 0.0
      %1678 = vmatpush2.msra.mxu0 0.0
      %1679 = vmatprep.subr.mxu0 0.0
      %1680 = vmatpush2.msra.mxu0 0.0
      %1681 = vmatprep.subr.mxu0 0.0
      %1682 = vmatpush2.msra.mxu0 0.0
      %1683 = vmatprep.subr.mxu0 0.0
      %1684 = vmatpush2.msra.mxu0 0.0
      %1685 = vmatprep.subr.mxu0 0.0
      %1686 = vmatpush2.msra.mxu0 0.0
      %1687 = vmatprep.subr.mxu0 0.0
      %1688 = vmatpush2.msra.mxu0 0.0
      %1689 = vmatprep.subr.mxu0 0.0
      %1690 = vmatpush2.msra.mxu0 0.0
      %1691 = vmatprep.subr.mxu0 0.0
      %1692 = vmatpush2.msra.mxu0 0.0
      %1693 = vmatprep.subr.mxu0 0.0
      %1694 = vmatpush2.msra.mxu0 0.0
      %1695 = vmatprep.subr.mxu0 0.0
      %1696 = vmatpush2.msra.mxu0 0.0
      %1697 = vmatprep.subr.mxu0 0.0
      %1698 = vmatpush2.msra.mxu0 0.0
      %1699 = vmatprep.subr.mxu0 0.0
      %1700 = vmatpush2.msra.mxu0 0.0
      %1701 = vmatprep.subr.mxu0 0.0
      %1702 = vmatpush2.msra.mxu0 0.0
      %1703 = vmatprep.mubr.f32.mxu0 0.0
      %1704 = vmatmul.mubr.f32.gmra.mxu0 %v1566
      %v1705 = vpop.f32.mrf.mxu0
      %v1706 = vadd.f32 0.0, %v1705
      %v1707 = vpop.f32.mrf.mxu0
      %1708 = vdwg.mxu0
      %v1709 = vadd.f32 %v1560, %v1635
      %v1710 = vadd.f32 %v1561, %v1637
      %v1711 = vadd.f32 %v1562, %v1706
      %v1712 = vld [vmem:[#allocation2 + $0x8] sm:$0xff]
      %v1713 = vld [vmem:[#allocation2 + $0x10] sm:$0xff]
      %v1714 = vld [vmem:[#allocation2 + $0x18] sm:$0xff]
      %v1715 = vld [vmem:[#allocation2 + $0x20] sm:$0xff]
      %s1716 = scalar_lea.vmem %s4, 40
      %v1717 = vld [vmem:[%s1716] sm:$0xff]
      %1722 = vrot.lane.b32.xlu0 %v1712, 127
      %v1723 = vpop.permute.xlu0 %1722
      %1724 = vrot.lane.b32.xlu0 %v1713, 127
      %v1725 = vpop.permute.xlu0 %1724
      %1726 = vrot.lane.b32.xlu0 %v1714, 127
      %v1727 = vpop.permute.xlu0 %1726
      %1728 = vrot.lane.b32.xlu0 %v1715, 127
      %v1729 = vpop.permute.xlu0 %1728
      %v1730 = vsel %vm624, %v1723, %v1725
      %v1731 = vsel %vm624, %v1725, %v1727
      %v1732 = vsel %vm624, %v1727, %v1729
      %v1737 = vsel %vm931, %v1717, 0
      %1739 = vmatprep.subr.mxu0 0.0
      %1740 = vmatpush1.msra.mxu0 0.0
      %1741 = vmatprep.subr.mxu0 0.0
      %1742 = vmatpush1.msra.mxu0 0.0
      %1743 = vmatprep.subr.mxu0 0.0
      %1744 = vmatpush1.msra.mxu0 0.0
      %1745 = vmatprep.subr.mxu0 0.0
      %1746 = vmatpush1.msra.mxu0 0.0
      %1747 = vmatprep.subr.mxu0 0.0
      %1748 = vmatpush1.msra.mxu0 0.0
      %1749 = vmatprep.subr.mxu0 0.0
      %1750 = vmatpush1.msra.mxu0 0.0
      %1751 = vmatprep.subr.mxu0 0.0
      %1752 = vmatpush1.msra.mxu0 0.0
      %1753 = vmatprep.subr.mxu0 0.0
      %1754 = vmatpush1.msra.mxu0 0.0
      %1755 = vmatprep.subr.mxu0 0.0
      %1756 = vmatpush1.msra.mxu0 0.0
      %1757 = vmatprep.subr.mxu0 0.0
      %1758 = vmatpush1.msra.mxu0 0.0
      %1759 = vmatprep.subr.mxu0 0.0
      %1760 = vmatpush1.msra.mxu0 0.0
      %1761 = vmatprep.subr.mxu0 0.0
      %1762 = vmatpush1.msra.mxu0 0.0
      %1763 = vmatprep.subr.mxu0 0.0
      %1764 = vmatpush1.msra.mxu0 0.0
      %1765 = vmatprep.subr.mxu0 0.0
      %1766 = vmatpush1.msra.mxu0 0.0
      %1767 = vmatprep.subr.mxu0 0.0
      %1768 = vmatpush1.msra.mxu0 0.0
      %1769 = vmatprep.subr.mxu0 %v1731
      %1770 = vmatpush1.msra.mxu0 %v1730
      %1771 = vmatprep.subr.mxu0 0.0
      %1772 = vmatpush2.msra.mxu0 0.0
      %1773 = vmatprep.subr.mxu0 0.0
      %1774 = vmatpush2.msra.mxu0 0.0
      %1775 = vmatprep.subr.mxu0 0.0
      %1776 = vmatpush2.msra.mxu0 0.0
      %1777 = vmatprep.subr.mxu0 0.0
      %1778 = vmatpush2.msra.mxu0 0.0
      %1779 = vmatprep.subr.mxu0 0.0
      %1780 = vmatpush2.msra.mxu0 0.0
      %1781 = vmatprep.subr.mxu0 0.0
      %1782 = vmatpush2.msra.mxu0 0.0
      %1783 = vmatprep.subr.mxu0 0.0
      %1784 = vmatpush2.msra.mxu0 0.0
      %1785 = vmatprep.subr.mxu0 0.0
      %1786 = vmatpush2.msra.mxu0 0.0
      %1787 = vmatprep.subr.mxu0 0.0
      %1788 = vmatpush2.msra.mxu0 0.0
      %1789 = vmatprep.subr.mxu0 0.0
      %1790 = vmatpush2.msra.mxu0 0.0
      %1791 = vmatprep.subr.mxu0 0.0
      %1792 = vmatpush2.msra.mxu0 0.0
      %1793 = vmatprep.subr.mxu0 0.0
      %1794 = vmatpush2.msra.mxu0 0.0
      %1795 = vmatprep.subr.mxu0 0.0
      %1796 = vmatpush2.msra.mxu0 0.0
      %1797 = vmatprep.subr.mxu0 0.0
      %1798 = vmatpush2.msra.mxu0 0.0
      %1799 = vmatprep.subr.mxu0 0.0
      %1800 = vmatpush2.msra.mxu0 0.0
      %1801 = vmatprep.subr.mxu0 0.0
      %1802 = vmatpush2.msra.mxu0 0.0
      %1803 = vmatprep.mubr.f32.mxu0 0.0
      %1804 = vmatmul.mubr.f32.gmra.mxu0 %v1737
      %v1805 = vpop.f32.mrf.mxu0
      %v1806 = vadd.f32 0.0, %v1805
      %v1807 = vpop.f32.mrf.mxu0
      %v1808 = vadd.f32 0.0, %v1807
      %1809 = vdwg.mxu0
      %1810 = vmatprep.subr.mxu0 0.0
      %1811 = vmatpush1.msra.mxu0 0.0
      %1812 = vmatprep.subr.mxu0 0.0
      %1813 = vmatpush1.msra.mxu0 0.0
      %1814 = vmatprep.subr.mxu0 0.0
      %1815 = vmatpush1.msra.mxu0 0.0
      %1816 = vmatprep.subr.mxu0 0.0
      %1817 = vmatpush1.msra.mxu0 0.0
      %1818 = vmatprep.subr.mxu0 0.0
      %1819 = vmatpush1.msra.mxu0 0.0
      %1820 = vmatprep.subr.mxu0 0.0
      %1821 = vmatpush1.msra.mxu0 0.0
      %1822 = vmatprep.subr.mxu0 0.0
      %1823 = vmatpush1.msra.mxu0 0.0
      %1824 = vmatprep.subr.mxu0 0.0
      %1825 = vmatpush1.msra.mxu0 0.0
      %1826 = vmatprep.subr.mxu0 0.0
      %1827 = vmatpush1.msra.mxu0 0.0
      %1828 = vmatprep.subr.mxu0 0.0
      %1829 = vmatpush1.msra.mxu0 0.0
      %1830 = vmatprep.subr.mxu0 0.0
      %1831 = vmatpush1.msra.mxu0 0.0
      %1832 = vmatprep.subr.mxu0 0.0
      %1833 = vmatpush1.msra.mxu0 0.0
      %1834 = vmatprep.subr.mxu0 0.0
      %1835 = vmatpush1.msra.mxu0 0.0
      %1836 = vmatprep.subr.mxu0 0.0
      %1837 = vmatpush1.msra.mxu0 0.0
      %1838 = vmatprep.subr.mxu0 0.0
      %1839 = vmatpush1.msra.mxu0 0.0
      %1840 = vmatprep.subr.mxu0 0.0
      %1841 = vmatpush1.msra.mxu0 %v1732
      %1842 = vmatprep.subr.mxu0 0.0
      %1843 = vmatpush2.msra.mxu0 0.0
      %1844 = vmatprep.subr.mxu0 0.0
      %1845 = vmatpush2.msra.mxu0 0.0
      %1846 = vmatprep.subr.mxu0 0.0
      %1847 = vmatpush2.msra.mxu0 0.0
      %1848 = vmatprep.subr.mxu0 0.0
      %1849 = vmatpush2.msra.mxu0 0.0
      %1850 = vmatprep.subr.mxu0 0.0
      %1851 = vmatpush2.msra.mxu0 0.0
      %1852 = vmatprep.subr.mxu0 0.0
      %1853 = vmatpush2.msra.mxu0 0.0
      %1854 = vmatprep.subr.mxu0 0.0
      %1855 = vmatpush2.msra.mxu0 0.0
      %1856 = vmatprep.subr.mxu0 0.0
      %1857 = vmatpush2.msra.mxu0 0.0
      %1858 = vmatprep.subr.mxu0 0.0
      %1859 = vmatpush2.msra.mxu0 0.0
      %1860 = vmatprep.subr.mxu0 0.0
      %1861 = vmatpush2.msra.mxu0 0.0
      %1862 = vmatprep.subr.mxu0 0.0
      %1863 = vmatpush2.msra.mxu0 0.0
      %1864 = vmatprep.subr.mxu0 0.0
      %1865 = vmatpush2.msra.mxu0 0.0
      %1866 = vmatprep.subr.mxu0 0.0
      %1867 = vmatpush2.msra.mxu0 0.0
      %1868 = vmatprep.subr.mxu0 0.0
      %1869 = vmatpush2.msra.mxu0 0.0
      %1870 = vmatprep.subr.mxu0 0.0
      %1871 = vmatpush2.msra.mxu0 0.0
      %1872 = vmatprep.subr.mxu0 0.0
      %1873 = vmatpush2.msra.mxu0 0.0
      %1874 = vmatprep.mubr.f32.mxu0 0.0
      %1875 = vmatmul.mubr.f32.gmra.mxu0 %v1737
      %v1876 = vpop.f32.mrf.mxu0
      %v1877 = vadd.f32 0.0, %v1876
      %v1878 = vpop.f32.mrf.mxu0
      %1879 = vdwg.mxu0
      %v1880 = vadd.f32 %v1709, %v1806
      %v1881 = vadd.f32 %v1710, %v1808
      %v1882 = vadd.f32 %v1711, %v1877
      %s1883 = scalar_lea.vmem %s4, 48
      %v1884 = vld [vmem:[%s1883] sm:$0xff]
      %1885 = vrot.lane.b32.xlu0 %v1712, 105
      %v1886 = vpop.permute.xlu0 %1885
      %1887 = vrot.lane.b32.xlu0 %v1713, 105
      %v1888 = vpop.permute.xlu0 %1887
      %1889 = vrot.lane.b32.xlu0 %v1714, 105
      %v1890 = vpop.permute.xlu0 %1889
      %1891 = vrot.lane.b32.xlu0 %v1715, 105
      %v1892 = vpop.permute.xlu0 %1891
      %vm1893 = vcmask 859136
      %v1894 = vsel %vm1893, %v1886, %v1888
      %v1895 = vsel %vm1893, %v1888, %v1890
      %v1896 = vsel %vm1893, %v1890, %v1892
      %v1901 = vsel %vm931, %v1884, 0
      %1903 = vmatprep.subr.mxu0 0.0
      %1904 = vmatpush1.msra.mxu0 0.0
      %1905 = vmatprep.subr.mxu0 0.0
      %1906 = vmatpush1.msra.mxu0 0.0
      %1907 = vmatprep.subr.mxu0 0.0
      %1908 = vmatpush1.msra.mxu0 0.0
      %1909 = vmatprep.subr.mxu0 0.0
      %1910 = vmatpush1.msra.mxu0 0.0
      %1911 = vmatprep.subr.mxu0 0.0
      %1912 = vmatpush1.msra.mxu0 0.0
      %1913 = vmatprep.subr.mxu0 0.0
      %1914 = vmatpush1.msra.mxu0 0.0
      %1915 = vmatprep.subr.mxu0 0.0
      %1916 = vmatpush1.msra.mxu0 0.0
      %1917 = vmatprep.subr.mxu0 0.0
      %1918 = vmatpush1.msra.mxu0 0.0
      %1919 = vmatprep.subr.mxu0 0.0
      %1920 = vmatpush1.msra.mxu0 0.0
      %1921 = vmatprep.subr.mxu0 0.0
      %1922 = vmatpush1.msra.mxu0 0.0
      %1923 = vmatprep.subr.mxu0 0.0
      %1924 = vmatpush1.msra.mxu0 0.0
      %1925 = vmatprep.subr.mxu0 0.0
      %1926 = vmatpush1.msra.mxu0 0.0
      %1927 = vmatprep.subr.mxu0 0.0
      %1928 = vmatpush1.msra.mxu0 0.0
      %1929 = vmatprep.subr.mxu0 0.0
      %1930 = vmatpush1.msra.mxu0 0.0
      %1931 = vmatprep.subr.mxu0 0.0
      %1932 = vmatpush1.msra.mxu0 0.0
      %1933 = vmatprep.subr.mxu0 %v1895
      %1934 = vmatpush1.msra.mxu0 %v1894
      %1935 = vmatprep.subr.mxu0 0.0
      %1936 = vmatpush2.msra.mxu0 0.0
      %1937 = vmatprep.subr.mxu0 0.0
      %1938 = vmatpush2.msra.mxu0 0.0
      %1939 = vmatprep.subr.mxu0 0.0
      %1940 = vmatpush2.msra.mxu0 0.0
      %1941 = vmatprep.subr.mxu0 0.0
      %1942 = vmatpush2.msra.mxu0 0.0
      %1943 = vmatprep.subr.mxu0 0.0
      %1944 = vmatpush2.msra.mxu0 0.0
      %1945 = vmatprep.subr.mxu0 0.0
      %1946 = vmatpush2.msra.mxu0 0.0
      %1947 = vmatprep.subr.mxu0 0.0
      %1948 = vmatpush2.msra.mxu0 0.0
      %1949 = vmatprep.subr.mxu0 0.0
      %1950 = vmatpush2.msra.mxu0 0.0
      %1951 = vmatprep.subr.mxu0 0.0
      %1952 = vmatpush2.msra.mxu0 0.0
      %1953 = vmatprep.subr.mxu0 0.0
      %1954 = vmatpush2.msra.mxu0 0.0
      %1955 = vmatprep.subr.mxu0 0.0
      %1956 = vmatpush2.msra.mxu0 0.0
      %1957 = vmatprep.subr.mxu0 0.0
      %1958 = vmatpush2.msra.mxu0 0.0
      %1959 = vmatprep.subr.mxu0 0.0
      %1960 = vmatpush2.msra.mxu0 0.0
      %1961 = vmatprep.subr.mxu0 0.0
      %1962 = vmatpush2.msra.mxu0 0.0
      %1963 = vmatprep.subr.mxu0 0.0
      %1964 = vmatpush2.msra.mxu0 0.0
      %1965 = vmatprep.subr.mxu0 0.0
      %1966 = vmatpush2.msra.mxu0 0.0
      %1967 = vmatprep.mubr.f32.mxu0 0.0
      %1968 = vmatmul.mubr.f32.gmra.mxu0 %v1901
      %v1969 = vpop.f32.mrf.mxu0
      %v1970 = vadd.f32 0.0, %v1969
      %v1971 = vpop.f32.mrf.mxu0
      %v1972 = vadd.f32 0.0, %v1971
      %1973 = vdwg.mxu0
      %1974 = vmatprep.subr.mxu0 0.0
      %1975 = vmatpush1.msra.mxu0 0.0
      %1976 = vmatprep.subr.mxu0 0.0
      %1977 = vmatpush1.msra.mxu0 0.0
      %1978 = vmatprep.subr.mxu0 0.0
      %1979 = vmatpush1.msra.mxu0 0.0
      %1980 = vmatprep.subr.mxu0 0.0
      %1981 = vmatpush1.msra.mxu0 0.0
      %1982 = vmatprep.subr.mxu0 0.0
      %1983 = vmatpush1.msra.mxu0 0.0
      %1984 = vmatprep.subr.mxu0 0.0
      %1985 = vmatpush1.msra.mxu0 0.0
      %1986 = vmatprep.subr.mxu0 0.0
      %1987 = vmatpush1.msra.mxu0 0.0
      %1988 = vmatprep.subr.mxu0 0.0
      %1989 = vmatpush1.msra.mxu0 0.0
      %1990 = vmatprep.subr.mxu0 0.0
      %1991 = vmatpush1.msra.mxu0 0.0
      %1992 = vmatprep.subr.mxu0 0.0
      %1993 = vmatpush1.msra.mxu0 0.0
      %1994 = vmatprep.subr.mxu0 0.0
      %1995 = vmatpush1.msra.mxu0 0.0
      %1996 = vmatprep.subr.mxu0 0.0
      %1997 = vmatpush1.msra.mxu0 0.0
      %1998 = vmatprep.subr.mxu0 0.0
      %1999 = vmatpush1.msra.mxu0 0.0
      %2000 = vmatprep.subr.mxu0 0.0
      %2001 = vmatpush1.msra.mxu0 0.0
      %2002 = vmatprep.subr.mxu0 0.0
      %2003 = vmatpush1.msra.mxu0 0.0
      %2004 = vmatprep.subr.mxu0 0.0
      %2005 = vmatpush1.msra.mxu0 %v1896
      %2006 = vmatprep.subr.mxu0 0.0
      %2007 = vmatpush2.msra.mxu0 0.0
      %2008 = vmatprep.subr.mxu0 0.0
      %2009 = vmatpush2.msra.mxu0 0.0
      %2010 = vmatprep.subr.mxu0 0.0
      %2011 = vmatpush2.msra.mxu0 0.0
      %2012 = vmatprep.subr.mxu0 0.0
      %2013 = vmatpush2.msra.mxu0 0.0
      %2014 = vmatprep.subr.mxu0 0.0
      %2015 = vmatpush2.msra.mxu0 0.0
      %2016 = vmatprep.subr.mxu0 0.0
      %2017 = vmatpush2.msra.mxu0 0.0
      %2018 = vmatprep.subr.mxu0 0.0
      %2019 = vmatpush2.msra.mxu0 0.0
      %2020 = vmatprep.subr.mxu0 0.0
      %2021 = vmatpush2.msra.mxu0 0.0
      %2022 = vmatprep.subr.mxu0 0.0
      %2023 = vmatpush2.msra.mxu0 0.0
      %2024 = vmatprep.subr.mxu0 0.0
      %2025 = vmatpush2.msra.mxu0 0.0
      %2026 = vmatprep.subr.mxu0 0.0
      %2027 = vmatpush2.msra.mxu0 0.0
      %2028 = vmatprep.subr.mxu0 0.0
      %2029 = vmatpush2.msra.mxu0 0.0
      %2030 = vmatprep.subr.mxu0 0.0
      %2031 = vmatpush2.msra.mxu0 0.0
      %2032 = vmatprep.subr.mxu0 0.0
      %2033 = vmatpush2.msra.mxu0 0.0
      %2034 = vmatprep.subr.mxu0 0.0
      %2035 = vmatpush2.msra.mxu0 0.0
      %2036 = vmatprep.subr.mxu0 0.0
      %2037 = vmatpush2.msra.mxu0 0.0
      %2038 = vmatprep.mubr.f32.mxu0 0.0
      %2039 = vmatmul.mubr.f32.gmra.mxu0 %v1901
      %v2040 = vpop.f32.mrf.mxu0
      %v2041 = vadd.f32 0.0, %v2040
      %v2042 = vpop.f32.mrf.mxu0
      %2043 = vdwg.mxu0
      %v2044 = vadd.f32 %v1880, %v1970
      %v2045 = vadd.f32 %v1881, %v1972
      %v2046 = vadd.f32 %v1882, %v2041
      %s2047 = scalar_lea.vmem %s4, 56
      %v2048 = vld [vmem:[%s2047] sm:$0xff]
      %2049 = vrot.lane.b32.xlu0 %v1712, 104
      %v2050 = vpop.permute.xlu0 %2049
      %2051 = vrot.lane.b32.xlu0 %v1713, 104
      %v2052 = vpop.permute.xlu0 %2051
      %2053 = vrot.lane.b32.xlu0 %v1714, 104
      %v2054 = vpop.permute.xlu0 %2053
      %2055 = vrot.lane.b32.xlu0 %v1715, 104
      %v2056 = vpop.permute.xlu0 %2055
      %v2057 = vsel %vm652, %v2050, %v2052
      %v2058 = vsel %vm652, %v2052, %v2054
      %v2059 = vsel %vm652, %v2054, %v2056
      %v2064 = vsel %vm931, %v2048, 0
      %2066 = vmatprep.subr.mxu0 0.0
      %2067 = vmatpush1.msra.mxu0 0.0
      %2068 = vmatprep.subr.mxu0 0.0
      %2069 = vmatpush1.msra.mxu0 0.0
      %2070 = vmatprep.subr.mxu0 0.0
      %2071 = vmatpush1.msra.mxu0 0.0
      %2072 = vmatprep.subr.mxu0 0.0
      %2073 = vmatpush1.msra.mxu0 0.0
      %2074 = vmatprep.subr.mxu0 0.0
      %2075 = vmatpush1.msra.mxu0 0.0
      %2076 = vmatprep.subr.mxu0 0.0
      %2077 = vmatpush1.msra.mxu0 0.0
      %2078 = vmatprep.subr.mxu0 0.0
      %2079 = vmatpush1.msra.mxu0 0.0
      %2080 = vmatprep.subr.mxu0 0.0
      %2081 = vmatpush1.msra.mxu0 0.0
      %2082 = vmatprep.subr.mxu0 0.0
      %2083 = vmatpush1.msra.mxu0 0.0
      %2084 = vmatprep.subr.mxu0 0.0
      %2085 = vmatpush1.msra.mxu0 0.0
      %2086 = vmatprep.subr.mxu0 0.0
      %2087 = vmatpush1.msra.mxu0 0.0
      %2088 = vmatprep.subr.mxu0 0.0
      %2089 = vmatpush1.msra.mxu0 0.0
      %2090 = vmatprep.subr.mxu0 0.0
      %2091 = vmatpush1.msra.mxu0 0.0
      %2092 = vmatprep.subr.mxu0 0.0
      %2093 = vmatpush1.msra.mxu0 0.0
      %2094 = vmatprep.subr.mxu0 0.0
      %2095 = vmatpush1.msra.mxu0 0.0
      %2096 = vmatprep.subr.mxu0 %v2058
      %2097 = vmatpush1.msra.mxu0 %v2057
      %2098 = vmatprep.subr.mxu0 0.0
      %2099 = vmatpush2.msra.mxu0 0.0
      %2100 = vmatprep.subr.mxu0 0.0
      %2101 = vmatpush2.msra.mxu0 0.0
      %2102 = vmatprep.subr.mxu0 0.0
      %2103 = vmatpush2.msra.mxu0 0.0
      %2104 = vmatprep.subr.mxu0 0.0
      %2105 = vmatpush2.msra.mxu0 0.0
      %2106 = vmatprep.subr.mxu0 0.0
      %2107 = vmatpush2.msra.mxu0 0.0
      %2108 = vmatprep.subr.mxu0 0.0
      %2109 = vmatpush2.msra.mxu0 0.0
      %2110 = vmatprep.subr.mxu0 0.0
      %2111 = vmatpush2.msra.mxu0 0.0
      %2112 = vmatprep.subr.mxu0 0.0
      %2113 = vmatpush2.msra.mxu0 0.0
      %2114 = vmatprep.subr.mxu0 0.0
      %2115 = vmatpush2.msra.mxu0 0.0
      %2116 = vmatprep.subr.mxu0 0.0
      %2117 = vmatpush2.msra.mxu0 0.0
      %2118 = vmatprep.subr.mxu0 0.0
      %2119 = vmatpush2.msra.mxu0 0.0
      %2120 = vmatprep.subr.mxu0 0.0
      %2121 = vmatpush2.msra.mxu0 0.0
      %2122 = vmatprep.subr.mxu0 0.0
      %2123 = vmatpush2.msra.mxu0 0.0
      %2124 = vmatprep.subr.mxu0 0.0
      %2125 = vmatpush2.msra.mxu0 0.0
      %2126 = vmatprep.subr.mxu0 0.0
      %2127 = vmatpush2.msra.mxu0 0.0
      %2128 = vmatprep.subr.mxu0 0.0
      %2129 = vmatpush2.msra.mxu0 0.0
      %2130 = vmatprep.mubr.f32.mxu0 0.0
      %2131 = vmatmul.mubr.f32.gmra.mxu0 %v2064
      %v2132 = vpop.f32.mrf.mxu0
      %v2133 = vadd.f32 0.0, %v2132
      %v2134 = vpop.f32.mrf.mxu0
      %v2135 = vadd.f32 0.0, %v2134
      %2136 = vdwg.mxu0
      %2137 = vmatprep.subr.mxu0 0.0
      %2138 = vmatpush1.msra.mxu0 0.0
      %2139 = vmatprep.subr.mxu0 0.0
      %2140 = vmatpush1.msra.mxu0 0.0
      %2141 = vmatprep.subr.mxu0 0.0
      %2142 = vmatpush1.msra.mxu0 0.0
      %2143 = vmatprep.subr.mxu0 0.0
      %2144 = vmatpush1.msra.mxu0 0.0
      %2145 = vmatprep.subr.mxu0 0.0
      %2146 = vmatpush1.msra.mxu0 0.0
      %2147 = vmatprep.subr.mxu0 0.0
      %2148 = vmatpush1.msra.mxu0 0.0
      %2149 = vmatprep.subr.mxu0 0.0
      %2150 = vmatpush1.msra.mxu0 0.0
      %2151 = vmatprep.subr.mxu0 0.0
      %2152 = vmatpush1.msra.mxu0 0.0
      %2153 = vmatprep.subr.mxu0 0.0
      %2154 = vmatpush1.msra.mxu0 0.0
      %2155 = vmatprep.subr.mxu0 0.0
      %2156 = vmatpush1.msra.mxu0 0.0
      %2157 = vmatprep.subr.mxu0 0.0
      %2158 = vmatpush1.msra.mxu0 0.0
      %2159 = vmatprep.subr.mxu0 0.0
      %2160 = vmatpush1.msra.mxu0 0.0
      %2161 = vmatprep.subr.mxu0 0.0
      %2162 = vmatpush1.msra.mxu0 0.0
      %2163 = vmatprep.subr.mxu0 0.0
      %2164 = vmatpush1.msra.mxu0 0.0
      %2165 = vmatprep.subr.mxu0 0.0
      %2166 = vmatpush1.msra.mxu0 0.0
      %2167 = vmatprep.subr.mxu0 0.0
      %2168 = vmatpush1.msra.mxu0 %v2059
      %2169 = vmatprep.subr.mxu0 0.0
      %2170 = vmatpush2.msra.mxu0 0.0
      %2171 = vmatprep.subr.mxu0 0.0
      %2172 = vmatpush2.msra.mxu0 0.0
      %2173 = vmatprep.subr.mxu0 0.0
      %2174 = vmatpush2.msra.mxu0 0.0
      %2175 = vmatprep.subr.mxu0 0.0
      %2176 = vmatpush2.msra.mxu0 0.0
      %2177 = vmatprep.subr.mxu0 0.0
      %2178 = vmatpush2.msra.mxu0 0.0
      %2179 = vmatprep.subr.mxu0 0.0
      %2180 = vmatpush2.msra.mxu0 0.0
      %2181 = vmatprep.subr.mxu0 0.0
      %2182 = vmatpush2.msra.mxu0 0.0
      %2183 = vmatprep.subr.mxu0 0.0
      %2184 = vmatpush2.msra.mxu0 0.0
      %2185 = vmatprep.subr.mxu0 0.0
      %2186 = vmatpush2.msra.mxu0 0.0
      %2187 = vmatprep.subr.mxu0 0.0
      %2188 = vmatpush2.msra.mxu0 0.0
      %2189 = vmatprep.subr.mxu0 0.0
      %2190 = vmatpush2.msra.mxu0 0.0
      %2191 = vmatprep.subr.mxu0 0.0
      %2192 = vmatpush2.msra.mxu0 0.0
      %2193 = vmatprep.subr.mxu0 0.0
      %2194 = vmatpush2.msra.mxu0 0.0
      %2195 = vmatprep.subr.mxu0 0.0
      %2196 = vmatpush2.msra.mxu0 0.0
      %2197 = vmatprep.subr.mxu0 0.0
      %2198 = vmatpush2.msra.mxu0 0.0
      %2199 = vmatprep.subr.mxu0 0.0
      %2200 = vmatpush2.msra.mxu0 0.0
      %2201 = vmatprep.mubr.f32.mxu0 0.0
      %2202 = vmatmul.mubr.f32.gmra.mxu0 %v2064
      %v2203 = vpop.f32.mrf.mxu0
      %v2204 = vadd.f32 0.0, %v2203
      %v2205 = vpop.f32.mrf.mxu0
      %2206 = vdwg.mxu0
      %v2207 = vadd.f32 %v2044, %v2133
      %v2208 = vadd.f32 %v2045, %v2135
      %v2209 = vadd.f32 %v2046, %v2204
      %s2210 = scalar_lea.vmem %s4, 64
      %v2211 = vld [vmem:[%s2210] sm:$0xff]
      %2212 = vrot.lane.b32.xlu0 %v1712, 103
      %v2213 = vpop.permute.xlu0 %2212
      %2214 = vrot.lane.b32.xlu0 %v1713, 103
      %v2215 = vpop.permute.xlu0 %2214
      %2216 = vrot.lane.b32.xlu0 %v1714, 103
      %v2217 = vpop.permute.xlu0 %2216
      %2218 = vrot.lane.b32.xlu0 %v1715, 103
      %v2219 = vpop.permute.xlu0 %2218
      %v2220 = vsel %vm666, %v2213, %v2215
      %v2221 = vsel %vm666, %v2215, %v2217
      %v2222 = vsel %vm666, %v2217, %v2219
      %v2227 = vsel %vm931, %v2211, 0
      %2229 = vmatprep.subr.mxu0 0.0
      %2230 = vmatpush1.msra.mxu0 0.0
      %2231 = vmatprep.subr.mxu0 0.0
      %2232 = vmatpush1.msra.mxu0 0.0
      %2233 = vmatprep.subr.mxu0 0.0
      %2234 = vmatpush1.msra.mxu0 0.0
      %2235 = vmatprep.subr.mxu0 0.0
      %2236 = vmatpush1.msra.mxu0 0.0
      %2237 = vmatprep.subr.mxu0 0.0
      %2238 = vmatpush1.msra.mxu0 0.0
      %2239 = vmatprep.subr.mxu0 0.0
      %2240 = vmatpush1.msra.mxu0 0.0
      %2241 = vmatprep.subr.mxu0 0.0
      %2242 = vmatpush1.msra.mxu0 0.0
      %2243 = vmatprep.subr.mxu0 0.0
      %2244 = vmatpush1.msra.mxu0 0.0
      %2245 = vmatprep.subr.mxu0 0.0
      %2246 = vmatpush1.msra.mxu0 0.0
      %2247 = vmatprep.subr.mxu0 0.0
      %2248 = vmatpush1.msra.mxu0 0.0
      %2249 = vmatprep.subr.mxu0 0.0
      %2250 = vmatpush1.msra.mxu0 0.0
      %2251 = vmatprep.subr.mxu0 0.0
      %2252 = vmatpush1.msra.mxu0 0.0
      %2253 = vmatprep.subr.mxu0 0.0
      %2254 = vmatpush1.msra.mxu0 0.0
      %2255 = vmatprep.subr.mxu0 0.0
      %2256 = vmatpush1.msra.mxu0 0.0
      %2257 = vmatprep.subr.mxu0 0.0
      %2258 = vmatpush1.msra.mxu0 0.0
      %2259 = vmatprep.subr.mxu0 %v2221
      %2260 = vmatpush1.msra.mxu0 %v2220
      %2261 = vmatprep.subr.mxu0 0.0
      %2262 = vmatpush2.msra.mxu0 0.0
      %2263 = vmatprep.subr.mxu0 0.0
      %2264 = vmatpush2.msra.mxu0 0.0
      %2265 = vmatprep.subr.mxu0 0.0
      %2266 = vmatpush2.msra.mxu0 0.0
      %2267 = vmatprep.subr.mxu0 0.0
      %2268 = vmatpush2.msra.mxu0 0.0
      %2269 = vmatprep.subr.mxu0 0.0
      %2270 = vmatpush2.msra.mxu0 0.0
      %2271 = vmatprep.subr.mxu0 0.0
      %2272 = vmatpush2.msra.mxu0 0.0
      %2273 = vmatprep.subr.mxu0 0.0
      %2274 = vmatpush2.msra.mxu0 0.0
      %2275 = vmatprep.subr.mxu0 0.0
      %2276 = vmatpush2.msra.mxu0 0.0
      %2277 = vmatprep.subr.mxu0 0.0
      %2278 = vmatpush2.msra.mxu0 0.0
      %2279 = vmatprep.subr.mxu0 0.0
      %2280 = vmatpush2.msra.mxu0 0.0
      %2281 = vmatprep.subr.mxu0 0.0
      %2282 = vmatpush2.msra.mxu0 0.0
      %2283 = vmatprep.subr.mxu0 0.0
      %2284 = vmatpush2.msra.mxu0 0.0
      %2285 = vmatprep.subr.mxu0 0.0
      %2286 = vmatpush2.msra.mxu0 0.0
      %2287 = vmatprep.subr.mxu0 0.0
      %2288 = vmatpush2.msra.mxu0 0.0
      %2289 = vmatprep.subr.mxu0 0.0
      %2290 = vmatpush2.msra.mxu0 0.0
      %2291 = vmatprep.subr.mxu0 0.0
      %2292 = vmatpush2.msra.mxu0 0.0
      %2293 = vmatprep.mubr.f32.mxu0 0.0
      %2294 = vmatmul.mubr.f32.gmra.mxu0 %v2227
      %v2295 = vpop.f32.mrf.mxu0
      %v2296 = vadd.f32 0.0, %v2295
      %v2297 = vpop.f32.mrf.mxu0
      %v2298 = vadd.f32 0.0, %v2297
      %2299 = vdwg.mxu0
      %2300 = vmatprep.subr.mxu0 0.0
      %2301 = vmatpush1.msra.mxu0 0.0
      %2302 = vmatprep.subr.mxu0 0.0
      %2303 = vmatpush1.msra.mxu0 0.0
      %2304 = vmatprep.subr.mxu0 0.0
      %2305 = vmatpush1.msra.mxu0 0.0
      %2306 = vmatprep.subr.mxu0 0.0
      %2307 = vmatpush1.msra.mxu0 0.0
      %2308 = vmatprep.subr.mxu0 0.0
      %2309 = vmatpush1.msra.mxu0 0.0
      %2310 = vmatprep.subr.mxu0 0.0
      %2311 = vmatpush1.msra.mxu0 0.0
      %2312 = vmatprep.subr.mxu0 0.0
      %2313 = vmatpush1.msra.mxu0 0.0
      %2314 = vmatprep.subr.mxu0 0.0
      %2315 = vmatpush1.msra.mxu0 0.0
      %2316 = vmatprep.subr.mxu0 0.0
      %2317 = vmatpush1.msra.mxu0 0.0
      %2318 = vmatprep.subr.mxu0 0.0
      %2319 = vmatpush1.msra.mxu0 0.0
      %2320 = vmatprep.subr.mxu0 0.0
      %2321 = vmatpush1.msra.mxu0 0.0
      %2322 = vmatprep.subr.mxu0 0.0
      %2323 = vmatpush1.msra.mxu0 0.0
      %2324 = vmatprep.subr.mxu0 0.0
      %2325 = vmatpush1.msra.mxu0 0.0
      %2326 = vmatprep.subr.mxu0 0.0
      %2327 = vmatpush1.msra.mxu0 0.0
      %2328 = vmatprep.subr.mxu0 0.0
      %2329 = vmatpush1.msra.mxu0 0.0
      %2330 = vmatprep.subr.mxu0 0.0
      %2331 = vmatpush1.msra.mxu0 %v2222
      %2332 = vmatprep.subr.mxu0 0.0
      %2333 = vmatpush2.msra.mxu0 0.0
      %2334 = vmatprep.subr.mxu0 0.0
      %2335 = vmatpush2.msra.mxu0 0.0
      %2336 = vmatprep.subr.mxu0 0.0
      %2337 = vmatpush2.msra.mxu0 0.0
      %2338 = vmatprep.subr.mxu0 0.0
      %2339 = vmatpush2.msra.mxu0 0.0
      %2340 = vmatprep.subr.mxu0 0.0
      %2341 = vmatpush2.msra.mxu0 0.0
      %2342 = vmatprep.subr.mxu0 0.0
      %2343 = vmatpush2.msra.mxu0 0.0
      %2344 = vmatprep.subr.mxu0 0.0
      %2345 = vmatpush2.msra.mxu0 0.0
      %2346 = vmatprep.subr.mxu0 0.0
      %2347 = vmatpush2.msra.mxu0 0.0
      %2348 = vmatprep.subr.mxu0 0.0
      %2349 = vmatpush2.msra.mxu0 0.0
      %2350 = vmatprep.subr.mxu0 0.0
      %2351 = vmatpush2.msra.mxu0 0.0
      %2352 = vmatprep.subr.mxu0 0.0
      %2353 = vmatpush2.msra.mxu0 0.0
      %2354 = vmatprep.subr.mxu0 0.0
      %2355 = vmatpush2.msra.mxu0 0.0
      %2356 = vmatprep.subr.mxu0 0.0
      %2357 = vmatpush2.msra.mxu0 0.0
      %2358 = vmatprep.subr.mxu0 0.0
      %2359 = vmatpush2.msra.mxu0 0.0
      %2360 = vmatprep.subr.mxu0 0.0
      %2361 = vmatpush2.msra.mxu0 0.0
      %2362 = vmatprep.subr.mxu0 0.0
      %2363 = vmatpush2.msra.mxu0 0.0
      %2364 = vmatprep.mubr.f32.mxu0 0.0
      %2365 = vmatmul.mubr.f32.gmra.mxu0 %v2227
      %v2366 = vpop.f32.mrf.mxu0
      %v2367 = vadd.f32 0.0, %v2366
      %v2368 = vpop.f32.mrf.mxu0
      %2369 = vdwg.mxu0
      %v2370 = vadd.f32 %v2207, %v2296
      %v2371 = vadd.f32 %v2208, %v2298
      %v2372 = vadd.f32 %v2209, %v2367
      %v2373 = vld [vmem:[%s5] sm:$0xff]
      %2375 = vset.pattern.permute.xlu0 0
      %2376 = vperm.xlu0 %2375, %v2373
      %v2377 = vpop.permute.xlu0 %2376
      %v2379 = vadd.f32 %v2370, %v2377
      %v2380 = vadd.f32 %v2371, %v2377
      %v2381 = vadd.f32 %v2372, %v2377
      %v2382 = vmax.f32 %v2379, 0.0
      %v2383 = vmax.f32 %v2380, 0.0
      %v2384 = vmax.f32 %v2381, 0.0
      %2385 = vst [vmem:[%s359 + $0x18] sm:$0xff] %v2382
      %2386 = vst [vmem:[%s359 + $0x20] sm:$0xff] %v2383
      %2387 = vst [vmem:[%s359 + $0x28] sm:$0xff] %v2384
      %2388 = vst [vmem:[#allocation2 + $0x8] sm:$0xff] %v611
      %2389 = vst [vmem:[#allocation2 + $0x10] sm:$0xff] %v612
      %2390 = vst [vmem:[#allocation2 + $0x18] sm:$0xff] %v613
      %v2391 = vld [vmem:[#allocation2] sm:$0xff]
      %v2392 = vld [vmem:[#allocation2 + $0x8] sm:$0xff]
      %v2393 = vld [vmem:[#allocation2 + $0x10] sm:$0xff]
      %v2394 = vld [vmem:[#allocation2 + $0x18] sm:$0xff]
      %v2395 = vld [vmem:[%s6] sm:$0xff]
      %s2396 = scalar_lea.vmem %s6, 8
      %v2397 = vld [vmem:[%s2396] sm:$0xff]
      %2402 = vrot.lane.b32.xlu0 %v2391, 49
      %v2403 = vpop.permute.xlu0 %2402
      %2404 = vrot.lane.b32.xlu0 %v2392, 49
      %v2405 = vpop.permute.xlu0 %2404
      %2406 = vrot.lane.b32.xlu0 %v2393, 49
      %v2407 = vpop.permute.xlu0 %2406
      %2408 = vrot.lane.b32.xlu0 %v2394, 49
      %v2409 = vpop.permute.xlu0 %2408
      %vm2410 = vcmask 400384
      %v2411 = vsel %vm2410, %v2403, %v2405
      %v2412 = vsel %vm2410, %v2405, %v2407
      %v2413 = vsel %vm2410, %v2407, %v2409
      %v2418 = vsel %vm931, %v2397, 0
      %2420 = vmatprep.subr.mxu0 0.0
      %2421 = vmatpush1.msra.mxu0 0.0
      %2422 = vmatprep.subr.mxu0 0.0
      %2423 = vmatpush1.msra.mxu0 0.0
      %2424 = vmatprep.subr.mxu0 0.0
      %2425 = vmatpush1.msra.mxu0 0.0
      %2426 = vmatprep.subr.mxu0 0.0
      %2427 = vmatpush1.msra.mxu0 0.0
      %2428 = vmatprep.subr.mxu0 0.0
      %2429 = vmatpush1.msra.mxu0 0.0
      %2430 = vmatprep.subr.mxu0 0.0
      %2431 = vmatpush1.msra.mxu0 0.0
      %2432 = vmatprep.subr.mxu0 0.0
      %2433 = vmatpush1.msra.mxu0 0.0
      %2434 = vmatprep.subr.mxu0 0.0
      %2435 = vmatpush1.msra.mxu0 0.0
      %2436 = vmatprep.subr.mxu0 0.0
      %2437 = vmatpush1.msra.mxu0 0.0
      %2438 = vmatprep.subr.mxu0 0.0
      %2439 = vmatpush1.msra.mxu0 0.0
      %2440 = vmatprep.subr.mxu0 0.0
      %2441 = vmatpush1.msra.mxu0 0.0
      %2442 = vmatprep.subr.mxu0 0.0
      %2443 = vmatpush1.msra.mxu0 0.0
      %2444 = vmatprep.subr.mxu0 0.0
      %2445 = vmatpush1.msra.mxu0 0.0
      %2446 = vmatprep.subr.mxu0 0.0
      %2447 = vmatpush1.msra.mxu0 0.0
      %2448 = vmatprep.subr.mxu0 0.0
      %2449 = vmatpush1.msra.mxu0 0.0
      %2450 = vmatprep.subr.mxu0 %v2412
      %2451 = vmatpush1.msra.mxu0 %v2411
      %2452 = vmatprep.subr.mxu0 0.0
      %2453 = vmatpush2.msra.mxu0 0.0
      %2454 = vmatprep.subr.mxu0 0.0
      %2455 = vmatpush2.msra.mxu0 0.0
      %2456 = vmatprep.subr.mxu0 0.0
      %2457 = vmatpush2.msra.mxu0 0.0
      %2458 = vmatprep.subr.mxu0 0.0
      %2459 = vmatpush2.msra.mxu0 0.0
      %2460 = vmatprep.subr.mxu0 0.0
      %2461 = vmatpush2.msra.mxu0 0.0
      %2462 = vmatprep.subr.mxu0 0.0
      %2463 = vmatpush2.msra.mxu0 0.0
      %2464 = vmatprep.subr.mxu0 0.0
      %2465 = vmatpush2.msra.mxu0 0.0
      %2466 = vmatprep.subr.mxu0 0.0
      %2467 = vmatpush2.msra.mxu0 0.0
      %2468 = vmatprep.subr.mxu0 0.0
      %2469 = vmatpush2.msra.mxu0 0.0
      %2470 = vmatprep.subr.mxu0 0.0
      %2471 = vmatpush2.msra.mxu0 0.0
      %2472 = vmatprep.subr.mxu0 0.0
      %2473 = vmatpush2.msra.mxu0 0.0
      %2474 = vmatprep.subr.mxu0 0.0
      %2475 = vmatpush2.msra.mxu0 0.0
      %2476 = vmatprep.subr.mxu0 0.0
      %2477 = vmatpush2.msra.mxu0 0.0
      %2478 = vmatprep.subr.mxu0 0.0
      %2479 = vmatpush2.msra.mxu0 0.0
      %2480 = vmatprep.subr.mxu0 0.0
      %2481 = vmatpush2.msra.mxu0 0.0
      %2482 = vmatprep.subr.mxu0 0.0
      %2483 = vmatpush2.msra.mxu0 0.0
      %2484 = vmatprep.mubr.f32.mxu0 0.0
      %2485 = vmatmul.mubr.f32.gmra.mxu0 %v2418
      %v2486 = vpop.f32.mrf.mxu0
      %v2487 = vadd.f32 0.0, %v2486
      %v2488 = vpop.f32.mrf.mxu0
      %v2489 = vadd.f32 0.0, %v2488
      %2490 = vdwg.mxu0
      %2491 = vmatprep.subr.mxu0 0.0
      %2492 = vmatpush1.msra.mxu0 0.0
      %2493 = vmatprep.subr.mxu0 0.0
      %2494 = vmatpush1.msra.mxu0 0.0
      %2495 = vmatprep.subr.mxu0 0.0
      %2496 = vmatpush1.msra.mxu0 0.0
      %2497 = vmatprep.subr.mxu0 0.0
      %2498 = vmatpush1.msra.mxu0 0.0
      %2499 = vmatprep.subr.mxu0 0.0
      %2500 = vmatpush1.msra.mxu0 0.0
      %2501 = vmatprep.subr.mxu0 0.0
      %2502 = vmatpush1.msra.mxu0 0.0
      %2503 = vmatprep.subr.mxu0 0.0
      %2504 = vmatpush1.msra.mxu0 0.0
      %2505 = vmatprep.subr.mxu0 0.0
      %2506 = vmatpush1.msra.mxu0 0.0
      %2507 = vmatprep.subr.mxu0 0.0
      %2508 = vmatpush1.msra.mxu0 0.0
      %2509 = vmatprep.subr.mxu0 0.0
      %2510 = vmatpush1.msra.mxu0 0.0
      %2511 = vmatprep.subr.mxu0 0.0
      %2512 = vmatpush1.msra.mxu0 0.0
      %2513 = vmatprep.subr.mxu0 0.0
      %2514 = vmatpush1.msra.mxu0 0.0
      %2515 = vmatprep.subr.mxu0 0.0
      %2516 = vmatpush1.msra.mxu0 0.0
      %2517 = vmatprep.subr.mxu0 0.0
      %2518 = vmatpush1.msra.mxu0 0.0
      %2519 = vmatprep.subr.mxu0 0.0
      %2520 = vmatpush1.msra.mxu0 0.0
      %2521 = vmatprep.subr.mxu0 0.0
      %2522 = vmatpush1.msra.mxu0 %v2413
      %2523 = vmatprep.subr.mxu0 0.0
      %2524 = vmatpush2.msra.mxu0 0.0
      %2525 = vmatprep.subr.mxu0 0.0
      %2526 = vmatpush2.msra.mxu0 0.0
      %2527 = vmatprep.subr.mxu0 0.0
      %2528 = vmatpush2.msra.mxu0 0.0
      %2529 = vmatprep.subr.mxu0 0.0
      %2530 = vmatpush2.msra.mxu0 0.0
      %2531 = vmatprep.subr.mxu0 0.0
      %2532 = vmatpush2.msra.mxu0 0.0
      %2533 = vmatprep.subr.mxu0 0.0
      %2534 = vmatpush2.msra.mxu0 0.0
      %2535 = vmatprep.subr.mxu0 0.0
      %2536 = vmatpush2.msra.mxu0 0.0
      %2537 = vmatprep.subr.mxu0 0.0
      %2538 = vmatpush2.msra.mxu0 0.0
      %2539 = vmatprep.subr.mxu0 0.0
      %2540 = vmatpush2.msra.mxu0 0.0
      %2541 = vmatprep.subr.mxu0 0.0
      %2542 = vmatpush2.msra.mxu0 0.0
      %2543 = vmatprep.subr.mxu0 0.0
      %2544 = vmatpush2.msra.mxu0 0.0
      %2545 = vmatprep.subr.mxu0 0.0
      %2546 = vmatpush2.msra.mxu0 0.0
      %2547 = vmatprep.subr.mxu0 0.0
      %2548 = vmatpush2.msra.mxu0 0.0
      %2549 = vmatprep.subr.mxu0 0.0
      %2550 = vmatpush2.msra.mxu0 0.0
      %2551 = vmatprep.subr.mxu0 0.0
      %2552 = vmatpush2.msra.mxu0 0.0
      %2553 = vmatprep.subr.mxu0 0.0
      %2554 = vmatpush2.msra.mxu0 0.0
      %2555 = vmatprep.mubr.f32.mxu0 0.0
      %2556 = vmatmul.mubr.f32.gmra.mxu0 %v2418
      %v2557 = vpop.f32.mrf.mxu0
      %v2558 = vadd.f32 0.0, %v2557
      %v2559 = vpop.f32.mrf.mxu0
      %2560 = vdwg.mxu0
      %2561 = vrot.lane.b32.xlu0 %v2391, 50
      %v2562 = vpop.permute.xlu0 %2561
      %2563 = vrot.lane.b32.xlu0 %v2392, 50
      %v2564 = vpop.permute.xlu0 %2563
      %2565 = vrot.lane.b32.xlu0 %v2393, 50
      %v2566 = vpop.permute.xlu0 %2565
      %2567 = vrot.lane.b32.xlu0 %v2394, 50
      %v2568 = vpop.permute.xlu0 %2567
      %v2569 = vsel %vm361, %v2562, %v2564
      %v2570 = vsel %vm361, %v2564, %v2566
      %v2571 = vsel %vm361, %v2566, %v2568
      %v2576 = vsel %vm931, %v2395, 0
      %2578 = vmatprep.subr.mxu0 0.0
      %2579 = vmatpush1.msra.mxu0 0.0
      %2580 = vmatprep.subr.mxu0 0.0
      %2581 = vmatpush1.msra.mxu0 0.0
      %2582 = vmatprep.subr.mxu0 0.0
      %2583 = vmatpush1.msra.mxu0 0.0
      %2584 = vmatprep.subr.mxu0 0.0
      %2585 = vmatpush1.msra.mxu0 0.0
      %2586 = vmatprep.subr.mxu0 0.0
      %2587 = vmatpush1.msra.mxu0 0.0
      %2588 = vmatprep.subr.mxu0 0.0
      %2589 = vmatpush1.msra.mxu0 0.0
      %2590 = vmatprep.subr.mxu0 0.0
      %2591 = vmatpush1.msra.mxu0 0.0
      %2592 = vmatprep.subr.mxu0 0.0
      %2593 = vmatpush1.msra.mxu0 0.0
      %2594 = vmatprep.subr.mxu0 0.0
      %2595 = vmatpush1.msra.mxu0 0.0
      %2596 = vmatprep.subr.mxu0 0.0
      %2597 = vmatpush1.msra.mxu0 0.0
      %2598 = vmatprep.subr.mxu0 0.0
      %2599 = vmatpush1.msra.mxu0 0.0
      %2600 = vmatprep.subr.mxu0 0.0
      %2601 = vmatpush1.msra.mxu0 0.0
      %2602 = vmatprep.subr.mxu0 0.0
      %2603 = vmatpush1.msra.mxu0 0.0
      %2604 = vmatprep.subr.mxu0 0.0
      %2605 = vmatpush1.msra.mxu0 0.0
      %2606 = vmatprep.subr.mxu0 0.0
      %2607 = vmatpush1.msra.mxu0 0.0
      %2608 = vmatprep.subr.mxu0 %v2570
      %2609 = vmatpush1.msra.mxu0 %v2569
      %2610 = vmatprep.subr.mxu0 0.0
      %2611 = vmatpush2.msra.mxu0 0.0
      %2612 = vmatprep.subr.mxu0 0.0
      %2613 = vmatpush2.msra.mxu0 0.0
      %2614 = vmatprep.subr.mxu0 0.0
      %2615 = vmatpush2.msra.mxu0 0.0
      %2616 = vmatprep.subr.mxu0 0.0
      %2617 = vmatpush2.msra.mxu0 0.0
      %2618 = vmatprep.subr.mxu0 0.0
      %2619 = vmatpush2.msra.mxu0 0.0
      %2620 = vmatprep.subr.mxu0 0.0
      %2621 = vmatpush2.msra.mxu0 0.0
      %2622 = vmatprep.subr.mxu0 0.0
      %2623 = vmatpush2.msra.mxu0 0.0
      %2624 = vmatprep.subr.mxu0 0.0
      %2625 = vmatpush2.msra.mxu0 0.0
      %2626 = vmatprep.subr.mxu0 0.0
      %2627 = vmatpush2.msra.mxu0 0.0
      %2628 = vmatprep.subr.mxu0 0.0
      %2629 = vmatpush2.msra.mxu0 0.0
      %2630 = vmatprep.subr.mxu0 0.0
      %2631 = vmatpush2.msra.mxu0 0.0
      %2632 = vmatprep.subr.mxu0 0.0
      %2633 = vmatpush2.msra.mxu0 0.0
      %2634 = vmatprep.subr.mxu0 0.0
      %2635 = vmatpush2.msra.mxu0 0.0
      %2636 = vmatprep.subr.mxu0 0.0
      %2637 = vmatpush2.msra.mxu0 0.0
      %2638 = vmatprep.subr.mxu0 0.0
      %2639 = vmatpush2.msra.mxu0 0.0
      %2640 = vmatprep.subr.mxu0 0.0
      %2641 = vmatpush2.msra.mxu0 0.0
      %2642 = vmatprep.mubr.f32.mxu0 0.0
      %2643 = vmatmul.mubr.f32.gmra.mxu0 %v2576
      %v2644 = vpop.f32.mrf.mxu0
      %v2645 = vadd.f32 %v2487, %v2644
      %v2646 = vpop.f32.mrf.mxu0
      %v2647 = vadd.f32 %v2489, %v2646
      %2648 = vdwg.mxu0
      %2649 = vmatprep.subr.mxu0 0.0
      %2650 = vmatpush1.msra.mxu0 0.0
      %2651 = vmatprep.subr.mxu0 0.0
      %2652 = vmatpush1.msra.mxu0 0.0
      %2653 = vmatprep.subr.mxu0 0.0
      %2654 = vmatpush1.msra.mxu0 0.0
      %2655 = vmatprep.subr.mxu0 0.0
      %2656 = vmatpush1.msra.mxu0 0.0
      %2657 = vmatprep.subr.mxu0 0.0
      %2658 = vmatpush1.msra.mxu0 0.0
      %2659 = vmatprep.subr.mxu0 0.0
      %2660 = vmatpush1.msra.mxu0 0.0
      %2661 = vmatprep.subr.mxu0 0.0
      %2662 = vmatpush1.msra.mxu0 0.0
      %2663 = vmatprep.subr.mxu0 0.0
      %2664 = vmatpush1.msra.mxu0 0.0
      %2665 = vmatprep.subr.mxu0 0.0
      %2666 = vmatpush1.msra.mxu0 0.0
      %2667 = vmatprep.subr.mxu0 0.0
      %2668 = vmatpush1.msra.mxu0 0.0
      %2669 = vmatprep.subr.mxu0 0.0
      %2670 = vmatpush1.msra.mxu0 0.0
      %2671 = vmatprep.subr.mxu0 0.0
      %2672 = vmatpush1.msra.mxu0 0.0
      %2673 = vmatprep.subr.mxu0 0.0
      %2674 = vmatpush1.msra.mxu0 0.0
      %2675 = vmatprep.subr.mxu0 0.0
      %2676 = vmatpush1.msra.mxu0 0.0
      %2677 = vmatprep.subr.mxu0 0.0
      %2678 = vmatpush1.msra.mxu0 0.0
      %2679 = vmatprep.subr.mxu0 0.0
      %2680 = vmatpush1.msra.mxu0 %v2571
      %2681 = vmatprep.subr.mxu0 0.0
      %2682 = vmatpush2.msra.mxu0 0.0
      %2683 = vmatprep.subr.mxu0 0.0
      %2684 = vmatpush2.msra.mxu0 0.0
      %2685 = vmatprep.subr.mxu0 0.0
      %2686 = vmatpush2.msra.mxu0 0.0
      %2687 = vmatprep.subr.mxu0 0.0
      %2688 = vmatpush2.msra.mxu0 0.0
      %2689 = vmatprep.subr.mxu0 0.0
      %2690 = vmatpush2.msra.mxu0 0.0
      %2691 = vmatprep.subr.mxu0 0.0
      %2692 = vmatpush2.msra.mxu0 0.0
      %2693 = vmatprep.subr.mxu0 0.0
      %2694 = vmatpush2.msra.mxu0 0.0
      %2695 = vmatprep.subr.mxu0 0.0
      %2696 = vmatpush2.msra.mxu0 0.0
      %2697 = vmatprep.subr.mxu0 0.0
      %2698 = vmatpush2.msra.mxu0 0.0
      %2699 = vmatprep.subr.mxu0 0.0
      %2700 = vmatpush2.msra.mxu0 0.0
      %2701 = vmatprep.subr.mxu0 0.0
      %2702 = vmatpush2.msra.mxu0 0.0
      %2703 = vmatprep.subr.mxu0 0.0
      %2704 = vmatpush2.msra.mxu0 0.0
      %2705 = vmatprep.subr.mxu0 0.0
      %2706 = vmatpush2.msra.mxu0 0.0
      %2707 = vmatprep.subr.mxu0 0.0
      %2708 = vmatpush2.msra.mxu0 0.0
      %2709 = vmatprep.subr.mxu0 0.0
      %2710 = vmatpush2.msra.mxu0 0.0
      %2711 = vmatprep.subr.mxu0 0.0
      %2712 = vmatpush2.msra.mxu0 0.0
      %2713 = vmatprep.mubr.f32.mxu0 0.0
      %2714 = vmatmul.mubr.f32.gmra.mxu0 %v2576
      %v2715 = vpop.f32.mrf.mxu0
      %v2716 = vadd.f32 %v2558, %v2715
      %v2717 = vpop.f32.mrf.mxu0
      %2718 = vdwg.mxu0
      %s2719 = scalar_lea.vmem %s6, 16
      %v2720 = vld [vmem:[%s2719] sm:$0xff]
      %2721 = vrot.lane.b32.xlu0 %v2391, 48
      %v2722 = vpop.permute.xlu0 %2721
      %2723 = vrot.lane.b32.xlu0 %v2392, 48
      %v2724 = vpop.permute.xlu0 %2723
      %2725 = vrot.lane.b32.xlu0 %v2393, 48
      %v2726 = vpop.permute.xlu0 %2725
      %2727 = vrot.lane.b32.xlu0 %v2394, 48
      %v2728 = vpop.permute.xlu0 %2727
      %vm2729 = vcmask 392192
      %v2730 = vsel %vm2729, %v2722, %v2724
      %v2731 = vsel %vm2729, %v2724, %v2726
      %v2732 = vsel %vm2729, %v2726, %v2728
      %v2737 = vsel %vm931, %v2720, 0
      %2739 = vmatprep.subr.mxu0 0.0
      %2740 = vmatpush1.msra.mxu0 0.0
      %2741 = vmatprep.subr.mxu0 0.0
      %2742 = vmatpush1.msra.mxu0 0.0
      %2743 = vmatprep.subr.mxu0 0.0
      %2744 = vmatpush1.msra.mxu0 0.0
      %2745 = vmatprep.subr.mxu0 0.0
      %2746 = vmatpush1.msra.mxu0 0.0
      %2747 = vmatprep.subr.mxu0 0.0
      %2748 = vmatpush1.msra.mxu0 0.0
      %2749 = vmatprep.subr.mxu0 0.0
      %2750 = vmatpush1.msra.mxu0 0.0
      %2751 = vmatprep.subr.mxu0 0.0
      %2752 = vmatpush1.msra.mxu0 0.0
      %2753 = vmatprep.subr.mxu0 0.0
      %2754 = vmatpush1.msra.mxu0 0.0
      %2755 = vmatprep.subr.mxu0 0.0
      %2756 = vmatpush1.msra.mxu0 0.0
      %2757 = vmatprep.subr.mxu0 0.0
      %2758 = vmatpush1.msra.mxu0 0.0
      %2759 = vmatprep.subr.mxu0 0.0
      %2760 = vmatpush1.msra.mxu0 0.0
      %2761 = vmatprep.subr.mxu0 0.0
      %2762 = vmatpush1.msra.mxu0 0.0
      %2763 = vmatprep.subr.mxu0 0.0
      %2764 = vmatpush1.msra.mxu0 0.0
      %2765 = vmatprep.subr.mxu0 0.0
      %2766 = vmatpush1.msra.mxu0 0.0
      %2767 = vmatprep.subr.mxu0 0.0
      %2768 = vmatpush1.msra.mxu0 0.0
      %2769 = vmatprep.subr.mxu0 %v2731
      %2770 = vmatpush1.msra.mxu0 %v2730
      %2771 = vmatprep.subr.mxu0 0.0
      %2772 = vmatpush2.msra.mxu0 0.0
      %2773 = vmatprep.subr.mxu0 0.0
      %2774 = vmatpush2.msra.mxu0 0.0
      %2775 = vmatprep.subr.mxu0 0.0
      %2776 = vmatpush2.msra.mxu0 0.0
      %2777 = vmatprep.subr.mxu0 0.0
      %2778 = vmatpush2.msra.mxu0 0.0
      %2779 = vmatprep.subr.mxu0 0.0
      %2780 = vmatpush2.msra.mxu0 0.0
      %2781 = vmatprep.subr.mxu0 0.0
      %2782 = vmatpush2.msra.mxu0 0.0
      %2783 = vmatprep.subr.mxu0 0.0
      %2784 = vmatpush2.msra.mxu0 0.0
      %2785 = vmatprep.subr.mxu0 0.0
      %2786 = vmatpush2.msra.mxu0 0.0
      %2787 = vmatprep.subr.mxu0 0.0
      %2788 = vmatpush2.msra.mxu0 0.0
      %2789 = vmatprep.subr.mxu0 0.0
      %2790 = vmatpush2.msra.mxu0 0.0
      %2791 = vmatprep.subr.mxu0 0.0
      %2792 = vmatpush2.msra.mxu0 0.0
      %2793 = vmatprep.subr.mxu0 0.0
      %2794 = vmatpush2.msra.mxu0 0.0
      %2795 = vmatprep.subr.mxu0 0.0
      %2796 = vmatpush2.msra.mxu0 0.0
      %2797 = vmatprep.subr.mxu0 0.0
      %2798 = vmatpush2.msra.mxu0 0.0
      %2799 = vmatprep.subr.mxu0 0.0
      %2800 = vmatpush2.msra.mxu0 0.0
      %2801 = vmatprep.subr.mxu0 0.0
      %2802 = vmatpush2.msra.mxu0 0.0
      %2803 = vmatprep.mubr.f32.mxu0 0.0
      %2804 = vmatmul.mubr.f32.gmra.mxu0 %v2737
      %v2805 = vpop.f32.mrf.mxu0
      %v2806 = vadd.f32 0.0, %v2805
      %v2807 = vpop.f32.mrf.mxu0
      %v2808 = vadd.f32 0.0, %v2807
      %2809 = vdwg.mxu0
      %2810 = vmatprep.subr.mxu0 0.0
      %2811 = vmatpush1.msra.mxu0 0.0
      %2812 = vmatprep.subr.mxu0 0.0
      %2813 = vmatpush1.msra.mxu0 0.0
      %2814 = vmatprep.subr.mxu0 0.0
      %2815 = vmatpush1.msra.mxu0 0.0
      %2816 = vmatprep.subr.mxu0 0.0
      %2817 = vmatpush1.msra.mxu0 0.0
      %2818 = vmatprep.subr.mxu0 0.0
      %2819 = vmatpush1.msra.mxu0 0.0
      %2820 = vmatprep.subr.mxu0 0.0
      %2821 = vmatpush1.msra.mxu0 0.0
      %2822 = vmatprep.subr.mxu0 0.0
      %2823 = vmatpush1.msra.mxu0 0.0
      %2824 = vmatprep.subr.mxu0 0.0
      %2825 = vmatpush1.msra.mxu0 0.0
      %2826 = vmatprep.subr.mxu0 0.0
      %2827 = vmatpush1.msra.mxu0 0.0
      %2828 = vmatprep.subr.mxu0 0.0
      %2829 = vmatpush1.msra.mxu0 0.0
      %2830 = vmatprep.subr.mxu0 0.0
      %2831 = vmatpush1.msra.mxu0 0.0
      %2832 = vmatprep.subr.mxu0 0.0
      %2833 = vmatpush1.msra.mxu0 0.0
      %2834 = vmatprep.subr.mxu0 0.0
      %2835 = vmatpush1.msra.mxu0 0.0
      %2836 = vmatprep.subr.mxu0 0.0
      %2837 = vmatpush1.msra.mxu0 0.0
      %2838 = vmatprep.subr.mxu0 0.0
      %2839 = vmatpush1.msra.mxu0 0.0
      %2840 = vmatprep.subr.mxu0 0.0
      %2841 = vmatpush1.msra.mxu0 %v2732
      %2842 = vmatprep.subr.mxu0 0.0
      %2843 = vmatpush2.msra.mxu0 0.0
      %2844 = vmatprep.subr.mxu0 0.0
      %2845 = vmatpush2.msra.mxu0 0.0
      %2846 = vmatprep.subr.mxu0 0.0
      %2847 = vmatpush2.msra.mxu0 0.0
      %2848 = vmatprep.subr.mxu0 0.0
      %2849 = vmatpush2.msra.mxu0 0.0
      %2850 = vmatprep.subr.mxu0 0.0
      %2851 = vmatpush2.msra.mxu0 0.0
      %2852 = vmatprep.subr.mxu0 0.0
      %2853 = vmatpush2.msra.mxu0 0.0
      %2854 = vmatprep.subr.mxu0 0.0
      %2855 = vmatpush2.msra.mxu0 0.0
      %2856 = vmatprep.subr.mxu0 0.0
      %2857 = vmatpush2.msra.mxu0 0.0
      %2858 = vmatprep.subr.mxu0 0.0
      %2859 = vmatpush2.msra.mxu0 0.0
      %2860 = vmatprep.subr.mxu0 0.0
      %2861 = vmatpush2.msra.mxu0 0.0
      %2862 = vmatprep.subr.mxu0 0.0
      %2863 = vmatpush2.msra.mxu0 0.0
      %2864 = vmatprep.subr.mxu0 0.0
      %2865 = vmatpush2.msra.mxu0 0.0
      %2866 = vmatprep.subr.mxu0 0.0
      %2867 = vmatpush2.msra.mxu0 0.0
      %2868 = vmatprep.subr.mxu0 0.0
      %2869 = vmatpush2.msra.mxu0 0.0
      %2870 = vmatprep.subr.mxu0 0.0
      %2871 = vmatpush2.msra.mxu0 0.0
      %2872 = vmatprep.subr.mxu0 0.0
      %2873 = vmatpush2.msra.mxu0 0.0
      %2874 = vmatprep.mubr.f32.mxu0 0.0
      %2875 = vmatmul.mubr.f32.gmra.mxu0 %v2737
      %v2876 = vpop.f32.mrf.mxu0
      %v2877 = vadd.f32 0.0, %v2876
      %v2878 = vpop.f32.mrf.mxu0
      %2879 = vdwg.mxu0
      %v2880 = vadd.f32 %v2645, %v2806
      %v2881 = vadd.f32 %v2647, %v2808
      %v2882 = vadd.f32 %v2716, %v2877
      %s2883 = scalar_lea.vmem %s6, 24
      %v2884 = vld [vmem:[%s2883] sm:$0xff]
      %2885 = vrot.lane.b32.xlu0 %v2391, 47
      %v2886 = vpop.permute.xlu0 %2885
      %2887 = vrot.lane.b32.xlu0 %v2392, 47
      %v2888 = vpop.permute.xlu0 %2887
      %2889 = vrot.lane.b32.xlu0 %v2393, 47
      %v2890 = vpop.permute.xlu0 %2889
      %2891 = vrot.lane.b32.xlu0 %v2394, 47
      %v2892 = vpop.permute.xlu0 %2891
      %vm2893 = vcmask 384000
      %v2894 = vsel %vm2893, %v2886, %v2888
      %v2895 = vsel %vm2893, %v2888, %v2890
      %v2896 = vsel %vm2893, %v2890, %v2892
      %v2901 = vsel %vm931, %v2884, 0
      %2903 = vmatprep.subr.mxu0 0.0
      %2904 = vmatpush1.msra.mxu0 0.0
      %2905 = vmatprep.subr.mxu0 0.0
      %2906 = vmatpush1.msra.mxu0 0.0
      %2907 = vmatprep.subr.mxu0 0.0
      %2908 = vmatpush1.msra.mxu0 0.0
      %2909 = vmatprep.subr.mxu0 0.0
      %2910 = vmatpush1.msra.mxu0 0.0
      %2911 = vmatprep.subr.mxu0 0.0
      %2912 = vmatpush1.msra.mxu0 0.0
      %2913 = vmatprep.subr.mxu0 0.0
      %2914 = vmatpush1.msra.mxu0 0.0
      %2915 = vmatprep.subr.mxu0 0.0
      %2916 = vmatpush1.msra.mxu0 0.0
      %2917 = vmatprep.subr.mxu0 0.0
      %2918 = vmatpush1.msra.mxu0 0.0
      %2919 = vmatprep.subr.mxu0 0.0
      %2920 = vmatpush1.msra.mxu0 0.0
      %2921 = vmatprep.subr.mxu0 0.0
      %2922 = vmatpush1.msra.mxu0 0.0
      %2923 = vmatprep.subr.mxu0 0.0
      %2924 = vmatpush1.msra.mxu0 0.0
      %2925 = vmatprep.subr.mxu0 0.0
      %2926 = vmatpush1.msra.mxu0 0.0
      %2927 = vmatprep.subr.mxu0 0.0
      %2928 = vmatpush1.msra.mxu0 0.0
      %2929 = vmatprep.subr.mxu0 0.0
      %2930 = vmatpush1.msra.mxu0 0.0
      %2931 = vmatprep.subr.mxu0 0.0
      %2932 = vmatpush1.msra.mxu0 0.0
      %2933 = vmatprep.subr.mxu0 %v2895
      %2934 = vmatpush1.msra.mxu0 %v2894
      %2935 = vmatprep.subr.mxu0 0.0
      %2936 = vmatpush2.msra.mxu0 0.0
      %2937 = vmatprep.subr.mxu0 0.0
      %2938 = vmatpush2.msra.mxu0 0.0
      %2939 = vmatprep.subr.mxu0 0.0
      %2940 = vmatpush2.msra.mxu0 0.0
      %2941 = vmatprep.subr.mxu0 0.0
      %2942 = vmatpush2.msra.mxu0 0.0
      %2943 = vmatprep.subr.mxu0 0.0
      %2944 = vmatpush2.msra.mxu0 0.0
      %2945 = vmatprep.subr.mxu0 0.0
      %2946 = vmatpush2.msra.mxu0 0.0
      %2947 = vmatprep.subr.mxu0 0.0
      %2948 = vmatpush2.msra.mxu0 0.0
      %2949 = vmatprep.subr.mxu0 0.0
      %2950 = vmatpush2.msra.mxu0 0.0
      %2951 = vmatprep.subr.mxu0 0.0
      %2952 = vmatpush2.msra.mxu0 0.0
      %2953 = vmatprep.subr.mxu0 0.0
      %2954 = vmatpush2.msra.mxu0 0.0
      %2955 = vmatprep.subr.mxu0 0.0
      %2956 = vmatpush2.msra.mxu0 0.0
      %2957 = vmatprep.subr.mxu0 0.0
      %2958 = vmatpush2.msra.mxu0 0.0
      %2959 = vmatprep.subr.mxu0 0.0
      %2960 = vmatpush2.msra.mxu0 0.0
      %2961 = vmatprep.subr.mxu0 0.0
      %2962 = vmatpush2.msra.mxu0 0.0
      %2963 = vmatprep.subr.mxu0 0.0
      %2964 = vmatpush2.msra.mxu0 0.0
      %2965 = vmatprep.subr.mxu0 0.0
      %2966 = vmatpush2.msra.mxu0 0.0
      %2967 = vmatprep.mubr.f32.mxu0 0.0
      %2968 = vmatmul.mubr.f32.gmra.mxu0 %v2901
      %v2969 = vpop.f32.mrf.mxu0
      %v2970 = vadd.f32 0.0, %v2969
      %v2971 = vpop.f32.mrf.mxu0
      %v2972 = vadd.f32 0.0, %v2971
      %2973 = vdwg.mxu0
      %2974 = vmatprep.subr.mxu0 0.0
      %2975 = vmatpush1.msra.mxu0 0.0
      %2976 = vmatprep.subr.mxu0 0.0
      %2977 = vmatpush1.msra.mxu0 0.0
      %2978 = vmatprep.subr.mxu0 0.0
      %2979 = vmatpush1.msra.mxu0 0.0
      %2980 = vmatprep.subr.mxu0 0.0
      %2981 = vmatpush1.msra.mxu0 0.0
      %2982 = vmatprep.subr.mxu0 0.0
      %2983 = vmatpush1.msra.mxu0 0.0
      %2984 = vmatprep.subr.mxu0 0.0
      %2985 = vmatpush1.msra.mxu0 0.0
      %2986 = vmatprep.subr.mxu0 0.0
      %2987 = vmatpush1.msra.mxu0 0.0
      %2988 = vmatprep.subr.mxu0 0.0
      %2989 = vmatpush1.msra.mxu0 0.0
      %2990 = vmatprep.subr.mxu0 0.0
      %2991 = vmatpush1.msra.mxu0 0.0
      %2992 = vmatprep.subr.mxu0 0.0
      %2993 = vmatpush1.msra.mxu0 0.0
      %2994 = vmatprep.subr.mxu0 0.0
      %2995 = vmatpush1.msra.mxu0 0.0
      %2996 = vmatprep.subr.mxu0 0.0
      %2997 = vmatpush1.msra.mxu0 0.0
      %2998 = vmatprep.subr.mxu0 0.0
      %2999 = vmatpush1.msra.mxu0 0.0
      %3000 = vmatprep.subr.mxu0 0.0
      %3001 = vmatpush1.msra.mxu0 0.0
      %3002 = vmatprep.subr.mxu0 0.0
      %3003 = vmatpush1.msra.mxu0 0.0
      %3004 = vmatprep.subr.mxu0 0.0
      %3005 = vmatpush1.msra.mxu0 %v2896
      %3006 = vmatprep.subr.mxu0 0.0
      %3007 = vmatpush2.msra.mxu0 0.0
      %3008 = vmatprep.subr.mxu0 0.0
      %3009 = vmatpush2.msra.mxu0 0.0
      %3010 = vmatprep.subr.mxu0 0.0
      %3011 = vmatpush2.msra.mxu0 0.0
      %3012 = vmatprep.subr.mxu0 0.0
      %3013 = vmatpush2.msra.mxu0 0.0
      %3014 = vmatprep.subr.mxu0 0.0
      %3015 = vmatpush2.msra.mxu0 0.0
      %3016 = vmatprep.subr.mxu0 0.0
      %3017 = vmatpush2.msra.mxu0 0.0
      %3018 = vmatprep.subr.mxu0 0.0
      %3019 = vmatpush2.msra.mxu0 0.0
      %3020 = vmatprep.subr.mxu0 0.0
      %3021 = vmatpush2.msra.mxu0 0.0
      %3022 = vmatprep.subr.mxu0 0.0
      %3023 = vmatpush2.msra.mxu0 0.0
      %3024 = vmatprep.subr.mxu0 0.0
      %3025 = vmatpush2.msra.mxu0 0.0
      %3026 = vmatprep.subr.mxu0 0.0
      %3027 = vmatpush2.msra.mxu0 0.0
      %3028 = vmatprep.subr.mxu0 0.0
      %3029 = vmatpush2.msra.mxu0 0.0
      %3030 = vmatprep.subr.mxu0 0.0
      %3031 = vmatpush2.msra.mxu0 0.0
      %3032 = vmatprep.subr.mxu0 0.0
      %3033 = vmatpush2.msra.mxu0 0.0
      %3034 = vmatprep.subr.mxu0 0.0
      %3035 = vmatpush2.msra.mxu0 0.0
      %3036 = vmatprep.subr.mxu0 0.0
      %3037 = vmatpush2.msra.mxu0 0.0
      %3038 = vmatprep.mubr.f32.mxu0 0.0
      %3039 = vmatmul.mubr.f32.gmra.mxu0 %v2901
      %v3040 = vpop.f32.mrf.mxu0
      %v3041 = vadd.f32 0.0, %v3040
      %v3042 = vpop.f32.mrf.mxu0
      %3043 = vdwg.mxu0
      %v3044 = vadd.f32 %v2880, %v2970
      %v3045 = vadd.f32 %v2881, %v2972
      %v3046 = vadd.f32 %v2882, %v3041
      %s3047 = scalar_lea.vmem %s6, 32
      %v3048 = vld [vmem:[%s3047] sm:$0xff]
      %3049 = vrot.lane.b32.xlu0 %v2391, 46
      %v3050 = vpop.permute.xlu0 %3049
      %3051 = vrot.lane.b32.xlu0 %v2392, 46
      %v3052 = vpop.permute.xlu0 %3051
      %3053 = vrot.lane.b32.xlu0 %v2393, 46
      %v3054 = vpop.permute.xlu0 %3053
      %3055 = vrot.lane.b32.xlu0 %v2394, 46
      %v3056 = vpop.permute.xlu0 %3055
      %vm3057 = vcmask 375808
      %v3058 = vsel %vm3057, %v3050, %v3052
      %v3059 = vsel %vm3057, %v3052, %v3054
      %v3060 = vsel %vm3057, %v3054, %v3056
      %v3065 = vsel %vm931, %v3048, 0
      %3067 = vmatprep.subr.mxu0 0.0
      %3068 = vmatpush1.msra.mxu0 0.0
      %3069 = vmatprep.subr.mxu0 0.0
      %3070 = vmatpush1.msra.mxu0 0.0
      %3071 = vmatprep.subr.mxu0 0.0
      %3072 = vmatpush1.msra.mxu0 0.0
      %3073 = vmatprep.subr.mxu0 0.0
      %3074 = vmatpush1.msra.mxu0 0.0
      %3075 = vmatprep.subr.mxu0 0.0
      %3076 = vmatpush1.msra.mxu0 0.0
      %3077 = vmatprep.subr.mxu0 0.0
      %3078 = vmatpush1.msra.mxu0 0.0
      %3079 = vmatprep.subr.mxu0 0.0
      %3080 = vmatpush1.msra.mxu0 0.0
      %3081 = vmatprep.subr.mxu0 0.0
      %3082 = vmatpush1.msra.mxu0 0.0
      %3083 = vmatprep.subr.mxu0 0.0
      %3084 = vmatpush1.msra.mxu0 0.0
      %3085 = vmatprep.subr.mxu0 0.0
      %3086 = vmatpush1.msra.mxu0 0.0
      %3087 = vmatprep.subr.mxu0 0.0
      %3088 = vmatpush1.msra.mxu0 0.0
      %3089 = vmatprep.subr.mxu0 0.0
      %3090 = vmatpush1.msra.mxu0 0.0
      %3091 = vmatprep.subr.mxu0 0.0
      %3092 = vmatpush1.msra.mxu0 0.0
      %3093 = vmatprep.subr.mxu0 0.0
      %3094 = vmatpush1.msra.mxu0 0.0
      %3095 = vmatprep.subr.mxu0 0.0
      %3096 = vmatpush1.msra.mxu0 0.0
      %3097 = vmatprep.subr.mxu0 %v3059
      %3098 = vmatpush1.msra.mxu0 %v3058
      %3099 = vmatprep.subr.mxu0 0.0
      %3100 = vmatpush2.msra.mxu0 0.0
      %3101 = vmatprep.subr.mxu0 0.0
      %3102 = vmatpush2.msra.mxu0 0.0
      %3103 = vmatprep.subr.mxu0 0.0
      %3104 = vmatpush2.msra.mxu0 0.0
      %3105 = vmatprep.subr.mxu0 0.0
      %3106 = vmatpush2.msra.mxu0 0.0
      %3107 = vmatprep.subr.mxu0 0.0
      %3108 = vmatpush2.msra.mxu0 0.0
      %3109 = vmatprep.subr.mxu0 0.0
      %3110 = vmatpush2.msra.mxu0 0.0
      %3111 = vmatprep.subr.mxu0 0.0
      %3112 = vmatpush2.msra.mxu0 0.0
      %3113 = vmatprep.subr.mxu0 0.0
      %3114 = vmatpush2.msra.mxu0 0.0
      %3115 = vmatprep.subr.mxu0 0.0
      %3116 = vmatpush2.msra.mxu0 0.0
      %3117 = vmatprep.subr.mxu0 0.0
      %3118 = vmatpush2.msra.mxu0 0.0
      %3119 = vmatprep.subr.mxu0 0.0
      %3120 = vmatpush2.msra.mxu0 0.0
      %3121 = vmatprep.subr.mxu0 0.0
      %3122 = vmatpush2.msra.mxu0 0.0
      %3123 = vmatprep.subr.mxu0 0.0
      %3124 = vmatpush2.msra.mxu0 0.0
      %3125 = vmatprep.subr.mxu0 0.0
      %3126 = vmatpush2.msra.mxu0 0.0
      %3127 = vmatprep.subr.mxu0 0.0
      %3128 = vmatpush2.msra.mxu0 0.0
      %3129 = vmatprep.subr.mxu0 0.0
      %3130 = vmatpush2.msra.mxu0 0.0
      %3131 = vmatprep.mubr.f32.mxu0 0.0
      %3132 = vmatmul.mubr.f32.gmra.mxu0 %v3065
      %v3133 = vpop.f32.mrf.mxu0
      %v3134 = vadd.f32 0.0, %v3133
      %v3135 = vpop.f32.mrf.mxu0
      %v3136 = vadd.f32 0.0, %v3135
      %3137 = vdwg.mxu0
      %3138 = vmatprep.subr.mxu0 0.0
      %3139 = vmatpush1.msra.mxu0 0.0
      %3140 = vmatprep.subr.mxu0 0.0
      %3141 = vmatpush1.msra.mxu0 0.0
      %3142 = vmatprep.subr.mxu0 0.0
      %3143 = vmatpush1.msra.mxu0 0.0
      %3144 = vmatprep.subr.mxu0 0.0
      %3145 = vmatpush1.msra.mxu0 0.0
      %3146 = vmatprep.subr.mxu0 0.0
      %3147 = vmatpush1.msra.mxu0 0.0
      %3148 = vmatprep.subr.mxu0 0.0
      %3149 = vmatpush1.msra.mxu0 0.0
      %3150 = vmatprep.subr.mxu0 0.0
      %3151 = vmatpush1.msra.mxu0 0.0
      %3152 = vmatprep.subr.mxu0 0.0
      %3153 = vmatpush1.msra.mxu0 0.0
      %3154 = vmatprep.subr.mxu0 0.0
      %3155 = vmatpush1.msra.mxu0 0.0
      %3156 = vmatprep.subr.mxu0 0.0
      %3157 = vmatpush1.msra.mxu0 0.0
      %3158 = vmatprep.subr.mxu0 0.0
      %3159 = vmatpush1.msra.mxu0 0.0
      %3160 = vmatprep.subr.mxu0 0.0
      %3161 = vmatpush1.msra.mxu0 0.0
      %3162 = vmatprep.subr.mxu0 0.0
      %3163 = vmatpush1.msra.mxu0 0.0
      %3164 = vmatprep.subr.mxu0 0.0
      %3165 = vmatpush1.msra.mxu0 0.0
      %3166 = vmatprep.subr.mxu0 0.0
      %3167 = vmatpush1.msra.mxu0 0.0
      %3168 = vmatprep.subr.mxu0 0.0
      %3169 = vmatpush1.msra.mxu0 %v3060
      %3170 = vmatprep.subr.mxu0 0.0
      %3171 = vmatpush2.msra.mxu0 0.0
      %3172 = vmatprep.subr.mxu0 0.0
      %3173 = vmatpush2.msra.mxu0 0.0
      %3174 = vmatprep.subr.mxu0 0.0
      %3175 = vmatpush2.msra.mxu0 0.0
      %3176 = vmatprep.subr.mxu0 0.0
      %3177 = vmatpush2.msra.mxu0 0.0
      %3178 = vmatprep.subr.mxu0 0.0
      %3179 = vmatpush2.msra.mxu0 0.0
      %3180 = vmatprep.subr.mxu0 0.0
      %3181 = vmatpush2.msra.mxu0 0.0
      %3182 = vmatprep.subr.mxu0 0.0
      %3183 = vmatpush2.msra.mxu0 0.0
      %3184 = vmatprep.subr.mxu0 0.0
      %3185 = vmatpush2.msra.mxu0 0.0
      %3186 = vmatprep.subr.mxu0 0.0
      %3187 = vmatpush2.msra.mxu0 0.0
      %3188 = vmatprep.subr.mxu0 0.0
      %3189 = vmatpush2.msra.mxu0 0.0
      %3190 = vmatprep.subr.mxu0 0.0
      %3191 = vmatpush2.msra.mxu0 0.0
      %3192 = vmatprep.subr.mxu0 0.0
      %3193 = vmatpush2.msra.mxu0 0.0
      %3194 = vmatprep.subr.mxu0 0.0
      %3195 = vmatpush2.msra.mxu0 0.0
      %3196 = vmatprep.subr.mxu0 0.0
      %3197 = vmatpush2.msra.mxu0 0.0
      %3198 = vmatprep.subr.mxu0 0.0
      %3199 = vmatpush2.msra.mxu0 0.0
      %3200 = vmatprep.subr.mxu0 0.0
      %3201 = vmatpush2.msra.mxu0 0.0
      %3202 = vmatprep.mubr.f32.mxu0 0.0
      %3203 = vmatmul.mubr.f32.gmra.mxu0 %v3065
      %v3204 = vpop.f32.mrf.mxu0
      %v3205 = vadd.f32 0.0, %v3204
      %v3206 = vpop.f32.mrf.mxu0
      %3207 = vdwg.mxu0
      %v3208 = vadd.f32 %v3044, %v3134
      %v3209 = vadd.f32 %v3045, %v3136
      %v3210 = vadd.f32 %v3046, %v3205
      %s3211 = scalar_lea.vmem %s6, 40
      %v3212 = vld [vmem:[%s3211] sm:$0xff]
      %3213 = vrot.lane.b32.xlu0 %v2391, 26
      %v3214 = vpop.permute.xlu0 %3213
      %3215 = vrot.lane.b32.xlu0 %v2392, 26
      %v3216 = vpop.permute.xlu0 %3215
      %3217 = vrot.lane.b32.xlu0 %v2393, 26
      %v3218 = vpop.permute.xlu0 %3217
      %3219 = vrot.lane.b32.xlu0 %v2394, 26
      %v3220 = vpop.permute.xlu0 %3219
      %vm3221 = vcmask 211968
      %v3222 = vsel %vm3221, %v3214, %v3216
      %v3223 = vsel %vm3221, %v3216, %v3218
      %v3224 = vsel %vm3221, %v3218, %v3220
      %v3229 = vsel %vm931, %v3212, 0
      %3231 = vmatprep.subr.mxu0 0.0
      %3232 = vmatpush1.msra.mxu0 0.0
      %3233 = vmatprep.subr.mxu0 0.0
      %3234 = vmatpush1.msra.mxu0 0.0
      %3235 = vmatprep.subr.mxu0 0.0
      %3236 = vmatpush1.msra.mxu0 0.0
      %3237 = vmatprep.subr.mxu0 0.0
      %3238 = vmatpush1.msra.mxu0 0.0
      %3239 = vmatprep.subr.mxu0 0.0
      %3240 = vmatpush1.msra.mxu0 0.0
      %3241 = vmatprep.subr.mxu0 0.0
      %3242 = vmatpush1.msra.mxu0 0.0
      %3243 = vmatprep.subr.mxu0 0.0
      %3244 = vmatpush1.msra.mxu0 0.0
      %3245 = vmatprep.subr.mxu0 0.0
      %3246 = vmatpush1.msra.mxu0 0.0
      %3247 = vmatprep.subr.mxu0 0.0
      %3248 = vmatpush1.msra.mxu0 0.0
      %3249 = vmatprep.subr.mxu0 0.0
      %3250 = vmatpush1.msra.mxu0 0.0
      %3251 = vmatprep.subr.mxu0 0.0
      %3252 = vmatpush1.msra.mxu0 0.0
      %3253 = vmatprep.subr.mxu0 0.0
      %3254 = vmatpush1.msra.mxu0 0.0
      %3255 = vmatprep.subr.mxu0 0.0
      %3256 = vmatpush1.msra.mxu0 0.0
      %3257 = vmatprep.subr.mxu0 0.0
      %3258 = vmatpush1.msra.mxu0 0.0
      %3259 = vmatprep.subr.mxu0 0.0
      %3260 = vmatpush1.msra.mxu0 0.0
      %3261 = vmatprep.subr.mxu0 %v3223
      %3262 = vmatpush1.msra.mxu0 %v3222
      %3263 = vmatprep.subr.mxu0 0.0
      %3264 = vmatpush2.msra.mxu0 0.0
      %3265 = vmatprep.subr.mxu0 0.0
      %3266 = vmatpush2.msra.mxu0 0.0
      %3267 = vmatprep.subr.mxu0 0.0
      %3268 = vmatpush2.msra.mxu0 0.0
      %3269 = vmatprep.subr.mxu0 0.0
      %3270 = vmatpush2.msra.mxu0 0.0
      %3271 = vmatprep.subr.mxu0 0.0
      %3272 = vmatpush2.msra.mxu0 0.0
      %3273 = vmatprep.subr.mxu0 0.0
      %3274 = vmatpush2.msra.mxu0 0.0
      %3275 = vmatprep.subr.mxu0 0.0
      %3276 = vmatpush2.msra.mxu0 0.0
      %3277 = vmatprep.subr.mxu0 0.0
      %3278 = vmatpush2.msra.mxu0 0.0
      %3279 = vmatprep.subr.mxu0 0.0
      %3280 = vmatpush2.msra.mxu0 0.0
      %3281 = vmatprep.subr.mxu0 0.0
      %3282 = vmatpush2.msra.mxu0 0.0
      %3283 = vmatprep.subr.mxu0 0.0
      %3284 = vmatpush2.msra.mxu0 0.0
      %3285 = vmatprep.subr.mxu0 0.0
      %3286 = vmatpush2.msra.mxu0 0.0
      %3287 = vmatprep.subr.mxu0 0.0
      %3288 = vmatpush2.msra.mxu0 0.0
      %3289 = vmatprep.subr.mxu0 0.0
      %3290 = vmatpush2.msra.mxu0 0.0
      %3291 = vmatprep.subr.mxu0 0.0
      %3292 = vmatpush2.msra.mxu0 0.0
      %3293 = vmatprep.subr.mxu0 0.0
      %3294 = vmatpush2.msra.mxu0 0.0
      %3295 = vmatprep.mubr.f32.mxu0 0.0
      %3296 = vmatmul.mubr.f32.gmra.mxu0 %v3229
      %v3297 = vpop.f32.mrf.mxu0
      %v3298 = vadd.f32 0.0, %v3297
      %v3299 = vpop.f32.mrf.mxu0
      %v3300 = vadd.f32 0.0, %v3299
      %3301 = vdwg.mxu0
      %3302 = vmatprep.subr.mxu0 0.0
      %3303 = vmatpush1.msra.mxu0 0.0
      %3304 = vmatprep.subr.mxu0 0.0
      %3305 = vmatpush1.msra.mxu0 0.0
      %3306 = vmatprep.subr.mxu0 0.0
      %3307 = vmatpush1.msra.mxu0 0.0
      %3308 = vmatprep.subr.mxu0 0.0
      %3309 = vmatpush1.msra.mxu0 0.0
      %3310 = vmatprep.subr.mxu0 0.0
      %3311 = vmatpush1.msra.mxu0 0.0
      %3312 = vmatprep.subr.mxu0 0.0
      %3313 = vmatpush1.msra.mxu0 0.0
      %3314 = vmatprep.subr.mxu0 0.0
      %3315 = vmatpush1.msra.mxu0 0.0
      %3316 = vmatprep.subr.mxu0 0.0
      %3317 = vmatpush1.msra.mxu0 0.0
      %3318 = vmatprep.subr.mxu0 0.0
      %3319 = vmatpush1.msra.mxu0 0.0
      %3320 = vmatprep.subr.mxu0 0.0
      %3321 = vmatpush1.msra.mxu0 0.0
      %3322 = vmatprep.subr.mxu0 0.0
      %3323 = vmatpush1.msra.mxu0 0.0
      %3324 = vmatprep.subr.mxu0 0.0
      %3325 = vmatpush1.msra.mxu0 0.0
      %3326 = vmatprep.subr.mxu0 0.0
      %3327 = vmatpush1.msra.mxu0 0.0
      %3328 = vmatprep.subr.mxu0 0.0
      %3329 = vmatpush1.msra.mxu0 0.0
      %3330 = vmatprep.subr.mxu0 0.0
      %3331 = vmatpush1.msra.mxu0 0.0
      %3332 = vmatprep.subr.mxu0 0.0
      %3333 = vmatpush1.msra.mxu0 %v3224
      %3334 = vmatprep.subr.mxu0 0.0
      %3335 = vmatpush2.msra.mxu0 0.0
      %3336 = vmatprep.subr.mxu0 0.0
      %3337 = vmatpush2.msra.mxu0 0.0
      %3338 = vmatprep.subr.mxu0 0.0
      %3339 = vmatpush2.msra.mxu0 0.0
      %3340 = vmatprep.subr.mxu0 0.0
      %3341 = vmatpush2.msra.mxu0 0.0
      %3342 = vmatprep.subr.mxu0 0.0
      %3343 = vmatpush2.msra.mxu0 0.0
      %3344 = vmatprep.subr.mxu0 0.0
      %3345 = vmatpush2.msra.mxu0 0.0
      %3346 = vmatprep.subr.mxu0 0.0
      %3347 = vmatpush2.msra.mxu0 0.0
      %3348 = vmatprep.subr.mxu0 0.0
      %3349 = vmatpush2.msra.mxu0 0.0
      %3350 = vmatprep.subr.mxu0 0.0
      %3351 = vmatpush2.msra.mxu0 0.0
      %3352 = vmatprep.subr.mxu0 0.0
      %3353 = vmatpush2.msra.mxu0 0.0
      %3354 = vmatprep.subr.mxu0 0.0
      %3355 = vmatpush2.msra.mxu0 0.0
      %3356 = vmatprep.subr.mxu0 0.0
      %3357 = vmatpush2.msra.mxu0 0.0
      %3358 = vmatprep.subr.mxu0 0.0
      %3359 = vmatpush2.msra.mxu0 0.0
      %3360 = vmatprep.subr.mxu0 0.0
      %3361 = vmatpush2.msra.mxu0 0.0
      %3362 = vmatprep.subr.mxu0 0.0
      %3363 = vmatpush2.msra.mxu0 0.0
      %3364 = vmatprep.subr.mxu0 0.0
      %3365 = vmatpush2.msra.mxu0 0.0
      %3366 = vmatprep.mubr.f32.mxu0 0.0
      %3367 = vmatmul.mubr.f32.gmra.mxu0 %v3229
      %v3368 = vpop.f32.mrf.mxu0
      %v3369 = vadd.f32 0.0, %v3368
      %v3370 = vpop.f32.mrf.mxu0
      %3371 = vdwg.mxu0
      %v3372 = vadd.f32 %v3208, %v3298
      %v3373 = vadd.f32 %v3209, %v3300
      %v3374 = vadd.f32 %v3210, %v3369
      %s3375 = scalar_lea.vmem %s6, 48
      %v3376 = vld [vmem:[%s3375] sm:$0xff]
      %3377 = vrot.lane.b32.xlu0 %v2391, 25
      %v3378 = vpop.permute.xlu0 %3377
      %3379 = vrot.lane.b32.xlu0 %v2392, 25
      %v3380 = vpop.permute.xlu0 %3379
      %3381 = vrot.lane.b32.xlu0 %v2393, 25
      %v3382 = vpop.permute.xlu0 %3381
      %3383 = vrot.lane.b32.xlu0 %v2394, 25
      %v3384 = vpop.permute.xlu0 %3383
      %v3385 = vsel %vm1084, %v3378, %v3380
      %v3386 = vsel %vm1084, %v3380, %v3382
      %v3387 = vsel %vm1084, %v3382, %v3384
      %v3392 = vsel %vm931, %v3376, 0
      %3394 = vmatprep.subr.mxu0 0.0
      %3395 = vmatpush1.msra.mxu0 0.0
      %3396 = vmatprep.subr.mxu0 0.0
      %3397 = vmatpush1.msra.mxu0 0.0
      %3398 = vmatprep.subr.mxu0 0.0
      %3399 = vmatpush1.msra.mxu0 0.0
      %3400 = vmatprep.subr.mxu0 0.0
      %3401 = vmatpush1.msra.mxu0 0.0
      %3402 = vmatprep.subr.mxu0 0.0
      %3403 = vmatpush1.msra.mxu0 0.0
      %3404 = vmatprep.subr.mxu0 0.0
      %3405 = vmatpush1.msra.mxu0 0.0
      %3406 = vmatprep.subr.mxu0 0.0
      %3407 = vmatpush1.msra.mxu0 0.0
      %3408 = vmatprep.subr.mxu0 0.0
      %3409 = vmatpush1.msra.mxu0 0.0
      %3410 = vmatprep.subr.mxu0 0.0
      %3411 = vmatpush1.msra.mxu0 0.0
      %3412 = vmatprep.subr.mxu0 0.0
      %3413 = vmatpush1.msra.mxu0 0.0
      %3414 = vmatprep.subr.mxu0 0.0
      %3415 = vmatpush1.msra.mxu0 0.0
      %3416 = vmatprep.subr.mxu0 0.0
      %3417 = vmatpush1.msra.mxu0 0.0
      %3418 = vmatprep.subr.mxu0 0.0
      %3419 = vmatpush1.msra.mxu0 0.0
      %3420 = vmatprep.subr.mxu0 0.0
      %3421 = vmatpush1.msra.mxu0 0.0
      %3422 = vmatprep.subr.mxu0 0.0
      %3423 = vmatpush1.msra.mxu0 0.0
      %3424 = vmatprep.subr.mxu0 %v3386
      %3425 = vmatpush1.msra.mxu0 %v3385
      %3426 = vmatprep.subr.mxu0 0.0
      %3427 = vmatpush2.msra.mxu0 0.0
      %3428 = vmatprep.subr.mxu0 0.0
      %3429 = vmatpush2.msra.mxu0 0.0
      %3430 = vmatprep.subr.mxu0 0.0
      %3431 = vmatpush2.msra.mxu0 0.0
      %3432 = vmatprep.subr.mxu0 0.0
      %3433 = vmatpush2.msra.mxu0 0.0
      %3434 = vmatprep.subr.mxu0 0.0
      %3435 = vmatpush2.msra.mxu0 0.0
      %3436 = vmatprep.subr.mxu0 0.0
      %3437 = vmatpush2.msra.mxu0 0.0
      %3438 = vmatprep.subr.mxu0 0.0
      %3439 = vmatpush2.msra.mxu0 0.0
      %3440 = vmatprep.subr.mxu0 0.0
      %3441 = vmatpush2.msra.mxu0 0.0
      %3442 = vmatprep.subr.mxu0 0.0
      %3443 = vmatpush2.msra.mxu0 0.0
      %3444 = vmatprep.subr.mxu0 0.0
      %3445 = vmatpush2.msra.mxu0 0.0
      %3446 = vmatprep.subr.mxu0 0.0
      %3447 = vmatpush2.msra.mxu0 0.0
      %3448 = vmatprep.subr.mxu0 0.0
      %3449 = vmatpush2.msra.mxu0 0.0
      %3450 = vmatprep.subr.mxu0 0.0
      %3451 = vmatpush2.msra.mxu0 0.0
      %3452 = vmatprep.subr.mxu0 0.0
      %3453 = vmatpush2.msra.mxu0 0.0
      %3454 = vmatprep.subr.mxu0 0.0
      %3455 = vmatpush2.msra.mxu0 0.0
      %3456 = vmatprep.subr.mxu0 0.0
      %3457 = vmatpush2.msra.mxu0 0.0
      %3458 = vmatprep.mubr.f32.mxu0 0.0
      %3459 = vmatmul.mubr.f32.gmra.mxu0 %v3392
      %v3460 = vpop.f32.mrf.mxu0
      %v3461 = vadd.f32 0.0, %v3460
      %v3462 = vpop.f32.mrf.mxu0
      %v3463 = vadd.f32 0.0, %v3462
      %3464 = vdwg.mxu0
      %3465 = vmatprep.subr.mxu0 0.0
      %3466 = vmatpush1.msra.mxu0 0.0
      %3467 = vmatprep.subr.mxu0 0.0
      %3468 = vmatpush1.msra.mxu0 0.0
      %3469 = vmatprep.subr.mxu0 0.0
      %3470 = vmatpush1.msra.mxu0 0.0
      %3471 = vmatprep.subr.mxu0 0.0
      %3472 = vmatpush1.msra.mxu0 0.0
      %3473 = vmatprep.subr.mxu0 0.0
      %3474 = vmatpush1.msra.mxu0 0.0
      %3475 = vmatprep.subr.mxu0 0.0
      %3476 = vmatpush1.msra.mxu0 0.0
      %3477 = vmatprep.subr.mxu0 0.0
      %3478 = vmatpush1.msra.mxu0 0.0
      %3479 = vmatprep.subr.mxu0 0.0
      %3480 = vmatpush1.msra.mxu0 0.0
      %3481 = vmatprep.subr.mxu0 0.0
      %3482 = vmatpush1.msra.mxu0 0.0
      %3483 = vmatprep.subr.mxu0 0.0
      %3484 = vmatpush1.msra.mxu0 0.0
      %3485 = vmatprep.subr.mxu0 0.0
      %3486 = vmatpush1.msra.mxu0 0.0
      %3487 = vmatprep.subr.mxu0 0.0
      %3488 = vmatpush1.msra.mxu0 0.0
      %3489 = vmatprep.subr.mxu0 0.0
      %3490 = vmatpush1.msra.mxu0 0.0
      %3491 = vmatprep.subr.mxu0 0.0
      %3492 = vmatpush1.msra.mxu0 0.0
      %3493 = vmatprep.subr.mxu0 0.0
      %3494 = vmatpush1.msra.mxu0 0.0
      %3495 = vmatprep.subr.mxu0 0.0
      %3496 = vmatpush1.msra.mxu0 %v3387
      %3497 = vmatprep.subr.mxu0 0.0
      %3498 = vmatpush2.msra.mxu0 0.0
      %3499 = vmatprep.subr.mxu0 0.0
      %3500 = vmatpush2.msra.mxu0 0.0
      %3501 = vmatprep.subr.mxu0 0.0
      %3502 = vmatpush2.msra.mxu0 0.0
      %3503 = vmatprep.subr.mxu0 0.0
      %3504 = vmatpush2.msra.mxu0 0.0
      %3505 = vmatprep.subr.mxu0 0.0
      %3506 = vmatpush2.msra.mxu0 0.0
      %3507 = vmatprep.subr.mxu0 0.0
      %3508 = vmatpush2.msra.mxu0 0.0
      %3509 = vmatprep.subr.mxu0 0.0
      %3510 = vmatpush2.msra.mxu0 0.0
      %3511 = vmatprep.subr.mxu0 0.0
      %3512 = vmatpush2.msra.mxu0 0.0
      %3513 = vmatprep.subr.mxu0 0.0
      %3514 = vmatpush2.msra.mxu0 0.0
      %3515 = vmatprep.subr.mxu0 0.0
      %3516 = vmatpush2.msra.mxu0 0.0
      %3517 = vmatprep.subr.mxu0 0.0
      %3518 = vmatpush2.msra.mxu0 0.0
      %3519 = vmatprep.subr.mxu0 0.0
      %3520 = vmatpush2.msra.mxu0 0.0
      %3521 = vmatprep.subr.mxu0 0.0
      %3522 = vmatpush2.msra.mxu0 0.0
      %3523 = vmatprep.subr.mxu0 0.0
      %3524 = vmatpush2.msra.mxu0 0.0
      %3525 = vmatprep.subr.mxu0 0.0
      %3526 = vmatpush2.msra.mxu0 0.0
      %3527 = vmatprep.subr.mxu0 0.0
      %3528 = vmatpush2.msra.mxu0 0.0
      %3529 = vmatprep.mubr.f32.mxu0 0.0
      %3530 = vmatmul.mubr.f32.gmra.mxu0 %v3392
      %v3531 = vpop.f32.mrf.mxu0
      %v3532 = vadd.f32 0.0, %v3531
      %v3533 = vpop.f32.mrf.mxu0
      %3534 = vdwg.mxu0
      %v3535 = vadd.f32 %v3372, %v3461
      %v3536 = vadd.f32 %v3373, %v3463
      %v3537 = vadd.f32 %v3374, %v3532
      %s3538 = scalar_lea.vmem %s6, 56
      %v3539 = vld [vmem:[%s3538] sm:$0xff]
      %3540 = vrot.lane.b32.xlu0 %v2391, 24
      %v3541 = vpop.permute.xlu0 %3540
      %3542 = vrot.lane.b32.xlu0 %v2392, 24
      %v3543 = vpop.permute.xlu0 %3542
      %3544 = vrot.lane.b32.xlu0 %v2393, 24
      %v3545 = vpop.permute.xlu0 %3544
      %3546 = vrot.lane.b32.xlu0 %v2394, 24
      %v3547 = vpop.permute.xlu0 %3546
      %v3548 = vsel %vm924, %v3541, %v3543
      %v3549 = vsel %vm924, %v3543, %v3545
      %v3550 = vsel %vm924, %v3545, %v3547
      %v3555 = vsel %vm931, %v3539, 0
      %3557 = vmatprep.subr.mxu0 0.0
      %3558 = vmatpush1.msra.mxu0 0.0
      %3559 = vmatprep.subr.mxu0 0.0
      %3560 = vmatpush1.msra.mxu0 0.0
      %3561 = vmatprep.subr.mxu0 0.0
      %3562 = vmatpush1.msra.mxu0 0.0
      %3563 = vmatprep.subr.mxu0 0.0
      %3564 = vmatpush1.msra.mxu0 0.0
      %3565 = vmatprep.subr.mxu0 0.0
      %3566 = vmatpush1.msra.mxu0 0.0
      %3567 = vmatprep.subr.mxu0 0.0
      %3568 = vmatpush1.msra.mxu0 0.0
      %3569 = vmatprep.subr.mxu0 0.0
      %3570 = vmatpush1.msra.mxu0 0.0
      %3571 = vmatprep.subr.mxu0 0.0
      %3572 = vmatpush1.msra.mxu0 0.0
      %3573 = vmatprep.subr.mxu0 0.0
      %3574 = vmatpush1.msra.mxu0 0.0
      %3575 = vmatprep.subr.mxu0 0.0
      %3576 = vmatpush1.msra.mxu0 0.0
      %3577 = vmatprep.subr.mxu0 0.0
      %3578 = vmatpush1.msra.mxu0 0.0
      %3579 = vmatprep.subr.mxu0 0.0
      %3580 = vmatpush1.msra.mxu0 0.0
      %3581 = vmatprep.subr.mxu0 0.0
      %3582 = vmatpush1.msra.mxu0 0.0
      %3583 = vmatprep.subr.mxu0 0.0
      %3584 = vmatpush1.msra.mxu0 0.0
      %3585 = vmatprep.subr.mxu0 0.0
      %3586 = vmatpush1.msra.mxu0 0.0
      %3587 = vmatprep.subr.mxu0 %v3549
      %3588 = vmatpush1.msra.mxu0 %v3548
      %3589 = vmatprep.subr.mxu0 0.0
      %3590 = vmatpush2.msra.mxu0 0.0
      %3591 = vmatprep.subr.mxu0 0.0
      %3592 = vmatpush2.msra.mxu0 0.0
      %3593 = vmatprep.subr.mxu0 0.0
      %3594 = vmatpush2.msra.mxu0 0.0
      %3595 = vmatprep.subr.mxu0 0.0
      %3596 = vmatpush2.msra.mxu0 0.0
      %3597 = vmatprep.subr.mxu0 0.0
      %3598 = vmatpush2.msra.mxu0 0.0
      %3599 = vmatprep.subr.mxu0 0.0
      %3600 = vmatpush2.msra.mxu0 0.0
      %3601 = vmatprep.subr.mxu0 0.0
      %3602 = vmatpush2.msra.mxu0 0.0
      %3603 = vmatprep.subr.mxu0 0.0
      %3604 = vmatpush2.msra.mxu0 0.0
      %3605 = vmatprep.subr.mxu0 0.0
      %3606 = vmatpush2.msra.mxu0 0.0
      %3607 = vmatprep.subr.mxu0 0.0
      %3608 = vmatpush2.msra.mxu0 0.0
      %3609 = vmatprep.subr.mxu0 0.0
      %3610 = vmatpush2.msra.mxu0 0.0
      %3611 = vmatprep.subr.mxu0 0.0
      %3612 = vmatpush2.msra.mxu0 0.0
      %3613 = vmatprep.subr.mxu0 0.0
      %3614 = vmatpush2.msra.mxu0 0.0
      %3615 = vmatprep.subr.mxu0 0.0
      %3616 = vmatpush2.msra.mxu0 0.0
      %3617 = vmatprep.subr.mxu0 0.0
      %3618 = vmatpush2.msra.mxu0 0.0
      %3619 = vmatprep.subr.mxu0 0.0
      %3620 = vmatpush2.msra.mxu0 0.0
      %3621 = vmatprep.mubr.f32.mxu0 0.0
      %3622 = vmatmul.mubr.f32.gmra.mxu0 %v3555
      %v3623 = vpop.f32.mrf.mxu0
      %v3624 = vadd.f32 0.0, %v3623
      %v3625 = vpop.f32.mrf.mxu0
      %v3626 = vadd.f32 0.0, %v3625
      %3627 = vdwg.mxu0
      %3628 = vmatprep.subr.mxu0 0.0
      %3629 = vmatpush1.msra.mxu0 0.0
      %3630 = vmatprep.subr.mxu0 0.0
      %3631 = vmatpush1.msra.mxu0 0.0
      %3632 = vmatprep.subr.mxu0 0.0
      %3633 = vmatpush1.msra.mxu0 0.0
      %3634 = vmatprep.subr.mxu0 0.0
      %3635 = vmatpush1.msra.mxu0 0.0
      %3636 = vmatprep.subr.mxu0 0.0
      %3637 = vmatpush1.msra.mxu0 0.0
      %3638 = vmatprep.subr.mxu0 0.0
      %3639 = vmatpush1.msra.mxu0 0.0
      %3640 = vmatprep.subr.mxu0 0.0
      %3641 = vmatpush1.msra.mxu0 0.0
      %3642 = vmatprep.subr.mxu0 0.0
      %3643 = vmatpush1.msra.mxu0 0.0
      %3644 = vmatprep.subr.mxu0 0.0
      %3645 = vmatpush1.msra.mxu0 0.0
      %3646 = vmatprep.subr.mxu0 0.0
      %3647 = vmatpush1.msra.mxu0 0.0
      %3648 = vmatprep.subr.mxu0 0.0
      %3649 = vmatpush1.msra.mxu0 0.0
      %3650 = vmatprep.subr.mxu0 0.0
      %3651 = vmatpush1.msra.mxu0 0.0
      %3652 = vmatprep.subr.mxu0 0.0
      %3653 = vmatpush1.msra.mxu0 0.0
      %3654 = vmatprep.subr.mxu0 0.0
      %3655 = vmatpush1.msra.mxu0 0.0
      %3656 = vmatprep.subr.mxu0 0.0
      %3657 = vmatpush1.msra.mxu0 0.0
      %3658 = vmatprep.subr.mxu0 0.0
      %3659 = vmatpush1.msra.mxu0 %v3550
      %3660 = vmatprep.subr.mxu0 0.0
      %3661 = vmatpush2.msra.mxu0 0.0
      %3662 = vmatprep.subr.mxu0 0.0
      %3663 = vmatpush2.msra.mxu0 0.0
      %3664 = vmatprep.subr.mxu0 0.0
      %3665 = vmatpush2.msra.mxu0 0.0
      %3666 = vmatprep.subr.mxu0 0.0
      %3667 = vmatpush2.msra.mxu0 0.0
      %3668 = vmatprep.subr.mxu0 0.0
      %3669 = vmatpush2.msra.mxu0 0.0
      %3670 = vmatprep.subr.mxu0 0.0
      %3671 = vmatpush2.msra.mxu0 0.0
      %3672 = vmatprep.subr.mxu0 0.0
      %3673 = vmatpush2.msra.mxu0 0.0
      %3674 = vmatprep.subr.mxu0 0.0
      %3675 = vmatpush2.msra.mxu0 0.0
      %3676 = vmatprep.subr.mxu0 0.0
      %3677 = vmatpush2.msra.mxu0 0.0
      %3678 = vmatprep.subr.mxu0 0.0
      %3679 = vmatpush2.msra.mxu0 0.0
      %3680 = vmatprep.subr.mxu0 0.0
      %3681 = vmatpush2.msra.mxu0 0.0
      %3682 = vmatprep.subr.mxu0 0.0
      %3683 = vmatpush2.msra.mxu0 0.0
      %3684 = vmatprep.subr.mxu0 0.0
      %3685 = vmatpush2.msra.mxu0 0.0
      %3686 = vmatprep.subr.mxu0 0.0
      %3687 = vmatpush2.msra.mxu0 0.0
      %3688 = vmatprep.subr.mxu0 0.0
      %3689 = vmatpush2.msra.mxu0 0.0
      %3690 = vmatprep.subr.mxu0 0.0
      %3691 = vmatpush2.msra.mxu0 0.0
      %3692 = vmatprep.mubr.f32.mxu0 0.0
      %3693 = vmatmul.mubr.f32.gmra.mxu0 %v3555
      %v3694 = vpop.f32.mrf.mxu0
      %v3695 = vadd.f32 0.0, %v3694
      %v3696 = vpop.f32.mrf.mxu0
      %3697 = vdwg.mxu0
      %v3698 = vadd.f32 %v3535, %v3624
      %v3699 = vadd.f32 %v3536, %v3626
      %v3700 = vadd.f32 %v3537, %v3695
      %s3701 = scalar_lea.vmem %s6, 64
      %v3702 = vld [vmem:[%s3701] sm:$0xff]
      %3703 = vrot.lane.b32.xlu0 %v2391, 23
      %v3704 = vpop.permute.xlu0 %3703
      %3705 = vrot.lane.b32.xlu0 %v2392, 23
      %v3706 = vpop.permute.xlu0 %3705
      %3707 = vrot.lane.b32.xlu0 %v2393, 23
      %v3708 = vpop.permute.xlu0 %3707
      %3709 = vrot.lane.b32.xlu0 %v2394, 23
      %v3710 = vpop.permute.xlu0 %3709
      %v3711 = vsel %vm1245, %v3704, %v3706
      %v3712 = vsel %vm1245, %v3706, %v3708
      %v3713 = vsel %vm1245, %v3708, %v3710
      %v3718 = vsel %vm931, %v3702, 0
      %3720 = vmatprep.subr.mxu0 0.0
      %3721 = vmatpush1.msra.mxu0 0.0
      %3722 = vmatprep.subr.mxu0 0.0
      %3723 = vmatpush1.msra.mxu0 0.0
      %3724 = vmatprep.subr.mxu0 0.0
      %3725 = vmatpush1.msra.mxu0 0.0
      %3726 = vmatprep.subr.mxu0 0.0
      %3727 = vmatpush1.msra.mxu0 0.0
      %3728 = vmatprep.subr.mxu0 0.0
      %3729 = vmatpush1.msra.mxu0 0.0
      %3730 = vmatprep.subr.mxu0 0.0
      %3731 = vmatpush1.msra.mxu0 0.0
      %3732 = vmatprep.subr.mxu0 0.0
      %3733 = vmatpush1.msra.mxu0 0.0
      %3734 = vmatprep.subr.mxu0 0.0
      %3735 = vmatpush1.msra.mxu0 0.0
      %3736 = vmatprep.subr.mxu0 0.0
      %3737 = vmatpush1.msra.mxu0 0.0
      %3738 = vmatprep.subr.mxu0 0.0
      %3739 = vmatpush1.msra.mxu0 0.0
      %3740 = vmatprep.subr.mxu0 0.0
      %3741 = vmatpush1.msra.mxu0 0.0
      %3742 = vmatprep.subr.mxu0 0.0
      %3743 = vmatpush1.msra.mxu0 0.0
      %3744 = vmatprep.subr.mxu0 0.0
      %3745 = vmatpush1.msra.mxu0 0.0
      %3746 = vmatprep.subr.mxu0 0.0
      %3747 = vmatpush1.msra.mxu0 0.0
      %3748 = vmatprep.subr.mxu0 0.0
      %3749 = vmatpush1.msra.mxu0 0.0
      %3750 = vmatprep.subr.mxu0 %v3712
      %3751 = vmatpush1.msra.mxu0 %v3711
      %3752 = vmatprep.subr.mxu0 0.0
      %3753 = vmatpush2.msra.mxu0 0.0
      %3754 = vmatprep.subr.mxu0 0.0
      %3755 = vmatpush2.msra.mxu0 0.0
      %3756 = vmatprep.subr.mxu0 0.0
      %3757 = vmatpush2.msra.mxu0 0.0
      %3758 = vmatprep.subr.mxu0 0.0
      %3759 = vmatpush2.msra.mxu0 0.0
      %3760 = vmatprep.subr.mxu0 0.0
      %3761 = vmatpush2.msra.mxu0 0.0
      %3762 = vmatprep.subr.mxu0 0.0
      %3763 = vmatpush2.msra.mxu0 0.0
      %3764 = vmatprep.subr.mxu0 0.0
      %3765 = vmatpush2.msra.mxu0 0.0
      %3766 = vmatprep.subr.mxu0 0.0
      %3767 = vmatpush2.msra.mxu0 0.0
      %3768 = vmatprep.subr.mxu0 0.0
      %3769 = vmatpush2.msra.mxu0 0.0
      %3770 = vmatprep.subr.mxu0 0.0
      %3771 = vmatpush2.msra.mxu0 0.0
      %3772 = vmatprep.subr.mxu0 0.0
      %3773 = vmatpush2.msra.mxu0 0.0
      %3774 = vmatprep.subr.mxu0 0.0
      %3775 = vmatpush2.msra.mxu0 0.0
      %3776 = vmatprep.subr.mxu0 0.0
      %3777 = vmatpush2.msra.mxu0 0.0
      %3778 = vmatprep.subr.mxu0 0.0
      %3779 = vmatpush2.msra.mxu0 0.0
      %3780 = vmatprep.subr.mxu0 0.0
      %3781 = vmatpush2.msra.mxu0 0.0
      %3782 = vmatprep.subr.mxu0 0.0
      %3783 = vmatpush2.msra.mxu0 0.0
      %3784 = vmatprep.mubr.f32.mxu0 0.0
      %3785 = vmatmul.mubr.f32.gmra.mxu0 %v3718
      %v3786 = vpop.f32.mrf.mxu0
      %v3787 = vadd.f32 0.0, %v3786
      %v3788 = vpop.f32.mrf.mxu0
      %v3789 = vadd.f32 0.0, %v3788
      %3790 = vdwg.mxu0
      %3791 = vmatprep.subr.mxu0 0.0
      %3792 = vmatpush1.msra.mxu0 0.0
      %3793 = vmatprep.subr.mxu0 0.0
      %3794 = vmatpush1.msra.mxu0 0.0
      %3795 = vmatprep.subr.mxu0 0.0
      %3796 = vmatpush1.msra.mxu0 0.0
      %3797 = vmatprep.subr.mxu0 0.0
      %3798 = vmatpush1.msra.mxu0 0.0
      %3799 = vmatprep.subr.mxu0 0.0
      %3800 = vmatpush1.msra.mxu0 0.0
      %3801 = vmatprep.subr.mxu0 0.0
      %3802 = vmatpush1.msra.mxu0 0.0
      %3803 = vmatprep.subr.mxu0 0.0
      %3804 = vmatpush1.msra.mxu0 0.0
      %3805 = vmatprep.subr.mxu0 0.0
      %3806 = vmatpush1.msra.mxu0 0.0
      %3807 = vmatprep.subr.mxu0 0.0
      %3808 = vmatpush1.msra.mxu0 0.0
      %3809 = vmatprep.subr.mxu0 0.0
      %3810 = vmatpush1.msra.mxu0 0.0
      %3811 = vmatprep.subr.mxu0 0.0
      %3812 = vmatpush1.msra.mxu0 0.0
      %3813 = vmatprep.subr.mxu0 0.0
      %3814 = vmatpush1.msra.mxu0 0.0
      %3815 = vmatprep.subr.mxu0 0.0
      %3816 = vmatpush1.msra.mxu0 0.0
      %3817 = vmatprep.subr.mxu0 0.0
      %3818 = vmatpush1.msra.mxu0 0.0
      %3819 = vmatprep.subr.mxu0 0.0
      %3820 = vmatpush1.msra.mxu0 0.0
      %3821 = vmatprep.subr.mxu0 0.0
      %3822 = vmatpush1.msra.mxu0 %v3713
      %3823 = vmatprep.subr.mxu0 0.0
      %3824 = vmatpush2.msra.mxu0 0.0
      %3825 = vmatprep.subr.mxu0 0.0
      %3826 = vmatpush2.msra.mxu0 0.0
      %3827 = vmatprep.subr.mxu0 0.0
      %3828 = vmatpush2.msra.mxu0 0.0
      %3829 = vmatprep.subr.mxu0 0.0
      %3830 = vmatpush2.msra.mxu0 0.0
      %3831 = vmatprep.subr.mxu0 0.0
      %3832 = vmatpush2.msra.mxu0 0.0
      %3833 = vmatprep.subr.mxu0 0.0
      %3834 = vmatpush2.msra.mxu0 0.0
      %3835 = vmatprep.subr.mxu0 0.0
      %3836 = vmatpush2.msra.mxu0 0.0
      %3837 = vmatprep.subr.mxu0 0.0
      %3838 = vmatpush2.msra.mxu0 0.0
      %3839 = vmatprep.subr.mxu0 0.0
      %3840 = vmatpush2.msra.mxu0 0.0
      %3841 = vmatprep.subr.mxu0 0.0
      %3842 = vmatpush2.msra.mxu0 0.0
      %3843 = vmatprep.subr.mxu0 0.0
      %3844 = vmatpush2.msra.mxu0 0.0
      %3845 = vmatprep.subr.mxu0 0.0
      %3846 = vmatpush2.msra.mxu0 0.0
      %3847 = vmatprep.subr.mxu0 0.0
      %3848 = vmatpush2.msra.mxu0 0.0
      %3849 = vmatprep.subr.mxu0 0.0
      %3850 = vmatpush2.msra.mxu0 0.0
      %3851 = vmatprep.subr.mxu0 0.0
      %3852 = vmatpush2.msra.mxu0 0.0
      %3853 = vmatprep.subr.mxu0 0.0
      %3854 = vmatpush2.msra.mxu0 0.0
      %3855 = vmatprep.mubr.f32.mxu0 0.0
      %3856 = vmatmul.mubr.f32.gmra.mxu0 %v3718
      %v3857 = vpop.f32.mrf.mxu0
      %v3858 = vadd.f32 0.0, %v3857
      %v3859 = vpop.f32.mrf.mxu0
      %3860 = vdwg.mxu0
      %v3861 = vadd.f32 %v3698, %v3787
      %v3862 = vadd.f32 %v3699, %v3789
      %v3863 = vadd.f32 %v3700, %v3858
      %s3864 = scalar_lea.vmem %s6, 72
      %v3865 = vld [vmem:[%s3864] sm:$0xff]
      %3866 = vrot.lane.b32.xlu0 %v2391, 22
      %v3867 = vpop.permute.xlu0 %3866
      %3868 = vrot.lane.b32.xlu0 %v2392, 22
      %v3869 = vpop.permute.xlu0 %3868
      %3870 = vrot.lane.b32.xlu0 %v2393, 22
      %v3871 = vpop.permute.xlu0 %3870
      %3872 = vrot.lane.b32.xlu0 %v2394, 22
      %v3873 = vpop.permute.xlu0 %3872
      %vm3874 = vcmask 179200
      %v3875 = vsel %vm3874, %v3867, %v3869
      %v3876 = vsel %vm3874, %v3869, %v3871
      %v3877 = vsel %vm3874, %v3871, %v3873
      %v3882 = vsel %vm931, %v3865, 0
      %3884 = vmatprep.subr.mxu0 0.0
      %3885 = vmatpush1.msra.mxu0 0.0
      %3886 = vmatprep.subr.mxu0 0.0
      %3887 = vmatpush1.msra.mxu0 0.0
      %3888 = vmatprep.subr.mxu0 0.0
      %3889 = vmatpush1.msra.mxu0 0.0
      %3890 = vmatprep.subr.mxu0 0.0
      %3891 = vmatpush1.msra.mxu0 0.0
      %3892 = vmatprep.subr.mxu0 0.0
      %3893 = vmatpush1.msra.mxu0 0.0
      %3894 = vmatprep.subr.mxu0 0.0
      %3895 = vmatpush1.msra.mxu0 0.0
      %3896 = vmatprep.subr.mxu0 0.0
      %3897 = vmatpush1.msra.mxu0 0.0
      %3898 = vmatprep.subr.mxu0 0.0
      %3899 = vmatpush1.msra.mxu0 0.0
      %3900 = vmatprep.subr.mxu0 0.0
      %3901 = vmatpush1.msra.mxu0 0.0
      %3902 = vmatprep.subr.mxu0 0.0
      %3903 = vmatpush1.msra.mxu0 0.0
      %3904 = vmatprep.subr.mxu0 0.0
      %3905 = vmatpush1.msra.mxu0 0.0
      %3906 = vmatprep.subr.mxu0 0.0
      %3907 = vmatpush1.msra.mxu0 0.0
      %3908 = vmatprep.subr.mxu0 0.0
      %3909 = vmatpush1.msra.mxu0 0.0
      %3910 = vmatprep.subr.mxu0 0.0
      %3911 = vmatpush1.msra.mxu0 0.0
      %3912 = vmatprep.subr.mxu0 0.0
      %3913 = vmatpush1.msra.mxu0 0.0
      %3914 = vmatprep.subr.mxu0 %v3876
      %3915 = vmatpush1.msra.mxu0 %v3875
      %3916 = vmatprep.subr.mxu0 0.0
      %3917 = vmatpush2.msra.mxu0 0.0
      %3918 = vmatprep.subr.mxu0 0.0
      %3919 = vmatpush2.msra.mxu0 0.0
      %3920 = vmatprep.subr.mxu0 0.0
      %3921 = vmatpush2.msra.mxu0 0.0
      %3922 = vmatprep.subr.mxu0 0.0
      %3923 = vmatpush2.msra.mxu0 0.0
      %3924 = vmatprep.subr.mxu0 0.0
      %3925 = vmatpush2.msra.mxu0 0.0
      %3926 = vmatprep.subr.mxu0 0.0
      %3927 = vmatpush2.msra.mxu0 0.0
      %3928 = vmatprep.subr.mxu0 0.0
      %3929 = vmatpush2.msra.mxu0 0.0
      %3930 = vmatprep.subr.mxu0 0.0
      %3931 = vmatpush2.msra.mxu0 0.0
      %3932 = vmatprep.subr.mxu0 0.0
      %3933 = vmatpush2.msra.mxu0 0.0
      %3934 = vmatprep.subr.mxu0 0.0
      %3935 = vmatpush2.msra.mxu0 0.0
      %3936 = vmatprep.subr.mxu0 0.0
      %3937 = vmatpush2.msra.mxu0 0.0
      %3938 = vmatprep.subr.mxu0 0.0
      %3939 = vmatpush2.msra.mxu0 0.0
      %3940 = vmatprep.subr.mxu0 0.0
      %3941 = vmatpush2.msra.mxu0 0.0
      %3942 = vmatprep.subr.mxu0 0.0
      %3943 = vmatpush2.msra.mxu0 0.0
      %3944 = vmatprep.subr.mxu0 0.0
      %3945 = vmatpush2.msra.mxu0 0.0
      %3946 = vmatprep.subr.mxu0 0.0
      %3947 = vmatpush2.msra.mxu0 0.0
      %3948 = vmatprep.mubr.f32.mxu0 0.0
      %3949 = vmatmul.mubr.f32.gmra.mxu0 %v3882
      %v3950 = vpop.f32.mrf.mxu0
      %v3951 = vadd.f32 0.0, %v3950
      %v3952 = vpop.f32.mrf.mxu0
      %v3953 = vadd.f32 0.0, %v3952
      %3954 = vdwg.mxu0
      %3955 = vmatprep.subr.mxu0 0.0
      %3956 = vmatpush1.msra.mxu0 0.0
      %3957 = vmatprep.subr.mxu0 0.0
      %3958 = vmatpush1.msra.mxu0 0.0
      %3959 = vmatprep.subr.mxu0 0.0
      %3960 = vmatpush1.msra.mxu0 0.0
      %3961 = vmatprep.subr.mxu0 0.0
      %3962 = vmatpush1.msra.mxu0 0.0
      %3963 = vmatprep.subr.mxu0 0.0
      %3964 = vmatpush1.msra.mxu0 0.0
      %3965 = vmatprep.subr.mxu0 0.0
      %3966 = vmatpush1.msra.mxu0 0.0
      %3967 = vmatprep.subr.mxu0 0.0
      %3968 = vmatpush1.msra.mxu0 0.0
      %3969 = vmatprep.subr.mxu0 0.0
      %3970 = vmatpush1.msra.mxu0 0.0
      %3971 = vmatprep.subr.mxu0 0.0
      %3972 = vmatpush1.msra.mxu0 0.0
      %3973 = vmatprep.subr.mxu0 0.0
      %3974 = vmatpush1.msra.mxu0 0.0
      %3975 = vmatprep.subr.mxu0 0.0
      %3976 = vmatpush1.msra.mxu0 0.0
      %3977 = vmatprep.subr.mxu0 0.0
      %3978 = vmatpush1.msra.mxu0 0.0
      %3979 = vmatprep.subr.mxu0 0.0
      %3980 = vmatpush1.msra.mxu0 0.0
      %3981 = vmatprep.subr.mxu0 0.0
      %3982 = vmatpush1.msra.mxu0 0.0
      %3983 = vmatprep.subr.mxu0 0.0
      %3984 = vmatpush1.msra.mxu0 0.0
      %3985 = vmatprep.subr.mxu0 0.0
      %3986 = vmatpush1.msra.mxu0 %v3877
      %3987 = vmatprep.subr.mxu0 0.0
      %3988 = vmatpush2.msra.mxu0 0.0
      %3989 = vmatprep.subr.mxu0 0.0
      %3990 = vmatpush2.msra.mxu0 0.0
      %3991 = vmatprep.subr.mxu0 0.0
      %3992 = vmatpush2.msra.mxu0 0.0
      %3993 = vmatprep.subr.mxu0 0.0
      %3994 = vmatpush2.msra.mxu0 0.0
      %3995 = vmatprep.subr.mxu0 0.0
      %3996 = vmatpush2.msra.mxu0 0.0
      %3997 = vmatprep.subr.mxu0 0.0
      %3998 = vmatpush2.msra.mxu0 0.0
      %3999 = vmatprep.subr.mxu0 0.0
      %4000 = vmatpush2.msra.mxu0 0.0
      %4001 = vmatprep.subr.mxu0 0.0
      %4002 = vmatpush2.msra.mxu0 0.0
      %4003 = vmatprep.subr.mxu0 0.0
      %4004 = vmatpush2.msra.mxu0 0.0
      %4005 = vmatprep.subr.mxu0 0.0
      %4006 = vmatpush2.msra.mxu0 0.0
      %4007 = vmatprep.subr.mxu0 0.0
      %4008 = vmatpush2.msra.mxu0 0.0
      %4009 = vmatprep.subr.mxu0 0.0
      %4010 = vmatpush2.msra.mxu0 0.0
      %4011 = vmatprep.subr.mxu0 0.0
      %4012 = vmatpush2.msra.mxu0 0.0
      %4013 = vmatprep.subr.mxu0 0.0
      %4014 = vmatpush2.msra.mxu0 0.0
      %4015 = vmatprep.subr.mxu0 0.0
      %4016 = vmatpush2.msra.mxu0 0.0
      %4017 = vmatprep.subr.mxu0 0.0
      %4018 = vmatpush2.msra.mxu0 0.0
      %4019 = vmatprep.mubr.f32.mxu0 0.0
      %4020 = vmatmul.mubr.f32.gmra.mxu0 %v3882
      %v4021 = vpop.f32.mrf.mxu0
      %v4022 = vadd.f32 0.0, %v4021
      %v4023 = vpop.f32.mrf.mxu0
      %4024 = vdwg.mxu0
      %v4025 = vadd.f32 %v3861, %v3951
      %v4026 = vadd.f32 %v3862, %v3953
      %v4027 = vadd.f32 %v3863, %v4022
      %s4028 = scalar_lea.vmem %s6, 80
      %v4029 = vld [vmem:[%s4028] sm:$0xff]
      %4030 = vrot.lane.b32.xlu0 %v2391, 2
      %v4031 = vpop.permute.xlu0 %4030
      %4032 = vrot.lane.b32.xlu0 %v2392, 2
      %v4033 = vpop.permute.xlu0 %4032
      %4034 = vrot.lane.b32.xlu0 %v2393, 2
      %v4035 = vpop.permute.xlu0 %4034
      %4036 = vrot.lane.b32.xlu0 %v2394, 2
      %v4037 = vpop.permute.xlu0 %4036
      %vm4038 = vcmask 15360
      %v4039 = vsel %vm4038, %v4031, %v4033
      %v4040 = vsel %vm4038, %v4033, %v4035
      %v4041 = vsel %vm4038, %v4035, %v4037
      %v4046 = vsel %vm931, %v4029, 0
      %4048 = vmatprep.subr.mxu0 0.0
      %4049 = vmatpush1.msra.mxu0 0.0
      %4050 = vmatprep.subr.mxu0 0.0
      %4051 = vmatpush1.msra.mxu0 0.0
      %4052 = vmatprep.subr.mxu0 0.0
      %4053 = vmatpush1.msra.mxu0 0.0
      %4054 = vmatprep.subr.mxu0 0.0
      %4055 = vmatpush1.msra.mxu0 0.0
      %4056 = vmatprep.subr.mxu0 0.0
      %4057 = vmatpush1.msra.mxu0 0.0
      %4058 = vmatprep.subr.mxu0 0.0
      %4059 = vmatpush1.msra.mxu0 0.0
      %4060 = vmatprep.subr.mxu0 0.0
      %4061 = vmatpush1.msra.mxu0 0.0
      %4062 = vmatprep.subr.mxu0 0.0
      %4063 = vmatpush1.msra.mxu0 0.0
      %4064 = vmatprep.subr.mxu0 0.0
      %4065 = vmatpush1.msra.mxu0 0.0
      %4066 = vmatprep.subr.mxu0 0.0
      %4067 = vmatpush1.msra.mxu0 0.0
      %4068 = vmatprep.subr.mxu0 0.0
      %4069 = vmatpush1.msra.mxu0 0.0
      %4070 = vmatprep.subr.mxu0 0.0
      %4071 = vmatpush1.msra.mxu0 0.0
      %4072 = vmatprep.subr.mxu0 0.0
      %4073 = vmatpush1.msra.mxu0 0.0
      %4074 = vmatprep.subr.mxu0 0.0
      %4075 = vmatpush1.msra.mxu0 0.0
      %4076 = vmatprep.subr.mxu0 0.0
      %4077 = vmatpush1.msra.mxu0 0.0
      %4078 = vmatprep.subr.mxu0 %v4040
      %4079 = vmatpush1.msra.mxu0 %v4039
      %4080 = vmatprep.subr.mxu0 0.0
      %4081 = vmatpush2.msra.mxu0 0.0
      %4082 = vmatprep.subr.mxu0 0.0
      %4083 = vmatpush2.msra.mxu0 0.0
      %4084 = vmatprep.subr.mxu0 0.0
      %4085 = vmatpush2.msra.mxu0 0.0
      %4086 = vmatprep.subr.mxu0 0.0
      %4087 = vmatpush2.msra.mxu0 0.0
      %4088 = vmatprep.subr.mxu0 0.0
      %4089 = vmatpush2.msra.mxu0 0.0
      %4090 = vmatprep.subr.mxu0 0.0
      %4091 = vmatpush2.msra.mxu0 0.0
      %4092 = vmatprep.subr.mxu0 0.0
      %4093 = vmatpush2.msra.mxu0 0.0
      %4094 = vmatprep.subr.mxu0 0.0
      %4095 = vmatpush2.msra.mxu0 0.0
      %4096 = vmatprep.subr.mxu0 0.0
      %4097 = vmatpush2.msra.mxu0 0.0
      %4098 = vmatprep.subr.mxu0 0.0
      %4099 = vmatpush2.msra.mxu0 0.0
      %4100 = vmatprep.subr.mxu0 0.0
      %4101 = vmatpush2.msra.mxu0 0.0
      %4102 = vmatprep.subr.mxu0 0.0
      %4103 = vmatpush2.msra.mxu0 0.0
      %4104 = vmatprep.subr.mxu0 0.0
      %4105 = vmatpush2.msra.mxu0 0.0
      %4106 = vmatprep.subr.mxu0 0.0
      %4107 = vmatpush2.msra.mxu0 0.0
      %4108 = vmatprep.subr.mxu0 0.0
      %4109 = vmatpush2.msra.mxu0 0.0
      %4110 = vmatprep.subr.mxu0 0.0
      %4111 = vmatpush2.msra.mxu0 0.0
      %4112 = vmatprep.mubr.f32.mxu0 0.0
      %4113 = vmatmul.mubr.f32.gmra.mxu0 %v4046
      %v4114 = vpop.f32.mrf.mxu0
      %v4115 = vadd.f32 0.0, %v4114
      %v4116 = vpop.f32.mrf.mxu0
      %v4117 = vadd.f32 0.0, %v4116
      %4118 = vdwg.mxu0
      %4119 = vmatprep.subr.mxu0 0.0
      %4120 = vmatpush1.msra.mxu0 0.0
      %4121 = vmatprep.subr.mxu0 0.0
      %4122 = vmatpush1.msra.mxu0 0.0
      %4123 = vmatprep.subr.mxu0 0.0
      %4124 = vmatpush1.msra.mxu0 0.0
      %4125 = vmatprep.subr.mxu0 0.0
      %4126 = vmatpush1.msra.mxu0 0.0
      %4127 = vmatprep.subr.mxu0 0.0
      %4128 = vmatpush1.msra.mxu0 0.0
      %4129 = vmatprep.subr.mxu0 0.0
      %4130 = vmatpush1.msra.mxu0 0.0
      %4131 = vmatprep.subr.mxu0 0.0
      %4132 = vmatpush1.msra.mxu0 0.0
      %4133 = vmatprep.subr.mxu0 0.0
      %4134 = vmatpush1.msra.mxu0 0.0
      %4135 = vmatprep.subr.mxu0 0.0
      %4136 = vmatpush1.msra.mxu0 0.0
      %4137 = vmatprep.subr.mxu0 0.0
      %4138 = vmatpush1.msra.mxu0 0.0
      %4139 = vmatprep.subr.mxu0 0.0
      %4140 = vmatpush1.msra.mxu0 0.0
      %4141 = vmatprep.subr.mxu0 0.0
      %4142 = vmatpush1.msra.mxu0 0.0
      %4143 = vmatprep.subr.mxu0 0.0
      %4144 = vmatpush1.msra.mxu0 0.0
      %4145 = vmatprep.subr.mxu0 0.0
      %4146 = vmatpush1.msra.mxu0 0.0
      %4147 = vmatprep.subr.mxu0 0.0
      %4148 = vmatpush1.msra.mxu0 0.0
      %4149 = vmatprep.subr.mxu0 0.0
      %4150 = vmatpush1.msra.mxu0 %v4041
      %4151 = vmatprep.subr.mxu0 0.0
      %4152 = vmatpush2.msra.mxu0 0.0
      %4153 = vmatprep.subr.mxu0 0.0
      %4154 = vmatpush2.msra.mxu0 0.0
      %4155 = vmatprep.subr.mxu0 0.0
      %4156 = vmatpush2.msra.mxu0 0.0
      %4157 = vmatprep.subr.mxu0 0.0
      %4158 = vmatpush2.msra.mxu0 0.0
      %4159 = vmatprep.subr.mxu0 0.0
      %4160 = vmatpush2.msra.mxu0 0.0
      %4161 = vmatprep.subr.mxu0 0.0
      %4162 = vmatpush2.msra.mxu0 0.0
      %4163 = vmatprep.subr.mxu0 0.0
      %4164 = vmatpush2.msra.mxu0 0.0
      %4165 = vmatprep.subr.mxu0 0.0
      %4166 = vmatpush2.msra.mxu0 0.0
      %4167 = vmatprep.subr.mxu0 0.0
      %4168 = vmatpush2.msra.mxu0 0.0
      %4169 = vmatprep.subr.mxu0 0.0
      %4170 = vmatpush2.msra.mxu0 0.0
      %4171 = vmatprep.subr.mxu0 0.0
      %4172 = vmatpush2.msra.mxu0 0.0
      %4173 = vmatprep.subr.mxu0 0.0
      %4174 = vmatpush2.msra.mxu0 0.0
      %4175 = vmatprep.subr.mxu0 0.0
      %4176 = vmatpush2.msra.mxu0 0.0
      %4177 = vmatprep.subr.mxu0 0.0
      %4178 = vmatpush2.msra.mxu0 0.0
      %4179 = vmatprep.subr.mxu0 0.0
      %4180 = vmatpush2.msra.mxu0 0.0
      %4181 = vmatprep.subr.mxu0 0.0
      %4182 = vmatpush2.msra.mxu0 0.0
      %4183 = vmatprep.mubr.f32.mxu0 0.0
      %4184 = vmatmul.mubr.f32.gmra.mxu0 %v4046
      %v4185 = vpop.f32.mrf.mxu0
      %v4186 = vadd.f32 0.0, %v4185
      %v4187 = vpop.f32.mrf.mxu0
      %4188 = vdwg.mxu0
      %v4189 = vadd.f32 %v4025, %v4115
      %v4190 = vadd.f32 %v4026, %v4117
      %v4191 = vadd.f32 %v4027, %v4186
      %s4192 = scalar_lea.vmem %s6, 88
      %v4193 = vld [vmem:[%s4192] sm:$0xff]
      %4194 = vrot.lane.b32.xlu0 %v2391, 1
      %v4195 = vpop.permute.xlu0 %4194
      %4196 = vrot.lane.b32.xlu0 %v2392, 1
      %v4197 = vpop.permute.xlu0 %4196
      %4198 = vrot.lane.b32.xlu0 %v2393, 1
      %v4199 = vpop.permute.xlu0 %4198
      %4200 = vrot.lane.b32.xlu0 %v2394, 1
      %v4201 = vpop.permute.xlu0 %4200
      %v4202 = vsel %vm1409, %v4195, %v4197
      %v4203 = vsel %vm1409, %v4197, %v4199
      %v4204 = vsel %vm1409, %v4199, %v4201
      %v4209 = vsel %vm931, %v4193, 0
      %4211 = vmatprep.subr.mxu0 0.0
      %4212 = vmatpush1.msra.mxu0 0.0
      %4213 = vmatprep.subr.mxu0 0.0
      %4214 = vmatpush1.msra.mxu0 0.0
      %4215 = vmatprep.subr.mxu0 0.0
      %4216 = vmatpush1.msra.mxu0 0.0
      %4217 = vmatprep.subr.mxu0 0.0
      %4218 = vmatpush1.msra.mxu0 0.0
      %4219 = vmatprep.subr.mxu0 0.0
      %4220 = vmatpush1.msra.mxu0 0.0
      %4221 = vmatprep.subr.mxu0 0.0
      %4222 = vmatpush1.msra.mxu0 0.0
      %4223 = vmatprep.subr.mxu0 0.0
      %4224 = vmatpush1.msra.mxu0 0.0
      %4225 = vmatprep.subr.mxu0 0.0
      %4226 = vmatpush1.msra.mxu0 0.0
      %4227 = vmatprep.subr.mxu0 0.0
      %4228 = vmatpush1.msra.mxu0 0.0
      %4229 = vmatprep.subr.mxu0 0.0
      %4230 = vmatpush1.msra.mxu0 0.0
      %4231 = vmatprep.subr.mxu0 0.0
      %4232 = vmatpush1.msra.mxu0 0.0
      %4233 = vmatprep.subr.mxu0 0.0
      %4234 = vmatpush1.msra.mxu0 0.0
      %4235 = vmatprep.subr.mxu0 0.0
      %4236 = vmatpush1.msra.mxu0 0.0
      %4237 = vmatprep.subr.mxu0 0.0
      %4238 = vmatpush1.msra.mxu0 0.0
      %4239 = vmatprep.subr.mxu0 0.0
      %4240 = vmatpush1.msra.mxu0 0.0
      %4241 = vmatprep.subr.mxu0 %v4203
      %4242 = vmatpush1.msra.mxu0 %v4202
      %4243 = vmatprep.subr.mxu0 0.0
      %4244 = vmatpush2.msra.mxu0 0.0
      %4245 = vmatprep.subr.mxu0 0.0
      %4246 = vmatpush2.msra.mxu0 0.0
      %4247 = vmatprep.subr.mxu0 0.0
      %4248 = vmatpush2.msra.mxu0 0.0
      %4249 = vmatprep.subr.mxu0 0.0
      %4250 = vmatpush2.msra.mxu0 0.0
      %4251 = vmatprep.subr.mxu0 0.0
      %4252 = vmatpush2.msra.mxu0 0.0
      %4253 = vmatprep.subr.mxu0 0.0
      %4254 = vmatpush2.msra.mxu0 0.0
      %4255 = vmatprep.subr.mxu0 0.0
      %4256 = vmatpush2.msra.mxu0 0.0
      %4257 = vmatprep.subr.mxu0 0.0
      %4258 = vmatpush2.msra.mxu0 0.0
      %4259 = vmatprep.subr.mxu0 0.0
      %4260 = vmatpush2.msra.mxu0 0.0
      %4261 = vmatprep.subr.mxu0 0.0
      %4262 = vmatpush2.msra.mxu0 0.0
      %4263 = vmatprep.subr.mxu0 0.0
      %4264 = vmatpush2.msra.mxu0 0.0
      %4265 = vmatprep.subr.mxu0 0.0
      %4266 = vmatpush2.msra.mxu0 0.0
      %4267 = vmatprep.subr.mxu0 0.0
      %4268 = vmatpush2.msra.mxu0 0.0
      %4269 = vmatprep.subr.mxu0 0.0
      %4270 = vmatpush2.msra.mxu0 0.0
      %4271 = vmatprep.subr.mxu0 0.0
      %4272 = vmatpush2.msra.mxu0 0.0
      %4273 = vmatprep.subr.mxu0 0.0
      %4274 = vmatpush2.msra.mxu0 0.0
      %4275 = vmatprep.mubr.f32.mxu0 0.0
      %4276 = vmatmul.mubr.f32.gmra.mxu0 %v4209
      %v4277 = vpop.f32.mrf.mxu0
      %v4278 = vadd.f32 0.0, %v4277
      %v4279 = vpop.f32.mrf.mxu0
      %v4280 = vadd.f32 0.0, %v4279
      %4281 = vdwg.mxu0
      %4282 = vmatprep.subr.mxu0 0.0
      %4283 = vmatpush1.msra.mxu0 0.0
      %4284 = vmatprep.subr.mxu0 0.0
      %4285 = vmatpush1.msra.mxu0 0.0
      %4286 = vmatprep.subr.mxu0 0.0
      %4287 = vmatpush1.msra.mxu0 0.0
      %4288 = vmatprep.subr.mxu0 0.0
      %4289 = vmatpush1.msra.mxu0 0.0
      %4290 = vmatprep.subr.mxu0 0.0
      %4291 = vmatpush1.msra.mxu0 0.0
      %4292 = vmatprep.subr.mxu0 0.0
      %4293 = vmatpush1.msra.mxu0 0.0
      %4294 = vmatprep.subr.mxu0 0.0
      %4295 = vmatpush1.msra.mxu0 0.0
      %4296 = vmatprep.subr.mxu0 0.0
      %4297 = vmatpush1.msra.mxu0 0.0
      %4298 = vmatprep.subr.mxu0 0.0
      %4299 = vmatpush1.msra.mxu0 0.0
      %4300 = vmatprep.subr.mxu0 0.0
      %4301 = vmatpush1.msra.mxu0 0.0
      %4302 = vmatprep.subr.mxu0 0.0
      %4303 = vmatpush1.msra.mxu0 0.0
      %4304 = vmatprep.subr.mxu0 0.0
      %4305 = vmatpush1.msra.mxu0 0.0
      %4306 = vmatprep.subr.mxu0 0.0
      %4307 = vmatpush1.msra.mxu0 0.0
      %4308 = vmatprep.subr.mxu0 0.0
      %4309 = vmatpush1.msra.mxu0 0.0
      %4310 = vmatprep.subr.mxu0 0.0
      %4311 = vmatpush1.msra.mxu0 0.0
      %4312 = vmatprep.subr.mxu0 0.0
      %4313 = vmatpush1.msra.mxu0 %v4204
      %4314 = vmatprep.subr.mxu0 0.0
      %4315 = vmatpush2.msra.mxu0 0.0
      %4316 = vmatprep.subr.mxu0 0.0
      %4317 = vmatpush2.msra.mxu0 0.0
      %4318 = vmatprep.subr.mxu0 0.0
      %4319 = vmatpush2.msra.mxu0 0.0
      %4320 = vmatprep.subr.mxu0 0.0
      %4321 = vmatpush2.msra.mxu0 0.0
      %4322 = vmatprep.subr.mxu0 0.0
      %4323 = vmatpush2.msra.mxu0 0.0
      %4324 = vmatprep.subr.mxu0 0.0
      %4325 = vmatpush2.msra.mxu0 0.0
      %4326 = vmatprep.subr.mxu0 0.0
      %4327 = vmatpush2.msra.mxu0 0.0
      %4328 = vmatprep.subr.mxu0 0.0
      %4329 = vmatpush2.msra.mxu0 0.0
      %4330 = vmatprep.subr.mxu0 0.0
      %4331 = vmatpush2.msra.mxu0 0.0
      %4332 = vmatprep.subr.mxu0 0.0
      %4333 = vmatpush2.msra.mxu0 0.0
      %4334 = vmatprep.subr.mxu0 0.0
      %4335 = vmatpush2.msra.mxu0 0.0
      %4336 = vmatprep.subr.mxu0 0.0
      %4337 = vmatpush2.msra.mxu0 0.0
      %4338 = vmatprep.subr.mxu0 0.0
      %4339 = vmatpush2.msra.mxu0 0.0
      %4340 = vmatprep.subr.mxu0 0.0
      %4341 = vmatpush2.msra.mxu0 0.0
      %4342 = vmatprep.subr.mxu0 0.0
      %4343 = vmatpush2.msra.mxu0 0.0
      %4344 = vmatprep.subr.mxu0 0.0
      %4345 = vmatpush2.msra.mxu0 0.0
      %4346 = vmatprep.mubr.f32.mxu0 0.0
      %4347 = vmatmul.mubr.f32.gmra.mxu0 %v4209
      %v4348 = vpop.f32.mrf.mxu0
      %v4349 = vadd.f32 0.0, %v4348
      %v4350 = vpop.f32.mrf.mxu0
      %4351 = vdwg.mxu0
      %v4352 = vadd.f32 %v4189, %v4278
      %v4353 = vadd.f32 %v4190, %v4280
      %v4354 = vadd.f32 %v4191, %v4349
      %s4355 = scalar_lea.vmem %s6, 96
      %v4356 = vld [vmem:[%s4355] sm:$0xff]
      %v4358 = vsel %vm931, %v4356, 0
      %4360 = vmatprep.subr.mxu0 0.0
      %4361 = vmatpush1.msra.mxu0 0.0
      %4362 = vmatprep.subr.mxu0 0.0
      %4363 = vmatpush1.msra.mxu0 0.0
      %4364 = vmatprep.subr.mxu0 0.0
      %4365 = vmatpush1.msra.mxu0 0.0
      %4366 = vmatprep.subr.mxu0 0.0
      %4367 = vmatpush1.msra.mxu0 0.0
      %4368 = vmatprep.subr.mxu0 0.0
      %4369 = vmatpush1.msra.mxu0 0.0
      %4370 = vmatprep.subr.mxu0 0.0
      %4371 = vmatpush1.msra.mxu0 0.0
      %4372 = vmatprep.subr.mxu0 0.0
      %4373 = vmatpush1.msra.mxu0 0.0
      %4374 = vmatprep.subr.mxu0 0.0
      %4375 = vmatpush1.msra.mxu0 0.0
      %4376 = vmatprep.subr.mxu0 0.0
      %4377 = vmatpush1.msra.mxu0 0.0
      %4378 = vmatprep.subr.mxu0 0.0
      %4379 = vmatpush1.msra.mxu0 0.0
      %4380 = vmatprep.subr.mxu0 0.0
      %4381 = vmatpush1.msra.mxu0 0.0
      %4382 = vmatprep.subr.mxu0 0.0
      %4383 = vmatpush1.msra.mxu0 0.0
      %4384 = vmatprep.subr.mxu0 0.0
      %4385 = vmatpush1.msra.mxu0 0.0
      %4386 = vmatprep.subr.mxu0 0.0
      %4387 = vmatpush1.msra.mxu0 0.0
      %4388 = vmatprep.subr.mxu0 0.0
      %4389 = vmatpush1.msra.mxu0 0.0
      %4390 = vmatprep.subr.mxu0 %v2393
      %4391 = vmatpush1.msra.mxu0 %v2392
      %4392 = vmatprep.subr.mxu0 0.0
      %4393 = vmatpush2.msra.mxu0 0.0
      %4394 = vmatprep.subr.mxu0 0.0
      %4395 = vmatpush2.msra.mxu0 0.0
      %4396 = vmatprep.subr.mxu0 0.0
      %4397 = vmatpush2.msra.mxu0 0.0
      %4398 = vmatprep.subr.mxu0 0.0
      %4399 = vmatpush2.msra.mxu0 0.0
      %4400 = vmatprep.subr.mxu0 0.0
      %4401 = vmatpush2.msra.mxu0 0.0
      %4402 = vmatprep.subr.mxu0 0.0
      %4403 = vmatpush2.msra.mxu0 0.0
      %4404 = vmatprep.subr.mxu0 0.0
      %4405 = vmatpush2.msra.mxu0 0.0
      %4406 = vmatprep.subr.mxu0 0.0
      %4407 = vmatpush2.msra.mxu0 0.0
      %4408 = vmatprep.subr.mxu0 0.0
      %4409 = vmatpush2.msra.mxu0 0.0
      %4410 = vmatprep.subr.mxu0 0.0
      %4411 = vmatpush2.msra.mxu0 0.0
      %4412 = vmatprep.subr.mxu0 0.0
      %4413 = vmatpush2.msra.mxu0 0.0
      %4414 = vmatprep.subr.mxu0 0.0
      %4415 = vmatpush2.msra.mxu0 0.0
      %4416 = vmatprep.subr.mxu0 0.0
      %4417 = vmatpush2.msra.mxu0 0.0
      %4418 = vmatprep.subr.mxu0 0.0
      %4419 = vmatpush2.msra.mxu0 0.0
      %4420 = vmatprep.subr.mxu0 0.0
      %4421 = vmatpush2.msra.mxu0 0.0
      %4422 = vmatprep.subr.mxu0 0.0
      %4423 = vmatpush2.msra.mxu0 0.0
      %4424 = vmatprep.mubr.f32.mxu0 0.0
      %4425 = vmatmul.mubr.f32.gmra.mxu0 %v4358
      %v4426 = vpop.f32.mrf.mxu0
      %v4427 = vadd.f32 0.0, %v4426
      %v4428 = vpop.f32.mrf.mxu0
      %v4429 = vadd.f32 0.0, %v4428
      %4430 = vdwg.mxu0
      %4431 = vmatprep.subr.mxu0 0.0
      %4432 = vmatpush1.msra.mxu0 0.0
      %4433 = vmatprep.subr.mxu0 0.0
      %4434 = vmatpush1.msra.mxu0 0.0
      %4435 = vmatprep.subr.mxu0 0.0
      %4436 = vmatpush1.msra.mxu0 0.0
      %4437 = vmatprep.subr.mxu0 0.0
      %4438 = vmatpush1.msra.mxu0 0.0
      %4439 = vmatprep.subr.mxu0 0.0
      %4440 = vmatpush1.msra.mxu0 0.0
      %4441 = vmatprep.subr.mxu0 0.0
      %4442 = vmatpush1.msra.mxu0 0.0
      %4443 = vmatprep.subr.mxu0 0.0
      %4444 = vmatpush1.msra.mxu0 0.0
      %4445 = vmatprep.subr.mxu0 0.0
      %4446 = vmatpush1.msra.mxu0 0.0
      %4447 = vmatprep.subr.mxu0 0.0
      %4448 = vmatpush1.msra.mxu0 0.0
      %4449 = vmatprep.subr.mxu0 0.0
      %4450 = vmatpush1.msra.mxu0 0.0
      %4451 = vmatprep.subr.mxu0 0.0
      %4452 = vmatpush1.msra.mxu0 0.0
      %4453 = vmatprep.subr.mxu0 0.0
      %4454 = vmatpush1.msra.mxu0 0.0
      %4455 = vmatprep.subr.mxu0 0.0
      %4456 = vmatpush1.msra.mxu0 0.0
      %4457 = vmatprep.subr.mxu0 0.0
      %4458 = vmatpush1.msra.mxu0 0.0
      %4459 = vmatprep.subr.mxu0 0.0
      %4460 = vmatpush1.msra.mxu0 0.0
      %4461 = vmatprep.subr.mxu0 0.0
      %4462 = vmatpush1.msra.mxu0 %v2394
      %4463 = vmatprep.subr.mxu0 0.0
      %4464 = vmatpush2.msra.mxu0 0.0
      %4465 = vmatprep.subr.mxu0 0.0
      %4466 = vmatpush2.msra.mxu0 0.0
      %4467 = vmatprep.subr.mxu0 0.0
      %4468 = vmatpush2.msra.mxu0 0.0
      %4469 = vmatprep.subr.mxu0 0.0
      %4470 = vmatpush2.msra.mxu0 0.0
      %4471 = vmatprep.subr.mxu0 0.0
      %4472 = vmatpush2.msra.mxu0 0.0
      %4473 = vmatprep.subr.mxu0 0.0
      %4474 = vmatpush2.msra.mxu0 0.0
      %4475 = vmatprep.subr.mxu0 0.0
      %4476 = vmatpush2.msra.mxu0 0.0
      %4477 = vmatprep.subr.mxu0 0.0
      %4478 = vmatpush2.msra.mxu0 0.0
      %4479 = vmatprep.subr.mxu0 0.0
      %4480 = vmatpush2.msra.mxu0 0.0
      %4481 = vmatprep.subr.mxu0 0.0
      %4482 = vmatpush2.msra.mxu0 0.0
      %4483 = vmatprep.subr.mxu0 0.0
      %4484 = vmatpush2.msra.mxu0 0.0
      %4485 = vmatprep.subr.mxu0 0.0
      %4486 = vmatpush2.msra.mxu0 0.0
      %4487 = vmatprep.subr.mxu0 0.0
      %4488 = vmatpush2.msra.mxu0 0.0
      %4489 = vmatprep.subr.mxu0 0.0
      %4490 = vmatpush2.msra.mxu0 0.0
      %4491 = vmatprep.subr.mxu0 0.0
      %4492 = vmatpush2.msra.mxu0 0.0
      %4493 = vmatprep.subr.mxu0 0.0
      %4494 = vmatpush2.msra.mxu0 0.0
      %4495 = vmatprep.mubr.f32.mxu0 0.0
      %4496 = vmatmul.mubr.f32.gmra.mxu0 %v4358
      %v4497 = vpop.f32.mrf.mxu0
      %v4498 = vadd.f32 0.0, %v4497
      %v4499 = vpop.f32.mrf.mxu0
      %4500 = vdwg.mxu0
      %v4501 = vadd.f32 %v4352, %v4427
      %v4502 = vadd.f32 %v4353, %v4429
      %v4503 = vadd.f32 %v4354, %v4498
      %v4504 = vld [vmem:[#allocation2 + $0x8] sm:$0xff]
      %v4505 = vld [vmem:[#allocation2 + $0x10] sm:$0xff]
      %v4506 = vld [vmem:[#allocation2 + $0x18] sm:$0xff]
      %v4507 = vld [vmem:[#allocation2 + $0x20] sm:$0xff]
      %s4508 = scalar_lea.vmem %s6, 104
      %v4509 = vld [vmem:[%s4508] sm:$0xff]
      %4514 = vrot.lane.b32.xlu0 %v4504, 127
      %v4515 = vpop.permute.xlu0 %4514
      %4516 = vrot.lane.b32.xlu0 %v4505, 127
      %v4517 = vpop.permute.xlu0 %4516
      %4518 = vrot.lane.b32.xlu0 %v4506, 127
      %v4519 = vpop.permute.xlu0 %4518
      %4520 = vrot.lane.b32.xlu0 %v4507, 127
      %v4521 = vpop.permute.xlu0 %4520
      %v4522 = vsel %vm624, %v4515, %v4517
      %v4523 = vsel %vm624, %v4517, %v4519
      %v4524 = vsel %vm624, %v4519, %v4521
      %v4529 = vsel %vm931, %v4509, 0
      %4531 = vmatprep.subr.mxu0 0.0
      %4532 = vmatpush1.msra.mxu0 0.0
      %4533 = vmatprep.subr.mxu0 0.0
      %4534 = vmatpush1.msra.mxu0 0.0
      %4535 = vmatprep.subr.mxu0 0.0
      %4536 = vmatpush1.msra.mxu0 0.0
      %4537 = vmatprep.subr.mxu0 0.0
      %4538 = vmatpush1.msra.mxu0 0.0
      %4539 = vmatprep.subr.mxu0 0.0
      %4540 = vmatpush1.msra.mxu0 0.0
      %4541 = vmatprep.subr.mxu0 0.0
      %4542 = vmatpush1.msra.mxu0 0.0
      %4543 = vmatprep.subr.mxu0 0.0
      %4544 = vmatpush1.msra.mxu0 0.0
      %4545 = vmatprep.subr.mxu0 0.0
      %4546 = vmatpush1.msra.mxu0 0.0
      %4547 = vmatprep.subr.mxu0 0.0
      %4548 = vmatpush1.msra.mxu0 0.0
      %4549 = vmatprep.subr.mxu0 0.0
      %4550 = vmatpush1.msra.mxu0 0.0
      %4551 = vmatprep.subr.mxu0 0.0
      %4552 = vmatpush1.msra.mxu0 0.0
      %4553 = vmatprep.subr.mxu0 0.0
      %4554 = vmatpush1.msra.mxu0 0.0
      %4555 = vmatprep.subr.mxu0 0.0
      %4556 = vmatpush1.msra.mxu0 0.0
      %4557 = vmatprep.subr.mxu0 0.0
      %4558 = vmatpush1.msra.mxu0 0.0
      %4559 = vmatprep.subr.mxu0 0.0
      %4560 = vmatpush1.msra.mxu0 0.0
      %4561 = vmatprep.subr.mxu0 %v4523
      %4562 = vmatpush1.msra.mxu0 %v4522
      %4563 = vmatprep.subr.mxu0 0.0
      %4564 = vmatpush2.msra.mxu0 0.0
      %4565 = vmatprep.subr.mxu0 0.0
      %4566 = vmatpush2.msra.mxu0 0.0
      %4567 = vmatprep.subr.mxu0 0.0
      %4568 = vmatpush2.msra.mxu0 0.0
      %4569 = vmatprep.subr.mxu0 0.0
      %4570 = vmatpush2.msra.mxu0 0.0
      %4571 = vmatprep.subr.mxu0 0.0
      %4572 = vmatpush2.msra.mxu0 0.0
      %4573 = vmatprep.subr.mxu0 0.0
      %4574 = vmatpush2.msra.mxu0 0.0
      %4575 = vmatprep.subr.mxu0 0.0
      %4576 = vmatpush2.msra.mxu0 0.0
      %4577 = vmatprep.subr.mxu0 0.0
      %4578 = vmatpush2.msra.mxu0 0.0
      %4579 = vmatprep.subr.mxu0 0.0
      %4580 = vmatpush2.msra.mxu0 0.0
      %4581 = vmatprep.subr.mxu0 0.0
      %4582 = vmatpush2.msra.mxu0 0.0
      %4583 = vmatprep.subr.mxu0 0.0
      %4584 = vmatpush2.msra.mxu0 0.0
      %4585 = vmatprep.subr.mxu0 0.0
      %4586 = vmatpush2.msra.mxu0 0.0
      %4587 = vmatprep.subr.mxu0 0.0
      %4588 = vmatpush2.msra.mxu0 0.0
      %4589 = vmatprep.subr.mxu0 0.0
      %4590 = vmatpush2.msra.mxu0 0.0
      %4591 = vmatprep.subr.mxu0 0.0
      %4592 = vmatpush2.msra.mxu0 0.0
      %4593 = vmatprep.subr.mxu0 0.0
      %4594 = vmatpush2.msra.mxu0 0.0
      %4595 = vmatprep.mubr.f32.mxu0 0.0
      %4596 = vmatmul.mubr.f32.gmra.mxu0 %v4529
      %v4597 = vpop.f32.mrf.mxu0
      %v4598 = vadd.f32 0.0, %v4597
      %v4599 = vpop.f32.mrf.mxu0
      %v4600 = vadd.f32 0.0, %v4599
      %4601 = vdwg.mxu0
      %4602 = vmatprep.subr.mxu0 0.0
      %4603 = vmatpush1.msra.mxu0 0.0
      %4604 = vmatprep.subr.mxu0 0.0
      %4605 = vmatpush1.msra.mxu0 0.0
      %4606 = vmatprep.subr.mxu0 0.0
      %4607 = vmatpush1.msra.mxu0 0.0
      %4608 = vmatprep.subr.mxu0 0.0
      %4609 = vmatpush1.msra.mxu0 0.0
      %4610 = vmatprep.subr.mxu0 0.0
      %4611 = vmatpush1.msra.mxu0 0.0
      %4612 = vmatprep.subr.mxu0 0.0
      %4613 = vmatpush1.msra.mxu0 0.0
      %4614 = vmatprep.subr.mxu0 0.0
      %4615 = vmatpush1.msra.mxu0 0.0
      %4616 = vmatprep.subr.mxu0 0.0
      %4617 = vmatpush1.msra.mxu0 0.0
      %4618 = vmatprep.subr.mxu0 0.0
      %4619 = vmatpush1.msra.mxu0 0.0
      %4620 = vmatprep.subr.mxu0 0.0
      %4621 = vmatpush1.msra.mxu0 0.0
      %4622 = vmatprep.subr.mxu0 0.0
      %4623 = vmatpush1.msra.mxu0 0.0
      %4624 = vmatprep.subr.mxu0 0.0
      %4625 = vmatpush1.msra.mxu0 0.0
      %4626 = vmatprep.subr.mxu0 0.0
      %4627 = vmatpush1.msra.mxu0 0.0
      %4628 = vmatprep.subr.mxu0 0.0
      %4629 = vmatpush1.msra.mxu0 0.0
      %4630 = vmatprep.subr.mxu0 0.0
      %4631 = vmatpush1.msra.mxu0 0.0
      %4632 = vmatprep.subr.mxu0 0.0
      %4633 = vmatpush1.msra.mxu0 %v4524
      %4634 = vmatprep.subr.mxu0 0.0
      %4635 = vmatpush2.msra.mxu0 0.0
      %4636 = vmatprep.subr.mxu0 0.0
      %4637 = vmatpush2.msra.mxu0 0.0
      %4638 = vmatprep.subr.mxu0 0.0
      %4639 = vmatpush2.msra.mxu0 0.0
      %4640 = vmatprep.subr.mxu0 0.0
      %4641 = vmatpush2.msra.mxu0 0.0
      %4642 = vmatprep.subr.mxu0 0.0
      %4643 = vmatpush2.msra.mxu0 0.0
      %4644 = vmatprep.subr.mxu0 0.0
      %4645 = vmatpush2.msra.mxu0 0.0
      %4646 = vmatprep.subr.mxu0 0.0
      %4647 = vmatpush2.msra.mxu0 0.0
      %4648 = vmatprep.subr.mxu0 0.0
      %4649 = vmatpush2.msra.mxu0 0.0
      %4650 = vmatprep.subr.mxu0 0.0
      %4651 = vmatpush2.msra.mxu0 0.0
      %4652 = vmatprep.subr.mxu0 0.0
      %4653 = vmatpush2.msra.mxu0 0.0
      %4654 = vmatprep.subr.mxu0 0.0
      %4655 = vmatpush2.msra.mxu0 0.0
      %4656 = vmatprep.subr.mxu0 0.0
      %4657 = vmatpush2.msra.mxu0 0.0
      %4658 = vmatprep.subr.mxu0 0.0
      %4659 = vmatpush2.msra.mxu0 0.0
      %4660 = vmatprep.subr.mxu0 0.0
      %4661 = vmatpush2.msra.mxu0 0.0
      %4662 = vmatprep.subr.mxu0 0.0
      %4663 = vmatpush2.msra.mxu0 0.0
      %4664 = vmatprep.subr.mxu0 0.0
      %4665 = vmatpush2.msra.mxu0 0.0
      %4666 = vmatprep.mubr.f32.mxu0 0.0
      %4667 = vmatmul.mubr.f32.gmra.mxu0 %v4529
      %v4668 = vpop.f32.mrf.mxu0
      %v4669 = vadd.f32 0.0, %v4668
      %v4670 = vpop.f32.mrf.mxu0
      %4671 = vdwg.mxu0
      %v4672 = vadd.f32 %v4501, %v4598
      %v4673 = vadd.f32 %v4502, %v4600
      %v4674 = vadd.f32 %v4503, %v4669
      %s4675 = scalar_lea.vmem %s6, 112
      %v4676 = vld [vmem:[%s4675] sm:$0xff]
      %4677 = vrot.lane.b32.xlu0 %v4504, 126
      %v4678 = vpop.permute.xlu0 %4677
      %4679 = vrot.lane.b32.xlu0 %v4505, 126
      %v4680 = vpop.permute.xlu0 %4679
      %4681 = vrot.lane.b32.xlu0 %v4506, 126
      %v4682 = vpop.permute.xlu0 %4681
      %4683 = vrot.lane.b32.xlu0 %v4507, 126
      %v4684 = vpop.permute.xlu0 %4683
      %v4685 = vsel %vm638, %v4678, %v4680
      %v4686 = vsel %vm638, %v4680, %v4682
      %v4687 = vsel %vm638, %v4682, %v4684
      %v4692 = vsel %vm931, %v4676, 0
      %4694 = vmatprep.subr.mxu0 0.0
      %4695 = vmatpush1.msra.mxu0 0.0
      %4696 = vmatprep.subr.mxu0 0.0
      %4697 = vmatpush1.msra.mxu0 0.0
      %4698 = vmatprep.subr.mxu0 0.0
      %4699 = vmatpush1.msra.mxu0 0.0
      %4700 = vmatprep.subr.mxu0 0.0
      %4701 = vmatpush1.msra.mxu0 0.0
      %4702 = vmatprep.subr.mxu0 0.0
      %4703 = vmatpush1.msra.mxu0 0.0
      %4704 = vmatprep.subr.mxu0 0.0
      %4705 = vmatpush1.msra.mxu0 0.0
      %4706 = vmatprep.subr.mxu0 0.0
      %4707 = vmatpush1.msra.mxu0 0.0
      %4708 = vmatprep.subr.mxu0 0.0
      %4709 = vmatpush1.msra.mxu0 0.0
      %4710 = vmatprep.subr.mxu0 0.0
      %4711 = vmatpush1.msra.mxu0 0.0
      %4712 = vmatprep.subr.mxu0 0.0
      %4713 = vmatpush1.msra.mxu0 0.0
      %4714 = vmatprep.subr.mxu0 0.0
      %4715 = vmatpush1.msra.mxu0 0.0
      %4716 = vmatprep.subr.mxu0 0.0
      %4717 = vmatpush1.msra.mxu0 0.0
      %4718 = vmatprep.subr.mxu0 0.0
      %4719 = vmatpush1.msra.mxu0 0.0
      %4720 = vmatprep.subr.mxu0 0.0
      %4721 = vmatpush1.msra.mxu0 0.0
      %4722 = vmatprep.subr.mxu0 0.0
      %4723 = vmatpush1.msra.mxu0 0.0
      %4724 = vmatprep.subr.mxu0 %v4686
      %4725 = vmatpush1.msra.mxu0 %v4685
      %4726 = vmatprep.subr.mxu0 0.0
      %4727 = vmatpush2.msra.mxu0 0.0
      %4728 = vmatprep.subr.mxu0 0.0
      %4729 = vmatpush2.msra.mxu0 0.0
      %4730 = vmatprep.subr.mxu0 0.0
      %4731 = vmatpush2.msra.mxu0 0.0
      %4732 = vmatprep.subr.mxu0 0.0
      %4733 = vmatpush2.msra.mxu0 0.0
      %4734 = vmatprep.subr.mxu0 0.0
      %4735 = vmatpush2.msra.mxu0 0.0
      %4736 = vmatprep.subr.mxu0 0.0
      %4737 = vmatpush2.msra.mxu0 0.0
      %4738 = vmatprep.subr.mxu0 0.0
      %4739 = vmatpush2.msra.mxu0 0.0
      %4740 = vmatprep.subr.mxu0 0.0
      %4741 = vmatpush2.msra.mxu0 0.0
      %4742 = vmatprep.subr.mxu0 0.0
      %4743 = vmatpush2.msra.mxu0 0.0
      %4744 = vmatprep.subr.mxu0 0.0
      %4745 = vmatpush2.msra.mxu0 0.0
      %4746 = vmatprep.subr.mxu0 0.0
      %4747 = vmatpush2.msra.mxu0 0.0
      %4748 = vmatprep.subr.mxu0 0.0
      %4749 = vmatpush2.msra.mxu0 0.0
      %4750 = vmatprep.subr.mxu0 0.0
      %4751 = vmatpush2.msra.mxu0 0.0
      %4752 = vmatprep.subr.mxu0 0.0
      %4753 = vmatpush2.msra.mxu0 0.0
      %4754 = vmatprep.subr.mxu0 0.0
      %4755 = vmatpush2.msra.mxu0 0.0
      %4756 = vmatprep.subr.mxu0 0.0
      %4757 = vmatpush2.msra.mxu0 0.0
      %4758 = vmatprep.mubr.f32.mxu0 0.0
      %4759 = vmatmul.mubr.f32.gmra.mxu0 %v4692
      %v4760 = vpop.f32.mrf.mxu0
      %v4761 = vadd.f32 0.0, %v4760
      %v4762 = vpop.f32.mrf.mxu0
      %v4763 = vadd.f32 0.0, %v4762
      %4764 = vdwg.mxu0
      %4765 = vmatprep.subr.mxu0 0.0
      %4766 = vmatpush1.msra.mxu0 0.0
      %4767 = vmatprep.subr.mxu0 0.0
      %4768 = vmatpush1.msra.mxu0 0.0
      %4769 = vmatprep.subr.mxu0 0.0
      %4770 = vmatpush1.msra.mxu0 0.0
      %4771 = vmatprep.subr.mxu0 0.0
      %4772 = vmatpush1.msra.mxu0 0.0
      %4773 = vmatprep.subr.mxu0 0.0
      %4774 = vmatpush1.msra.mxu0 0.0
      %4775 = vmatprep.subr.mxu0 0.0
      %4776 = vmatpush1.msra.mxu0 0.0
      %4777 = vmatprep.subr.mxu0 0.0
      %4778 = vmatpush1.msra.mxu0 0.0
      %4779 = vmatprep.subr.mxu0 0.0
      %4780 = vmatpush1.msra.mxu0 0.0
      %4781 = vmatprep.subr.mxu0 0.0
      %4782 = vmatpush1.msra.mxu0 0.0
      %4783 = vmatprep.subr.mxu0 0.0
      %4784 = vmatpush1.msra.mxu0 0.0
      %4785 = vmatprep.subr.mxu0 0.0
      %4786 = vmatpush1.msra.mxu0 0.0
      %4787 = vmatprep.subr.mxu0 0.0
      %4788 = vmatpush1.msra.mxu0 0.0
      %4789 = vmatprep.subr.mxu0 0.0
      %4790 = vmatpush1.msra.mxu0 0.0
      %4791 = vmatprep.subr.mxu0 0.0
      %4792 = vmatpush1.msra.mxu0 0.0
      %4793 = vmatprep.subr.mxu0 0.0
      %4794 = vmatpush1.msra.mxu0 0.0
      %4795 = vmatprep.subr.mxu0 0.0
      %4796 = vmatpush1.msra.mxu0 %v4687
      %4797 = vmatprep.subr.mxu0 0.0
      %4798 = vmatpush2.msra.mxu0 0.0
      %4799 = vmatprep.subr.mxu0 0.0
      %4800 = vmatpush2.msra.mxu0 0.0
      %4801 = vmatprep.subr.mxu0 0.0
      %4802 = vmatpush2.msra.mxu0 0.0
      %4803 = vmatprep.subr.mxu0 0.0
      %4804 = vmatpush2.msra.mxu0 0.0
      %4805 = vmatprep.subr.mxu0 0.0
      %4806 = vmatpush2.msra.mxu0 0.0
      %4807 = vmatprep.subr.mxu0 0.0
      %4808 = vmatpush2.msra.mxu0 0.0
      %4809 = vmatprep.subr.mxu0 0.0
      %4810 = vmatpush2.msra.mxu0 0.0
      %4811 = vmatprep.subr.mxu0 0.0
      %4812 = vmatpush2.msra.mxu0 0.0
      %4813 = vmatprep.subr.mxu0 0.0
      %4814 = vmatpush2.msra.mxu0 0.0
      %4815 = vmatprep.subr.mxu0 0.0
      %4816 = vmatpush2.msra.mxu0 0.0
      %4817 = vmatprep.subr.mxu0 0.0
      %4818 = vmatpush2.msra.mxu0 0.0
      %4819 = vmatprep.subr.mxu0 0.0
      %4820 = vmatpush2.msra.mxu0 0.0
      %4821 = vmatprep.subr.mxu0 0.0
      %4822 = vmatpush2.msra.mxu0 0.0
      %4823 = vmatprep.subr.mxu0 0.0
      %4824 = vmatpush2.msra.mxu0 0.0
      %4825 = vmatprep.subr.mxu0 0.0
      %4826 = vmatpush2.msra.mxu0 0.0
      %4827 = vmatprep.subr.mxu0 0.0
      %4828 = vmatpush2.msra.mxu0 0.0
      %4829 = vmatprep.mubr.f32.mxu0 0.0
      %4830 = vmatmul.mubr.f32.gmra.mxu0 %v4692
      %v4831 = vpop.f32.mrf.mxu0
      %v4832 = vadd.f32 0.0, %v4831
      %v4833 = vpop.f32.mrf.mxu0
      %4834 = vdwg.mxu0
      %v4835 = vadd.f32 %v4672, %v4761
      %v4836 = vadd.f32 %v4673, %v4763
      %v4837 = vadd.f32 %v4674, %v4832
      %s4838 = scalar_lea.vmem %s6, 120
      %v4839 = vld [vmem:[%s4838] sm:$0xff]
      %4840 = vrot.lane.b32.xlu0 %v4504, 106
      %v4841 = vpop.permute.xlu0 %4840
      %4842 = vrot.lane.b32.xlu0 %v4505, 106
      %v4843 = vpop.permute.xlu0 %4842
      %4844 = vrot.lane.b32.xlu0 %v4506, 106
      %v4845 = vpop.permute.xlu0 %4844
      %4846 = vrot.lane.b32.xlu0 %v4507, 106
      %v4847 = vpop.permute.xlu0 %4846
      %vm4848 = vcmask 867328
      %v4849 = vsel %vm4848, %v4841, %v4843
      %v4850 = vsel %vm4848, %v4843, %v4845
      %v4851 = vsel %vm4848, %v4845, %v4847
      %v4856 = vsel %vm931, %v4839, 0
      %4858 = vmatprep.subr.mxu0 0.0
      %4859 = vmatpush1.msra.mxu0 0.0
      %4860 = vmatprep.subr.mxu0 0.0
      %4861 = vmatpush1.msra.mxu0 0.0
      %4862 = vmatprep.subr.mxu0 0.0
      %4863 = vmatpush1.msra.mxu0 0.0
      %4864 = vmatprep.subr.mxu0 0.0
      %4865 = vmatpush1.msra.mxu0 0.0
      %4866 = vmatprep.subr.mxu0 0.0
      %4867 = vmatpush1.msra.mxu0 0.0
      %4868 = vmatprep.subr.mxu0 0.0
      %4869 = vmatpush1.msra.mxu0 0.0
      %4870 = vmatprep.subr.mxu0 0.0
      %4871 = vmatpush1.msra.mxu0 0.0
      %4872 = vmatprep.subr.mxu0 0.0
      %4873 = vmatpush1.msra.mxu0 0.0
      %4874 = vmatprep.subr.mxu0 0.0
      %4875 = vmatpush1.msra.mxu0 0.0
      %4876 = vmatprep.subr.mxu0 0.0
      %4877 = vmatpush1.msra.mxu0 0.0
      %4878 = vmatprep.subr.mxu0 0.0
      %4879 = vmatpush1.msra.mxu0 0.0
      %4880 = vmatprep.subr.mxu0 0.0
      %4881 = vmatpush1.msra.mxu0 0.0
      %4882 = vmatprep.subr.mxu0 0.0
      %4883 = vmatpush1.msra.mxu0 0.0
      %4884 = vmatprep.subr.mxu0 0.0
      %4885 = vmatpush1.msra.mxu0 0.0
      %4886 = vmatprep.subr.mxu0 0.0
      %4887 = vmatpush1.msra.mxu0 0.0
      %4888 = vmatprep.subr.mxu0 %v4850
      %4889 = vmatpush1.msra.mxu0 %v4849
      %4890 = vmatprep.subr.mxu0 0.0
      %4891 = vmatpush2.msra.mxu0 0.0
      %4892 = vmatprep.subr.mxu0 0.0
      %4893 = vmatpush2.msra.mxu0 0.0
      %4894 = vmatprep.subr.mxu0 0.0
      %4895 = vmatpush2.msra.mxu0 0.0
      %4896 = vmatprep.subr.mxu0 0.0
      %4897 = vmatpush2.msra.mxu0 0.0
      %4898 = vmatprep.subr.mxu0 0.0
      %4899 = vmatpush2.msra.mxu0 0.0
      %4900 = vmatprep.subr.mxu0 0.0
      %4901 = vmatpush2.msra.mxu0 0.0
      %4902 = vmatprep.subr.mxu0 0.0
      %4903 = vmatpush2.msra.mxu0 0.0
      %4904 = vmatprep.subr.mxu0 0.0
      %4905 = vmatpush2.msra.mxu0 0.0
      %4906 = vmatprep.subr.mxu0 0.0
      %4907 = vmatpush2.msra.mxu0 0.0
      %4908 = vmatprep.subr.mxu0 0.0
      %4909 = vmatpush2.msra.mxu0 0.0
      %4910 = vmatprep.subr.mxu0 0.0
      %4911 = vmatpush2.msra.mxu0 0.0
      %4912 = vmatprep.subr.mxu0 0.0
      %4913 = vmatpush2.msra.mxu0 0.0
      %4914 = vmatprep.subr.mxu0 0.0
      %4915 = vmatpush2.msra.mxu0 0.0
      %4916 = vmatprep.subr.mxu0 0.0
      %4917 = vmatpush2.msra.mxu0 0.0
      %4918 = vmatprep.subr.mxu0 0.0
      %4919 = vmatpush2.msra.mxu0 0.0
      %4920 = vmatprep.subr.mxu0 0.0
      %4921 = vmatpush2.msra.mxu0 0.0
      %4922 = vmatprep.mubr.f32.mxu0 0.0
      %4923 = vmatmul.mubr.f32.gmra.mxu0 %v4856
      %v4924 = vpop.f32.mrf.mxu0
      %v4925 = vadd.f32 0.0, %v4924
      %v4926 = vpop.f32.mrf.mxu0
      %v4927 = vadd.f32 0.0, %v4926
      %4928 = vdwg.mxu0
      %4929 = vmatprep.subr.mxu0 0.0
      %4930 = vmatpush1.msra.mxu0 0.0
      %4931 = vmatprep.subr.mxu0 0.0
      %4932 = vmatpush1.msra.mxu0 0.0
      %4933 = vmatprep.subr.mxu0 0.0
      %4934 = vmatpush1.msra.mxu0 0.0
      %4935 = vmatprep.subr.mxu0 0.0
      %4936 = vmatpush1.msra.mxu0 0.0
      %4937 = vmatprep.subr.mxu0 0.0
      %4938 = vmatpush1.msra.mxu0 0.0
      %4939 = vmatprep.subr.mxu0 0.0
      %4940 = vmatpush1.msra.mxu0 0.0
      %4941 = vmatprep.subr.mxu0 0.0
      %4942 = vmatpush1.msra.mxu0 0.0
      %4943 = vmatprep.subr.mxu0 0.0
      %4944 = vmatpush1.msra.mxu0 0.0
      %4945 = vmatprep.subr.mxu0 0.0
      %4946 = vmatpush1.msra.mxu0 0.0
      %4947 = vmatprep.subr.mxu0 0.0
      %4948 = vmatpush1.msra.mxu0 0.0
      %4949 = vmatprep.subr.mxu0 0.0
      %4950 = vmatpush1.msra.mxu0 0.0
      %4951 = vmatprep.subr.mxu0 0.0
      %4952 = vmatpush1.msra.mxu0 0.0
      %4953 = vmatprep.subr.mxu0 0.0
      %4954 = vmatpush1.msra.mxu0 0.0
      %4955 = vmatprep.subr.mxu0 0.0
      %4956 = vmatpush1.msra.mxu0 0.0
      %4957 = vmatprep.subr.mxu0 0.0
      %4958 = vmatpush1.msra.mxu0 0.0
      %4959 = vmatprep.subr.mxu0 0.0
      %4960 = vmatpush1.msra.mxu0 %v4851
      %4961 = vmatprep.subr.mxu0 0.0
      %4962 = vmatpush2.msra.mxu0 0.0
      %4963 = vmatprep.subr.mxu0 0.0
      %4964 = vmatpush2.msra.mxu0 0.0
      %4965 = vmatprep.subr.mxu0 0.0
      %4966 = vmatpush2.msra.mxu0 0.0
      %4967 = vmatprep.subr.mxu0 0.0
      %4968 = vmatpush2.msra.mxu0 0.0
      %4969 = vmatprep.subr.mxu0 0.0
      %4970 = vmatpush2.msra.mxu0 0.0
      %4971 = vmatprep.subr.mxu0 0.0
      %4972 = vmatpush2.msra.mxu0 0.0
      %4973 = vmatprep.subr.mxu0 0.0
      %4974 = vmatpush2.msra.mxu0 0.0
      %4975 = vmatprep.subr.mxu0 0.0
      %4976 = vmatpush2.msra.mxu0 0.0
      %4977 = vmatprep.subr.mxu0 0.0
      %4978 = vmatpush2.msra.mxu0 0.0
      %4979 = vmatprep.subr.mxu0 0.0
      %4980 = vmatpush2.msra.mxu0 0.0
      %4981 = vmatprep.subr.mxu0 0.0
      %4982 = vmatpush2.msra.mxu0 0.0
      %4983 = vmatprep.subr.mxu0 0.0
      %4984 = vmatpush2.msra.mxu0 0.0
      %4985 = vmatprep.subr.mxu0 0.0
      %4986 = vmatpush2.msra.mxu0 0.0
      %4987 = vmatprep.subr.mxu0 0.0
      %4988 = vmatpush2.msra.mxu0 0.0
      %4989 = vmatprep.subr.mxu0 0.0
      %4990 = vmatpush2.msra.mxu0 0.0
      %4991 = vmatprep.subr.mxu0 0.0
      %4992 = vmatpush2.msra.mxu0 0.0
      %4993 = vmatprep.mubr.f32.mxu0 0.0
      %4994 = vmatmul.mubr.f32.gmra.mxu0 %v4856
      %v4995 = vpop.f32.mrf.mxu0
      %v4996 = vadd.f32 0.0, %v4995
      %v4997 = vpop.f32.mrf.mxu0
      %4998 = vdwg.mxu0
      %v4999 = vadd.f32 %v4835, %v4925
      %v5000 = vadd.f32 %v4836, %v4927
      %v5001 = vadd.f32 %v4837, %v4996
      %s5002 = scalar_lea.vmem %s6, 128
      %v5003 = vld [vmem:[%s5002] sm:$0xff]
      %5004 = vrot.lane.b32.xlu0 %v4504, 105
      %v5005 = vpop.permute.xlu0 %5004
      %5006 = vrot.lane.b32.xlu0 %v4505, 105
      %v5007 = vpop.permute.xlu0 %5006
      %5008 = vrot.lane.b32.xlu0 %v4506, 105
      %v5009 = vpop.permute.xlu0 %5008
      %5010 = vrot.lane.b32.xlu0 %v4507, 105
      %v5011 = vpop.permute.xlu0 %5010
      %v5012 = vsel %vm1893, %v5005, %v5007
      %v5013 = vsel %vm1893, %v5007, %v5009
      %v5014 = vsel %vm1893, %v5009, %v5011
      %v5019 = vsel %vm931, %v5003, 0
      %5021 = vmatprep.subr.mxu0 0.0
      %5022 = vmatpush1.msra.mxu0 0.0
      %5023 = vmatprep.subr.mxu0 0.0
      %5024 = vmatpush1.msra.mxu0 0.0
      %5025 = vmatprep.subr.mxu0 0.0
      %5026 = vmatpush1.msra.mxu0 0.0
      %5027 = vmatprep.subr.mxu0 0.0
      %5028 = vmatpush1.msra.mxu0 0.0
      %5029 = vmatprep.subr.mxu0 0.0
      %5030 = vmatpush1.msra.mxu0 0.0
      %5031 = vmatprep.subr.mxu0 0.0
      %5032 = vmatpush1.msra.mxu0 0.0
      %5033 = vmatprep.subr.mxu0 0.0
      %5034 = vmatpush1.msra.mxu0 0.0
      %5035 = vmatprep.subr.mxu0 0.0
      %5036 = vmatpush1.msra.mxu0 0.0
      %5037 = vmatprep.subr.mxu0 0.0
      %5038 = vmatpush1.msra.mxu0 0.0
      %5039 = vmatprep.subr.mxu0 0.0
      %5040 = vmatpush1.msra.mxu0 0.0
      %5041 = vmatprep.subr.mxu0 0.0
      %5042 = vmatpush1.msra.mxu0 0.0
      %5043 = vmatprep.subr.mxu0 0.0
      %5044 = vmatpush1.msra.mxu0 0.0
      %5045 = vmatprep.subr.mxu0 0.0
      %5046 = vmatpush1.msra.mxu0 0.0
      %5047 = vmatprep.subr.mxu0 0.0
      %5048 = vmatpush1.msra.mxu0 0.0
      %5049 = vmatprep.subr.mxu0 0.0
      %5050 = vmatpush1.msra.mxu0 0.0
      %5051 = vmatprep.subr.mxu0 %v5013
      %5052 = vmatpush1.msra.mxu0 %v5012
      %5053 = vmatprep.subr.mxu0 0.0
      %5054 = vmatpush2.msra.mxu0 0.0
      %5055 = vmatprep.subr.mxu0 0.0
      %5056 = vmatpush2.msra.mxu0 0.0
      %5057 = vmatprep.subr.mxu0 0.0
      %5058 = vmatpush2.msra.mxu0 0.0
      %5059 = vmatprep.subr.mxu0 0.0
      %5060 = vmatpush2.msra.mxu0 0.0
      %5061 = vmatprep.subr.mxu0 0.0
      %5062 = vmatpush2.msra.mxu0 0.0
      %5063 = vmatprep.subr.mxu0 0.0
      %5064 = vmatpush2.msra.mxu0 0.0
      %5065 = vmatprep.subr.mxu0 0.0
      %5066 = vmatpush2.msra.mxu0 0.0
      %5067 = vmatprep.subr.mxu0 0.0
      %5068 = vmatpush2.msra.mxu0 0.0
      %5069 = vmatprep.subr.mxu0 0.0
      %5070 = vmatpush2.msra.mxu0 0.0
      %5071 = vmatprep.subr.mxu0 0.0
      %5072 = vmatpush2.msra.mxu0 0.0
      %5073 = vmatprep.subr.mxu0 0.0
      %5074 = vmatpush2.msra.mxu0 0.0
      %5075 = vmatprep.subr.mxu0 0.0
      %5076 = vmatpush2.msra.mxu0 0.0
      %5077 = vmatprep.subr.mxu0 0.0
      %5078 = vmatpush2.msra.mxu0 0.0
      %5079 = vmatprep.subr.mxu0 0.0
      %5080 = vmatpush2.msra.mxu0 0.0
      %5081 = vmatprep.subr.mxu0 0.0
      %5082 = vmatpush2.msra.mxu0 0.0
      %5083 = vmatprep.subr.mxu0 0.0
      %5084 = vmatpush2.msra.mxu0 0.0
      %5085 = vmatprep.mubr.f32.mxu0 0.0
      %5086 = vmatmul.mubr.f32.gmra.mxu0 %v5019
      %v5087 = vpop.f32.mrf.mxu0
      %v5088 = vadd.f32 0.0, %v5087
      %v5089 = vpop.f32.mrf.mxu0
      %v5090 = vadd.f32 0.0, %v5089
      %5091 = vdwg.mxu0
      %5092 = vmatprep.subr.mxu0 0.0
      %5093 = vmatpush1.msra.mxu0 0.0
      %5094 = vmatprep.subr.mxu0 0.0
      %5095 = vmatpush1.msra.mxu0 0.0
      %5096 = vmatprep.subr.mxu0 0.0
      %5097 = vmatpush1.msra.mxu0 0.0
      %5098 = vmatprep.subr.mxu0 0.0
      %5099 = vmatpush1.msra.mxu0 0.0
      %5100 = vmatprep.subr.mxu0 0.0
      %5101 = vmatpush1.msra.mxu0 0.0
      %5102 = vmatprep.subr.mxu0 0.0
      %5103 = vmatpush1.msra.mxu0 0.0
      %5104 = vmatprep.subr.mxu0 0.0
      %5105 = vmatpush1.msra.mxu0 0.0
      %5106 = vmatprep.subr.mxu0 0.0
      %5107 = vmatpush1.msra.mxu0 0.0
      %5108 = vmatprep.subr.mxu0 0.0
      %5109 = vmatpush1.msra.mxu0 0.0
      %5110 = vmatprep.subr.mxu0 0.0
      %5111 = vmatpush1.msra.mxu0 0.0
      %5112 = vmatprep.subr.mxu0 0.0
      %5113 = vmatpush1.msra.mxu0 0.0
      %5114 = vmatprep.subr.mxu0 0.0
      %5115 = vmatpush1.msra.mxu0 0.0
      %5116 = vmatprep.subr.mxu0 0.0
      %5117 = vmatpush1.msra.mxu0 0.0
      %5118 = vmatprep.subr.mxu0 0.0
      %5119 = vmatpush1.msra.mxu0 0.0
      %5120 = vmatprep.subr.mxu0 0.0
      %5121 = vmatpush1.msra.mxu0 0.0
      %5122 = vmatprep.subr.mxu0 0.0
      %5123 = vmatpush1.msra.mxu0 %v5014
      %5124 = vmatprep.subr.mxu0 0.0
      %5125 = vmatpush2.msra.mxu0 0.0
      %5126 = vmatprep.subr.mxu0 0.0
      %5127 = vmatpush2.msra.mxu0 0.0
      %5128 = vmatprep.subr.mxu0 0.0
      %5129 = vmatpush2.msra.mxu0 0.0
      %5130 = vmatprep.subr.mxu0 0.0
      %5131 = vmatpush2.msra.mxu0 0.0
      %5132 = vmatprep.subr.mxu0 0.0
      %5133 = vmatpush2.msra.mxu0 0.0
      %5134 = vmatprep.subr.mxu0 0.0
      %5135 = vmatpush2.msra.mxu0 0.0
      %5136 = vmatprep.subr.mxu0 0.0
      %5137 = vmatpush2.msra.mxu0 0.0
      %5138 = vmatprep.subr.mxu0 0.0
      %5139 = vmatpush2.msra.mxu0 0.0
      %5140 = vmatprep.subr.mxu0 0.0
      %5141 = vmatpush2.msra.mxu0 0.0
      %5142 = vmatprep.subr.mxu0 0.0
      %5143 = vmatpush2.msra.mxu0 0.0
      %5144 = vmatprep.subr.mxu0 0.0
      %5145 = vmatpush2.msra.mxu0 0.0
      %5146 = vmatprep.subr.mxu0 0.0
      %5147 = vmatpush2.msra.mxu0 0.0
      %5148 = vmatprep.subr.mxu0 0.0
      %5149 = vmatpush2.msra.mxu0 0.0
      %5150 = vmatprep.subr.mxu0 0.0
      %5151 = vmatpush2.msra.mxu0 0.0
      %5152 = vmatprep.subr.mxu0 0.0
      %5153 = vmatpush2.msra.mxu0 0.0
      %5154 = vmatprep.subr.mxu0 0.0
      %5155 = vmatpush2.msra.mxu0 0.0
      %5156 = vmatprep.mubr.f32.mxu0 0.0
      %5157 = vmatmul.mubr.f32.gmra.mxu0 %v5019
      %v5158 = vpop.f32.mrf.mxu0
      %v5159 = vadd.f32 0.0, %v5158
      %v5160 = vpop.f32.mrf.mxu0
      %5161 = vdwg.mxu0
      %v5162 = vadd.f32 %v4999, %v5088
      %v5163 = vadd.f32 %v5000, %v5090
      %v5164 = vadd.f32 %v5001, %v5159
      %s5165 = scalar_lea.vmem %s6, 136
      %v5166 = vld [vmem:[%s5165] sm:$0xff]
      %5167 = vrot.lane.b32.xlu0 %v4504, 104
      %v5168 = vpop.permute.xlu0 %5167
      %5169 = vrot.lane.b32.xlu0 %v4505, 104
      %v5170 = vpop.permute.xlu0 %5169
      %5171 = vrot.lane.b32.xlu0 %v4506, 104
      %v5172 = vpop.permute.xlu0 %5171
      %5173 = vrot.lane.b32.xlu0 %v4507, 104
      %v5174 = vpop.permute.xlu0 %5173
      %v5175 = vsel %vm652, %v5168, %v5170
      %v5176 = vsel %vm652, %v5170, %v5172
      %v5177 = vsel %vm652, %v5172, %v5174
      %v5182 = vsel %vm931, %v5166, 0
      %5184 = vmatprep.subr.mxu0 0.0
      %5185 = vmatpush1.msra.mxu0 0.0
      %5186 = vmatprep.subr.mxu0 0.0
      %5187 = vmatpush1.msra.mxu0 0.0
      %5188 = vmatprep.subr.mxu0 0.0
      %5189 = vmatpush1.msra.mxu0 0.0
      %5190 = vmatprep.subr.mxu0 0.0
      %5191 = vmatpush1.msra.mxu0 0.0
      %5192 = vmatprep.subr.mxu0 0.0
      %5193 = vmatpush1.msra.mxu0 0.0
      %5194 = vmatprep.subr.mxu0 0.0
      %5195 = vmatpush1.msra.mxu0 0.0
      %5196 = vmatprep.subr.mxu0 0.0
      %5197 = vmatpush1.msra.mxu0 0.0
      %5198 = vmatprep.subr.mxu0 0.0
      %5199 = vmatpush1.msra.mxu0 0.0
      %5200 = vmatprep.subr.mxu0 0.0
      %5201 = vmatpush1.msra.mxu0 0.0
      %5202 = vmatprep.subr.mxu0 0.0
      %5203 = vmatpush1.msra.mxu0 0.0
      %5204 = vmatprep.subr.mxu0 0.0
      %5205 = vmatpush1.msra.mxu0 0.0
      %5206 = vmatprep.subr.mxu0 0.0
      %5207 = vmatpush1.msra.mxu0 0.0
      %5208 = vmatprep.subr.mxu0 0.0
      %5209 = vmatpush1.msra.mxu0 0.0
      %5210 = vmatprep.subr.mxu0 0.0
      %5211 = vmatpush1.msra.mxu0 0.0
      %5212 = vmatprep.subr.mxu0 0.0
      %5213 = vmatpush1.msra.mxu0 0.0
      %5214 = vmatprep.subr.mxu0 %v5176
      %5215 = vmatpush1.msra.mxu0 %v5175
      %5216 = vmatprep.subr.mxu0 0.0
      %5217 = vmatpush2.msra.mxu0 0.0
      %5218 = vmatprep.subr.mxu0 0.0
      %5219 = vmatpush2.msra.mxu0 0.0
      %5220 = vmatprep.subr.mxu0 0.0
      %5221 = vmatpush2.msra.mxu0 0.0
      %5222 = vmatprep.subr.mxu0 0.0
      %5223 = vmatpush2.msra.mxu0 0.0
      %5224 = vmatprep.subr.mxu0 0.0
      %5225 = vmatpush2.msra.mxu0 0.0
      %5226 = vmatprep.subr.mxu0 0.0
      %5227 = vmatpush2.msra.mxu0 0.0
      %5228 = vmatprep.subr.mxu0 0.0
      %5229 = vmatpush2.msra.mxu0 0.0
      %5230 = vmatprep.subr.mxu0 0.0
      %5231 = vmatpush2.msra.mxu0 0.0
      %5232 = vmatprep.subr.mxu0 0.0
      %5233 = vmatpush2.msra.mxu0 0.0
      %5234 = vmatprep.subr.mxu0 0.0
      %5235 = vmatpush2.msra.mxu0 0.0
      %5236 = vmatprep.subr.mxu0 0.0
      %5237 = vmatpush2.msra.mxu0 0.0
      %5238 = vmatprep.subr.mxu0 0.0
      %5239 = vmatpush2.msra.mxu0 0.0
      %5240 = vmatprep.subr.mxu0 0.0
      %5241 = vmatpush2.msra.mxu0 0.0
      %5242 = vmatprep.subr.mxu0 0.0
      %5243 = vmatpush2.msra.mxu0 0.0
      %5244 = vmatprep.subr.mxu0 0.0
      %5245 = vmatpush2.msra.mxu0 0.0
      %5246 = vmatprep.subr.mxu0 0.0
      %5247 = vmatpush2.msra.mxu0 0.0
      %5248 = vmatprep.mubr.f32.mxu0 0.0
      %5249 = vmatmul.mubr.f32.gmra.mxu0 %v5182
      %v5250 = vpop.f32.mrf.mxu0
      %v5251 = vadd.f32 0.0, %v5250
      %v5252 = vpop.f32.mrf.mxu0
      %v5253 = vadd.f32 0.0, %v5252
      %5254 = vdwg.mxu0
      %5255 = vmatprep.subr.mxu0 0.0
      %5256 = vmatpush1.msra.mxu0 0.0
      %5257 = vmatprep.subr.mxu0 0.0
      %5258 = vmatpush1.msra.mxu0 0.0
      %5259 = vmatprep.subr.mxu0 0.0
      %5260 = vmatpush1.msra.mxu0 0.0
      %5261 = vmatprep.subr.mxu0 0.0
      %5262 = vmatpush1.msra.mxu0 0.0
      %5263 = vmatprep.subr.mxu0 0.0
      %5264 = vmatpush1.msra.mxu0 0.0
      %5265 = vmatprep.subr.mxu0 0.0
      %5266 = vmatpush1.msra.mxu0 0.0
      %5267 = vmatprep.subr.mxu0 0.0
      %5268 = vmatpush1.msra.mxu0 0.0
      %5269 = vmatprep.subr.mxu0 0.0
      %5270 = vmatpush1.msra.mxu0 0.0
      %5271 = vmatprep.subr.mxu0 0.0
      %5272 = vmatpush1.msra.mxu0 0.0
      %5273 = vmatprep.subr.mxu0 0.0
      %5274 = vmatpush1.msra.mxu0 0.0
      %5275 = vmatprep.subr.mxu0 0.0
      %5276 = vmatpush1.msra.mxu0 0.0
      %5277 = vmatprep.subr.mxu0 0.0
      %5278 = vmatpush1.msra.mxu0 0.0
      %5279 = vmatprep.subr.mxu0 0.0
      %5280 = vmatpush1.msra.mxu0 0.0
      %5281 = vmatprep.subr.mxu0 0.0
      %5282 = vmatpush1.msra.mxu0 0.0
      %5283 = vmatprep.subr.mxu0 0.0
      %5284 = vmatpush1.msra.mxu0 0.0
      %5285 = vmatprep.subr.mxu0 0.0
      %5286 = vmatpush1.msra.mxu0 %v5177
      %5287 = vmatprep.subr.mxu0 0.0
      %5288 = vmatpush2.msra.mxu0 0.0
      %5289 = vmatprep.subr.mxu0 0.0
      %5290 = vmatpush2.msra.mxu0 0.0
      %5291 = vmatprep.subr.mxu0 0.0
      %5292 = vmatpush2.msra.mxu0 0.0
      %5293 = vmatprep.subr.mxu0 0.0
      %5294 = vmatpush2.msra.mxu0 0.0
      %5295 = vmatprep.subr.mxu0 0.0
      %5296 = vmatpush2.msra.mxu0 0.0
      %5297 = vmatprep.subr.mxu0 0.0
      %5298 = vmatpush2.msra.mxu0 0.0
      %5299 = vmatprep.subr.mxu0 0.0
      %5300 = vmatpush2.msra.mxu0 0.0
      %5301 = vmatprep.subr.mxu0 0.0
      %5302 = vmatpush2.msra.mxu0 0.0
      %5303 = vmatprep.subr.mxu0 0.0
      %5304 = vmatpush2.msra.mxu0 0.0
      %5305 = vmatprep.subr.mxu0 0.0
      %5306 = vmatpush2.msra.mxu0 0.0
      %5307 = vmatprep.subr.mxu0 0.0
      %5308 = vmatpush2.msra.mxu0 0.0
      %5309 = vmatprep.subr.mxu0 0.0
      %5310 = vmatpush2.msra.mxu0 0.0
      %5311 = vmatprep.subr.mxu0 0.0
      %5312 = vmatpush2.msra.mxu0 0.0
      %5313 = vmatprep.subr.mxu0 0.0
      %5314 = vmatpush2.msra.mxu0 0.0
      %5315 = vmatprep.subr.mxu0 0.0
      %5316 = vmatpush2.msra.mxu0 0.0
      %5317 = vmatprep.subr.mxu0 0.0
      %5318 = vmatpush2.msra.mxu0 0.0
      %5319 = vmatprep.mubr.f32.mxu0 0.0
      %5320 = vmatmul.mubr.f32.gmra.mxu0 %v5182
      %v5321 = vpop.f32.mrf.mxu0
      %v5322 = vadd.f32 0.0, %v5321
      %v5323 = vpop.f32.mrf.mxu0
      %5324 = vdwg.mxu0
      %v5325 = vadd.f32 %v5162, %v5251
      %v5326 = vadd.f32 %v5163, %v5253
      %v5327 = vadd.f32 %v5164, %v5322
      %s5328 = scalar_lea.vmem %s6, 144
      %v5329 = vld [vmem:[%s5328] sm:$0xff]
      %5330 = vrot.lane.b32.xlu0 %v4504, 103
      %v5331 = vpop.permute.xlu0 %5330
      %5332 = vrot.lane.b32.xlu0 %v4505, 103
      %v5333 = vpop.permute.xlu0 %5332
      %5334 = vrot.lane.b32.xlu0 %v4506, 103
      %v5335 = vpop.permute.xlu0 %5334
      %5336 = vrot.lane.b32.xlu0 %v4507, 103
      %v5337 = vpop.permute.xlu0 %5336
      %v5338 = vsel %vm666, %v5331, %v5333
      %v5339 = vsel %vm666, %v5333, %v5335
      %v5340 = vsel %vm666, %v5335, %v5337
      %v5345 = vsel %vm931, %v5329, 0
      %5347 = vmatprep.subr.mxu0 0.0
      %5348 = vmatpush1.msra.mxu0 0.0
      %5349 = vmatprep.subr.mxu0 0.0
      %5350 = vmatpush1.msra.mxu0 0.0
      %5351 = vmatprep.subr.mxu0 0.0
      %5352 = vmatpush1.msra.mxu0 0.0
      %5353 = vmatprep.subr.mxu0 0.0
      %5354 = vmatpush1.msra.mxu0 0.0
      %5355 = vmatprep.subr.mxu0 0.0
      %5356 = vmatpush1.msra.mxu0 0.0
      %5357 = vmatprep.subr.mxu0 0.0
      %5358 = vmatpush1.msra.mxu0 0.0
      %5359 = vmatprep.subr.mxu0 0.0
      %5360 = vmatpush1.msra.mxu0 0.0
      %5361 = vmatprep.subr.mxu0 0.0
      %5362 = vmatpush1.msra.mxu0 0.0
      %5363 = vmatprep.subr.mxu0 0.0
      %5364 = vmatpush1.msra.mxu0 0.0
      %5365 = vmatprep.subr.mxu0 0.0
      %5366 = vmatpush1.msra.mxu0 0.0
      %5367 = vmatprep.subr.mxu0 0.0
      %5368 = vmatpush1.msra.mxu0 0.0
      %5369 = vmatprep.subr.mxu0 0.0
      %5370 = vmatpush1.msra.mxu0 0.0
      %5371 = vmatprep.subr.mxu0 0.0
      %5372 = vmatpush1.msra.mxu0 0.0
      %5373 = vmatprep.subr.mxu0 0.0
      %5374 = vmatpush1.msra.mxu0 0.0
      %5375 = vmatprep.subr.mxu0 0.0
      %5376 = vmatpush1.msra.mxu0 0.0
      %5377 = vmatprep.subr.mxu0 %v5339
      %5378 = vmatpush1.msra.mxu0 %v5338
      %5379 = vmatprep.subr.mxu0 0.0
      %5380 = vmatpush2.msra.mxu0 0.0
      %5381 = vmatprep.subr.mxu0 0.0
      %5382 = vmatpush2.msra.mxu0 0.0
      %5383 = vmatprep.subr.mxu0 0.0
      %5384 = vmatpush2.msra.mxu0 0.0
      %5385 = vmatprep.subr.mxu0 0.0
      %5386 = vmatpush2.msra.mxu0 0.0
      %5387 = vmatprep.subr.mxu0 0.0
      %5388 = vmatpush2.msra.mxu0 0.0
      %5389 = vmatprep.subr.mxu0 0.0
      %5390 = vmatpush2.msra.mxu0 0.0
      %5391 = vmatprep.subr.mxu0 0.0
      %5392 = vmatpush2.msra.mxu0 0.0
      %5393 = vmatprep.subr.mxu0 0.0
      %5394 = vmatpush2.msra.mxu0 0.0
      %5395 = vmatprep.subr.mxu0 0.0
      %5396 = vmatpush2.msra.mxu0 0.0
      %5397 = vmatprep.subr.mxu0 0.0
      %5398 = vmatpush2.msra.mxu0 0.0
      %5399 = vmatprep.subr.mxu0 0.0
      %5400 = vmatpush2.msra.mxu0 0.0
      %5401 = vmatprep.subr.mxu0 0.0
      %5402 = vmatpush2.msra.mxu0 0.0
      %5403 = vmatprep.subr.mxu0 0.0
      %5404 = vmatpush2.msra.mxu0 0.0
      %5405 = vmatprep.subr.mxu0 0.0
      %5406 = vmatpush2.msra.mxu0 0.0
      %5407 = vmatprep.subr.mxu0 0.0
      %5408 = vmatpush2.msra.mxu0 0.0
      %5409 = vmatprep.subr.mxu0 0.0
      %5410 = vmatpush2.msra.mxu0 0.0
      %5411 = vmatprep.mubr.f32.mxu0 0.0
      %5412 = vmatmul.mubr.f32.gmra.mxu0 %v5345
      %v5413 = vpop.f32.mrf.mxu0
      %v5414 = vadd.f32 0.0, %v5413
      %v5415 = vpop.f32.mrf.mxu0
      %v5416 = vadd.f32 0.0, %v5415
      %5417 = vdwg.mxu0
      %5418 = vmatprep.subr.mxu0 0.0
      %5419 = vmatpush1.msra.mxu0 0.0
      %5420 = vmatprep.subr.mxu0 0.0
      %5421 = vmatpush1.msra.mxu0 0.0
      %5422 = vmatprep.subr.mxu0 0.0
      %5423 = vmatpush1.msra.mxu0 0.0
      %5424 = vmatprep.subr.mxu0 0.0
      %5425 = vmatpush1.msra.mxu0 0.0
      %5426 = vmatprep.subr.mxu0 0.0
      %5427 = vmatpush1.msra.mxu0 0.0
      %5428 = vmatprep.subr.mxu0 0.0
      %5429 = vmatpush1.msra.mxu0 0.0
      %5430 = vmatprep.subr.mxu0 0.0
      %5431 = vmatpush1.msra.mxu0 0.0
      %5432 = vmatprep.subr.mxu0 0.0
      %5433 = vmatpush1.msra.mxu0 0.0
      %5434 = vmatprep.subr.mxu0 0.0
      %5435 = vmatpush1.msra.mxu0 0.0
      %5436 = vmatprep.subr.mxu0 0.0
      %5437 = vmatpush1.msra.mxu0 0.0
      %5438 = vmatprep.subr.mxu0 0.0
      %5439 = vmatpush1.msra.mxu0 0.0
      %5440 = vmatprep.subr.mxu0 0.0
      %5441 = vmatpush1.msra.mxu0 0.0
      %5442 = vmatprep.subr.mxu0 0.0
      %5443 = vmatpush1.msra.mxu0 0.0
      %5444 = vmatprep.subr.mxu0 0.0
      %5445 = vmatpush1.msra.mxu0 0.0
      %5446 = vmatprep.subr.mxu0 0.0
      %5447 = vmatpush1.msra.mxu0 0.0
      %5448 = vmatprep.subr.mxu0 0.0
      %5449 = vmatpush1.msra.mxu0 %v5340
      %5450 = vmatprep.subr.mxu0 0.0
      %5451 = vmatpush2.msra.mxu0 0.0
      %5452 = vmatprep.subr.mxu0 0.0
      %5453 = vmatpush2.msra.mxu0 0.0
      %5454 = vmatprep.subr.mxu0 0.0
      %5455 = vmatpush2.msra.mxu0 0.0
      %5456 = vmatprep.subr.mxu0 0.0
      %5457 = vmatpush2.msra.mxu0 0.0
      %5458 = vmatprep.subr.mxu0 0.0
      %5459 = vmatpush2.msra.mxu0 0.0
      %5460 = vmatprep.subr.mxu0 0.0
      %5461 = vmatpush2.msra.mxu0 0.0
      %5462 = vmatprep.subr.mxu0 0.0
      %5463 = vmatpush2.msra.mxu0 0.0
      %5464 = vmatprep.subr.mxu0 0.0
      %5465 = vmatpush2.msra.mxu0 0.0
      %5466 = vmatprep.subr.mxu0 0.0
      %5467 = vmatpush2.msra.mxu0 0.0
      %5468 = vmatprep.subr.mxu0 0.0
      %5469 = vmatpush2.msra.mxu0 0.0
      %5470 = vmatprep.subr.mxu0 0.0
      %5471 = vmatpush2.msra.mxu0 0.0
      %5472 = vmatprep.subr.mxu0 0.0
      %5473 = vmatpush2.msra.mxu0 0.0
      %5474 = vmatprep.subr.mxu0 0.0
      %5475 = vmatpush2.msra.mxu0 0.0
      %5476 = vmatprep.subr.mxu0 0.0
      %5477 = vmatpush2.msra.mxu0 0.0
      %5478 = vmatprep.subr.mxu0 0.0
      %5479 = vmatpush2.msra.mxu0 0.0
      %5480 = vmatprep.subr.mxu0 0.0
      %5481 = vmatpush2.msra.mxu0 0.0
      %5482 = vmatprep.mubr.f32.mxu0 0.0
      %5483 = vmatmul.mubr.f32.gmra.mxu0 %v5345
      %v5484 = vpop.f32.mrf.mxu0
      %v5485 = vadd.f32 0.0, %v5484
      %v5486 = vpop.f32.mrf.mxu0
      %5487 = vdwg.mxu0
      %v5488 = vadd.f32 %v5325, %v5414
      %v5489 = vadd.f32 %v5326, %v5416
      %v5490 = vadd.f32 %v5327, %v5485
      %s5491 = scalar_lea.vmem %s6, 152
      %v5492 = vld [vmem:[%s5491] sm:$0xff]
      %5493 = vrot.lane.b32.xlu0 %v4504, 102
      %v5494 = vpop.permute.xlu0 %5493
      %5495 = vrot.lane.b32.xlu0 %v4505, 102
      %v5496 = vpop.permute.xlu0 %5495
      %5497 = vrot.lane.b32.xlu0 %v4506, 102
      %v5498 = vpop.permute.xlu0 %5497
      %5499 = vrot.lane.b32.xlu0 %v4507, 102
      %v5500 = vpop.permute.xlu0 %5499
      %v5501 = vsel %vm399, %v5494, %v5496
      %v5502 = vsel %vm399, %v5496, %v5498
      %v5503 = vsel %vm399, %v5498, %v5500
      %v5508 = vsel %vm931, %v5492, 0
      %5510 = vmatprep.subr.mxu0 0.0
      %5511 = vmatpush1.msra.mxu0 0.0
      %5512 = vmatprep.subr.mxu0 0.0
      %5513 = vmatpush1.msra.mxu0 0.0
      %5514 = vmatprep.subr.mxu0 0.0
      %5515 = vmatpush1.msra.mxu0 0.0
      %5516 = vmatprep.subr.mxu0 0.0
      %5517 = vmatpush1.msra.mxu0 0.0
      %5518 = vmatprep.subr.mxu0 0.0
      %5519 = vmatpush1.msra.mxu0 0.0
      %5520 = vmatprep.subr.mxu0 0.0
      %5521 = vmatpush1.msra.mxu0 0.0
      %5522 = vmatprep.subr.mxu0 0.0
      %5523 = vmatpush1.msra.mxu0 0.0
      %5524 = vmatprep.subr.mxu0 0.0
      %5525 = vmatpush1.msra.mxu0 0.0
      %5526 = vmatprep.subr.mxu0 0.0
      %5527 = vmatpush1.msra.mxu0 0.0
      %5528 = vmatprep.subr.mxu0 0.0
      %5529 = vmatpush1.msra.mxu0 0.0
      %5530 = vmatprep.subr.mxu0 0.0
      %5531 = vmatpush1.msra.mxu0 0.0
      %5532 = vmatprep.subr.mxu0 0.0
      %5533 = vmatpush1.msra.mxu0 0.0
      %5534 = vmatprep.subr.mxu0 0.0
      %5535 = vmatpush1.msra.mxu0 0.0
      %5536 = vmatprep.subr.mxu0 0.0
      %5537 = vmatpush1.msra.mxu0 0.0
      %5538 = vmatprep.subr.mxu0 0.0
      %5539 = vmatpush1.msra.mxu0 0.0
      %5540 = vmatprep.subr.mxu0 %v5502
      %5541 = vmatpush1.msra.mxu0 %v5501
      %5542 = vmatprep.subr.mxu0 0.0
      %5543 = vmatpush2.msra.mxu0 0.0
      %5544 = vmatprep.subr.mxu0 0.0
      %5545 = vmatpush2.msra.mxu0 0.0
      %5546 = vmatprep.subr.mxu0 0.0
      %5547 = vmatpush2.msra.mxu0 0.0
      %5548 = vmatprep.subr.mxu0 0.0
      %5549 = vmatpush2.msra.mxu0 0.0
      %5550 = vmatprep.subr.mxu0 0.0
      %5551 = vmatpush2.msra.mxu0 0.0
      %5552 = vmatprep.subr.mxu0 0.0
      %5553 = vmatpush2.msra.mxu0 0.0
      %5554 = vmatprep.subr.mxu0 0.0
      %5555 = vmatpush2.msra.mxu0 0.0
      %5556 = vmatprep.subr.mxu0 0.0
      %5557 = vmatpush2.msra.mxu0 0.0
      %5558 = vmatprep.subr.mxu0 0.0
      %5559 = vmatpush2.msra.mxu0 0.0
      %5560 = vmatprep.subr.mxu0 0.0
      %5561 = vmatpush2.msra.mxu0 0.0
      %5562 = vmatprep.subr.mxu0 0.0
      %5563 = vmatpush2.msra.mxu0 0.0
      %5564 = vmatprep.subr.mxu0 0.0
      %5565 = vmatpush2.msra.mxu0 0.0
      %5566 = vmatprep.subr.mxu0 0.0
      %5567 = vmatpush2.msra.mxu0 0.0
      %5568 = vmatprep.subr.mxu0 0.0
      %5569 = vmatpush2.msra.mxu0 0.0
      %5570 = vmatprep.subr.mxu0 0.0
      %5571 = vmatpush2.msra.mxu0 0.0
      %5572 = vmatprep.subr.mxu0 0.0
      %5573 = vmatpush2.msra.mxu0 0.0
      %5574 = vmatprep.mubr.f32.mxu0 0.0
      %5575 = vmatmul.mubr.f32.gmra.mxu0 %v5508
      %v5576 = vpop.f32.mrf.mxu0
      %v5577 = vadd.f32 0.0, %v5576
      %v5578 = vpop.f32.mrf.mxu0
      %v5579 = vadd.f32 0.0, %v5578
      %5580 = vdwg.mxu0
      %5581 = vmatprep.subr.mxu0 0.0
      %5582 = vmatpush1.msra.mxu0 0.0
      %5583 = vmatprep.subr.mxu0 0.0
      %5584 = vmatpush1.msra.mxu0 0.0
      %5585 = vmatprep.subr.mxu0 0.0
      %5586 = vmatpush1.msra.mxu0 0.0
      %5587 = vmatprep.subr.mxu0 0.0
      %5588 = vmatpush1.msra.mxu0 0.0
      %5589 = vmatprep.subr.mxu0 0.0
      %5590 = vmatpush1.msra.mxu0 0.0
      %5591 = vmatprep.subr.mxu0 0.0
      %5592 = vmatpush1.msra.mxu0 0.0
      %5593 = vmatprep.subr.mxu0 0.0
      %5594 = vmatpush1.msra.mxu0 0.0
      %5595 = vmatprep.subr.mxu0 0.0
      %5596 = vmatpush1.msra.mxu0 0.0
      %5597 = vmatprep.subr.mxu0 0.0
      %5598 = vmatpush1.msra.mxu0 0.0
      %5599 = vmatprep.subr.mxu0 0.0
      %5600 = vmatpush1.msra.mxu0 0.0
      %5601 = vmatprep.subr.mxu0 0.0
      %5602 = vmatpush1.msra.mxu0 0.0
      %5603 = vmatprep.subr.mxu0 0.0
      %5604 = vmatpush1.msra.mxu0 0.0
      %5605 = vmatprep.subr.mxu0 0.0
      %5606 = vmatpush1.msra.mxu0 0.0
      %5607 = vmatprep.subr.mxu0 0.0
      %5608 = vmatpush1.msra.mxu0 0.0
      %5609 = vmatprep.subr.mxu0 0.0
      %5610 = vmatpush1.msra.mxu0 0.0
      %5611 = vmatprep.subr.mxu0 0.0
      %5612 = vmatpush1.msra.mxu0 %v5503
      %5613 = vmatprep.subr.mxu0 0.0
      %5614 = vmatpush2.msra.mxu0 0.0
      %5615 = vmatprep.subr.mxu0 0.0
      %5616 = vmatpush2.msra.mxu0 0.0
      %5617 = vmatprep.subr.mxu0 0.0
      %5618 = vmatpush2.msra.mxu0 0.0
      %5619 = vmatprep.subr.mxu0 0.0
      %5620 = vmatpush2.msra.mxu0 0.0
      %5621 = vmatprep.subr.mxu0 0.0
      %5622 = vmatpush2.msra.mxu0 0.0
      %5623 = vmatprep.subr.mxu0 0.0
      %5624 = vmatpush2.msra.mxu0 0.0
      %5625 = vmatprep.subr.mxu0 0.0
      %5626 = vmatpush2.msra.mxu0 0.0
      %5627 = vmatprep.subr.mxu0 0.0
      %5628 = vmatpush2.msra.mxu0 0.0
      %5629 = vmatprep.subr.mxu0 0.0
      %5630 = vmatpush2.msra.mxu0 0.0
      %5631 = vmatprep.subr.mxu0 0.0
      %5632 = vmatpush2.msra.mxu0 0.0
      %5633 = vmatprep.subr.mxu0 0.0
      %5634 = vmatpush2.msra.mxu0 0.0
      %5635 = vmatprep.subr.mxu0 0.0
      %5636 = vmatpush2.msra.mxu0 0.0
      %5637 = vmatprep.subr.mxu0 0.0
      %5638 = vmatpush2.msra.mxu0 0.0
      %5639 = vmatprep.subr.mxu0 0.0
      %5640 = vmatpush2.msra.mxu0 0.0
      %5641 = vmatprep.subr.mxu0 0.0
      %5642 = vmatpush2.msra.mxu0 0.0
      %5643 = vmatprep.subr.mxu0 0.0
      %5644 = vmatpush2.msra.mxu0 0.0
      %5645 = vmatprep.mubr.f32.mxu0 0.0
      %5646 = vmatmul.mubr.f32.gmra.mxu0 %v5508
      %v5647 = vpop.f32.mrf.mxu0
      %v5648 = vadd.f32 0.0, %v5647
      %v5649 = vpop.f32.mrf.mxu0
      %5650 = vdwg.mxu0
      %v5651 = vadd.f32 %v5488, %v5577
      %v5652 = vadd.f32 %v5489, %v5579
      %v5653 = vadd.f32 %v5490, %v5648
      %s5654 = scalar_lea.vmem %s6, 160
      %v5655 = vld [vmem:[%s5654] sm:$0xff]
      %5656 = vrot.lane.b32.xlu0 %v4504, 82
      %v5657 = vpop.permute.xlu0 %5656
      %5658 = vrot.lane.b32.xlu0 %v4505, 82
      %v5659 = vpop.permute.xlu0 %5658
      %5660 = vrot.lane.b32.xlu0 %v4506, 82
      %v5661 = vpop.permute.xlu0 %5660
      %5662 = vrot.lane.b32.xlu0 %v4507, 82
      %v5663 = vpop.permute.xlu0 %5662
      %vm5664 = vcmask 670720
      %v5665 = vsel %vm5664, %v5657, %v5659
      %v5666 = vsel %vm5664, %v5659, %v5661
      %v5667 = vsel %vm5664, %v5661, %v5663
      %v5672 = vsel %vm931, %v5655, 0
      %5674 = vmatprep.subr.mxu0 0.0
      %5675 = vmatpush1.msra.mxu0 0.0
      %5676 = vmatprep.subr.mxu0 0.0
      %5677 = vmatpush1.msra.mxu0 0.0
      %5678 = vmatprep.subr.mxu0 0.0
      %5679 = vmatpush1.msra.mxu0 0.0
      %5680 = vmatprep.subr.mxu0 0.0
      %5681 = vmatpush1.msra.mxu0 0.0
      %5682 = vmatprep.subr.mxu0 0.0
      %5683 = vmatpush1.msra.mxu0 0.0
      %5684 = vmatprep.subr.mxu0 0.0
      %5685 = vmatpush1.msra.mxu0 0.0
      %5686 = vmatprep.subr.mxu0 0.0
      %5687 = vmatpush1.msra.mxu0 0.0
      %5688 = vmatprep.subr.mxu0 0.0
      %5689 = vmatpush1.msra.mxu0 0.0
      %5690 = vmatprep.subr.mxu0 0.0
      %5691 = vmatpush1.msra.mxu0 0.0
      %5692 = vmatprep.subr.mxu0 0.0
      %5693 = vmatpush1.msra.mxu0 0.0
      %5694 = vmatprep.subr.mxu0 0.0
      %5695 = vmatpush1.msra.mxu0 0.0
      %5696 = vmatprep.subr.mxu0 0.0
      %5697 = vmatpush1.msra.mxu0 0.0
      %5698 = vmatprep.subr.mxu0 0.0
      %5699 = vmatpush1.msra.mxu0 0.0
      %5700 = vmatprep.subr.mxu0 0.0
      %5701 = vmatpush1.msra.mxu0 0.0
      %5702 = vmatprep.subr.mxu0 0.0
      %5703 = vmatpush1.msra.mxu0 0.0
      %5704 = vmatprep.subr.mxu0 %v5666
      %5705 = vmatpush1.msra.mxu0 %v5665
      %5706 = vmatprep.subr.mxu0 0.0
      %5707 = vmatpush2.msra.mxu0 0.0
      %5708 = vmatprep.subr.mxu0 0.0
      %5709 = vmatpush2.msra.mxu0 0.0
      %5710 = vmatprep.subr.mxu0 0.0
      %5711 = vmatpush2.msra.mxu0 0.0
      %5712 = vmatprep.subr.mxu0 0.0
      %5713 = vmatpush2.msra.mxu0 0.0
      %5714 = vmatprep.subr.mxu0 0.0
      %5715 = vmatpush2.msra.mxu0 0.0
      %5716 = vmatprep.subr.mxu0 0.0
      %5717 = vmatpush2.msra.mxu0 0.0
      %5718 = vmatprep.subr.mxu0 0.0
      %5719 = vmatpush2.msra.mxu0 0.0
      %5720 = vmatprep.subr.mxu0 0.0
      %5721 = vmatpush2.msra.mxu0 0.0
      %5722 = vmatprep.subr.mxu0 0.0
      %5723 = vmatpush2.msra.mxu0 0.0
      %5724 = vmatprep.subr.mxu0 0.0
      %5725 = vmatpush2.msra.mxu0 0.0
      %5726 = vmatprep.subr.mxu0 0.0
      %5727 = vmatpush2.msra.mxu0 0.0
      %5728 = vmatprep.subr.mxu0 0.0
      %5729 = vmatpush2.msra.mxu0 0.0
      %5730 = vmatprep.subr.mxu0 0.0
      %5731 = vmatpush2.msra.mxu0 0.0
      %5732 = vmatprep.subr.mxu0 0.0
      %5733 = vmatpush2.msra.mxu0 0.0
      %5734 = vmatprep.subr.mxu0 0.0
      %5735 = vmatpush2.msra.mxu0 0.0
      %5736 = vmatprep.subr.mxu0 0.0
      %5737 = vmatpush2.msra.mxu0 0.0
      %5738 = vmatprep.mubr.f32.mxu0 0.0
      %5739 = vmatmul.mubr.f32.gmra.mxu0 %v5672
      %v5740 = vpop.f32.mrf.mxu0
      %v5741 = vadd.f32 0.0, %v5740
      %v5742 = vpop.f32.mrf.mxu0
      %v5743 = vadd.f32 0.0, %v5742
      %5744 = vdwg.mxu0
      %5745 = vmatprep.subr.mxu0 0.0
      %5746 = vmatpush1.msra.mxu0 0.0
      %5747 = vmatprep.subr.mxu0 0.0
      %5748 = vmatpush1.msra.mxu0 0.0
      %5749 = vmatprep.subr.mxu0 0.0
      %5750 = vmatpush1.msra.mxu0 0.0
      %5751 = vmatprep.subr.mxu0 0.0
      %5752 = vmatpush1.msra.mxu0 0.0
      %5753 = vmatprep.subr.mxu0 0.0
      %5754 = vmatpush1.msra.mxu0 0.0
      %5755 = vmatprep.subr.mxu0 0.0
      %5756 = vmatpush1.msra.mxu0 0.0
      %5757 = vmatprep.subr.mxu0 0.0
      %5758 = vmatpush1.msra.mxu0 0.0
      %5759 = vmatprep.subr.mxu0 0.0
      %5760 = vmatpush1.msra.mxu0 0.0
      %5761 = vmatprep.subr.mxu0 0.0
      %5762 = vmatpush1.msra.mxu0 0.0
      %5763 = vmatprep.subr.mxu0 0.0
      %5764 = vmatpush1.msra.mxu0 0.0
      %5765 = vmatprep.subr.mxu0 0.0
      %5766 = vmatpush1.msra.mxu0 0.0
      %5767 = vmatprep.subr.mxu0 0.0
      %5768 = vmatpush1.msra.mxu0 0.0
      %5769 = vmatprep.subr.mxu0 0.0
      %5770 = vmatpush1.msra.mxu0 0.0
      %5771 = vmatprep.subr.mxu0 0.0
      %5772 = vmatpush1.msra.mxu0 0.0
      %5773 = vmatprep.subr.mxu0 0.0
      %5774 = vmatpush1.msra.mxu0 0.0
      %5775 = vmatprep.subr.mxu0 0.0
      %5776 = vmatpush1.msra.mxu0 %v5667
      %5777 = vmatprep.subr.mxu0 0.0
      %5778 = vmatpush2.msra.mxu0 0.0
      %5779 = vmatprep.subr.mxu0 0.0
      %5780 = vmatpush2.msra.mxu0 0.0
      %5781 = vmatprep.subr.mxu0 0.0
      %5782 = vmatpush2.msra.mxu0 0.0
      %5783 = vmatprep.subr.mxu0 0.0
      %5784 = vmatpush2.msra.mxu0 0.0
      %5785 = vmatprep.subr.mxu0 0.0
      %5786 = vmatpush2.msra.mxu0 0.0
      %5787 = vmatprep.subr.mxu0 0.0
      %5788 = vmatpush2.msra.mxu0 0.0
      %5789 = vmatprep.subr.mxu0 0.0
      %5790 = vmatpush2.msra.mxu0 0.0
      %5791 = vmatprep.subr.mxu0 0.0
      %5792 = vmatpush2.msra.mxu0 0.0
      %5793 = vmatprep.subr.mxu0 0.0
      %5794 = vmatpush2.msra.mxu0 0.0
      %5795 = vmatprep.subr.mxu0 0.0
      %5796 = vmatpush2.msra.mxu0 0.0
      %5797 = vmatprep.subr.mxu0 0.0
      %5798 = vmatpush2.msra.mxu0 0.0
      %5799 = vmatprep.subr.mxu0 0.0
      %5800 = vmatpush2.msra.mxu0 0.0
      %5801 = vmatprep.subr.mxu0 0.0
      %5802 = vmatpush2.msra.mxu0 0.0
      %5803 = vmatprep.subr.mxu0 0.0
      %5804 = vmatpush2.msra.mxu0 0.0
      %5805 = vmatprep.subr.mxu0 0.0
      %5806 = vmatpush2.msra.mxu0 0.0
      %5807 = vmatprep.subr.mxu0 0.0
      %5808 = vmatpush2.msra.mxu0 0.0
      %5809 = vmatprep.mubr.f32.mxu0 0.0
      %5810 = vmatmul.mubr.f32.gmra.mxu0 %v5672
      %v5811 = vpop.f32.mrf.mxu0
      %v5812 = vadd.f32 0.0, %v5811
      %v5813 = vpop.f32.mrf.mxu0
      %5814 = vdwg.mxu0
      %v5815 = vadd.f32 %v5651, %v5741
      %v5816 = vadd.f32 %v5652, %v5743
      %v5817 = vadd.f32 %v5653, %v5812
      %s5818 = scalar_lea.vmem %s6, 168
      %v5819 = vld [vmem:[%s5818] sm:$0xff]
      %5820 = vrot.lane.b32.xlu0 %v4504, 81
      %v5821 = vpop.permute.xlu0 %5820
      %5822 = vrot.lane.b32.xlu0 %v4505, 81
      %v5823 = vpop.permute.xlu0 %5822
      %5824 = vrot.lane.b32.xlu0 %v4506, 81
      %v5825 = vpop.permute.xlu0 %5824
      %5826 = vrot.lane.b32.xlu0 %v4507, 81
      %v5827 = vpop.permute.xlu0 %5826
      %vm5828 = vcmask 662528
      %v5829 = vsel %vm5828, %v5821, %v5823
      %v5830 = vsel %vm5828, %v5823, %v5825
      %v5831 = vsel %vm5828, %v5825, %v5827
      %v5836 = vsel %vm931, %v5819, 0
      %5838 = vmatprep.subr.mxu0 0.0
      %5839 = vmatpush1.msra.mxu0 0.0
      %5840 = vmatprep.subr.mxu0 0.0
      %5841 = vmatpush1.msra.mxu0 0.0
      %5842 = vmatprep.subr.mxu0 0.0
      %5843 = vmatpush1.msra.mxu0 0.0
      %5844 = vmatprep.subr.mxu0 0.0
      %5845 = vmatpush1.msra.mxu0 0.0
      %5846 = vmatprep.subr.mxu0 0.0
      %5847 = vmatpush1.msra.mxu0 0.0
      %5848 = vmatprep.subr.mxu0 0.0
      %5849 = vmatpush1.msra.mxu0 0.0
      %5850 = vmatprep.subr.mxu0 0.0
      %5851 = vmatpush1.msra.mxu0 0.0
      %5852 = vmatprep.subr.mxu0 0.0
      %5853 = vmatpush1.msra.mxu0 0.0
      %5854 = vmatprep.subr.mxu0 0.0
      %5855 = vmatpush1.msra.mxu0 0.0
      %5856 = vmatprep.subr.mxu0 0.0
      %5857 = vmatpush1.msra.mxu0 0.0
      %5858 = vmatprep.subr.mxu0 0.0
      %5859 = vmatpush1.msra.mxu0 0.0
      %5860 = vmatprep.subr.mxu0 0.0
      %5861 = vmatpush1.msra.mxu0 0.0
      %5862 = vmatprep.subr.mxu0 0.0
      %5863 = vmatpush1.msra.mxu0 0.0
      %5864 = vmatprep.subr.mxu0 0.0
      %5865 = vmatpush1.msra.mxu0 0.0
      %5866 = vmatprep.subr.mxu0 0.0
      %5867 = vmatpush1.msra.mxu0 0.0
      %5868 = vmatprep.subr.mxu0 %v5830
      %5869 = vmatpush1.msra.mxu0 %v5829
      %5870 = vmatprep.subr.mxu0 0.0
      %5871 = vmatpush2.msra.mxu0 0.0
      %5872 = vmatprep.subr.mxu0 0.0
      %5873 = vmatpush2.msra.mxu0 0.0
      %5874 = vmatprep.subr.mxu0 0.0
      %5875 = vmatpush2.msra.mxu0 0.0
      %5876 = vmatprep.subr.mxu0 0.0
      %5877 = vmatpush2.msra.mxu0 0.0
      %5878 = vmatprep.subr.mxu0 0.0
      %5879 = vmatpush2.msra.mxu0 0.0
      %5880 = vmatprep.subr.mxu0 0.0
      %5881 = vmatpush2.msra.mxu0 0.0
      %5882 = vmatprep.subr.mxu0 0.0
      %5883 = vmatpush2.msra.mxu0 0.0
      %5884 = vmatprep.subr.mxu0 0.0
      %5885 = vmatpush2.msra.mxu0 0.0
      %5886 = vmatprep.subr.mxu0 0.0
      %5887 = vmatpush2.msra.mxu0 0.0
      %5888 = vmatprep.subr.mxu0 0.0
      %5889 = vmatpush2.msra.mxu0 0.0
      %5890 = vmatprep.subr.mxu0 0.0
      %5891 = vmatpush2.msra.mxu0 0.0
      %5892 = vmatprep.subr.mxu0 0.0
      %5893 = vmatpush2.msra.mxu0 0.0
      %5894 = vmatprep.subr.mxu0 0.0
      %5895 = vmatpush2.msra.mxu0 0.0
      %5896 = vmatprep.subr.mxu0 0.0
      %5897 = vmatpush2.msra.mxu0 0.0
      %5898 = vmatprep.subr.mxu0 0.0
      %5899 = vmatpush2.msra.mxu0 0.0
      %5900 = vmatprep.subr.mxu0 0.0
      %5901 = vmatpush2.msra.mxu0 0.0
      %5902 = vmatprep.mubr.f32.mxu0 0.0
      %5903 = vmatmul.mubr.f32.gmra.mxu0 %v5836
      %v5904 = vpop.f32.mrf.mxu0
      %v5905 = vadd.f32 0.0, %v5904
      %v5906 = vpop.f32.mrf.mxu0
      %v5907 = vadd.f32 0.0, %v5906
      %5908 = vdwg.mxu0
      %5909 = vmatprep.subr.mxu0 0.0
      %5910 = vmatpush1.msra.mxu0 0.0
      %5911 = vmatprep.subr.mxu0 0.0
      %5912 = vmatpush1.msra.mxu0 0.0
      %5913 = vmatprep.subr.mxu0 0.0
      %5914 = vmatpush1.msra.mxu0 0.0
      %5915 = vmatprep.subr.mxu0 0.0
      %5916 = vmatpush1.msra.mxu0 0.0
      %5917 = vmatprep.subr.mxu0 0.0
      %5918 = vmatpush1.msra.mxu0 0.0
      %5919 = vmatprep.subr.mxu0 0.0
      %5920 = vmatpush1.msra.mxu0 0.0
      %5921 = vmatprep.subr.mxu0 0.0
      %5922 = vmatpush1.msra.mxu0 0.0
      %5923 = vmatprep.subr.mxu0 0.0
      %5924 = vmatpush1.msra.mxu0 0.0
      %5925 = vmatprep.subr.mxu0 0.0
      %5926 = vmatpush1.msra.mxu0 0.0
      %5927 = vmatprep.subr.mxu0 0.0
      %5928 = vmatpush1.msra.mxu0 0.0
      %5929 = vmatprep.subr.mxu0 0.0
      %5930 = vmatpush1.msra.mxu0 0.0
      %5931 = vmatprep.subr.mxu0 0.0
      %5932 = vmatpush1.msra.mxu0 0.0
      %5933 = vmatprep.subr.mxu0 0.0
      %5934 = vmatpush1.msra.mxu0 0.0
      %5935 = vmatprep.subr.mxu0 0.0
      %5936 = vmatpush1.msra.mxu0 0.0
      %5937 = vmatprep.subr.mxu0 0.0
      %5938 = vmatpush1.msra.mxu0 0.0
      %5939 = vmatprep.subr.mxu0 0.0
      %5940 = vmatpush1.msra.mxu0 %v5831
      %5941 = vmatprep.subr.mxu0 0.0
      %5942 = vmatpush2.msra.mxu0 0.0
      %5943 = vmatprep.subr.mxu0 0.0
      %5944 = vmatpush2.msra.mxu0 0.0
      %5945 = vmatprep.subr.mxu0 0.0
      %5946 = vmatpush2.msra.mxu0 0.0
      %5947 = vmatprep.subr.mxu0 0.0
      %5948 = vmatpush2.msra.mxu0 0.0
      %5949 = vmatprep.subr.mxu0 0.0
      %5950 = vmatpush2.msra.mxu0 0.0
      %5951 = vmatprep.subr.mxu0 0.0
      %5952 = vmatpush2.msra.mxu0 0.0
      %5953 = vmatprep.subr.mxu0 0.0
      %5954 = vmatpush2.msra.mxu0 0.0
      %5955 = vmatprep.subr.mxu0 0.0
      %5956 = vmatpush2.msra.mxu0 0.0
      %5957 = vmatprep.subr.mxu0 0.0
      %5958 = vmatpush2.msra.mxu0 0.0
      %5959 = vmatprep.subr.mxu0 0.0
      %5960 = vmatpush2.msra.mxu0 0.0
      %5961 = vmatprep.subr.mxu0 0.0
      %5962 = vmatpush2.msra.mxu0 0.0
      %5963 = vmatprep.subr.mxu0 0.0
      %5964 = vmatpush2.msra.mxu0 0.0
      %5965 = vmatprep.subr.mxu0 0.0
      %5966 = vmatpush2.msra.mxu0 0.0
      %5967 = vmatprep.subr.mxu0 0.0
      %5968 = vmatpush2.msra.mxu0 0.0
      %5969 = vmatprep.subr.mxu0 0.0
      %5970 = vmatpush2.msra.mxu0 0.0
      %5971 = vmatprep.subr.mxu0 0.0
      %5972 = vmatpush2.msra.mxu0 0.0
      %5973 = vmatprep.mubr.f32.mxu0 0.0
      %5974 = vmatmul.mubr.f32.gmra.mxu0 %v5836
      %v5975 = vpop.f32.mrf.mxu0
      %v5976 = vadd.f32 0.0, %v5975
      %v5977 = vpop.f32.mrf.mxu0
      %5978 = vdwg.mxu0
      %v5979 = vadd.f32 %v5815, %v5905
      %v5980 = vadd.f32 %v5816, %v5907
      %v5981 = vadd.f32 %v5817, %v5976
      %s5982 = scalar_lea.vmem %s6, 176
      %v5983 = vld [vmem:[%s5982] sm:$0xff]
      %5984 = vrot.lane.b32.xlu0 %v4504, 80
      %v5985 = vpop.permute.xlu0 %5984
      %5986 = vrot.lane.b32.xlu0 %v4505, 80
      %v5987 = vpop.permute.xlu0 %5986
      %5988 = vrot.lane.b32.xlu0 %v4506, 80
      %v5989 = vpop.permute.xlu0 %5988
      %5990 = vrot.lane.b32.xlu0 %v4507, 80
      %v5991 = vpop.permute.xlu0 %5990
      %v5992 = vsel %vm689, %v5985, %v5987
      %v5993 = vsel %vm689, %v5987, %v5989
      %v5994 = vsel %vm689, %v5989, %v5991
      %v5999 = vsel %vm931, %v5983, 0
      %6001 = vmatprep.subr.mxu0 0.0
      %6002 = vmatpush1.msra.mxu0 0.0
      %6003 = vmatprep.subr.mxu0 0.0
      %6004 = vmatpush1.msra.mxu0 0.0
      %6005 = vmatprep.subr.mxu0 0.0
      %6006 = vmatpush1.msra.mxu0 0.0
      %6007 = vmatprep.subr.mxu0 0.0
      %6008 = vmatpush1.msra.mxu0 0.0
      %6009 = vmatprep.subr.mxu0 0.0
      %6010 = vmatpush1.msra.mxu0 0.0
      %6011 = vmatprep.subr.mxu0 0.0
      %6012 = vmatpush1.msra.mxu0 0.0
      %6013 = vmatprep.subr.mxu0 0.0
      %6014 = vmatpush1.msra.mxu0 0.0
      %6015 = vmatprep.subr.mxu0 0.0
      %6016 = vmatpush1.msra.mxu0 0.0
      %6017 = vmatprep.subr.mxu0 0.0
      %6018 = vmatpush1.msra.mxu0 0.0
      %6019 = vmatprep.subr.mxu0 0.0
      %6020 = vmatpush1.msra.mxu0 0.0
      %6021 = vmatprep.subr.mxu0 0.0
      %6022 = vmatpush1.msra.mxu0 0.0
      %6023 = vmatprep.subr.mxu0 0.0
      %6024 = vmatpush1.msra.mxu0 0.0
      %6025 = vmatprep.subr.mxu0 0.0
      %6026 = vmatpush1.msra.mxu0 0.0
      %6027 = vmatprep.subr.mxu0 0.0
      %6028 = vmatpush1.msra.mxu0 0.0
      %6029 = vmatprep.subr.mxu0 0.0
      %6030 = vmatpush1.msra.mxu0 0.0
      %6031 = vmatprep.subr.mxu0 %v5993
      %6032 = vmatpush1.msra.mxu0 %v5992
      %6033 = vmatprep.subr.mxu0 0.0
      %6034 = vmatpush2.msra.mxu0 0.0
      %6035 = vmatprep.subr.mxu0 0.0
      %6036 = vmatpush2.msra.mxu0 0.0
      %6037 = vmatprep.subr.mxu0 0.0
      %6038 = vmatpush2.msra.mxu0 0.0
      %6039 = vmatprep.subr.mxu0 0.0
      %6040 = vmatpush2.msra.mxu0 0.0
      %6041 = vmatprep.subr.mxu0 0.0
      %6042 = vmatpush2.msra.mxu0 0.0
      %6043 = vmatprep.subr.mxu0 0.0
      %6044 = vmatpush2.msra.mxu0 0.0
      %6045 = vmatprep.subr.mxu0 0.0
      %6046 = vmatpush2.msra.mxu0 0.0
      %6047 = vmatprep.subr.mxu0 0.0
      %6048 = vmatpush2.msra.mxu0 0.0
      %6049 = vmatprep.subr.mxu0 0.0
      %6050 = vmatpush2.msra.mxu0 0.0
      %6051 = vmatprep.subr.mxu0 0.0
      %6052 = vmatpush2.msra.mxu0 0.0
      %6053 = vmatprep.subr.mxu0 0.0
      %6054 = vmatpush2.msra.mxu0 0.0
      %6055 = vmatprep.subr.mxu0 0.0
      %6056 = vmatpush2.msra.mxu0 0.0
      %6057 = vmatprep.subr.mxu0 0.0
      %6058 = vmatpush2.msra.mxu0 0.0
      %6059 = vmatprep.subr.mxu0 0.0
      %6060 = vmatpush2.msra.mxu0 0.0
      %6061 = vmatprep.subr.mxu0 0.0
      %6062 = vmatpush2.msra.mxu0 0.0
      %6063 = vmatprep.subr.mxu0 0.0
      %6064 = vmatpush2.msra.mxu0 0.0
      %6065 = vmatprep.mubr.f32.mxu0 0.0
      %6066 = vmatmul.mubr.f32.gmra.mxu0 %v5999
      %v6067 = vpop.f32.mrf.mxu0
      %v6068 = vadd.f32 0.0, %v6067
      %v6069 = vpop.f32.mrf.mxu0
      %v6070 = vadd.f32 0.0, %v6069
      %6071 = vdwg.mxu0
      %6072 = vmatprep.subr.mxu0 0.0
      %6073 = vmatpush1.msra.mxu0 0.0
      %6074 = vmatprep.subr.mxu0 0.0
      %6075 = vmatpush1.msra.mxu0 0.0
      %6076 = vmatprep.subr.mxu0 0.0
      %6077 = vmatpush1.msra.mxu0 0.0
      %6078 = vmatprep.subr.mxu0 0.0
      %6079 = vmatpush1.msra.mxu0 0.0
      %6080 = vmatprep.subr.mxu0 0.0
      %6081 = vmatpush1.msra.mxu0 0.0
      %6082 = vmatprep.subr.mxu0 0.0
      %6083 = vmatpush1.msra.mxu0 0.0
      %6084 = vmatprep.subr.mxu0 0.0
      %6085 = vmatpush1.msra.mxu0 0.0
      %6086 = vmatprep.subr.mxu0 0.0
      %6087 = vmatpush1.msra.mxu0 0.0
      %6088 = vmatprep.subr.mxu0 0.0
      %6089 = vmatpush1.msra.mxu0 0.0
      %6090 = vmatprep.subr.mxu0 0.0
      %6091 = vmatpush1.msra.mxu0 0.0
      %6092 = vmatprep.subr.mxu0 0.0
      %6093 = vmatpush1.msra.mxu0 0.0
      %6094 = vmatprep.subr.mxu0 0.0
      %6095 = vmatpush1.msra.mxu0 0.0
      %6096 = vmatprep.subr.mxu0 0.0
      %6097 = vmatpush1.msra.mxu0 0.0
      %6098 = vmatprep.subr.mxu0 0.0
      %6099 = vmatpush1.msra.mxu0 0.0
      %6100 = vmatprep.subr.mxu0 0.0
      %6101 = vmatpush1.msra.mxu0 0.0
      %6102 = vmatprep.subr.mxu0 0.0
      %6103 = vmatpush1.msra.mxu0 %v5994
      %6104 = vmatprep.subr.mxu0 0.0
      %6105 = vmatpush2.msra.mxu0 0.0
      %6106 = vmatprep.subr.mxu0 0.0
      %6107 = vmatpush2.msra.mxu0 0.0
      %6108 = vmatprep.subr.mxu0 0.0
      %6109 = vmatpush2.msra.mxu0 0.0
      %6110 = vmatprep.subr.mxu0 0.0
      %6111 = vmatpush2.msra.mxu0 0.0
      %6112 = vmatprep.subr.mxu0 0.0
      %6113 = vmatpush2.msra.mxu0 0.0
      %6114 = vmatprep.subr.mxu0 0.0
      %6115 = vmatpush2.msra.mxu0 0.0
      %6116 = vmatprep.subr.mxu0 0.0
      %6117 = vmatpush2.msra.mxu0 0.0
      %6118 = vmatprep.subr.mxu0 0.0
      %6119 = vmatpush2.msra.mxu0 0.0
      %6120 = vmatprep.subr.mxu0 0.0
      %6121 = vmatpush2.msra.mxu0 0.0
      %6122 = vmatprep.subr.mxu0 0.0
      %6123 = vmatpush2.msra.mxu0 0.0
      %6124 = vmatprep.subr.mxu0 0.0
      %6125 = vmatpush2.msra.mxu0 0.0
      %6126 = vmatprep.subr.mxu0 0.0
      %6127 = vmatpush2.msra.mxu0 0.0
      %6128 = vmatprep.subr.mxu0 0.0
      %6129 = vmatpush2.msra.mxu0 0.0
      %6130 = vmatprep.subr.mxu0 0.0
      %6131 = vmatpush2.msra.mxu0 0.0
      %6132 = vmatprep.subr.mxu0 0.0
      %6133 = vmatpush2.msra.mxu0 0.0
      %6134 = vmatprep.subr.mxu0 0.0
      %6135 = vmatpush2.msra.mxu0 0.0
      %6136 = vmatprep.mubr.f32.mxu0 0.0
      %6137 = vmatmul.mubr.f32.gmra.mxu0 %v5999
      %v6138 = vpop.f32.mrf.mxu0
      %v6139 = vadd.f32 0.0, %v6138
      %v6140 = vpop.f32.mrf.mxu0
      %6141 = vdwg.mxu0
      %v6142 = vadd.f32 %v5979, %v6068
      %v6143 = vadd.f32 %v5980, %v6070
      %v6144 = vadd.f32 %v5981, %v6139
      %s6145 = scalar_lea.vmem %s6, 184
      %v6146 = vld [vmem:[%s6145] sm:$0xff]
      %6147 = vrot.lane.b32.xlu0 %v4504, 79
      %v6148 = vpop.permute.xlu0 %6147
      %6149 = vrot.lane.b32.xlu0 %v4505, 79
      %v6150 = vpop.permute.xlu0 %6149
      %6151 = vrot.lane.b32.xlu0 %v4506, 79
      %v6152 = vpop.permute.xlu0 %6151
      %6153 = vrot.lane.b32.xlu0 %v4507, 79
      %v6154 = vpop.permute.xlu0 %6153
      %v6155 = vsel %vm703, %v6148, %v6150
      %v6156 = vsel %vm703, %v6150, %v6152
      %v6157 = vsel %vm703, %v6152, %v6154
      %v6162 = vsel %vm931, %v6146, 0
      %6164 = vmatprep.subr.mxu0 0.0
      %6165 = vmatpush1.msra.mxu0 0.0
      %6166 = vmatprep.subr.mxu0 0.0
      %6167 = vmatpush1.msra.mxu0 0.0
      %6168 = vmatprep.subr.mxu0 0.0
      %6169 = vmatpush1.msra.mxu0 0.0
      %6170 = vmatprep.subr.mxu0 0.0
      %6171 = vmatpush1.msra.mxu0 0.0
      %6172 = vmatprep.subr.mxu0 0.0
      %6173 = vmatpush1.msra.mxu0 0.0
      %6174 = vmatprep.subr.mxu0 0.0
      %6175 = vmatpush1.msra.mxu0 0.0
      %6176 = vmatprep.subr.mxu0 0.0
      %6177 = vmatpush1.msra.mxu0 0.0
      %6178 = vmatprep.subr.mxu0 0.0
      %6179 = vmatpush1.msra.mxu0 0.0
      %6180 = vmatprep.subr.mxu0 0.0
      %6181 = vmatpush1.msra.mxu0 0.0
      %6182 = vmatprep.subr.mxu0 0.0
      %6183 = vmatpush1.msra.mxu0 0.0
      %6184 = vmatprep.subr.mxu0 0.0
      %6185 = vmatpush1.msra.mxu0 0.0
      %6186 = vmatprep.subr.mxu0 0.0
      %6187 = vmatpush1.msra.mxu0 0.0
      %6188 = vmatprep.subr.mxu0 0.0
      %6189 = vmatpush1.msra.mxu0 0.0
      %6190 = vmatprep.subr.mxu0 0.0
      %6191 = vmatpush1.msra.mxu0 0.0
      %6192 = vmatprep.subr.mxu0 0.0
      %6193 = vmatpush1.msra.mxu0 0.0
      %6194 = vmatprep.subr.mxu0 %v6156
      %6195 = vmatpush1.msra.mxu0 %v6155
      %6196 = vmatprep.subr.mxu0 0.0
      %6197 = vmatpush2.msra.mxu0 0.0
      %6198 = vmatprep.subr.mxu0 0.0
      %6199 = vmatpush2.msra.mxu0 0.0
      %6200 = vmatprep.subr.mxu0 0.0
      %6201 = vmatpush2.msra.mxu0 0.0
      %6202 = vmatprep.subr.mxu0 0.0
      %6203 = vmatpush2.msra.mxu0 0.0
      %6204 = vmatprep.subr.mxu0 0.0
      %6205 = vmatpush2.msra.mxu0 0.0
      %6206 = vmatprep.subr.mxu0 0.0
      %6207 = vmatpush2.msra.mxu0 0.0
      %6208 = vmatprep.subr.mxu0 0.0
      %6209 = vmatpush2.msra.mxu0 0.0
      %6210 = vmatprep.subr.mxu0 0.0
      %6211 = vmatpush2.msra.mxu0 0.0
      %6212 = vmatprep.subr.mxu0 0.0
      %6213 = vmatpush2.msra.mxu0 0.0
      %6214 = vmatprep.subr.mxu0 0.0
      %6215 = vmatpush2.msra.mxu0 0.0
      %6216 = vmatprep.subr.mxu0 0.0
      %6217 = vmatpush2.msra.mxu0 0.0
      %6218 = vmatprep.subr.mxu0 0.0
      %6219 = vmatpush2.msra.mxu0 0.0
      %6220 = vmatprep.subr.mxu0 0.0
      %6221 = vmatpush2.msra.mxu0 0.0
      %6222 = vmatprep.subr.mxu0 0.0
      %6223 = vmatpush2.msra.mxu0 0.0
      %6224 = vmatprep.subr.mxu0 0.0
      %6225 = vmatpush2.msra.mxu0 0.0
      %6226 = vmatprep.subr.mxu0 0.0
      %6227 = vmatpush2.msra.mxu0 0.0
      %6228 = vmatprep.mubr.f32.mxu0 0.0
      %6229 = vmatmul.mubr.f32.gmra.mxu0 %v6162
      %v6230 = vpop.f32.mrf.mxu0
      %v6231 = vadd.f32 0.0, %v6230
      %v6232 = vpop.f32.mrf.mxu0
      %v6233 = vadd.f32 0.0, %v6232
      %6234 = vdwg.mxu0
      %6235 = vmatprep.subr.mxu0 0.0
      %6236 = vmatpush1.msra.mxu0 0.0
      %6237 = vmatprep.subr.mxu0 0.0
      %6238 = vmatpush1.msra.mxu0 0.0
      %6239 = vmatprep.subr.mxu0 0.0
      %6240 = vmatpush1.msra.mxu0 0.0
      %6241 = vmatprep.subr.mxu0 0.0
      %6242 = vmatpush1.msra.mxu0 0.0
      %6243 = vmatprep.subr.mxu0 0.0
      %6244 = vmatpush1.msra.mxu0 0.0
      %6245 = vmatprep.subr.mxu0 0.0
      %6246 = vmatpush1.msra.mxu0 0.0
      %6247 = vmatprep.subr.mxu0 0.0
      %6248 = vmatpush1.msra.mxu0 0.0
      %6249 = vmatprep.subr.mxu0 0.0
      %6250 = vmatpush1.msra.mxu0 0.0
      %6251 = vmatprep.subr.mxu0 0.0
      %6252 = vmatpush1.msra.mxu0 0.0
      %6253 = vmatprep.subr.mxu0 0.0
      %6254 = vmatpush1.msra.mxu0 0.0
      %6255 = vmatprep.subr.mxu0 0.0
      %6256 = vmatpush1.msra.mxu0 0.0
      %6257 = vmatprep.subr.mxu0 0.0
      %6258 = vmatpush1.msra.mxu0 0.0
      %6259 = vmatprep.subr.mxu0 0.0
      %6260 = vmatpush1.msra.mxu0 0.0
      %6261 = vmatprep.subr.mxu0 0.0
      %6262 = vmatpush1.msra.mxu0 0.0
      %6263 = vmatprep.subr.mxu0 0.0
      %6264 = vmatpush1.msra.mxu0 0.0
      %6265 = vmatprep.subr.mxu0 0.0
      %6266 = vmatpush1.msra.mxu0 %v6157
      %6267 = vmatprep.subr.mxu0 0.0
      %6268 = vmatpush2.msra.mxu0 0.0
      %6269 = vmatprep.subr.mxu0 0.0
      %6270 = vmatpush2.msra.mxu0 0.0
      %6271 = vmatprep.subr.mxu0 0.0
      %6272 = vmatpush2.msra.mxu0 0.0
      %6273 = vmatprep.subr.mxu0 0.0
      %6274 = vmatpush2.msra.mxu0 0.0
      %6275 = vmatprep.subr.mxu0 0.0
      %6276 = vmatpush2.msra.mxu0 0.0
      %6277 = vmatprep.subr.mxu0 0.0
      %6278 = vmatpush2.msra.mxu0 0.0
      %6279 = vmatprep.subr.mxu0 0.0
      %6280 = vmatpush2.msra.mxu0 0.0
      %6281 = vmatprep.subr.mxu0 0.0
      %6282 = vmatpush2.msra.mxu0 0.0
      %6283 = vmatprep.subr.mxu0 0.0
      %6284 = vmatpush2.msra.mxu0 0.0
      %6285 = vmatprep.subr.mxu0 0.0
      %6286 = vmatpush2.msra.mxu0 0.0
      %6287 = vmatprep.subr.mxu0 0.0
      %6288 = vmatpush2.msra.mxu0 0.0
      %6289 = vmatprep.subr.mxu0 0.0
      %6290 = vmatpush2.msra.mxu0 0.0
      %6291 = vmatprep.subr.mxu0 0.0
      %6292 = vmatpush2.msra.mxu0 0.0
      %6293 = vmatprep.subr.mxu0 0.0
      %6294 = vmatpush2.msra.mxu0 0.0
      %6295 = vmatprep.subr.mxu0 0.0
      %6296 = vmatpush2.msra.mxu0 0.0
      %6297 = vmatprep.subr.mxu0 0.0
      %6298 = vmatpush2.msra.mxu0 0.0
      %6299 = vmatprep.mubr.f32.mxu0 0.0
      %6300 = vmatmul.mubr.f32.gmra.mxu0 %v6162
      %v6301 = vpop.f32.mrf.mxu0
      %v6302 = vadd.f32 0.0, %v6301
      %v6303 = vpop.f32.mrf.mxu0
      %6304 = vdwg.mxu0
      %v6305 = vadd.f32 %v6142, %v6231
      %v6306 = vadd.f32 %v6143, %v6233
      %v6307 = vadd.f32 %v6144, %v6302
      %s6308 = scalar_lea.vmem %s6, 192
      %v6309 = vld [vmem:[%s6308] sm:$0xff]
      %6310 = vrot.lane.b32.xlu0 %v4504, 78
      %v6311 = vpop.permute.xlu0 %6310
      %6312 = vrot.lane.b32.xlu0 %v4505, 78
      %v6313 = vpop.permute.xlu0 %6312
      %6314 = vrot.lane.b32.xlu0 %v4506, 78
      %v6315 = vpop.permute.xlu0 %6314
      %6316 = vrot.lane.b32.xlu0 %v4507, 78
      %v6317 = vpop.permute.xlu0 %6316
      %v6318 = vsel %vm717, %v6311, %v6313
      %v6319 = vsel %vm717, %v6313, %v6315
      %v6320 = vsel %vm717, %v6315, %v6317
      %v6325 = vsel %vm931, %v6309, 0
      %6327 = vmatprep.subr.mxu0 0.0
      %6328 = vmatpush1.msra.mxu0 0.0
      %6329 = vmatprep.subr.mxu0 0.0
      %6330 = vmatpush1.msra.mxu0 0.0
      %6331 = vmatprep.subr.mxu0 0.0
      %6332 = vmatpush1.msra.mxu0 0.0
      %6333 = vmatprep.subr.mxu0 0.0
      %6334 = vmatpush1.msra.mxu0 0.0
      %6335 = vmatprep.subr.mxu0 0.0
      %6336 = vmatpush1.msra.mxu0 0.0
      %6337 = vmatprep.subr.mxu0 0.0
      %6338 = vmatpush1.msra.mxu0 0.0
      %6339 = vmatprep.subr.mxu0 0.0
      %6340 = vmatpush1.msra.mxu0 0.0
      %6341 = vmatprep.subr.mxu0 0.0
      %6342 = vmatpush1.msra.mxu0 0.0
      %6343 = vmatprep.subr.mxu0 0.0
      %6344 = vmatpush1.msra.mxu0 0.0
      %6345 = vmatprep.subr.mxu0 0.0
      %6346 = vmatpush1.msra.mxu0 0.0
      %6347 = vmatprep.subr.mxu0 0.0
      %6348 = vmatpush1.msra.mxu0 0.0
      %6349 = vmatprep.subr.mxu0 0.0
      %6350 = vmatpush1.msra.mxu0 0.0
      %6351 = vmatprep.subr.mxu0 0.0
      %6352 = vmatpush1.msra.mxu0 0.0
      %6353 = vmatprep.subr.mxu0 0.0
      %6354 = vmatpush1.msra.mxu0 0.0
      %6355 = vmatprep.subr.mxu0 0.0
      %6356 = vmatpush1.msra.mxu0 0.0
      %6357 = vmatprep.subr.mxu0 %v6319
      %6358 = vmatpush1.msra.mxu0 %v6318
      %6359 = vmatprep.subr.mxu0 0.0
      %6360 = vmatpush2.msra.mxu0 0.0
      %6361 = vmatprep.subr.mxu0 0.0
      %6362 = vmatpush2.msra.mxu0 0.0
      %6363 = vmatprep.subr.mxu0 0.0
      %6364 = vmatpush2.msra.mxu0 0.0
      %6365 = vmatprep.subr.mxu0 0.0
      %6366 = vmatpush2.msra.mxu0 0.0
      %6367 = vmatprep.subr.mxu0 0.0
      %6368 = vmatpush2.msra.mxu0 0.0
      %6369 = vmatprep.subr.mxu0 0.0
      %6370 = vmatpush2.msra.mxu0 0.0
      %6371 = vmatprep.subr.mxu0 0.0
      %6372 = vmatpush2.msra.mxu0 0.0
      %6373 = vmatprep.subr.mxu0 0.0
      %6374 = vmatpush2.msra.mxu0 0.0
      %6375 = vmatprep.subr.mxu0 0.0
      %6376 = vmatpush2.msra.mxu0 0.0
      %6377 = vmatprep.subr.mxu0 0.0
      %6378 = vmatpush2.msra.mxu0 0.0
      %6379 = vmatprep.subr.mxu0 0.0
      %6380 = vmatpush2.msra.mxu0 0.0
      %6381 = vmatprep.subr.mxu0 0.0
      %6382 = vmatpush2.msra.mxu0 0.0
      %6383 = vmatprep.subr.mxu0 0.0
      %6384 = vmatpush2.msra.mxu0 0.0
      %6385 = vmatprep.subr.mxu0 0.0
      %6386 = vmatpush2.msra.mxu0 0.0
      %6387 = vmatprep.subr.mxu0 0.0
      %6388 = vmatpush2.msra.mxu0 0.0
      %6389 = vmatprep.subr.mxu0 0.0
      %6390 = vmatpush2.msra.mxu0 0.0
      %6391 = vmatprep.mubr.f32.mxu0 0.0
      %6392 = vmatmul.mubr.f32.gmra.mxu0 %v6325
      %v6393 = vpop.f32.mrf.mxu0
      %v6394 = vadd.f32 0.0, %v6393
      %v6395 = vpop.f32.mrf.mxu0
      %v6396 = vadd.f32 0.0, %v6395
      %6397 = vdwg.mxu0
      %6398 = vmatprep.subr.mxu0 0.0
      %6399 = vmatpush1.msra.mxu0 0.0
      %6400 = vmatprep.subr.mxu0 0.0
      %6401 = vmatpush1.msra.mxu0 0.0
      %6402 = vmatprep.subr.mxu0 0.0
      %6403 = vmatpush1.msra.mxu0 0.0
      %6404 = vmatprep.subr.mxu0 0.0
      %6405 = vmatpush1.msra.mxu0 0.0
      %6406 = vmatprep.subr.mxu0 0.0
      %6407 = vmatpush1.msra.mxu0 0.0
      %6408 = vmatprep.subr.mxu0 0.0
      %6409 = vmatpush1.msra.mxu0 0.0
      %6410 = vmatprep.subr.mxu0 0.0
      %6411 = vmatpush1.msra.mxu0 0.0
      %6412 = vmatprep.subr.mxu0 0.0
      %6413 = vmatpush1.msra.mxu0 0.0
      %6414 = vmatprep.subr.mxu0 0.0
      %6415 = vmatpush1.msra.mxu0 0.0
      %6416 = vmatprep.subr.mxu0 0.0
      %6417 = vmatpush1.msra.mxu0 0.0
      %6418 = vmatprep.subr.mxu0 0.0
      %6419 = vmatpush1.msra.mxu0 0.0
      %6420 = vmatprep.subr.mxu0 0.0
      %6421 = vmatpush1.msra.mxu0 0.0
      %6422 = vmatprep.subr.mxu0 0.0
      %6423 = vmatpush1.msra.mxu0 0.0
      %6424 = vmatprep.subr.mxu0 0.0
      %6425 = vmatpush1.msra.mxu0 0.0
      %6426 = vmatprep.subr.mxu0 0.0
      %6427 = vmatpush1.msra.mxu0 0.0
      %6428 = vmatprep.subr.mxu0 0.0
      %6429 = vmatpush1.msra.mxu0 %v6320
      %6430 = vmatprep.subr.mxu0 0.0
      %6431 = vmatpush2.msra.mxu0 0.0
      %6432 = vmatprep.subr.mxu0 0.0
      %6433 = vmatpush2.msra.mxu0 0.0
      %6434 = vmatprep.subr.mxu0 0.0
      %6435 = vmatpush2.msra.mxu0 0.0
      %6436 = vmatprep.subr.mxu0 0.0
      %6437 = vmatpush2.msra.mxu0 0.0
      %6438 = vmatprep.subr.mxu0 0.0
      %6439 = vmatpush2.msra.mxu0 0.0
      %6440 = vmatprep.subr.mxu0 0.0
      %6441 = vmatpush2.msra.mxu0 0.0
      %6442 = vmatprep.subr.mxu0 0.0
      %6443 = vmatpush2.msra.mxu0 0.0
      %6444 = vmatprep.subr.mxu0 0.0
      %6445 = vmatpush2.msra.mxu0 0.0
      %6446 = vmatprep.subr.mxu0 0.0
      %6447 = vmatpush2.msra.mxu0 0.0
      %6448 = vmatprep.subr.mxu0 0.0
      %6449 = vmatpush2.msra.mxu0 0.0
      %6450 = vmatprep.subr.mxu0 0.0
      %6451 = vmatpush2.msra.mxu0 0.0
      %6452 = vmatprep.subr.mxu0 0.0
      %6453 = vmatpush2.msra.mxu0 0.0
      %6454 = vmatprep.subr.mxu0 0.0
      %6455 = vmatpush2.msra.mxu0 0.0
      %6456 = vmatprep.subr.mxu0 0.0
      %6457 = vmatpush2.msra.mxu0 0.0
      %6458 = vmatprep.subr.mxu0 0.0
      %6459 = vmatpush2.msra.mxu0 0.0
      %6460 = vmatprep.subr.mxu0 0.0
      %6461 = vmatpush2.msra.mxu0 0.0
      %6462 = vmatprep.mubr.f32.mxu0 0.0
      %6463 = vmatmul.mubr.f32.gmra.mxu0 %v6325
      %v6464 = vpop.f32.mrf.mxu0
      %v6465 = vadd.f32 0.0, %v6464
      %v6466 = vpop.f32.mrf.mxu0
      %6467 = vdwg.mxu0
      %v6468 = vadd.f32 %v6305, %v6394
      %v6469 = vadd.f32 %v6306, %v6396
      %v6470 = vadd.f32 %v6307, %v6465
      %v6471 = vld [vmem:[%s7] sm:$0xff]
      %6473 = vset.pattern.permute.xlu0 0
      %6474 = vperm.xlu0 %6473, %v6471
      %v6475 = vpop.permute.xlu0 %6474
      %v6477 = vadd.f32 %v6468, %v6475
      %v6478 = vadd.f32 %v6469, %v6475
      %v6479 = vadd.f32 %v6470, %v6475
      %v6480 = vmax.f32 %v6477, 0.0
      %v6481 = vmax.f32 %v6478, 0.0
      %v6482 = vmax.f32 %v6479, 0.0
      %6483 = vst [vmem:[%s359 + $0x30] sm:$0xff] %v6480
      %6484 = vst [vmem:[%s359 + $0x38] sm:$0xff] %v6481
      %6485 = vst [vmem:[%s359 + $0x40] sm:$0xff] %v6482
      %p6486 = scmp.lt.s32.totalorder %s21, 1
      %s6487 = scalar_select %p6486, %s21, 1
      %s6488 = smul.addr %s6487, 12
      %s6489 = smul.addr %s6488, 8
      %s6490 = scalar_lea.vmem %s10, %s6489
      // Predicated region
      $region61: #{inception_forward.1} parent=59 // pred_check
        %p6491 = pneg %p254
      $region62: #{inception_forward.1} parent=59 // pred_check_branch
        %6493 = sbr.rel (%p6491) target = $region64
      $region63: #{inception_forward.1} parent=59 // pred_region
        _
      $region64: #{inception_forward.1} parent=59 // pred_fallthru
        _
    $region60: #{inception_forward.1} parent=5 // pred_fallthru
      _
    %p6494 = scmp.le.s32.totalorder 2, %s16
    // Predicated region
    $region65: #{inception_forward.1} parent=5 // pred_check
      %p6495 = pneg %p6494
    $region66: #{inception_forward.1} parent=5 // pred_check_branch
      %6497 = sbr.rel (%p6495) target = $region68
    $region67: #{inception_forward.1} parent=5 // pred_region
      %s6498 = ssub.s32 %s16, 2
      // Predicated region
      $region69: #{inception_forward.1} parent=67 // pred_check
        %p6499 = pneg %p260
      $region70: #{inception_forward.1} parent=67 // pred_check_branch
        %6501 = sbr.rel (%p6499) target = $region72
      $region71: #{inception_forward.1} parent=67 // pred_region
        %p6502 = scmp.lt.s32.totalorder %s22, 1
        %s6503 = scalar_select %p6502, %s22, 1
        %s6504 = smul.addr %s6503, 12
        %s6505 = smul.addr %s6504, 8
        %s6506 = scalar_lea.vmem %s10, %s6505
      $region72: #{inception_forward.1} parent=67 // pred_fallthru
        _
    $region68: #{inception_forward.1} parent=5 // pred_fallthru
      _
  $region6: #{inception_forward.1} parent=0 // loop_footer
    %s20 = sadd.s32 1, %s16
  $region7: #{inception_forward.1} parent=0 // loop_footer_branch
    %15 = sbr.rel target = $region3
  $region8: #{inception_forward.1} parent=0 // loop_exit
    _

</llo_original>
